<compile_context>
chip_gen: v6e
topology: v6e:2x2x1
jax: 0.10.0
libtpu: 0.0.40
codegen_flags: <defaults>
</compile_context>

<pallas_src>
import jax
import jax.numpy as jnp
from jax.experimental import pallas as pl
from jax.experimental.pallas import tpu as pltpu

LANE = 128  # pad all output-channel / feature dims to one full lane register


# ---------------------------------------------------------------------------
# Pallas kernels
# ---------------------------------------------------------------------------
def _conv_relu_pool_kernel(c00_ref, c01_ref, c10_ref, c11_ref, w_ref, b_ref,
                           o_ref):
    """Fused conv (4 pool-corner matmuls) + bias + ReLU + 2x2/2 max-pool.

    c??_ref : (1, Mp, K)   bf16  im2col patches for each 2x2-pool corner
    w_ref   : (K, 128)     bf16  weight matrix, out-channels zero-padded to 128
    b_ref   : (1, 128)     f32   bias, zero-padded
    o_ref   : (1, Mp, 128) bf16  pooled activations (lane-dense store)
    """
    w = w_ref[...]
    acc = jnp.dot(c00_ref[0], w, preferred_element_type=jnp.float32)
    acc = jnp.maximum(acc, jnp.dot(c01_ref[0], w,
                                   preferred_element_type=jnp.float32))
    acc = jnp.maximum(acc, jnp.dot(c10_ref[0], w,
                                   preferred_element_type=jnp.float32))
    acc = jnp.maximum(acc, jnp.dot(c11_ref[0], w,
                                   preferred_element_type=jnp.float32))
    # f32 epilogue: maxpool(relu(conv + b)) == relu(max_corners(conv) + b).
    out = jnp.maximum(acc + b_ref[...], 0.0)
    o_ref[0] = out.astype(o_ref.dtype)


def _classifier_kernel(x_ref, w1_ref, b1_ref, w2_ref, b2_ref, w3_ref, b3_ref,
                       o_ref):
    """Fused Linear(400->120)+ReLU -> Linear(120->84)+ReLU -> Linear(84->10).

    All widths are zero-padded to 128 lanes; intermediates never leave VMEM.
    x_ref : (B, 3200) bf16   w*: (K,128) bf16   b*: (1,128) f32   o: (B,128) f32
    """
    h = jnp.dot(x_ref[...], w1_ref[...], preferred_element_type=jnp.float32)
    h = jnp.maximum(h + b1_ref[...], 0.0)
    h = jnp.dot(h.astype(jnp.bfloat16), w2_ref[...],
                preferred_element_type=jnp.float32)
    h = jnp.maximum(h + b2_ref[...], 0.0)
    h = jnp.dot(h.astype(jnp.bfloat16), w3_ref[...],
                preferred_element_type=jnp.float32)
    o_ref[...] = (h + b3_ref[...]).astype(o_ref.dtype)


# ---------------------------------------------------------------------------
# Pallas wrappers
# ---------------------------------------------------------------------------
def conv_relu_pool(x_nhwc, w_mat, b_row, k=5):
    """Conv2d(k=5, stride=1, pad=0) + ReLU + MaxPool2d(2,2), fused.

    x_nhwc : (B, H, W, C) bf16 (C is the padded channel width of the producer)
    w_mat  : (k*k*C, 128) bf16
    b_row  : (1, 128)     f32
    returns: (B, POH, POW, 128) bf16
    """
    B, H, W, C = x_nhwc.shape
    OH, OW = H - k + 1, W - k + 1
    POH, POW = OH // 2, OW // 2
    K = k * k * C
    Np = w_mat.shape[1]
    Mp = POH * POW

    # TODO(synk): corner im2col extraction stays as XLA strided-slice glue; at
    # large batch this gather should move in-kernel via scalar-prefetch offsets.
    def corner(di, dj):
        pieces = []
        for kh in range(k):
            for kw in range(k):
                hs = di + kh
                ws = dj + kw
                pieces.append(
                    x_nhwc[:, hs:hs + 2 * (POH - 1) + 1:2,
                              ws:ws + 2 * (POW - 1) + 1:2, :])
        p = jnp.stack(pieces, axis=3)            # (B, POH, POW, k*k, C)
        return p.reshape(B, Mp, K)               # column order = (kh, kw, c)

    corners = [corner(0, 0), corner(0, 1), corner(1, 0), corner(1, 1)]

    out = pl.pallas_call(
        _conv_relu_pool_kernel,
        out_shape=jax.ShapeDtypeStruct((B, Mp, Np), jnp.bfloat16),
        grid=(B,),
        in_specs=[pl.BlockSpec((1, Mp, K), lambda b: (b, 0, 0))] * 4
        + [
            pl.BlockSpec((K, Np), lambda b: (0, 0)),
            pl.BlockSpec((1, Np), lambda b: (0, 0)),
        ],
        out_specs=pl.BlockSpec((1, Mp, Np), lambda b: (b, 0, 0)),
        compiler_params=pltpu.CompilerParams(
            dimension_semantics=("parallel",)),
    )(*corners, w_mat, b_row)
    return out.reshape(B, POH, POW, Np)


def classifier(x2d, w1, b1, w2, b2, w3, b3):
    """Fused 3-layer MLP head. x2d: (B, 3200) bf16 -> (B, 128) f32."""
    B, K1 = x2d.shape
    N = w1.shape[1]
    return pl.pallas_call(
        _classifier_kernel,
        out_shape=jax.ShapeDtypeStruct((B, N), jnp.float32),
        grid=(1,),
        in_specs=[
            pl.BlockSpec((B, K1), lambda i: (0, 0)),
            pl.BlockSpec(w1.shape, lambda i: (0, 0)),
            pl.BlockSpec(b1.shape, lambda i: (0, 0)),
            pl.BlockSpec(w2.shape, lambda i: (0, 0)),
            pl.BlockSpec(b2.shape, lambda i: (0, 0)),
            pl.BlockSpec(w3.shape, lambda i: (0, 0)),
            pl.BlockSpec(b3.shape, lambda i: (0, 0)),
        ],
        out_specs=pl.BlockSpec((B, N), lambda i: (0, 0)),
    )(x2d, w1, b1, w2, b2, w3, b3)


# ---------------------------------------------------------------------------
# Parameters: PyTorch-style init, then one-time repack (pad/permute/bf16 cast)
# ---------------------------------------------------------------------------
def init_params(key):
    ks = jax.random.split(key, 10)

    def u(k, shape, fan_in):
        bound = 1.0 / jnp.sqrt(fan_in)
        return jax.random.uniform(k, shape, jnp.float32, -bound, bound)

    return {
        "conv1_w": u(ks[0], (6, 1, 5, 5), 1 * 5 * 5),
        "conv1_b": u(ks[1], (6,), 1 * 5 * 5),
        "conv2_w": u(ks[2], (16, 6, 5, 5), 6 * 5 * 5),
        "conv2_b": u(ks[3], (16,), 6 * 5 * 5),
        "fc1_w": u(ks[4], (120, 400), 400),
        "fc1_b": u(ks[5], (120,), 400),
        "fc2_w": u(ks[6], (84, 120), 120),
        "fc2_b": u(ks[7], (84,), 120),
        "fc3_w": u(ks[8], (10, 84), 84),
        "fc3_b": u(ks[9], (10,), 84),
    }


def prepare_params(p):
    """One-time repack into kernel-ready layouts (done outside the fwd pass)."""

    def pack_conv_w(w, cin_pad):
        oc, c, kh, kw = w.shape
        wt = jnp.transpose(w, (2, 3, 1, 0))                  # (kh, kw, c, oc)
        wt = jnp.pad(wt, ((0, 0), (0, 0),
                          (0, cin_pad - c), (0, LANE - oc)))
        return wt.reshape(kh * kw * cin_pad, LANE).astype(jnp.bfloat16)

    def pack_bias(b):
        return jnp.pad(b, (0, LANE - b.shape[0])).reshape(1, LANE).astype(
            jnp.float32)

    # fc1 columns permuted once to the NHWC (h, w, c_pad) flatten order.
    w1 = p["fc1_w"].reshape(120, 16, 5, 5)                   # (oc, c, h, w)
    w1 = jnp.transpose(w1, (2, 3, 1, 0))                     # (h, w, c, oc)
    w1 = jnp.pad(w1, ((0, 0), (0, 0), (0, LANE - 16), (0, LANE - 120)))
    w1 = w1.reshape(5 * 5 * LANE, LANE).astype(jnp.bfloat16)

    def pack_fc(w):                                          # (out, in) -> padded (in,128)
        wi = jnp.transpose(w, (1, 0))
        wi = jnp.pad(wi, ((0, LANE - wi.shape[0]), (0, LANE - wi.shape[1])))
        return wi.astype(jnp.bfloat16)

    return {
        "c1_w": pack_conv_w(p["conv1_w"], cin_pad=1),        # (25, 128)
        "c1_b": pack_bias(p["conv1_b"]),
        "c2_w": pack_conv_w(p["conv2_w"], cin_pad=LANE),     # (3200, 128)
        "c2_b": pack_bias(p["conv2_b"]),
        "fc1_w": w1,                                         # (3200, 128)
        "fc1_b": pack_bias(p["fc1_b"]),
        "fc2_w": pack_fc(p["fc2_w"]),                        # (128, 128)
        "fc2_b": pack_bias(p["fc2_b"]),
        "fc3_w": pack_fc(p["fc3_w"]),                        # (128, 128)
        "fc3_b": pack_bias(p["fc3_b"]),
    }


# ---------------------------------------------------------------------------
# Forward pass (matches PyTorch LeNet semantics on NCHW input)
# ---------------------------------------------------------------------------
def lenet_forward(prep, x):
    # x: (B, 1, 32, 32) NCHW f32  ->  NHWC bf16 once at the top.
    xh = jnp.transpose(x, (0, 2, 3, 1)).astype(jnp.bfloat16)     # (B,32,32,1)
    h = conv_relu_pool(xh, prep["c1_w"], prep["c1_b"])           # (B,14,14,128)
    h = conv_relu_pool(h, prep["c2_w"], prep["c2_b"])            # (B,5,5,128)
    B = h.shape[0]
    # Lane-dense flatten (padded channels carried; fc1_w rows match this order).
    h = h.reshape(B, 5 * 5 * LANE)                               # (B, 3200)
    out = classifier(h, prep["fc1_w"], prep["fc1_b"],
                     prep["fc2_w"], prep["fc2_b"],
                     prep["fc3_w"], prep["fc3_b"])               # (B, 128) f32
    return out[:, :10]


if __name__ == "__main__":
    key = jax.random.PRNGKey(0)
    pkey, xkey = jax.random.split(key)
    params = init_params(pkey)
    prep = prepare_params(params)
    # LeNet classic input: 1x32x32 images (400 = 16*5*5 flatten requires 32x32).
    x = jax.random.normal(xkey, (2, 1, 32, 32), jnp.float32)

    out = jax.jit(lenet_forward)(prep, x)
    out = jax.block_until_ready(out)
    assert out.shape == (2, 10), out.shape
    print("KERNEL_OK")
</pallas_src>

<mosaic_0001>
module attributes {stable_mosaic.version = 11 : i64} {
  func.func @_conv_relu_pool_kernel(%arg0: i32, %arg1: memref<1x196x25xbf16, #tpu.memory_space<vmem>>, %arg2: memref<1x196x25xbf16, #tpu.memory_space<vmem>>, %arg3: memref<1x196x25xbf16, #tpu.memory_space<vmem>>, %arg4: memref<1x196x25xbf16, #tpu.memory_space<vmem>>, %arg5: memref<25x128xbf16, #tpu.memory_space<vmem>>, %arg6: memref<1x128xf32, #tpu.memory_space<vmem>>, %arg7: memref<1x196x128xbf16, #tpu.memory_space<vmem>>) attributes {dimension_semantics = [#tpu.dimension_semantics<parallel>], iteration_bounds = array<i64: 2>, scalar_prefetch = 0 : i64, scratch_operands = 0 : i64, tpu.core_type = #tpu.core_type<tc>, window_params = [{transform_indices = @transform_0, window_bounds = array<i64: 1, 196, 25>}, {transform_indices = @transform_1, window_bounds = array<i64: 1, 196, 25>}, {transform_indices = @transform_2, window_bounds = array<i64: 1, 196, 25>}, {transform_indices = @transform_3, window_bounds = array<i64: 1, 196, 25>}, {pipeline_mode = #tpu.pipeline_mode<synchronous>, transform_indices = @transform_4, window_bounds = array<i64: 25, 128>}, {pipeline_mode = #tpu.pipeline_mode<synchronous>, transform_indices = @transform_5, window_bounds = array<i64: 1, 128>}, {transform_indices = @transform_6, window_bounds = array<i64: 1, 196, 128>}]} {
    %c0 = arith.constant 0 : index
    %c0_0 = arith.constant 0 : index
    %0 = vector.load %arg5[%c0, %c0_0] : memref<25x128xbf16, #tpu.memory_space<vmem>>, vector<25x128xbf16>
    %c0_1 = arith.constant 0 : index
    %c0_2 = arith.constant 0 : index
    %c0_3 = arith.constant 0 : index
    %1 = vector.load %arg1[%c0_1, %c0_2, %c0_3] : memref<1x196x25xbf16, #tpu.memory_space<vmem>>, vector<1x196x25xbf16>
    %2 = vector.shape_cast %1 : vector<1x196x25xbf16> to vector<196x25xbf16>
    %cst = arith.constant dense<0.000000e+00> : vector<196x128xf32>
    %3 = tpu.matmul %2, %0, %cst {dimension_numbers = #tpu.dot_dimension_numbers<[1], [0], [0], [1], [0, 0, 1, 1], [], []>} : vector<196x25xbf16>, vector<25x128xbf16>, vector<196x128xf32> -> vector<196x128xf32>
    %c0_4 = arith.constant 0 : index
    %c0_5 = arith.constant 0 : index
    %c0_6 = arith.constant 0 : index
    %4 = vector.load %arg2[%c0_4, %c0_5, %c0_6] : memref<1x196x25xbf16, #tpu.memory_space<vmem>>, vector<1x196x25xbf16>
    %5 = vector.shape_cast %4 : vector<1x196x25xbf16> to vector<196x25xbf16>
    %cst_7 = arith.constant dense<0.000000e+00> : vector<196x128xf32>
    %6 = tpu.matmul %5, %0, %cst_7 {dimension_numbers = #tpu.dot_dimension_numbers<[1], [0], [0], [1], [0, 0, 1, 1], [], []>} : vector<196x25xbf16>, vector<25x128xbf16>, vector<196x128xf32> -> vector<196x128xf32>
    %7 = arith.maximumf %3, %6 : vector<196x128xf32>
    %c0_8 = arith.constant 0 : index
    %c0_9 = arith.constant 0 : index
    %c0_10 = arith.constant 0 : index
    %8 = vector.load %arg3[%c0_8, %c0_9, %c0_10] : memref<1x196x25xbf16, #tpu.memory_space<vmem>>, vector<1x196x25xbf16>
    %9 = vector.shape_cast %8 : vector<1x196x25xbf16> to vector<196x25xbf16>
    %cst_11 = arith.constant dense<0.000000e+00> : vector<196x128xf32>
    %10 = tpu.matmul %9, %0, %cst_11 {dimension_numbers = #tpu.dot_dimension_numbers<[1], [0], [0], [1], [0, 0, 1, 1], [], []>} : vector<196x25xbf16>, vector<25x128xbf16>, vector<196x128xf32> -> vector<196x128xf32>
    %11 = arith.maximumf %7, %10 : vector<196x128xf32>
    %c0_12 = arith.constant 0 : index
    %c0_13 = arith.constant 0 : index
    %c0_14 = arith.constant 0 : index
    %12 = vector.load %arg4[%c0_12, %c0_13, %c0_14] : memref<1x196x25xbf16, #tpu.memory_space<vmem>>, vector<1x196x25xbf16>
    %13 = vector.shape_cast %12 : vector<1x196x25xbf16> to vector<196x25xbf16>
    %cst_15 = arith.constant dense<0.000000e+00> : vector<196x128xf32>
    %14 = tpu.matmul %13, %0, %cst_15 {dimension_numbers = #tpu.dot_dimension_numbers<[1], [0], [0], [1], [0, 0, 1, 1], [], []>} : vector<196x25xbf16>, vector<25x128xbf16>, vector<196x128xf32> -> vector<196x128xf32>
    %15 = arith.maximumf %11, %14 : vector<196x128xf32>
    %c0_16 = arith.constant 0 : index
    %c0_17 = arith.constant 0 : index
    %16 = vector.load %arg6[%c0_16, %c0_17] : memref<1x128xf32, #tpu.memory_space<vmem>>, vector<1x128xf32>
    %17 = vector.broadcast %16 : vector<1x128xf32> to vector<196x128xf32>
    %18 = arith.addf %15, %17 : vector<196x128xf32>
    %cst_18 = arith.constant 0.000000e+00 : f32
    %19 = vector.broadcast %cst_18 : f32 to vector<196x128xf32>
    %20 = arith.maximumf %18, %19 : vector<196x128xf32>
    %21 = arith.truncf %20 : vector<196x128xf32> to vector<196x128xbf16>
    %c0_19 = arith.constant 0 : index
    %c0_20 = arith.constant 0 : index
    %c0_21 = arith.constant 0 : index
    %22 = vector.load %arg7[%c0_19, %c0_20, %c0_21] : memref<1x196x128xbf16, #tpu.memory_space<vmem>>, vector<1x196x128xbf16>
    %23 = vector.shape_cast %22 : vector<1x196x128xbf16> to vector<196x128xbf16>
    %24 = vector.shape_cast %21 : vector<196x128xbf16> to vector<1x196x128xbf16>
    tpu.vector_store %arg7[%c0_19, %c0_20, %c0_21], %24 {strides = array<i32>} : memref<1x196x128xbf16, #tpu.memory_space<vmem>>, vector<1x196x128xbf16>,
    return
  }
  func.func @transform_0(%arg0: i32) -> (i32, i32, i32) {
    %c0_i32 = arith.constant 0 : i32
    %c0_i32_0 = arith.constant 0 : i32
    %c0_i32_1 = arith.constant 0 : i32
    return %arg0, %c0_i32, %c0_i32_0 : i32, i32, i32
  }
  func.func @transform_1(%arg0: i32) -> (i32, i32, i32) {
    %c0_i32 = arith.constant 0 : i32
    %c0_i32_0 = arith.constant 0 : i32
    %c0_i32_1 = arith.constant 0 : i32
    return %arg0, %c0_i32, %c0_i32_0 : i32, i32, i32
  }
  func.func @transform_2(%arg0: i32) -> (i32, i32, i32) {
    %c0_i32 = arith.constant 0 : i32
    %c0_i32_0 = arith.constant 0 : i32
    %c0_i32_1 = arith.constant 0 : i32
    return %arg0, %c0_i32, %c0_i32_0 : i32, i32, i32
  }
  func.func @transform_3(%arg0: i32) -> (i32, i32, i32) {
    %c0_i32 = arith.constant 0 : i32
    %c0_i32_0 = arith.constant 0 : i32
    %c0_i32_1 = arith.constant 0 : i32
    return %arg0, %c0_i32, %c0_i32_0 : i32, i32, i32
  }
  func.func @transform_4(%arg0: i32) -> (i32, i32) {
    %c0_i32 = arith.constant 0 : i32
    %c0_i32_0 = arith.constant 0 : i32
    %c0_i32_1 = arith.constant 0 : i32
    return %c0_i32, %c0_i32_0 : i32, i32
  }
  func.func @transform_5(%arg0: i32) -> (i32, i32) {
    %c0_i32 = arith.constant 0 : i32
    %c0_i32_0 = arith.constant 0 : i32
    %c0_i32_1 = arith.constant 0 : i32
    return %c0_i32, %c0_i32_0 : i32, i32
  }
  func.func @transform_6(%arg0: i32) -> (i32, i32, i32) {
    %c0_i32 = arith.constant 0 : i32
    %c0_i32_0 = arith.constant 0 : i32
    %c0_i32_1 = arith.constant 0 : i32
    return %arg0, %c0_i32, %c0_i32_0 : i32, i32, i32
  }
}

module attributes {stable_mosaic.version = 11 : i64} {
  func.func @_classifier_kernel(%arg0: i32, %arg1: memref<2x3200xbf16, #tpu.memory_space<vmem>>, %arg2: memref<3200x128xbf16, #tpu.memory_space<vmem>>, %arg3: memref<1x128xf32, #tpu.memory_space<vmem>>, %arg4: memref<128x128xbf16, #tpu.memory_space<vmem>>, %arg5: memref<1x128xf32, #tpu.memory_space<vmem>>, %arg6: memref<128x128xbf16, #tpu.memory_space<vmem>>, %arg7: memref<1x128xf32, #tpu.memory_space<vmem>>, %arg8: memref<2x128xf32, #tpu.memory_space<vmem>>) attributes {dimension_semantics = [#tpu.dimension_semantics<arbitrary>], iteration_bounds = array<i64: 1>, scalar_prefetch = 0 : i64, scratch_operands = 0 : i64, tpu.core_type = #tpu.core_type<tc>, window_params = [{pipeline_mode = #tpu.pipeline_mode<synchronous>, transform_indices = @transform_0, window_bounds = array<i64: 2, 3200>}, {pipeline_mode = #tpu.pipeline_mode<synchronous>, transform_indices = @transform_1, window_bounds = array<i64: 3200, 128>}, {pipeline_mode = #tpu.pipeline_mode<synchronous>, transform_indices = @transform_2, window_bounds = array<i64: 1, 128>}, {pipeline_mode = #tpu.pipeline_mode<synchronous>, transform_indices = @transform_3, window_bounds = array<i64: 128, 128>}, {pipeline_mode = #tpu.pipeline_mode<synchronous>, transform_indices = @transform_4, window_bounds = array<i64: 1, 128>}, {pipeline_mode = #tpu.pipeline_mode<synchronous>, transform_indices = @transform_5, window_bounds = array<i64: 128, 128>}, {pipeline_mode = #tpu.pipeline_mode<synchronous>, transform_indices = @transform_6, window_bounds = array<i64: 1, 128>}, {pipeline_mode = #tpu.pipeline_mode<synchronous>, transform_indices = @transform_7, window_bounds = array<i64: 2, 128>}]} {
    %c0 = arith.constant 0 : index
    %c0_0 = arith.constant 0 : index
    %0 = vector.load %arg1[%c0, %c0_0] : memref<2x3200xbf16, #tpu.memory_space<vmem>>, vector<2x3200xbf16>
    %c0_1 = arith.constant 0 : index
    %c0_2 = arith.constant 0 : index
    %1 = vector.load %arg2[%c0_1, %c0_2] : memref<3200x128xbf16, #tpu.memory_space<vmem>>, vector<3200x128xbf16>
    %cst = arith.constant dense<0.000000e+00> : vector<2x128xf32>
    %2 = tpu.matmul %0, %1, %cst {dimension_numbers = #tpu.dot_dimension_numbers<[1], [0], [0], [1], [0, 0, 1, 1], [], []>} : vector<2x3200xbf16>, vector<3200x128xbf16>, vector<2x128xf32> -> vector<2x128xf32>
    %c0_3 = arith.constant 0 : index
    %c0_4 = arith.constant 0 : index
    %3 = vector.load %arg3[%c0_3, %c0_4] : memref<1x128xf32, #tpu.memory_space<vmem>>, vector<1x128xf32>
    %4 = vector.broadcast %3 : vector<1x128xf32> to vector<2x128xf32>
    %5 = arith.addf %2, %4 : vector<2x128xf32>
    %cst_5 = arith.constant 0.000000e+00 : f32
    %6 = vector.broadcast %cst_5 : f32 to vector<2x128xf32>
    %7 = arith.maximumf %5, %6 : vector<2x128xf32>
    %8 = arith.truncf %7 : vector<2x128xf32> to vector<2x128xbf16>
    %c0_6 = arith.constant 0 : index
    %c0_7 = arith.constant 0 : index
    %9 = vector.load %arg4[%c0_6, %c0_7] : memref<128x128xbf16, #tpu.memory_space<vmem>>, vector<128x128xbf16>
    %cst_8 = arith.constant dense<0.000000e+00> : vector<2x128xf32>
    %10 = tpu.matmul %8, %9, %cst_8 {dimension_numbers = #tpu.dot_dimension_numbers<[1], [0], [0], [1], [0, 0, 1, 1], [], []>} : vector<2x128xbf16>, vector<128x128xbf16>, vector<2x128xf32> -> vector<2x128xf32>
    %c0_9 = arith.constant 0 : index
    %c0_10 = arith.constant 0 : index
    %11 = vector.load %arg5[%c0_9, %c0_10] : memref<1x128xf32, #tpu.memory_space<vmem>>, vector<1x128xf32>
    %12 = vector.broadcast %11 : vector<1x128xf32> to vector<2x128xf32>
    %13 = arith.addf %10, %12 : vector<2x128xf32>
    %cst_11 = arith.constant 0.000000e+00 : f32
    %14 = vector.broadcast %cst_11 : f32 to vector<2x128xf32>
    %15 = arith.maximumf %13, %14 : vector<2x128xf32>
    %16 = arith.truncf %15 : vector<2x128xf32> to vector<2x128xbf16>
    %c0_12 = arith.constant 0 : index
    %c0_13 = arith.constant 0 : index
    %17 = vector.load %arg6[%c0_12, %c0_13] : memref<128x128xbf16, #tpu.memory_space<vmem>>, vector<128x128xbf16>
    %cst_14 = arith.constant dense<0.000000e+00> : vector<2x128xf32>
    %18 = tpu.matmul %16, %17, %cst_14 {dimension_numbers = #tpu.dot_dimension_numbers<[1], [0], [0], [1], [0, 0, 1, 1], [], []>} : vector<2x128xbf16>, vector<128x128xbf16>, vector<2x128xf32> -> vector<2x128xf32>
    %c0_15 = arith.constant 0 : index
    %c0_16 = arith.constant 0 : index
    %19 = vector.load %arg7[%c0_15, %c0_16] : memref<1x128xf32, #tpu.memory_space<vmem>>, vector<1x128xf32>
    %20 = vector.broadcast %19 : vector<1x128xf32> to vector<2x128xf32>
    %21 = arith.addf %18, %20 : vector<2x128xf32>
    %c0_17 = arith.constant 0 : index
    %c0_18 = arith.constant 0 : index
    %22 = vector.load %arg8[%c0_17, %c0_18] : memref<2x128xf32, #tpu.memory_space<vmem>>, vector<2x128xf32>
    tpu.vector_store %arg8[%c0_17, %c0_18], %21 {strides = array<i32>} : memref<2x128xf32, #tpu.memory_space<vmem>>, vector<2x128xf32>,
    return
  }
  func.func @transform_0(%arg0: i32) -> (i32, i32) {
    %c0_i32 = arith.constant 0 : i32
    %c0_i32_0 = arith.constant 0 : i32
    %c0_i32_1 = arith.constant 0 : i32
    return %c0_i32, %c0_i32_0 : i32, i32
  }
  func.func @transform_1(%arg0: i32) -> (i32, i32) {
    %c0_i32 = arith.constant 0 : i32
    %c0_i32_0 = arith.constant 0 : i32
    %c0_i32_1 = arith.constant 0 : i32
    return %c0_i32, %c0_i32_0 : i32, i32
  }
  func.func @transform_2(%arg0: i32) -> (i32, i32) {
    %c0_i32 = arith.constant 0 : i32
    %c0_i32_0 = arith.constant 0 : i32
    %c0_i32_1 = arith.constant 0 : i32
    return %c0_i32, %c0_i32_0 : i32, i32
  }
  func.func @transform_3(%arg0: i32) -> (i32, i32) {
    %c0_i32 = arith.constant 0 : i32
    %c0_i32_0 = arith.constant 0 : i32
    %c0_i32_1 = arith.constant 0 : i32
    return %c0_i32, %c0_i32_0 : i32, i32
  }
  func.func @transform_4(%arg0: i32) -> (i32, i32) {
    %c0_i32 = arith.constant 0 : i32
    %c0_i32_0 = arith.constant 0 : i32
    %c0_i32_1 = arith.constant 0 : i32
    return %c0_i32, %c0_i32_0 : i32, i32
  }
  func.func @transform_5(%arg0: i32) -> (i32, i32) {
    %c0_i32 = arith.constant 0 : i32
    %c0_i32_0 = arith.constant 0 : i32
    %c0_i32_1 = arith.constant 0 : i32
    return %c0_i32, %c0_i32_0 : i32, i32
  }
  func.func @transform_6(%arg0: i32) -> (i32, i32) {
    %c0_i32 = arith.constant 0 : i32
    %c0_i32_0 = arith.constant 0 : i32
    %c0_i32_1 = arith.constant 0 : i32
    return %c0_i32, %c0_i32_0 : i32, i32
  }
  func.func @transform_7(%arg0: i32) -> (i32, i32) {
    %c0_i32 = arith.constant 0 : i32
    %c0_i32_0 = arith.constant 0 : i32
    %c0_i32_1 = arith.constant 0 : i32
    return %c0_i32, %c0_i32_0 : i32, i32
  }
}

module attributes {stable_mosaic.version = 11 : i64} {
  func.func @_conv_relu_pool_kernel(%arg0: i32, %arg1: memref<1x25x3200xbf16, #tpu.memory_space<vmem>>, %arg2: memref<1x25x3200xbf16, #tpu.memory_space<vmem>>, %arg3: memref<1x25x3200xbf16, #tpu.memory_space<vmem>>, %arg4: memref<1x25x3200xbf16, #tpu.memory_space<vmem>>, %arg5: memref<3200x128xbf16, #tpu.memory_space<vmem>>, %arg6: memref<1x128xf32, #tpu.memory_space<vmem>>, %arg7: memref<1x25x128xbf16, #tpu.memory_space<vmem>>) attributes {dimension_semantics = [#tpu.dimension_semantics<parallel>], iteration_bounds = array<i64: 2>, scalar_prefetch = 0 : i64, scratch_operands = 0 : i64, tpu.core_type = #tpu.core_type<tc>, window_params = [{transform_indices = @transform_0, window_bounds = array<i64: 1, 25, 3200>}, {transform_indices = @transform_1, window_bounds = array<i64: 1, 25, 3200>}, {transform_indices = @transform_2, window_bounds = array<i64: 1, 25, 3200>}, {transform_indices = @transform_3, window_bounds = array<i64: 1, 25, 3200>}, {pipeline_mode = #tpu.pipeline_mode<synchronous>, transform_indices = @transform_4, window_bounds = array<i64: 3200, 128>}, {pipeline_mode = #tpu.pipeline_mode<synchronous>, transform_indices = @transform_5, window_bounds = array<i64: 1, 128>}, {transform_indices = @transform_6, window_bounds = array<i64: 1, 25, 128>}]} {
    %c0 = arith.constant 0 : index
    %c0_0 = arith.constant 0 : index
    %0 = vector.load %arg5[%c0, %c0_0] : memref<3200x128xbf16, #tpu.memory_space<vmem>>, vector<3200x128xbf16>
    %c0_1 = arith.constant 0 : index
    %c0_2 = arith.constant 0 : index
    %c0_3 = arith.constant 0 : index
    %1 = vector.load %arg1[%c0_1, %c0_2, %c0_3] : memref<1x25x3200xbf16, #tpu.memory_space<vmem>>, vector<1x25x3200xbf16>
    %2 = vector.shape_cast %1 : vector<1x25x3200xbf16> to vector<25x3200xbf16>
    %cst = arith.constant dense<0.000000e+00> : vector<25x128xf32>
    %3 = tpu.matmul %2, %0, %cst {dimension_numbers = #tpu.dot_dimension_numbers<[1], [0], [0], [1], [0, 0, 1, 1], [], []>} : vector<25x3200xbf16>, vector<3200x128xbf16>, vector<25x128xf32> -> vector<25x128xf32>
    %c0_4 = arith.constant 0 : index
    %c0_5 = arith.constant 0 : index
    %c0_6 = arith.constant 0 : index
    %4 = vector.load %arg2[%c0_4, %c0_5, %c0_6] : memref<1x25x3200xbf16, #tpu.memory_space<vmem>>, vector<1x25x3200xbf16>
    %5 = vector.shape_cast %4 : vector<1x25x3200xbf16> to vector<25x3200xbf16>
    %cst_7 = arith.constant dense<0.000000e+00> : vector<25x128xf32>
    %6 = tpu.matmul %5, %0, %cst_7 {dimension_numbers = #tpu.dot_dimension_numbers<[1], [0], [0], [1], [0, 0, 1, 1], [], []>} : vector<25x3200xbf16>, vector<3200x128xbf16>, vector<25x128xf32> -> vector<25x128xf32>
    %7 = arith.maximumf %3, %6 : vector<25x128xf32>
    %c0_8 = arith.constant 0 : index
    %c0_9 = arith.constant 0 : index
    %c0_10 = arith.constant 0 : index
    %8 = vector.load %arg3[%c0_8, %c0_9, %c0_10] : memref<1x25x3200xbf16, #tpu.memory_space<vmem>>, vector<1x25x3200xbf16>
    %9 = vector.shape_cast %8 : vector<1x25x3200xbf16> to vector<25x3200xbf16>
    %cst_11 = arith.constant dense<0.000000e+00> : vector<25x128xf32>
    %10 = tpu.matmul %9, %0, %cst_11 {dimension_numbers = #tpu.dot_dimension_numbers<[1], [0], [0], [1], [0, 0, 1, 1], [], []>} : vector<25x3200xbf16>, vector<3200x128xbf16>, vector<25x128xf32> -> vector<25x128xf32>
    %11 = arith.maximumf %7, %10 : vector<25x128xf32>
    %c0_12 = arith.constant 0 : index
    %c0_13 = arith.constant 0 : index
    %c0_14 = arith.constant 0 : index
    %12 = vector.load %arg4[%c0_12, %c0_13, %c0_14] : memref<1x25x3200xbf16, #tpu.memory_space<vmem>>, vector<1x25x3200xbf16>
    %13 = vector.shape_cast %12 : vector<1x25x3200xbf16> to vector<25x3200xbf16>
    %cst_15 = arith.constant dense<0.000000e+00> : vector<25x128xf32>
    %14 = tpu.matmul %13, %0, %cst_15 {dimension_numbers = #tpu.dot_dimension_numbers<[1], [0], [0], [1], [0, 0, 1, 1], [], []>} : vector<25x3200xbf16>, vector<3200x128xbf16>, vector<25x128xf32> -> vector<25x128xf32>
    %15 = arith.maximumf %11, %14 : vector<25x128xf32>
    %c0_16 = arith.constant 0 : index
    %c0_17 = arith.constant 0 : index
    %16 = vector.load %arg6[%c0_16, %c0_17] : memref<1x128xf32, #tpu.memory_space<vmem>>, vector<1x128xf32>
    %17 = vector.broadcast %16 : vector<1x128xf32> to vector<25x128xf32>
    %18 = arith.addf %15, %17 : vector<25x128xf32>
    %cst_18 = arith.constant 0.000000e+00 : f32
    %19 = vector.broadcast %cst_18 : f32 to vector<25x128xf32>
    %20 = arith.maximumf %18, %19 : vector<25x128xf32>
    %21 = arith.truncf %20 : vector<25x128xf32> to vector<25x128xbf16>
    %c0_19 = arith.constant 0 : index
    %c0_20 = arith.constant 0 : index
    %c0_21 = arith.constant 0 : index
    %22 = vector.load %arg7[%c0_19, %c0_20, %c0_21] : memref<1x25x128xbf16, #tpu.memory_space<vmem>>, vector<1x25x128xbf16>
    %23 = vector.shape_cast %22 : vector<1x25x128xbf16> to vector<25x128xbf16>
    %24 = vector.shape_cast %21 : vector<25x128xbf16> to vector<1x25x128xbf16>
    tpu.vector_store %arg7[%c0_19, %c0_20, %c0_21], %24 {strides = array<i32>} : memref<1x25x128xbf16, #tpu.memory_space<vmem>>, vector<1x25x128xbf16>,
    return
  }
  func.func @transform_0(%arg0: i32) -> (i32, i32, i32) {
    %c0_i32 = arith.constant 0 : i32
    %c0_i32_0 = arith.constant 0 : i32
    %c0_i32_1 = arith.constant 0 : i32
    return %arg0, %c0_i32, %c0_i32_0 : i32, i32, i32
  }
  func.func @transform_1(%arg0: i32) -> (i32, i32, i32) {
    %c0_i32 = arith.constant 0 : i32
    %c0_i32_0 = arith.constant 0 : i32
    %c0_i32_1 = arith.constant 0 : i32
    return %arg0, %c0_i32, %c0_i32_0 : i32, i32, i32
  }
  func.func @transform_2(%arg0: i32) -> (i32, i32, i32) {
    %c0_i32 = arith.constant 0 : i32
    %c0_i32_0 = arith.constant 0 : i32
    %c0_i32_1 = arith.constant 0 : i32
    return %arg0, %c0_i32, %c0_i32_0 : i32, i32, i32
  }
  func.func @transform_3(%arg0: i32) -> (i32, i32, i32) {
    %c0_i32 = arith.constant 0 : i32
    %c0_i32_0 = arith.constant 0 : i32
    %c0_i32_1 = arith.constant 0 : i32
    return %arg0, %c0_i32, %c0_i32_0 : i32, i32, i32
  }
  func.func @transform_4(%arg0: i32) -> (i32, i32) {
    %c0_i32 = arith.constant 0 : i32
    %c0_i32_0 = arith.constant 0 : i32
    %c0_i32_1 = arith.constant 0 : i32
    return %c0_i32, %c0_i32_0 : i32, i32
  }
  func.func @transform_5(%arg0: i32) -> (i32, i32) {
    %c0_i32 = arith.constant 0 : i32
    %c0_i32_0 = arith.constant 0 : i32
    %c0_i32_1 = arith.constant 0 : i32
    return %c0_i32, %c0_i32_0 : i32, i32
  }
  func.func @transform_6(%arg0: i32) -> (i32, i32, i32) {
    %c0_i32 = arith.constant 0 : i32
    %c0_i32_0 = arith.constant 0 : i32
    %c0_i32_1 = arith.constant 0 : i32
    return %arg0, %c0_i32, %c0_i32_0 : i32, i32, i32
  }
}

</mosaic_0001>

<llo_original>
// kernel: lenet_forward.3
$region0: #{lenet_forward.3}
  #allocation0 [shape = 'u32[]', space=smem, size = 0x4, offset = 0x4, fixed_abs, tag = 'smem constant byte address 0x4 - core index']
  #allocation1 [shape = 'u32[144,128]{1,0:T(1,128)}', space=vmem, size = 0x12000, scoped, tag = 'internal scratch']
  %s0 = inlined_call_operand.vmem [shape: bf16[2,196,25], index: 0, kind: input, shape index: {}]
  %s1 = inlined_call_operand.vmem [shape: bf16[2,196,25], index: 1, kind: input, shape index: {}]
  %s2 = inlined_call_operand.vmem [shape: bf16[2,196,25], index: 2, kind: input, shape index: {}]
  %s3 = inlined_call_operand.vmem [shape: bf16[2,196,25], index: 3, kind: input, shape index: {}]
  %s4 = inlined_call_operand.vmem [shape: bf16[25,128], index: 4, kind: input, shape index: {}]
  %s5 = inlined_call_operand.vmem [shape: f32[1,128], index: 5, kind: input, shape index: {}]
  %s6 = inlined_call_operand.vmem [shape: bf16[2,196,128], index: 6, kind: output, shape index: {}]
  %s7 = sld [smem:[#allocation0]]
  $region57: #{lenet_forward.3} parent=0
    _
  %s9 = ssub.s32 1, %s7
  %s10 = scalar_select 0, %s9, %s7
  loop: start=0, step=1, limit=4
  $region2: #{lenet_forward.3} parent=0 // loop_pre_header
    _
  $region3: #{lenet_forward.3} parent=0 // loop_header
    %s12 = sphi 0, %s16
    %p13 = scmp.ge.s32.totalorder %s12, 4
    %s22 = sphi 0, %s24
    %s25 = sphi 0, %s22
    %s26 = sphi 0, %s25
    %s42 = sphi 0, %s26
    %s48 = sphi 0, %s50
    %s51 = sphi 0, %s48
    %s52 = sphi 0, %s51
    %s68 = sphi 0, %s52
    %s74 = sphi 0, %s76
    %s77 = sphi 0, %s74
    %s78 = sphi 0, %s77
    %s94 = sphi 0, %s78
    %s100 = sphi 0, %s102
    %s103 = sphi 0, %s100
    %s104 = sphi 0, %s103
    %s120 = sphi 0, %s104
    %s124 = sphi 0, %s124
    %s126 = sphi 0, %s124
    %s127 = sphi 0, %s126
    %s141 = sphi 0, %s127
    %s145 = sphi 0, %s145
    %s147 = sphi 0, %s145
    %s148 = sphi 0, %s147
    %s162 = sphi 0, %s148
    %s168 = sphi 0, %s170
    %s171 = sphi 0, %s168
    %s172 = sphi 0, %s171
    %s188 = sphi 0, %s172
  $region4: #{lenet_forward.3} parent=0 // loop_header_branch
    %15 = sbr.rel (%p13) target = $region8
  $region5: #{lenet_forward.3} parent=0 // loop_body
    %s17 = ssub.s32 %s12, 1
    %s18 = ssub.s32 %s12, 2
    %s19 = sadd.s32 %s12, 1
    %s20 = ssub.s32 %s12, %s19
    %p21 = scmp.eq.s32.totalorder %s20, 0
    %s23 = sadd.s32 %s22, 1
    %s24 = scalar_select %p21, %s22, %s23
    %p27 = pneg %p21
    %p28 = scmp.eq.s32.totalorder %s12, 1
    %p29 = por %p27, %p28
    %p30 = scmp.ne.s32.totalorder %s22, %s25
    %p31 = scmp.eq.s32.totalorder %s12, 0
    %p32 = por %p30, %p31
    %p33 = scmp.ne.s32.totalorder %s22, %s25
    %p34 = scmp.eq.s32.totalorder %s17, 1
    %p35 = por %p33, %p34
    %p36 = scmp.ne.s32.totalorder %s25, %s26
    %p37 = scmp.eq.s32.totalorder %s17, 0
    %p38 = por %p36, %p37
    %p39 = scmp.ne.s32.totalorder %s25, %s26
    %p40 = scmp.eq.s32.totalorder %s18, 1
    %p41 = por %p39, %p40
    %p43 = scmp.ne.s32.totalorder %s26, %s42
    %p44 = scmp.eq.s32.totalorder %s18, 0
    %p45 = por %p43, %p44
    %s46 = ssub.s32 %s12, %s19
    %p47 = scmp.eq.s32.totalorder %s46, 0
    %s49 = sadd.s32 %s48, 1
    %s50 = scalar_select %p47, %s48, %s49
    %p53 = pneg %p47
    %p54 = scmp.eq.s32.totalorder %s12, 1
    %p55 = por %p53, %p54
    %p56 = scmp.ne.s32.totalorder %s48, %s51
    %p57 = scmp.eq.s32.totalorder %s12, 0
    %p58 = por %p56, %p57
    %p59 = scmp.ne.s32.totalorder %s48, %s51
    %p60 = scmp.eq.s32.totalorder %s17, 1
    %p61 = por %p59, %p60
    %p62 = scmp.ne.s32.totalorder %s51, %s52
    %p63 = scmp.eq.s32.totalorder %s17, 0
    %p64 = por %p62, %p63
    %p65 = scmp.ne.s32.totalorder %s51, %s52
    %p66 = scmp.eq.s32.totalorder %s18, 1
    %p67 = por %p65, %p66
    %p69 = scmp.ne.s32.totalorder %s52, %s68
    %p70 = scmp.eq.s32.totalorder %s18, 0
    %p71 = por %p69, %p70
    %s72 = ssub.s32 %s12, %s19
    %p73 = scmp.eq.s32.totalorder %s72, 0
    %s75 = sadd.s32 %s74, 1
    %s76 = scalar_select %p73, %s74, %s75
    %p79 = pneg %p73
    %p80 = scmp.eq.s32.totalorder %s12, 1
    %p81 = por %p79, %p80
    %p82 = scmp.ne.s32.totalorder %s74, %s77
    %p83 = scmp.eq.s32.totalorder %s12, 0
    %p84 = por %p82, %p83
    %p85 = scmp.ne.s32.totalorder %s74, %s77
    %p86 = scmp.eq.s32.totalorder %s17, 1
    %p87 = por %p85, %p86
    %p88 = scmp.ne.s32.totalorder %s77, %s78
    %p89 = scmp.eq.s32.totalorder %s17, 0
    %p90 = por %p88, %p89
    %p91 = scmp.ne.s32.totalorder %s77, %s78
    %p92 = scmp.eq.s32.totalorder %s18, 1
    %p93 = por %p91, %p92
    %p95 = scmp.ne.s32.totalorder %s78, %s94
    %p96 = scmp.eq.s32.totalorder %s18, 0
    %p97 = por %p95, %p96
    %s98 = ssub.s32 %s12, %s19
    %p99 = scmp.eq.s32.totalorder %s98, 0
    %s101 = sadd.s32 %s100, 1
    %s102 = scalar_select %p99, %s100, %s101
    %p105 = pneg %p99
    %p106 = scmp.eq.s32.totalorder %s12, 1
    %p107 = por %p105, %p106
    %p108 = scmp.ne.s32.totalorder %s100, %s103
    %p109 = scmp.eq.s32.totalorder %s12, 0
    %p110 = por %p108, %p109
    %p111 = scmp.ne.s32.totalorder %s100, %s103
    %p112 = scmp.eq.s32.totalorder %s17, 1
    %p113 = por %p111, %p112
    %p114 = scmp.ne.s32.totalorder %s103, %s104
    %p115 = scmp.eq.s32.totalorder %s17, 0
    %p116 = por %p114, %p115
    %p117 = scmp.ne.s32.totalorder %s103, %s104
    %p118 = scmp.eq.s32.totalorder %s18, 1
    %p119 = por %p117, %p118
    %p121 = scmp.ne.s32.totalorder %s104, %s120
    %p122 = scmp.eq.s32.totalorder %s18, 0
    %p123 = por %p121, %p122
    %s125 = sadd.s32 %s124, 1
    %p128 = scmp.eq.s32.totalorder %s12, 1
    %p129 = scmp.ne.s32.totalorder %s124, %s126
    %p130 = scmp.eq.s32.totalorder %s12, 0
    %p131 = por %p129, %p130
    %p132 = scmp.ne.s32.totalorder %s124, %s126
    %p133 = scmp.eq.s32.totalorder %s17, 1
    %p134 = por %p132, %p133
    %p135 = scmp.ne.s32.totalorder %s126, %s127
    %p136 = scmp.eq.s32.totalorder %s17, 0
    %p137 = por %p135, %p136
    %p138 = scmp.ne.s32.totalorder %s126, %s127
    %p139 = scmp.eq.s32.totalorder %s18, 1
    %p140 = por %p138, %p139
    %p142 = scmp.ne.s32.totalorder %s127, %s141
    %p143 = scmp.eq.s32.totalorder %s18, 0
    %p144 = por %p142, %p143
    %s146 = sadd.s32 %s145, 1
    %p149 = scmp.eq.s32.totalorder %s12, 1
    %p150 = scmp.ne.s32.totalorder %s145, %s147
    %p151 = scmp.eq.s32.totalorder %s12, 0
    %p152 = por %p150, %p151
    %p153 = scmp.ne.s32.totalorder %s145, %s147
    %p154 = scmp.eq.s32.totalorder %s17, 1
    %p155 = por %p153, %p154
    %p156 = scmp.ne.s32.totalorder %s147, %s148
    %p157 = scmp.eq.s32.totalorder %s17, 0
    %p158 = por %p156, %p157
    %p159 = scmp.ne.s32.totalorder %s147, %s148
    %p160 = scmp.eq.s32.totalorder %s18, 1
    %p161 = por %p159, %p160
    %p163 = scmp.ne.s32.totalorder %s148, %s162
    %p164 = scmp.eq.s32.totalorder %s18, 0
    %p165 = por %p163, %p164
    %s166 = ssub.s32 %s12, %s19
    %p167 = scmp.eq.s32.totalorder %s166, 0
    %s169 = sadd.s32 %s168, 1
    %s170 = scalar_select %p167, %s168, %s169
    %p173 = pneg %p167
    %p174 = scmp.eq.s32.totalorder %s12, 1
    %p175 = por %p173, %p174
    %p176 = scmp.ne.s32.totalorder %s168, %s171
    %p177 = scmp.eq.s32.totalorder %s12, 0
    %p178 = por %p176, %p177
    %p179 = scmp.ne.s32.totalorder %s168, %s171
    %p180 = scmp.eq.s32.totalorder %s17, 1
    %p181 = por %p179, %p180
    %p182 = scmp.ne.s32.totalorder %s171, %s172
    %p183 = scmp.eq.s32.totalorder %s17, 0
    %p184 = por %p182, %p183
    %p185 = scmp.ne.s32.totalorder %s171, %s172
    %p186 = scmp.eq.s32.totalorder %s18, 1
    %p187 = por %p185, %p186
    %p189 = scmp.ne.s32.totalorder %s172, %s188
    %p190 = scmp.eq.s32.totalorder %s18, 0
    %p191 = por %p189, %p190
    %p192 = scmp.le.s32.totalorder 1, %s12
    %p193 = scmp.lt.s32.totalorder %s12, 3
    %p194 = pnand %p192, %p193
    %p195 = pneg %p194
    // Predicated region
    $region9: #{lenet_forward.3} parent=5 // pred_check
      _
    $region10: #{lenet_forward.3} parent=5 // pred_check_branch
      %197 = sbr.rel (%p194) target = $region12
    $region11: #{lenet_forward.3} parent=5 // pred_region
      %s198 = ssub.s32 %s12, 1
      // Predicated region
      $region13: #{lenet_forward.3} parent=11 // pred_check
        %p199 = pneg %p137
      $region14: #{lenet_forward.3} parent=11 // pred_check_branch
        %201 = sbr.rel (%p199) target = $region16
      $region15: #{lenet_forward.3} parent=11 // pred_region
        _
      $region16: #{lenet_forward.3} parent=11 // pred_fallthru
        _
      // Predicated region
      $region17: #{lenet_forward.3} parent=11 // pred_check
        %p202 = pneg %p158
      $region18: #{lenet_forward.3} parent=11 // pred_check_branch
        %204 = sbr.rel (%p202) target = $region20
      $region19: #{lenet_forward.3} parent=11 // pred_region
        _
      $region20: #{lenet_forward.3} parent=11 // pred_fallthru
        _
    $region12: #{lenet_forward.3} parent=5 // pred_fallthru
      _
    %p205 = scmp.lt.s32.totalorder %s12, 2
    // Predicated region
    $region21: #{lenet_forward.3} parent=5 // pred_check
      %p206 = pneg %p205
    $region22: #{lenet_forward.3} parent=5 // pred_check_branch
      %208 = sbr.rel (%p206) target = $region24
    $region23: #{lenet_forward.3} parent=5 // pred_region
      // Predicated region
      $region25: #{lenet_forward.3} parent=23 // pred_check
        %p209 = pneg %p32
      $region26: #{lenet_forward.3} parent=23 // pred_check_branch
        %211 = sbr.rel (%p209) target = $region28
      $region27: #{lenet_forward.3} parent=23 // pred_region
        %p212 = scmp.lt.s32.totalorder %s12, 1
        %s213 = scalar_select %p212, %s12, 1
        %s214 = smul.addr %s213, 25
        %s215 = smul.addr %s214, 4
        %s216 = scalar_lea.vmem %s0, %s215
      $region28: #{lenet_forward.3} parent=23 // pred_fallthru
        _
      // Predicated region
      $region29: #{lenet_forward.3} parent=23 // pred_check
        %p217 = pneg %p58
      $region30: #{lenet_forward.3} parent=23 // pred_check_branch
        %219 = sbr.rel (%p217) target = $region32
      $region31: #{lenet_forward.3} parent=23 // pred_region
        %p220 = scmp.lt.s32.totalorder %s12, 1
        %s221 = scalar_select %p220, %s12, 1
        %s222 = smul.addr %s221, 25
        %s223 = smul.addr %s222, 4
        %s224 = scalar_lea.vmem %s1, %s223
      $region32: #{lenet_forward.3} parent=23 // pred_fallthru
        _
      // Predicated region
      $region33: #{lenet_forward.3} parent=23 // pred_check
        %p225 = pneg %p84
      $region34: #{lenet_forward.3} parent=23 // pred_check_branch
        %227 = sbr.rel (%p225) target = $region36
      $region35: #{lenet_forward.3} parent=23 // pred_region
        %p228 = scmp.lt.s32.totalorder %s12, 1
        %s229 = scalar_select %p228, %s12, 1
        %s230 = smul.addr %s229, 25
        %s231 = smul.addr %s230, 4
        %s232 = scalar_lea.vmem %s2, %s231
      $region36: #{lenet_forward.3} parent=23 // pred_fallthru
        _
      // Predicated region
      $region37: #{lenet_forward.3} parent=23 // pred_check
        %p233 = pneg %p110
      $region38: #{lenet_forward.3} parent=23 // pred_check_branch
        %235 = sbr.rel (%p233) target = $region40
      $region39: #{lenet_forward.3} parent=23 // pred_region
        %p236 = scmp.lt.s32.totalorder %s12, 1
        %s237 = scalar_select %p236, %s12, 1
        %s238 = smul.addr %s237, 25
        %s239 = smul.addr %s238, 4
        %s240 = scalar_lea.vmem %s3, %s239
      $region40: #{lenet_forward.3} parent=23 // pred_fallthru
        _
    $region24: #{lenet_forward.3} parent=5 // pred_fallthru
      _
    %p241 = scmp.le.s32.totalorder 1, %s12
    %p242 = scmp.lt.s32.totalorder %s12, 3
    %p243 = pnand %p241, %p242
    %p244 = pneg %p243
    // Predicated region
    $region41: #{lenet_forward.3} parent=5 // pred_check
      _
    $region42: #{lenet_forward.3} parent=5 // pred_check_branch
      %246 = sbr.rel (%p243) target = $region44
    $region43: #{lenet_forward.3} parent=5 // pred_region
      %s247 = ssub.s32 %s12, 1
      %p248 = scmp.lt.s32.totalorder %s17, 1
      %s249 = scalar_select %p248, %s17, 1
      %s250 = smul.addr %s249, 25
      %s251 = smul.addr %s250, 4
      %s252 = scalar_lea.vmem %s0, %s251
      %p253 = pneg %p38
      %p254 = pneg %p35
      %p255 = scmp.lt.s32.totalorder %s17, 1
      %s256 = scalar_select %p255, %s17, 1
      %s257 = smul.addr %s256, 25
      %s258 = smul.addr %s257, 4
      %s259 = scalar_lea.vmem %s1, %s258
      %p260 = pneg %p64
      %p261 = pneg %p61
      %p262 = scmp.lt.s32.totalorder %s17, 1
      %s263 = scalar_select %p262, %s17, 1
      %s264 = smul.addr %s263, 25
      %s265 = smul.addr %s264, 4
      %s266 = scalar_lea.vmem %s2, %s265
      %p267 = pneg %p90
      %p268 = pneg %p87
      %p269 = scmp.lt.s32.totalorder %s17, 1
      %s270 = scalar_select %p269, %s17, 1
      %s271 = smul.addr %s270, 25
      %s272 = smul.addr %s271, 4
      %s273 = scalar_lea.vmem %s3, %s272
      %p274 = pneg %p116
      %p275 = pneg %p113
      %p276 = pneg %p137
      %p277 = pneg %p134
      %p278 = pneg %p158
      %p279 = pneg %p155
      %p280 = pneg %p184
      %p281 = pneg %p181
      %p282 = scmp.lt.s32.totalorder %s17, 1
      %s283 = scalar_select %p282, %s17, 1
      %s284 = smul.addr %s283, 25
      %s285 = smul.addr %s284, 4
      %s286 = scalar_lea.vmem %s6, %s285
      %p287 = scmp.lt.s32.totalorder %s17, 1
      %s288 = scalar_select %p287, %s17, 1
      %s289 = smul.addr %s288, 25
      %s290 = smul.addr %s289, 4
      %s291 = scalar_lea.vmem %s0, %s290
      %p292 = scmp.lt.s32.totalorder %s17, 1
      %s293 = scalar_select %p292, %s17, 1
      %s294 = smul.addr %s293, 25
      %s295 = smul.addr %s294, 4
      %s296 = scalar_lea.vmem %s1, %s295
      %p297 = scmp.lt.s32.totalorder %s17, 1
      %s298 = scalar_select %p297, %s17, 1
      %s299 = smul.addr %s298, 25
      %s300 = smul.addr %s299, 4
      %s301 = scalar_lea.vmem %s2, %s300
      %p302 = scmp.lt.s32.totalorder %s17, 1
      %s303 = scalar_select %p302, %s17, 1
      %s304 = smul.addr %s303, 25
      %s305 = smul.addr %s304, 4
      %s306 = scalar_lea.vmem %s3, %s305
      %p307 = scmp.lt.s32.totalorder %s17, 1
      %s308 = scalar_select %p307, %s17, 1
      %s309 = smul.addr %s308, 25
      %s310 = smul.addr %s309, 4
      %s311 = scalar_lea.vmem %s6, %s310
      %v313 = vld [vmem:[%s4] sm:$0xf]
      %v314 = vld [vmem:[%s4 + $0x4] sm:$0xf]
      %v315 = vld [vmem:[%s4 + $0x8] sm:$0xf]
      %v316 = vld [vmem:[%s4 + $0xc] sm:$0x1]
      %v317 = vld [vmem:[%s291] sm:$0xf]
      %v318 = vld [vmem:[%s291 + $0x4] sm:$0xf]
      %v319 = vld [vmem:[%s291 + $0x8] sm:$0xf]
      %v320 = vld [vmem:[%s291 + $0xc] sm:$0xf]
      %v321 = vld [vmem:[%s291 + $0x10] sm:$0xf]
      %v322 = vld [vmem:[%s291 + $0x14] sm:$0xf]
      %v323 = vld [vmem:[%s291 + $0x18] sm:$0xf]
      %v324 = vld [vmem:[%s291 + $0x1c] sm:$0xf]
      %v325 = vld [vmem:[%s291 + $0x20] sm:$0xf]
      %v326 = vld [vmem:[%s291 + $0x24] sm:$0xf]
      %v327 = vld [vmem:[%s291 + $0x28] sm:$0xf]
      %v328 = vld [vmem:[%s291 + $0x2c] sm:$0xf]
      %v329 = vld [vmem:[%s291 + $0x30] sm:$0xf]
      %v330 = vld [vmem:[%s291 + $0x34] sm:$0xf]
      %v331 = vld [vmem:[%s291 + $0x38] sm:$0xf]
      %v332 = vld [vmem:[%s291 + $0x3c] sm:$0xf]
      %v333 = vld [vmem:[%s291 + $0x40] sm:$0xf]
      %v334 = vld [vmem:[%s291 + $0x44] sm:$0xf]
      %v335 = vld [vmem:[%s291 + $0x48] sm:$0xf]
      %v336 = vld [vmem:[%s291 + $0x4c] sm:$0xf]
      %v337 = vld [vmem:[%s291 + $0x50] sm:$0xf]
      %v338 = vld [vmem:[%s291 + $0x54] sm:$0xf]
      %v339 = vld [vmem:[%s291 + $0x58] sm:$0xf]
      %v340 = vld [vmem:[%s291 + $0x5c] sm:$0xf]
      %v341 = vld [vmem:[%s291 + $0x60] sm:$0x3]
      %v367 = vunpack.c.l.b16 %v317
      %v368 = vunpack.c.l.b16 %v318
      %v369 = vunpack.c.l.b16 %v319
      %v370 = vunpack.c.l.b16 %v320
      %v371 = vunpack.c.l.b16 %v321
      %v372 = vunpack.c.l.b16 %v322
      %v373 = vunpack.c.l.b16 %v323
      %v374 = vunpack.c.l.b16 %v324
      %v375 = vunpack.c.l.b16 %v325
      %v376 = vunpack.c.l.b16 %v326
      %v377 = vunpack.c.l.b16 %v327
      %v378 = vunpack.c.l.b16 %v328
      %v379 = vunpack.c.l.b16 %v329
      %v380 = vunpack.c.l.b16 %v330
      %v381 = vunpack.c.l.b16 %v331
      %v382 = vunpack.c.l.b16 %v332
      %v383 = vunpack.c.l.b16 %v333
      %v384 = vunpack.c.l.b16 %v334
      %v385 = vunpack.c.l.b16 %v335
      %v386 = vunpack.c.l.b16 %v336
      %v387 = vunpack.c.l.b16 %v337
      %v388 = vunpack.c.l.b16 %v338
      %v389 = vunpack.c.l.b16 %v339
      %v390 = vunpack.c.l.b16 %v340
      %v391 = vunpack.c.l.b16 %v341
      %v392 = vpack.c.b16 %v368, %v367
      %v393 = vpack.c.b16 %v370, %v369
      %v394 = vpack.c.b16 %v372, %v371
      %v395 = vpack.c.b16 %v374, %v373
      %v396 = vpack.c.b16 %v376, %v375
      %v397 = vpack.c.b16 %v378, %v377
      %v398 = vpack.c.b16 %v380, %v379
      %v399 = vpack.c.b16 %v382, %v381
      %v400 = vpack.c.b16 %v384, %v383
      %v401 = vpack.c.b16 %v386, %v385
      %v402 = vpack.c.b16 %v388, %v387
      %v403 = vpack.c.b16 %v390, %v389
      %v404 = vpack.c.b16 %v391, %v391
      %v409 = vunpack.c.l.b16 %v313
      %v410 = vunpack.c.l.b16 %v314
      %v411 = vunpack.c.l.b16 %v315
      %v412 = vunpack.c.l.b16 %v316
      %v413 = vpack.c.b16 %v410, %v409
      %v414 = vpack.c.b16 %v412, %v411
      %vm416 = vcmask 203776
      %v418 = vsel %vm416, %v392, 0
      %v421 = vsel %vm416, %v393, 0
      %v424 = vsel %vm416, %v394, 0
      %v427 = vsel %vm416, %v395, 0
      %v430 = vsel %vm416, %v396, 0
      %v433 = vsel %vm416, %v397, 0
      %v436 = vsel %vm416, %v398, 0
      %v439 = vsel %vm416, %v399, 0
      %v442 = vsel %vm416, %v400, 0
      %v445 = vsel %vm416, %v401, 0
      %v448 = vsel %vm416, %v402, 0
      %v451 = vsel %vm416, %v403, 0
      %v454 = vsel %vm416, %v404, 0
      %vm456 = vcmask 1043456
      %vm457 = vcmask 1044480
      %v458 = vsel %vm456, 4294967295, 65535
      %v459 = vsel %vm457, %v458, 0
      %v461 = vand.u32 %v414, %v459
      %463 = vmatprep.subr.bf16.mxu0 0
      %464 = vmatpush1.bf16.msra.mxu0 0
      %465 = vmatprep.subr.bf16.mxu0 0
      %466 = vmatpush1.bf16.msra.mxu0 0
      %467 = vmatprep.subr.bf16.mxu0 0
      %468 = vmatpush1.bf16.msra.mxu0 0
      %469 = vmatprep.subr.bf16.mxu0 0
      %470 = vmatpush1.bf16.msra.mxu0 0
      %471 = vmatprep.subr.bf16.mxu0 0
      %472 = vmatpush1.bf16.msra.mxu0 0
      %473 = vmatprep.subr.bf16.mxu0 0
      %474 = vmatpush1.bf16.msra.mxu0 0
      %475 = vmatprep.subr.bf16.mxu0 0
      %476 = vmatpush1.bf16.msra.mxu0 %v461
      %477 = vmatprep.subr.bf16.mxu0 0
      %478 = vmatpush1.bf16.msra.mxu0 %v413
      %479 = vmatprep.subr.bf16.mxu0 0
      %480 = vmatpush2.bf16.msra.mxu0 0
      %481 = vmatprep.subr.bf16.mxu0 0
      %482 = vmatpush2.bf16.msra.mxu0 0
      %483 = vmatprep.subr.bf16.mxu0 0
      %484 = vmatpush2.bf16.msra.mxu0 0
      %485 = vmatprep.subr.bf16.mxu0 0
      %486 = vmatpush2.bf16.msra.mxu0 0
      %487 = vmatprep.subr.bf16.mxu0 0
      %488 = vmatpush2.bf16.msra.mxu0 0
      %489 = vmatprep.subr.bf16.mxu0 0
      %490 = vmatpush2.bf16.msra.mxu0 0
      %491 = vmatprep.subr.bf16.mxu0 0
      %492 = vmatpush2.bf16.msra.mxu0 0
      %493 = vmatprep.subr.bf16.mxu0 0
      %494 = vmatpush2.bf16.msra.mxu0 0
      %495 = vmatprep.mubr.bf16.mxu0 0
      %496 = vmatmul.mubr.bf16.gmra.mxu0 %v418
      %v497 = vpop.f32.mrf.mxu0
      %v498 = vadd.f32 0.0, %v497
      %v499 = vpop.f32.mrf.mxu0
      %v500 = vpop.f32.mrf.mxu0
      %v501 = vadd.f32 0.0, %v500
      %v502 = vpop.f32.mrf.mxu0
      %503 = vmatprep.mubr.bf16.mxu0 0
      %504 = vmatmul.mubr.bf16.gmra.mxu0 %v421
      %v505 = vpop.f32.mrf.mxu0
      %v506 = vadd.f32 0.0, %v505
      %v507 = vpop.f32.mrf.mxu0
      %v508 = vpop.f32.mrf.mxu0
      %v509 = vadd.f32 0.0, %v508
      %v510 = vpop.f32.mrf.mxu0
      %511 = vmatprep.mubr.bf16.mxu0 0
      %512 = vmatmul.mubr.bf16.gmra.mxu0 %v424
      %v513 = vpop.f32.mrf.mxu0
      %v514 = vadd.f32 0.0, %v513
      %v515 = vpop.f32.mrf.mxu0
      %v516 = vpop.f32.mrf.mxu0
      %v517 = vadd.f32 0.0, %v516
      %v518 = vpop.f32.mrf.mxu0
      %519 = vmatprep.mubr.bf16.mxu0 0
      %520 = vmatmul.mubr.bf16.gmra.mxu0 %v427
      %v521 = vpop.f32.mrf.mxu0
      %v522 = vadd.f32 0.0, %v521
      %v523 = vpop.f32.mrf.mxu0
      %v524 = vpop.f32.mrf.mxu0
      %v525 = vadd.f32 0.0, %v524
      %v526 = vpop.f32.mrf.mxu0
      %527 = vmatprep.mubr.bf16.mxu0 0
      %528 = vmatmul.mubr.bf16.gmra.mxu0 %v430
      %v529 = vpop.f32.mrf.mxu0
      %v530 = vadd.f32 0.0, %v529
      %v531 = vpop.f32.mrf.mxu0
      %v532 = vpop.f32.mrf.mxu0
      %v533 = vadd.f32 0.0, %v532
      %v534 = vpop.f32.mrf.mxu0
      %535 = vmatprep.mubr.bf16.mxu0 0
      %536 = vmatmul.mubr.bf16.gmra.mxu0 %v433
      %v537 = vpop.f32.mrf.mxu0
      %v538 = vadd.f32 0.0, %v537
      %v539 = vpop.f32.mrf.mxu0
      %v540 = vpop.f32.mrf.mxu0
      %v541 = vadd.f32 0.0, %v540
      %v542 = vpop.f32.mrf.mxu0
      %543 = vmatprep.mubr.bf16.mxu0 0
      %544 = vmatmul.mubr.bf16.gmra.mxu0 %v436
      %v545 = vpop.f32.mrf.mxu0
      %v546 = vadd.f32 0.0, %v545
      %v547 = vpop.f32.mrf.mxu0
      %v548 = vpop.f32.mrf.mxu0
      %v549 = vadd.f32 0.0, %v548
      %v550 = vpop.f32.mrf.mxu0
      %551 = vmatprep.mubr.bf16.mxu0 0
      %552 = vmatmul.mubr.bf16.gmra.mxu0 %v439
      %v553 = vpop.f32.mrf.mxu0
      %v554 = vadd.f32 0.0, %v553
      %v555 = vpop.f32.mrf.mxu0
      %v556 = vpop.f32.mrf.mxu0
      %v557 = vadd.f32 0.0, %v556
      %v558 = vpop.f32.mrf.mxu0
      %559 = vmatprep.mubr.bf16.mxu0 0
      %560 = vmatmul.mubr.bf16.gmra.mxu0 %v442
      %v561 = vpop.f32.mrf.mxu0
      %v562 = vadd.f32 0.0, %v561
      %v563 = vpop.f32.mrf.mxu0
      %v564 = vpop.f32.mrf.mxu0
      %v565 = vadd.f32 0.0, %v564
      %v566 = vpop.f32.mrf.mxu0
      %567 = vmatprep.mubr.bf16.mxu0 0
      %568 = vmatmul.mubr.bf16.gmra.mxu0 %v445
      %v569 = vpop.f32.mrf.mxu0
      %v570 = vadd.f32 0.0, %v569
      %v571 = vpop.f32.mrf.mxu0
      %v572 = vpop.f32.mrf.mxu0
      %v573 = vadd.f32 0.0, %v572
      %v574 = vpop.f32.mrf.mxu0
      %575 = vmatprep.mubr.bf16.mxu0 0
      %576 = vmatmul.mubr.bf16.gmra.mxu0 %v448
      %v577 = vpop.f32.mrf.mxu0
      %v578 = vadd.f32 0.0, %v577
      %v579 = vpop.f32.mrf.mxu0
      %v580 = vpop.f32.mrf.mxu0
      %v581 = vadd.f32 0.0, %v580
      %v582 = vpop.f32.mrf.mxu0
      %583 = vmatprep.mubr.bf16.mxu0 0
      %584 = vmatmul.mubr.bf16.gmra.mxu0 %v451
      %v585 = vpop.f32.mrf.mxu0
      %v586 = vadd.f32 0.0, %v585
      %v587 = vpop.f32.mrf.mxu0
      %v588 = vpop.f32.mrf.mxu0
      %v589 = vadd.f32 0.0, %v588
      %v590 = vpop.f32.mrf.mxu0
      %591 = vmatprep.mubr.bf16.mxu0 0
      %592 = vmatmul.mubr.bf16.gmra.mxu0 %v454
      %v593 = vpop.f32.mrf.mxu0
      %v594 = vadd.f32 0.0, %v593
      %v595 = vpop.f32.mrf.mxu0
      %v596 = vpop.f32.mrf.mxu0
      %v597 = vpop.f32.mrf.mxu0
      %598 = vdwg.mxu0
      %v599 = vld [vmem:[%s296] sm:$0xf]
      %v600 = vld [vmem:[%s296 + $0x4] sm:$0xf]
      %v601 = vld [vmem:[%s296 + $0x8] sm:$0xf]
      %v602 = vld [vmem:[%s296 + $0xc] sm:$0xf]
      %v603 = vld [vmem:[%s296 + $0x10] sm:$0xf]
      %v604 = vld [vmem:[%s296 + $0x14] sm:$0xf]
      %v605 = vld [vmem:[%s296 + $0x18] sm:$0xf]
      %v606 = vld [vmem:[%s296 + $0x1c] sm:$0xf]
      %v607 = vld [vmem:[%s296 + $0x20] sm:$0xf]
      %v608 = vld [vmem:[%s296 + $0x24] sm:$0xf]
      %v609 = vld [vmem:[%s296 + $0x28] sm:$0xf]
      %v610 = vld [vmem:[%s296 + $0x2c] sm:$0xf]
      %v611 = vld [vmem:[%s296 + $0x30] sm:$0xf]
      %v612 = vld [vmem:[%s296 + $0x34] sm:$0xf]
      %v613 = vld [vmem:[%s296 + $0x38] sm:$0xf]
      %v614 = vld [vmem:[%s296 + $0x3c] sm:$0xf]
      %v615 = vld [vmem:[%s296 + $0x40] sm:$0xf]
      %v616 = vld [vmem:[%s296 + $0x44] sm:$0xf]
      %v617 = vld [vmem:[%s296 + $0x48] sm:$0xf]
      %v618 = vld [vmem:[%s296 + $0x4c] sm:$0xf]
      %v619 = vld [vmem:[%s296 + $0x50] sm:$0xf]
      %v620 = vld [vmem:[%s296 + $0x54] sm:$0xf]
      %v621 = vld [vmem:[%s296 + $0x58] sm:$0xf]
      %v622 = vld [vmem:[%s296 + $0x5c] sm:$0xf]
      %v623 = vld [vmem:[%s296 + $0x60] sm:$0x3]
      %v649 = vunpack.c.l.b16 %v599
      %v650 = vunpack.c.l.b16 %v600
      %v651 = vunpack.c.l.b16 %v601
      %v652 = vunpack.c.l.b16 %v602
      %v653 = vunpack.c.l.b16 %v603
      %v654 = vunpack.c.l.b16 %v604
      %v655 = vunpack.c.l.b16 %v605
      %v656 = vunpack.c.l.b16 %v606
      %v657 = vunpack.c.l.b16 %v607
      %v658 = vunpack.c.l.b16 %v608
      %v659 = vunpack.c.l.b16 %v609
      %v660 = vunpack.c.l.b16 %v610
      %v661 = vunpack.c.l.b16 %v611
      %v662 = vunpack.c.l.b16 %v612
      %v663 = vunpack.c.l.b16 %v613
      %v664 = vunpack.c.l.b16 %v614
      %v665 = vunpack.c.l.b16 %v615
      %v666 = vunpack.c.l.b16 %v616
      %v667 = vunpack.c.l.b16 %v617
      %v668 = vunpack.c.l.b16 %v618
      %v669 = vunpack.c.l.b16 %v619
      %v670 = vunpack.c.l.b16 %v620
      %v671 = vunpack.c.l.b16 %v621
      %v672 = vunpack.c.l.b16 %v622
      %v673 = vunpack.c.l.b16 %v623
      %v674 = vpack.c.b16 %v650, %v649
      %v675 = vpack.c.b16 %v652, %v651
      %v676 = vpack.c.b16 %v654, %v653
      %v677 = vpack.c.b16 %v656, %v655
      %v678 = vpack.c.b16 %v658, %v657
      %v679 = vpack.c.b16 %v660, %v659
      %v680 = vpack.c.b16 %v662, %v661
      %v681 = vpack.c.b16 %v664, %v663
      %v682 = vpack.c.b16 %v666, %v665
      %v683 = vpack.c.b16 %v668, %v667
      %v684 = vpack.c.b16 %v670, %v669
      %v685 = vpack.c.b16 %v672, %v671
      %v686 = vpack.c.b16 %v673, %v673
      %v688 = vsel %vm416, %v674, 0
      %v691 = vsel %vm416, %v675, 0
      %v694 = vsel %vm416, %v676, 0
      %v697 = vsel %vm416, %v677, 0
      %v700 = vsel %vm416, %v678, 0
      %v703 = vsel %vm416, %v679, 0
      %v706 = vsel %vm416, %v680, 0
      %v709 = vsel %vm416, %v681, 0
      %v712 = vsel %vm416, %v682, 0
      %v715 = vsel %vm416, %v683, 0
      %v718 = vsel %vm416, %v684, 0
      %v721 = vsel %vm416, %v685, 0
      %v724 = vsel %vm416, %v686, 0
      %726 = vmatprep.subr.bf16.mxu0 0
      %727 = vmatpush1.bf16.msra.mxu0 0
      %728 = vmatprep.subr.bf16.mxu0 0
      %729 = vmatpush1.bf16.msra.mxu0 0
      %730 = vmatprep.subr.bf16.mxu0 0
      %731 = vmatpush1.bf16.msra.mxu0 0
      %732 = vmatprep.subr.bf16.mxu0 0
      %733 = vmatpush1.bf16.msra.mxu0 0
      %734 = vmatprep.subr.bf16.mxu0 0
      %735 = vmatpush1.bf16.msra.mxu0 0
      %736 = vmatprep.subr.bf16.mxu0 0
      %737 = vmatpush1.bf16.msra.mxu0 0
      %738 = vmatprep.subr.bf16.mxu0 0
      %739 = vmatpush1.bf16.msra.mxu0 %v461
      %740 = vmatprep.subr.bf16.mxu0 0
      %741 = vmatpush1.bf16.msra.mxu0 %v413
      %742 = vmatprep.subr.bf16.mxu0 0
      %743 = vmatpush2.bf16.msra.mxu0 0
      %744 = vmatprep.subr.bf16.mxu0 0
      %745 = vmatpush2.bf16.msra.mxu0 0
      %746 = vmatprep.subr.bf16.mxu0 0
      %747 = vmatpush2.bf16.msra.mxu0 0
      %748 = vmatprep.subr.bf16.mxu0 0
      %749 = vmatpush2.bf16.msra.mxu0 0
      %750 = vmatprep.subr.bf16.mxu0 0
      %751 = vmatpush2.bf16.msra.mxu0 0
      %752 = vmatprep.subr.bf16.mxu0 0
      %753 = vmatpush2.bf16.msra.mxu0 0
      %754 = vmatprep.subr.bf16.mxu0 0
      %755 = vmatpush2.bf16.msra.mxu0 0
      %756 = vmatprep.subr.bf16.mxu0 0
      %757 = vmatpush2.bf16.msra.mxu0 0
      %758 = vmatprep.mubr.bf16.mxu0 0
      %759 = vmatmul.mubr.bf16.gmra.mxu0 %v688
      %v760 = vpop.f32.mrf.mxu0
      %v761 = vadd.f32 0.0, %v760
      %v762 = vpop.f32.mrf.mxu0
      %v763 = vpop.f32.mrf.mxu0
      %v764 = vadd.f32 0.0, %v763
      %v765 = vpop.f32.mrf.mxu0
      %766 = vmatprep.mubr.bf16.mxu0 0
      %767 = vmatmul.mubr.bf16.gmra.mxu0 %v691
      %v768 = vpop.f32.mrf.mxu0
      %v769 = vadd.f32 0.0, %v768
      %v770 = vpop.f32.mrf.mxu0
      %v771 = vpop.f32.mrf.mxu0
      %v772 = vadd.f32 0.0, %v771
      %v773 = vpop.f32.mrf.mxu0
      %774 = vmatprep.mubr.bf16.mxu0 0
      %775 = vmatmul.mubr.bf16.gmra.mxu0 %v694
      %v776 = vpop.f32.mrf.mxu0
      %v777 = vadd.f32 0.0, %v776
      %v778 = vpop.f32.mrf.mxu0
      %v779 = vpop.f32.mrf.mxu0
      %v780 = vadd.f32 0.0, %v779
      %v781 = vpop.f32.mrf.mxu0
      %782 = vmatprep.mubr.bf16.mxu0 0
      %783 = vmatmul.mubr.bf16.gmra.mxu0 %v697
      %v784 = vpop.f32.mrf.mxu0
      %v785 = vadd.f32 0.0, %v784
      %v786 = vpop.f32.mrf.mxu0
      %v787 = vpop.f32.mrf.mxu0
      %v788 = vadd.f32 0.0, %v787
      %v789 = vpop.f32.mrf.mxu0
      %790 = vmatprep.mubr.bf16.mxu0 0
      %791 = vmatmul.mubr.bf16.gmra.mxu0 %v700
      %v792 = vpop.f32.mrf.mxu0
      %v793 = vadd.f32 0.0, %v792
      %v794 = vpop.f32.mrf.mxu0
      %v795 = vpop.f32.mrf.mxu0
      %v796 = vadd.f32 0.0, %v795
      %v797 = vpop.f32.mrf.mxu0
      %798 = vmatprep.mubr.bf16.mxu0 0
      %799 = vmatmul.mubr.bf16.gmra.mxu0 %v703
      %v800 = vpop.f32.mrf.mxu0
      %v801 = vadd.f32 0.0, %v800
      %v802 = vpop.f32.mrf.mxu0
      %v803 = vpop.f32.mrf.mxu0
      %v804 = vadd.f32 0.0, %v803
      %v805 = vpop.f32.mrf.mxu0
      %806 = vmatprep.mubr.bf16.mxu0 0
      %807 = vmatmul.mubr.bf16.gmra.mxu0 %v706
      %v808 = vpop.f32.mrf.mxu0
      %v809 = vadd.f32 0.0, %v808
      %v810 = vpop.f32.mrf.mxu0
      %v811 = vpop.f32.mrf.mxu0
      %v812 = vadd.f32 0.0, %v811
      %v813 = vpop.f32.mrf.mxu0
      %814 = vmatprep.mubr.bf16.mxu0 0
      %815 = vmatmul.mubr.bf16.gmra.mxu0 %v709
      %v816 = vpop.f32.mrf.mxu0
      %v817 = vadd.f32 0.0, %v816
      %v818 = vpop.f32.mrf.mxu0
      %v819 = vpop.f32.mrf.mxu0
      %v820 = vadd.f32 0.0, %v819
      %v821 = vpop.f32.mrf.mxu0
      %822 = vmatprep.mubr.bf16.mxu0 0
      %823 = vmatmul.mubr.bf16.gmra.mxu0 %v712
      %v824 = vpop.f32.mrf.mxu0
      %v825 = vadd.f32 0.0, %v824
      %v826 = vpop.f32.mrf.mxu0
      %v827 = vpop.f32.mrf.mxu0
      %v828 = vadd.f32 0.0, %v827
      %v829 = vpop.f32.mrf.mxu0
      %830 = vmatprep.mubr.bf16.mxu0 0
      %831 = vmatmul.mubr.bf16.gmra.mxu0 %v715
      %v832 = vpop.f32.mrf.mxu0
      %v833 = vadd.f32 0.0, %v832
      %v834 = vpop.f32.mrf.mxu0
      %v835 = vpop.f32.mrf.mxu0
      %v836 = vadd.f32 0.0, %v835
      %v837 = vpop.f32.mrf.mxu0
      %838 = vmatprep.mubr.bf16.mxu0 0
      %839 = vmatmul.mubr.bf16.gmra.mxu0 %v718
      %v840 = vpop.f32.mrf.mxu0
      %v841 = vadd.f32 0.0, %v840
      %v842 = vpop.f32.mrf.mxu0
      %v843 = vpop.f32.mrf.mxu0
      %v844 = vadd.f32 0.0, %v843
      %v845 = vpop.f32.mrf.mxu0
      %846 = vmatprep.mubr.bf16.mxu0 0
      %847 = vmatmul.mubr.bf16.gmra.mxu0 %v721
      %v848 = vpop.f32.mrf.mxu0
      %v849 = vadd.f32 0.0, %v848
      %v850 = vpop.f32.mrf.mxu0
      %v851 = vpop.f32.mrf.mxu0
      %v852 = vadd.f32 0.0, %v851
      %v853 = vpop.f32.mrf.mxu0
      %854 = vmatprep.mubr.bf16.mxu0 0
      %855 = vmatmul.mubr.bf16.gmra.mxu0 %v724
      %v856 = vpop.f32.mrf.mxu0
      %v857 = vadd.f32 0.0, %v856
      %v858 = vpop.f32.mrf.mxu0
      %v859 = vpop.f32.mrf.mxu0
      %v860 = vpop.f32.mrf.mxu0
      %861 = vdwg.mxu0
      %v862 = vmax.f32 %v498, %v761
      %v863 = vmax.f32 %v501, %v764
      %v864 = vmax.f32 %v506, %v769
      %v865 = vmax.f32 %v509, %v772
      %v866 = vmax.f32 %v514, %v777
      %v867 = vmax.f32 %v517, %v780
      %v868 = vmax.f32 %v522, %v785
      %v869 = vmax.f32 %v525, %v788
      %v870 = vmax.f32 %v530, %v793
      %v871 = vmax.f32 %v533, %v796
      %v872 = vmax.f32 %v538, %v801
      %v873 = vmax.f32 %v541, %v804
      %v874 = vmax.f32 %v546, %v809
      %v875 = vmax.f32 %v549, %v812
      %v876 = vmax.f32 %v554, %v817
      %v877 = vmax.f32 %v557, %v820
      %v878 = vmax.f32 %v562, %v825
      %v879 = vmax.f32 %v565, %v828
      %v880 = vmax.f32 %v570, %v833
      %v881 = vmax.f32 %v573, %v836
      %v882 = vmax.f32 %v578, %v841
      %v883 = vmax.f32 %v581, %v844
      %v884 = vmax.f32 %v586, %v849
      %v885 = vmax.f32 %v589, %v852
      %v886 = vmax.f32 %v594, %v857
      %v887 = vld [vmem:[%s301] sm:$0xf]
      %v888 = vld [vmem:[%s301 + $0x4] sm:$0xf]
      %v889 = vld [vmem:[%s301 + $0x8] sm:$0xf]
      %v890 = vld [vmem:[%s301 + $0xc] sm:$0xf]
      %v891 = vld [vmem:[%s301 + $0x10] sm:$0xf]
      %v892 = vld [vmem:[%s301 + $0x14] sm:$0xf]
      %v893 = vld [vmem:[%s301 + $0x18] sm:$0xf]
      %v894 = vld [vmem:[%s301 + $0x1c] sm:$0xf]
      %v895 = vld [vmem:[%s301 + $0x20] sm:$0xf]
      %v896 = vld [vmem:[%s301 + $0x24] sm:$0xf]
      %v897 = vld [vmem:[%s301 + $0x28] sm:$0xf]
      %v898 = vld [vmem:[%s301 + $0x2c] sm:$0xf]
      %v899 = vld [vmem:[%s301 + $0x30] sm:$0xf]
      %v900 = vld [vmem:[%s301 + $0x34] sm:$0xf]
      %v901 = vld [vmem:[%s301 + $0x38] sm:$0xf]
      %v902 = vld [vmem:[%s301 + $0x3c] sm:$0xf]
      %v903 = vld [vmem:[%s301 + $0x40] sm:$0xf]
      %v904 = vld [vmem:[%s301 + $0x44] sm:$0xf]
      %v905 = vld [vmem:[%s301 + $0x48] sm:$0xf]
      %v906 = vld [vmem:[%s301 + $0x4c] sm:$0xf]
      %v907 = vld [vmem:[%s301 + $0x50] sm:$0xf]
      %v908 = vld [vmem:[%s301 + $0x54] sm:$0xf]
      %v909 = vld [vmem:[%s301 + $0x58] sm:$0xf]
      %v910 = vld [vmem:[%s301 + $0x5c] sm:$0xf]
      %v911 = vld [vmem:[%s301 + $0x60] sm:$0x3]
      %v937 = vunpack.c.l.b16 %v887
      %v938 = vunpack.c.l.b16 %v888
      %v939 = vunpack.c.l.b16 %v889
      %v940 = vunpack.c.l.b16 %v890
      %v941 = vunpack.c.l.b16 %v891
      %v942 = vunpack.c.l.b16 %v892
      %v943 = vunpack.c.l.b16 %v893
      %v944 = vunpack.c.l.b16 %v894
      %v945 = vunpack.c.l.b16 %v895
      %v946 = vunpack.c.l.b16 %v896
      %v947 = vunpack.c.l.b16 %v897
      %v948 = vunpack.c.l.b16 %v898
      %v949 = vunpack.c.l.b16 %v899
      %v950 = vunpack.c.l.b16 %v900
      %v951 = vunpack.c.l.b16 %v901
      %v952 = vunpack.c.l.b16 %v902
      %v953 = vunpack.c.l.b16 %v903
      %v954 = vunpack.c.l.b16 %v904
      %v955 = vunpack.c.l.b16 %v905
      %v956 = vunpack.c.l.b16 %v906
      %v957 = vunpack.c.l.b16 %v907
      %v958 = vunpack.c.l.b16 %v908
      %v959 = vunpack.c.l.b16 %v909
      %v960 = vunpack.c.l.b16 %v910
      %v961 = vunpack.c.l.b16 %v911
      %v962 = vpack.c.b16 %v938, %v937
      %v963 = vpack.c.b16 %v940, %v939
      %v964 = vpack.c.b16 %v942, %v941
      %v965 = vpack.c.b16 %v944, %v943
      %v966 = vpack.c.b16 %v946, %v945
      %v967 = vpack.c.b16 %v948, %v947
      %v968 = vpack.c.b16 %v950, %v949
      %v969 = vpack.c.b16 %v952, %v951
      %v970 = vpack.c.b16 %v954, %v953
      %v971 = vpack.c.b16 %v956, %v955
      %v972 = vpack.c.b16 %v958, %v957
      %v973 = vpack.c.b16 %v960, %v959
      %v974 = vpack.c.b16 %v961, %v961
      %v976 = vsel %vm416, %v962, 0
      %v979 = vsel %vm416, %v963, 0
      %v982 = vsel %vm416, %v964, 0
      %v985 = vsel %vm416, %v965, 0
      %v988 = vsel %vm416, %v966, 0
      %v991 = vsel %vm416, %v967, 0
      %v994 = vsel %vm416, %v968, 0
      %v997 = vsel %vm416, %v969, 0
      %v1000 = vsel %vm416, %v970, 0
      %v1003 = vsel %vm416, %v971, 0
      %v1006 = vsel %vm416, %v972, 0
      %v1009 = vsel %vm416, %v973, 0
      %v1012 = vsel %vm416, %v974, 0
      %1014 = vmatprep.subr.bf16.mxu0 0
      %1015 = vmatpush1.bf16.msra.mxu0 0
      %1016 = vmatprep.subr.bf16.mxu0 0
      %1017 = vmatpush1.bf16.msra.mxu0 0
      %1018 = vmatprep.subr.bf16.mxu0 0
      %1019 = vmatpush1.bf16.msra.mxu0 0
      %1020 = vmatprep.subr.bf16.mxu0 0
      %1021 = vmatpush1.bf16.msra.mxu0 0
      %1022 = vmatprep.subr.bf16.mxu0 0
      %1023 = vmatpush1.bf16.msra.mxu0 0
      %1024 = vmatprep.subr.bf16.mxu0 0
      %1025 = vmatpush1.bf16.msra.mxu0 0
      %1026 = vmatprep.subr.bf16.mxu0 0
      %1027 = vmatpush1.bf16.msra.mxu0 %v461
      %1028 = vmatprep.subr.bf16.mxu0 0
      %1029 = vmatpush1.bf16.msra.mxu0 %v413
      %1030 = vmatprep.subr.bf16.mxu0 0
      %1031 = vmatpush2.bf16.msra.mxu0 0
      %1032 = vmatprep.subr.bf16.mxu0 0
      %1033 = vmatpush2.bf16.msra.mxu0 0
      %1034 = vmatprep.subr.bf16.mxu0 0
      %1035 = vmatpush2.bf16.msra.mxu0 0
      %1036 = vmatprep.subr.bf16.mxu0 0
      %1037 = vmatpush2.bf16.msra.mxu0 0
      %1038 = vmatprep.subr.bf16.mxu0 0
      %1039 = vmatpush2.bf16.msra.mxu0 0
      %1040 = vmatprep.subr.bf16.mxu0 0
      %1041 = vmatpush2.bf16.msra.mxu0 0
      %1042 = vmatprep.subr.bf16.mxu0 0
      %1043 = vmatpush2.bf16.msra.mxu0 0
      %1044 = vmatprep.subr.bf16.mxu0 0
      %1045 = vmatpush2.bf16.msra.mxu0 0
      %1046 = vmatprep.mubr.bf16.mxu0 0
      %1047 = vmatmul.mubr.bf16.gmra.mxu0 %v976
      %v1048 = vpop.f32.mrf.mxu0
      %v1049 = vadd.f32 0.0, %v1048
      %v1050 = vpop.f32.mrf.mxu0
      %v1051 = vpop.f32.mrf.mxu0
      %v1052 = vadd.f32 0.0, %v1051
      %v1053 = vpop.f32.mrf.mxu0
      %1054 = vmatprep.mubr.bf16.mxu0 0
      %1055 = vmatmul.mubr.bf16.gmra.mxu0 %v979
      %v1056 = vpop.f32.mrf.mxu0
      %v1057 = vadd.f32 0.0, %v1056
      %v1058 = vpop.f32.mrf.mxu0
      %v1059 = vpop.f32.mrf.mxu0
      %v1060 = vadd.f32 0.0, %v1059
      %v1061 = vpop.f32.mrf.mxu0
      %1062 = vmatprep.mubr.bf16.mxu0 0
      %1063 = vmatmul.mubr.bf16.gmra.mxu0 %v982
      %v1064 = vpop.f32.mrf.mxu0
      %v1065 = vadd.f32 0.0, %v1064
      %v1066 = vpop.f32.mrf.mxu0
      %v1067 = vpop.f32.mrf.mxu0
      %v1068 = vadd.f32 0.0, %v1067
      %v1069 = vpop.f32.mrf.mxu0
      %1070 = vmatprep.mubr.bf16.mxu0 0
      %1071 = vmatmul.mubr.bf16.gmra.mxu0 %v985
      %v1072 = vpop.f32.mrf.mxu0
      %v1073 = vadd.f32 0.0, %v1072
      %v1074 = vpop.f32.mrf.mxu0
      %v1075 = vpop.f32.mrf.mxu0
      %v1076 = vadd.f32 0.0, %v1075
      %v1077 = vpop.f32.mrf.mxu0
      %1078 = vmatprep.mubr.bf16.mxu0 0
      %1079 = vmatmul.mubr.bf16.gmra.mxu0 %v988
      %v1080 = vpop.f32.mrf.mxu0
      %v1081 = vadd.f32 0.0, %v1080
      %v1082 = vpop.f32.mrf.mxu0
      %v1083 = vpop.f32.mrf.mxu0
      %v1084 = vadd.f32 0.0, %v1083
      %v1085 = vpop.f32.mrf.mxu0
      %1086 = vmatprep.mubr.bf16.mxu0 0
      %1087 = vmatmul.mubr.bf16.gmra.mxu0 %v991
      %v1088 = vpop.f32.mrf.mxu0
      %v1089 = vadd.f32 0.0, %v1088
      %v1090 = vpop.f32.mrf.mxu0
      %v1091 = vpop.f32.mrf.mxu0
      %v1092 = vadd.f32 0.0, %v1091
      %v1093 = vpop.f32.mrf.mxu0
      %1094 = vmatprep.mubr.bf16.mxu0 0
      %1095 = vmatmul.mubr.bf16.gmra.mxu0 %v994
      %v1096 = vpop.f32.mrf.mxu0
      %v1097 = vadd.f32 0.0, %v1096
      %v1098 = vpop.f32.mrf.mxu0
      %v1099 = vpop.f32.mrf.mxu0
      %v1100 = vadd.f32 0.0, %v1099
      %v1101 = vpop.f32.mrf.mxu0
      %1102 = vmatprep.mubr.bf16.mxu0 0
      %1103 = vmatmul.mubr.bf16.gmra.mxu0 %v997
      %v1104 = vpop.f32.mrf.mxu0
      %v1105 = vadd.f32 0.0, %v1104
      %v1106 = vpop.f32.mrf.mxu0
      %v1107 = vpop.f32.mrf.mxu0
      %v1108 = vadd.f32 0.0, %v1107
      %v1109 = vpop.f32.mrf.mxu0
      %1110 = vmatprep.mubr.bf16.mxu0 0
      %1111 = vmatmul.mubr.bf16.gmra.mxu0 %v1000
      %v1112 = vpop.f32.mrf.mxu0
      %v1113 = vadd.f32 0.0, %v1112
      %v1114 = vpop.f32.mrf.mxu0
      %v1115 = vpop.f32.mrf.mxu0
      %v1116 = vadd.f32 0.0, %v1115
      %v1117 = vpop.f32.mrf.mxu0
      %1118 = vmatprep.mubr.bf16.mxu0 0
      %1119 = vmatmul.mubr.bf16.gmra.mxu0 %v1003
      %v1120 = vpop.f32.mrf.mxu0
      %v1121 = vadd.f32 0.0, %v1120
      %v1122 = vpop.f32.mrf.mxu0
      %v1123 = vpop.f32.mrf.mxu0
      %v1124 = vadd.f32 0.0, %v1123
      %v1125 = vpop.f32.mrf.mxu0
      %1126 = vmatprep.mubr.bf16.mxu0 0
      %1127 = vmatmul.mubr.bf16.gmra.mxu0 %v1006
      %v1128 = vpop.f32.mrf.mxu0
      %v1129 = vadd.f32 0.0, %v1128
      %v1130 = vpop.f32.mrf.mxu0
      %v1131 = vpop.f32.mrf.mxu0
      %v1132 = vadd.f32 0.0, %v1131
      %v1133 = vpop.f32.mrf.mxu0
      %1134 = vmatprep.mubr.bf16.mxu0 0
      %1135 = vmatmul.mubr.bf16.gmra.mxu0 %v1009
      %v1136 = vpop.f32.mrf.mxu0
      %v1137 = vadd.f32 0.0, %v1136
      %v1138 = vpop.f32.mrf.mxu0
      %v1139 = vpop.f32.mrf.mxu0
      %v1140 = vadd.f32 0.0, %v1139
      %v1141 = vpop.f32.mrf.mxu0
      %1142 = vmatprep.mubr.bf16.mxu0 0
      %1143 = vmatmul.mubr.bf16.gmra.mxu0 %v1012
      %v1144 = vpop.f32.mrf.mxu0
      %v1145 = vadd.f32 0.0, %v1144
      %v1146 = vpop.f32.mrf.mxu0
      %v1147 = vpop.f32.mrf.mxu0
      %v1148 = vpop.f32.mrf.mxu0
      %1149 = vdwg.mxu0
      %v1150 = vmax.f32 %v862, %v1049
      %v1151 = vmax.f32 %v863, %v1052
      %v1152 = vmax.f32 %v864, %v1057
      %v1153 = vmax.f32 %v865, %v1060
      %v1154 = vmax.f32 %v866, %v1065
      %v1155 = vmax.f32 %v867, %v1068
      %v1156 = vmax.f32 %v868, %v1073
      %v1157 = vmax.f32 %v869, %v1076
      %v1158 = vmax.f32 %v870, %v1081
      %v1159 = vmax.f32 %v871, %v1084
      %v1160 = vmax.f32 %v872, %v1089
      %v1161 = vmax.f32 %v873, %v1092
      %v1162 = vmax.f32 %v874, %v1097
      %v1163 = vmax.f32 %v875, %v1100
      %v1164 = vmax.f32 %v876, %v1105
      %v1165 = vmax.f32 %v877, %v1108
      %v1166 = vmax.f32 %v878, %v1113
      %v1167 = vmax.f32 %v879, %v1116
      %v1168 = vmax.f32 %v880, %v1121
      %v1169 = vmax.f32 %v881, %v1124
      %v1170 = vmax.f32 %v882, %v1129
      %v1171 = vmax.f32 %v883, %v1132
      %v1172 = vmax.f32 %v884, %v1137
      %v1173 = vmax.f32 %v885, %v1140
      %v1174 = vmax.f32 %v886, %v1145
      %v1175 = vld [vmem:[%s306] sm:$0xf]
      %v1176 = vld [vmem:[%s306 + $0x4] sm:$0xf]
      %v1177 = vld [vmem:[%s306 + $0x8] sm:$0xf]
      %v1178 = vld [vmem:[%s306 + $0xc] sm:$0xf]
      %v1179 = vld [vmem:[%s306 + $0x10] sm:$0xf]
      %v1180 = vld [vmem:[%s306 + $0x14] sm:$0xf]
      %v1181 = vld [vmem:[%s306 + $0x18] sm:$0xf]
      %v1182 = vld [vmem:[%s306 + $0x1c] sm:$0xf]
      %v1183 = vld [vmem:[%s306 + $0x20] sm:$0xf]
      %v1184 = vld [vmem:[%s306 + $0x24] sm:$0xf]
      %v1185 = vld [vmem:[%s306 + $0x28] sm:$0xf]
      %v1186 = vld [vmem:[%s306 + $0x2c] sm:$0xf]
      %v1187 = vld [vmem:[%s306 + $0x30] sm:$0xf]
      %v1188 = vld [vmem:[%s306 + $0x34] sm:$0xf]
      %v1189 = vld [vmem:[%s306 + $0x38] sm:$0xf]
      %v1190 = vld [vmem:[%s306 + $0x3c] sm:$0xf]
      %v1191 = vld [vmem:[%s306 + $0x40] sm:$0xf]
      %v1192 = vld [vmem:[%s306 + $0x44] sm:$0xf]
      %v1193 = vld [vmem:[%s306 + $0x48] sm:$0xf]
      %v1194 = vld [vmem:[%s306 + $0x4c] sm:$0xf]
      %v1195 = vld [vmem:[%s306 + $0x50] sm:$0xf]
      %v1196 = vld [vmem:[%s306 + $0x54] sm:$0xf]
      %v1197 = vld [vmem:[%s306 + $0x58] sm:$0xf]
      %v1198 = vld [vmem:[%s306 + $0x5c] sm:$0xf]
      %v1199 = vld [vmem:[%s306 + $0x60] sm:$0x3]
      %v1225 = vunpack.c.l.b16 %v1175
      %v1226 = vunpack.c.l.b16 %v1176
      %v1227 = vunpack.c.l.b16 %v1177
      %v1228 = vunpack.c.l.b16 %v1178
      %v1229 = vunpack.c.l.b16 %v1179
      %v1230 = vunpack.c.l.b16 %v1180
      %v1231 = vunpack.c.l.b16 %v1181
      %v1232 = vunpack.c.l.b16 %v1182
      %v1233 = vunpack.c.l.b16 %v1183
      %v1234 = vunpack.c.l.b16 %v1184
      %v1235 = vunpack.c.l.b16 %v1185
      %v1236 = vunpack.c.l.b16 %v1186
      %v1237 = vunpack.c.l.b16 %v1187
      %v1238 = vunpack.c.l.b16 %v1188
      %v1239 = vunpack.c.l.b16 %v1189
      %v1240 = vunpack.c.l.b16 %v1190
      %v1241 = vunpack.c.l.b16 %v1191
      %v1242 = vunpack.c.l.b16 %v1192
      %v1243 = vunpack.c.l.b16 %v1193
      %v1244 = vunpack.c.l.b16 %v1194
      %v1245 = vunpack.c.l.b16 %v1195
      %v1246 = vunpack.c.l.b16 %v1196
      %v1247 = vunpack.c.l.b16 %v1197
      %v1248 = vunpack.c.l.b16 %v1198
      %v1249 = vunpack.c.l.b16 %v1199
      %v1250 = vpack.c.b16 %v1226, %v1225
      %v1251 = vpack.c.b16 %v1228, %v1227
      %v1252 = vpack.c.b16 %v1230, %v1229
      %v1253 = vpack.c.b16 %v1232, %v1231
      %v1254 = vpack.c.b16 %v1234, %v1233
      %v1255 = vpack.c.b16 %v1236, %v1235
      %v1256 = vpack.c.b16 %v1238, %v1237
      %v1257 = vpack.c.b16 %v1240, %v1239
      %v1258 = vpack.c.b16 %v1242, %v1241
      %v1259 = vpack.c.b16 %v1244, %v1243
      %v1260 = vpack.c.b16 %v1246, %v1245
      %v1261 = vpack.c.b16 %v1248, %v1247
      %v1262 = vpack.c.b16 %v1249, %v1249
      %v1264 = vsel %vm416, %v1250, 0
      %v1267 = vsel %vm416, %v1251, 0
      %v1270 = vsel %vm416, %v1252, 0
      %v1273 = vsel %vm416, %v1253, 0
      %v1276 = vsel %vm416, %v1254, 0
      %v1279 = vsel %vm416, %v1255, 0
      %v1282 = vsel %vm416, %v1256, 0
      %v1285 = vsel %vm416, %v1257, 0
      %v1288 = vsel %vm416, %v1258, 0
      %v1291 = vsel %vm416, %v1259, 0
      %v1294 = vsel %vm416, %v1260, 0
      %v1297 = vsel %vm416, %v1261, 0
      %v1300 = vsel %vm416, %v1262, 0
      %1302 = vmatprep.subr.bf16.mxu0 0
      %1303 = vmatpush1.bf16.msra.mxu0 0
      %1304 = vmatprep.subr.bf16.mxu0 0
      %1305 = vmatpush1.bf16.msra.mxu0 0
      %1306 = vmatprep.subr.bf16.mxu0 0
      %1307 = vmatpush1.bf16.msra.mxu0 0
      %1308 = vmatprep.subr.bf16.mxu0 0
      %1309 = vmatpush1.bf16.msra.mxu0 0
      %1310 = vmatprep.subr.bf16.mxu0 0
      %1311 = vmatpush1.bf16.msra.mxu0 0
      %1312 = vmatprep.subr.bf16.mxu0 0
      %1313 = vmatpush1.bf16.msra.mxu0 0
      %1314 = vmatprep.subr.bf16.mxu0 0
      %1315 = vmatpush1.bf16.msra.mxu0 %v461
      %1316 = vmatprep.subr.bf16.mxu0 0
      %1317 = vmatpush1.bf16.msra.mxu0 %v413
      %1318 = vmatprep.subr.bf16.mxu0 0
      %1319 = vmatpush2.bf16.msra.mxu0 0
      %1320 = vmatprep.subr.bf16.mxu0 0
      %1321 = vmatpush2.bf16.msra.mxu0 0
      %1322 = vmatprep.subr.bf16.mxu0 0
      %1323 = vmatpush2.bf16.msra.mxu0 0
      %1324 = vmatprep.subr.bf16.mxu0 0
      %1325 = vmatpush2.bf16.msra.mxu0 0
      %1326 = vmatprep.subr.bf16.mxu0 0
      %1327 = vmatpush2.bf16.msra.mxu0 0
      %1328 = vmatprep.subr.bf16.mxu0 0
      %1329 = vmatpush2.bf16.msra.mxu0 0
      %1330 = vmatprep.subr.bf16.mxu0 0
      %1331 = vmatpush2.bf16.msra.mxu0 0
      %1332 = vmatprep.subr.bf16.mxu0 0
      %1333 = vmatpush2.bf16.msra.mxu0 0
      %1334 = vmatprep.mubr.bf16.mxu0 0
      %1335 = vmatmul.mubr.bf16.gmra.mxu0 %v1264
      %v1336 = vpop.f32.mrf.mxu0
      %v1337 = vadd.f32 0.0, %v1336
      %v1338 = vpop.f32.mrf.mxu0
      %v1339 = vpop.f32.mrf.mxu0
      %v1340 = vadd.f32 0.0, %v1339
      %v1341 = vpop.f32.mrf.mxu0
      %1342 = vmatprep.mubr.bf16.mxu0 0
      %1343 = vmatmul.mubr.bf16.gmra.mxu0 %v1267
      %v1344 = vpop.f32.mrf.mxu0
      %v1345 = vadd.f32 0.0, %v1344
      %v1346 = vpop.f32.mrf.mxu0
      %v1347 = vpop.f32.mrf.mxu0
      %v1348 = vadd.f32 0.0, %v1347
      %v1349 = vpop.f32.mrf.mxu0
      %1350 = vmatprep.mubr.bf16.mxu0 0
      %1351 = vmatmul.mubr.bf16.gmra.mxu0 %v1270
      %v1352 = vpop.f32.mrf.mxu0
      %v1353 = vadd.f32 0.0, %v1352
      %v1354 = vpop.f32.mrf.mxu0
      %v1355 = vpop.f32.mrf.mxu0
      %v1356 = vadd.f32 0.0, %v1355
      %v1357 = vpop.f32.mrf.mxu0
      %1358 = vmatprep.mubr.bf16.mxu0 0
      %1359 = vmatmul.mubr.bf16.gmra.mxu0 %v1273
      %v1360 = vpop.f32.mrf.mxu0
      %v1361 = vadd.f32 0.0, %v1360
      %v1362 = vpop.f32.mrf.mxu0
      %v1363 = vpop.f32.mrf.mxu0
      %v1364 = vadd.f32 0.0, %v1363
      %v1365 = vpop.f32.mrf.mxu0
      %1366 = vmatprep.mubr.bf16.mxu0 0
      %1367 = vmatmul.mubr.bf16.gmra.mxu0 %v1276
      %v1368 = vpop.f32.mrf.mxu0
      %v1369 = vadd.f32 0.0, %v1368
      %v1370 = vpop.f32.mrf.mxu0
      %v1371 = vpop.f32.mrf.mxu0
      %v1372 = vadd.f32 0.0, %v1371
      %v1373 = vpop.f32.mrf.mxu0
      %1374 = vmatprep.mubr.bf16.mxu0 0
      %1375 = vmatmul.mubr.bf16.gmra.mxu0 %v1279
      %v1376 = vpop.f32.mrf.mxu0
      %v1377 = vadd.f32 0.0, %v1376
      %v1378 = vpop.f32.mrf.mxu0
      %v1379 = vpop.f32.mrf.mxu0
      %v1380 = vadd.f32 0.0, %v1379
      %v1381 = vpop.f32.mrf.mxu0
      %1382 = vmatprep.mubr.bf16.mxu0 0
      %1383 = vmatmul.mubr.bf16.gmra.mxu0 %v1282
      %v1384 = vpop.f32.mrf.mxu0
      %v1385 = vadd.f32 0.0, %v1384
      %v1386 = vpop.f32.mrf.mxu0
      %v1387 = vpop.f32.mrf.mxu0
      %v1388 = vadd.f32 0.0, %v1387
      %v1389 = vpop.f32.mrf.mxu0
      %1390 = vmatprep.mubr.bf16.mxu0 0
      %1391 = vmatmul.mubr.bf16.gmra.mxu0 %v1285
      %v1392 = vpop.f32.mrf.mxu0
      %v1393 = vadd.f32 0.0, %v1392
      %v1394 = vpop.f32.mrf.mxu0
      %v1395 = vpop.f32.mrf.mxu0
      %v1396 = vadd.f32 0.0, %v1395
      %v1397 = vpop.f32.mrf.mxu0
      %1398 = vmatprep.mubr.bf16.mxu0 0
      %1399 = vmatmul.mubr.bf16.gmra.mxu0 %v1288
      %v1400 = vpop.f32.mrf.mxu0
      %v1401 = vadd.f32 0.0, %v1400
      %v1402 = vpop.f32.mrf.mxu0
      %v1403 = vpop.f32.mrf.mxu0
      %v1404 = vadd.f32 0.0, %v1403
      %v1405 = vpop.f32.mrf.mxu0
      %1406 = vmatprep.mubr.bf16.mxu0 0
      %1407 = vmatmul.mubr.bf16.gmra.mxu0 %v1291
      %v1408 = vpop.f32.mrf.mxu0
      %v1409 = vadd.f32 0.0, %v1408
      %v1410 = vpop.f32.mrf.mxu0
      %v1411 = vpop.f32.mrf.mxu0
      %v1412 = vadd.f32 0.0, %v1411
      %v1413 = vpop.f32.mrf.mxu0
      %1414 = vmatprep.mubr.bf16.mxu0 0
      %1415 = vmatmul.mubr.bf16.gmra.mxu0 %v1294
      %v1416 = vpop.f32.mrf.mxu0
      %v1417 = vadd.f32 0.0, %v1416
      %v1418 = vpop.f32.mrf.mxu0
      %v1419 = vpop.f32.mrf.mxu0
      %v1420 = vadd.f32 0.0, %v1419
      %v1421 = vpop.f32.mrf.mxu0
      %1422 = vmatprep.mubr.bf16.mxu0 0
      %1423 = vmatmul.mubr.bf16.gmra.mxu0 %v1297
      %v1424 = vpop.f32.mrf.mxu0
      %v1425 = vadd.f32 0.0, %v1424
      %v1426 = vpop.f32.mrf.mxu0
      %v1427 = vpop.f32.mrf.mxu0
      %v1428 = vadd.f32 0.0, %v1427
      %v1429 = vpop.f32.mrf.mxu0
      %1430 = vmatprep.mubr.bf16.mxu0 0
      %1431 = vmatmul.mubr.bf16.gmra.mxu0 %v1300
      %v1432 = vpop.f32.mrf.mxu0
      %v1433 = vadd.f32 0.0, %v1432
      %v1434 = vpop.f32.mrf.mxu0
      %v1435 = vpop.f32.mrf.mxu0
      %v1436 = vpop.f32.mrf.mxu0
      %1437 = vdwg.mxu0
      %v1438 = vmax.f32 %v1150, %v1337
      %v1439 = vmax.f32 %v1151, %v1340
      %v1440 = vmax.f32 %v1152, %v1345
      %v1441 = vmax.f32 %v1153, %v1348
      %v1442 = vmax.f32 %v1154, %v1353
      %v1443 = vmax.f32 %v1155, %v1356
      %v1444 = vmax.f32 %v1156, %v1361
      %v1445 = vmax.f32 %v1157, %v1364
      %v1446 = vmax.f32 %v1158, %v1369
      %v1447 = vmax.f32 %v1159, %v1372
      %v1448 = vmax.f32 %v1160, %v1377
      %v1449 = vmax.f32 %v1161, %v1380
      %v1450 = vmax.f32 %v1162, %v1385
      %v1451 = vmax.f32 %v1163, %v1388
      %v1452 = vmax.f32 %v1164, %v1393
      %v1453 = vmax.f32 %v1165, %v1396
      %v1454 = vmax.f32 %v1166, %v1401
      %v1455 = vmax.f32 %v1167, %v1404
      %v1456 = vmax.f32 %v1168, %v1409
      %v1457 = vmax.f32 %v1169, %v1412
      %v1458 = vmax.f32 %v1170, %v1417
      %v1459 = vmax.f32 %v1171, %v1420
      %v1460 = vmax.f32 %v1172, %v1425
      %v1461 = vmax.f32 %v1173, %v1428
      %v1462 = vmax.f32 %v1174, %v1433
      %v1463 = vld [vmem:[%s5] sm:$0x1]
      %v1465 = vlaneseq
      %v1466 = vshrl.u32 %v1465, 7
      %v1467 = vsub.s32 0, %v1466
      %v1468 = vrot.slane %v1463, %v1467
      %v1470 = vadd.f32 %v1438, %v1468
      %v1471 = vadd.f32 %v1439, %v1468
      %v1472 = vadd.f32 %v1440, %v1468
      %v1473 = vadd.f32 %v1441, %v1468
      %v1474 = vadd.f32 %v1442, %v1468
      %v1475 = vadd.f32 %v1443, %v1468
      %v1476 = vadd.f32 %v1444, %v1468
      %v1477 = vadd.f32 %v1445, %v1468
      %v1478 = vadd.f32 %v1446, %v1468
      %v1479 = vadd.f32 %v1447, %v1468
      %v1480 = vadd.f32 %v1448, %v1468
      %v1481 = vadd.f32 %v1449, %v1468
      %v1482 = vadd.f32 %v1450, %v1468
      %v1483 = vadd.f32 %v1451, %v1468
      %v1484 = vadd.f32 %v1452, %v1468
      %v1485 = vadd.f32 %v1453, %v1468
      %v1486 = vadd.f32 %v1454, %v1468
      %v1487 = vadd.f32 %v1455, %v1468
      %v1488 = vadd.f32 %v1456, %v1468
      %v1489 = vadd.f32 %v1457, %v1468
      %v1490 = vadd.f32 %v1458, %v1468
      %v1491 = vadd.f32 %v1459, %v1468
      %v1492 = vadd.f32 %v1460, %v1468
      %v1493 = vadd.f32 %v1461, %v1468
      %v1494 = vadd.f32 %v1462, %v1468
      %v1495 = vmax.f32 %v1470, 0.0
      %v1496 = vmax.f32 %v1471, 0.0
      %v1497 = vmax.f32 %v1472, 0.0
      %v1498 = vmax.f32 %v1473, 0.0
      %v1499 = vmax.f32 %v1474, 0.0
      %v1500 = vmax.f32 %v1475, 0.0
      %v1501 = vmax.f32 %v1476, 0.0
      %v1502 = vmax.f32 %v1477, 0.0
      %v1503 = vmax.f32 %v1478, 0.0
      %v1504 = vmax.f32 %v1479, 0.0
      %v1505 = vmax.f32 %v1480, 0.0
      %v1506 = vmax.f32 %v1481, 0.0
      %v1507 = vmax.f32 %v1482, 0.0
      %v1508 = vmax.f32 %v1483, 0.0
      %v1509 = vmax.f32 %v1484, 0.0
      %v1510 = vmax.f32 %v1485, 0.0
      %v1511 = vmax.f32 %v1486, 0.0
      %v1512 = vmax.f32 %v1487, 0.0
      %v1513 = vmax.f32 %v1488, 0.0
      %v1514 = vmax.f32 %v1489, 0.0
      %v1515 = vmax.f32 %v1490, 0.0
      %v1516 = vmax.f32 %v1491, 0.0
      %v1517 = vmax.f32 %v1492, 0.0
      %v1518 = vmax.f32 %v1493, 0.0
      %v1519 = vmax.f32 %v1494, 0.0
      %v1520 = vpack.c.bf16 %v1496, %v1495
      %v1521 = vpack.c.bf16 %v1498, %v1497
      %v1522 = vpack.c.bf16 %v1500, %v1499
      %v1523 = vpack.c.bf16 %v1502, %v1501
      %v1524 = vpack.c.bf16 %v1504, %v1503
      %v1525 = vpack.c.bf16 %v1506, %v1505
      %v1526 = vpack.c.bf16 %v1508, %v1507
      %v1527 = vpack.c.bf16 %v1510, %v1509
      %v1528 = vpack.c.bf16 %v1512, %v1511
      %v1529 = vpack.c.bf16 %v1514, %v1513
      %v1530 = vpack.c.bf16 %v1516, %v1515
      %v1531 = vpack.c.bf16 %v1518, %v1517
      %v1532 = vpack.c.bf16 %v1519, %v1519
      %v1546 = vunpack.c.l.b16 %v1520
      %v1547 = vunpack.c.h.b16 %v1520
      %v1548 = vunpack.c.l.b16 %v1521
      %v1549 = vunpack.c.h.b16 %v1521
      %v1550 = vunpack.c.l.b16 %v1522
      %v1551 = vunpack.c.h.b16 %v1522
      %v1552 = vunpack.c.l.b16 %v1523
      %v1553 = vunpack.c.h.b16 %v1523
      %v1554 = vunpack.c.l.b16 %v1524
      %v1555 = vunpack.c.h.b16 %v1524
      %v1556 = vunpack.c.l.b16 %v1525
      %v1557 = vunpack.c.h.b16 %v1525
      %v1558 = vunpack.c.l.b16 %v1526
      %v1559 = vunpack.c.h.b16 %v1526
      %v1560 = vunpack.c.l.b16 %v1527
      %v1561 = vunpack.c.h.b16 %v1527
      %v1562 = vunpack.c.l.b16 %v1528
      %v1563 = vunpack.c.h.b16 %v1528
      %v1564 = vunpack.c.l.b16 %v1529
      %v1565 = vunpack.c.h.b16 %v1529
      %v1566 = vunpack.c.l.b16 %v1530
      %v1567 = vunpack.c.h.b16 %v1530
      %v1568 = vunpack.c.l.b16 %v1531
      %v1569 = vunpack.c.h.b16 %v1531
      %v1570 = vunpack.c.l.b16 %v1532
      %v1571 = vpack.c.b16 %v1546, %v1546
      %v1572 = vpack.c.b16 %v1547, %v1547
      %v1573 = vpack.c.b16 %v1548, %v1548
      %v1574 = vpack.c.b16 %v1549, %v1549
      %v1575 = vpack.c.b16 %v1550, %v1550
      %v1576 = vpack.c.b16 %v1551, %v1551
      %v1577 = vpack.c.b16 %v1552, %v1552
      %v1578 = vpack.c.b16 %v1553, %v1553
      %v1579 = vpack.c.b16 %v1554, %v1554
      %v1580 = vpack.c.b16 %v1555, %v1555
      %v1581 = vpack.c.b16 %v1556, %v1556
      %v1582 = vpack.c.b16 %v1557, %v1557
      %v1583 = vpack.c.b16 %v1558, %v1558
      %v1584 = vpack.c.b16 %v1559, %v1559
      %v1585 = vpack.c.b16 %v1560, %v1560
      %v1586 = vpack.c.b16 %v1561, %v1561
      %v1587 = vpack.c.b16 %v1562, %v1562
      %v1588 = vpack.c.b16 %v1563, %v1563
      %v1589 = vpack.c.b16 %v1564, %v1564
      %v1590 = vpack.c.b16 %v1565, %v1565
      %v1591 = vpack.c.b16 %v1566, %v1566
      %v1592 = vpack.c.b16 %v1567, %v1567
      %v1593 = vpack.c.b16 %v1568, %v1568
      %v1594 = vpack.c.b16 %v1569, %v1569
      %v1595 = vpack.c.b16 %v1570, %v1570
      %1621 = vst [vmem:[%s311] sm:$0xf] %v1571
      %1622 = vst [vmem:[%s311 + $0x4] sm:$0xf] %v1572
      %1623 = vst [vmem:[%s311 + $0x8] sm:$0xf] %v1573
      %1624 = vst [vmem:[%s311 + $0xc] sm:$0xf] %v1574
      %1625 = vst [vmem:[%s311 + $0x10] sm:$0xf] %v1575
      %1626 = vst [vmem:[%s311 + $0x14] sm:$0xf] %v1576
      %1627 = vst [vmem:[%s311 + $0x18] sm:$0xf] %v1577
      %1628 = vst [vmem:[%s311 + $0x1c] sm:$0xf] %v1578
      %1629 = vst [vmem:[%s311 + $0x20] sm:$0xf] %v1579
      %1630 = vst [vmem:[%s311 + $0x24] sm:$0xf] %v1580
      %1631 = vst [vmem:[%s311 + $0x28] sm:$0xf] %v1581
      %1632 = vst [vmem:[%s311 + $0x2c] sm:$0xf] %v1582
      %1633 = vst [vmem:[%s311 + $0x30] sm:$0xf] %v1583
      %1634 = vst [vmem:[%s311 + $0x34] sm:$0xf] %v1584
      %1635 = vst [vmem:[%s311 + $0x38] sm:$0xf] %v1585
      %1636 = vst [vmem:[%s311 + $0x3c] sm:$0xf] %v1586
      %1637 = vst [vmem:[%s311 + $0x40] sm:$0xf] %v1587
      %1638 = vst [vmem:[%s311 + $0x44] sm:$0xf] %v1588
      %1639 = vst [vmem:[%s311 + $0x48] sm:$0xf] %v1589
      %1640 = vst [vmem:[%s311 + $0x4c] sm:$0xf] %v1590
      %1641 = vst [vmem:[%s311 + $0x50] sm:$0xf] %v1591
      %1642 = vst [vmem:[%s311 + $0x54] sm:$0xf] %v1592
      %1643 = vst [vmem:[%s311 + $0x58] sm:$0xf] %v1593
      %1644 = vst [vmem:[%s311 + $0x5c] sm:$0xf] %v1594
      %1645 = vst [vmem:[%s311 + $0x60] sm:$0x3] %v1595
      %p1646 = scmp.lt.s32.totalorder %s17, 1
      %s1647 = scalar_select %p1646, %s17, 1
      %s1648 = smul.addr %s1647, 25
      %s1649 = smul.addr %s1648, 4
      %s1650 = scalar_lea.vmem %s6, %s1649
      // Predicated region
      $region45: #{lenet_forward.3} parent=43 // pred_check
        %p1651 = pneg %p181
      $region46: #{lenet_forward.3} parent=43 // pred_check_branch
        %1653 = sbr.rel (%p1651) target = $region48
      $region47: #{lenet_forward.3} parent=43 // pred_region
        _
      $region48: #{lenet_forward.3} parent=43 // pred_fallthru
        _
    $region44: #{lenet_forward.3} parent=5 // pred_fallthru
      _
    %p1654 = scmp.le.s32.totalorder 2, %s12
    // Predicated region
    $region49: #{lenet_forward.3} parent=5 // pred_check
      %p1655 = pneg %p1654
    $region50: #{lenet_forward.3} parent=5 // pred_check_branch
      %1657 = sbr.rel (%p1655) target = $region52
    $region51: #{lenet_forward.3} parent=5 // pred_region
      %s1658 = ssub.s32 %s12, 2
      // Predicated region
      $region53: #{lenet_forward.3} parent=51 // pred_check
        %p1659 = pneg %p187
      $region54: #{lenet_forward.3} parent=51 // pred_check_branch
        %1661 = sbr.rel (%p1659) target = $region56
      $region55: #{lenet_forward.3} parent=51 // pred_region
        %p1662 = scmp.lt.s32.totalorder %s18, 1
        %s1663 = scalar_select %p1662, %s18, 1
        %s1664 = smul.addr %s1663, 25
        %s1665 = smul.addr %s1664, 4
        %s1666 = scalar_lea.vmem %s6, %s1665
      $region56: #{lenet_forward.3} parent=51 // pred_fallthru
        _
    $region52: #{lenet_forward.3} parent=5 // pred_fallthru
      _
  $region6: #{lenet_forward.3} parent=0 // loop_footer
    %s16 = sadd.s32 1, %s12
  $region7: #{lenet_forward.3} parent=0 // loop_footer_branch
    %11 = sbr.rel target = $region3
  $region8: #{lenet_forward.3} parent=0 // loop_exit
    _

// kernel: lenet_forward.5
$region0: #{lenet_forward.5}
  #allocation0 [shape = 'u32[]', space=smem, size = 0x4, offset = 0x4, fixed_abs, tag = 'smem constant byte address 0x4 - core index']
  #allocation1 [shape = 'u32[144,128]{1,0:T(1,128)}', space=vmem, size = 0x12000, scoped, tag = 'internal scratch']
  %s0 = inlined_call_operand.vmem [shape: bf16[2,3200], index: 0, kind: input, shape index: {}]
  %s1 = inlined_call_operand.vmem [shape: bf16[3200,128], index: 1, kind: input, shape index: {}]
  %s2 = inlined_call_operand.vmem [shape: f32[1,128], index: 2, kind: input, shape index: {}]
  %s3 = inlined_call_operand.vmem [shape: bf16[128,128], index: 3, kind: input, shape index: {}]
  %s4 = inlined_call_operand.vmem [shape: f32[1,128], index: 4, kind: input, shape index: {}]
  %s5 = inlined_call_operand.vmem [shape: bf16[128,128], index: 5, kind: input, shape index: {}]
  %s6 = inlined_call_operand.vmem [shape: f32[1,128], index: 6, kind: input, shape index: {}]
  %s7 = inlined_call_operand.hbm [shape: f32[2,128], index: 7, kind: output, shape index: {}]
  %s8 = sld [smem:[#allocation0]]
  $region38: #{lenet_forward.5} parent=0
    _
  %s10 = ssub.s32 1, %s8
  %s11 = scalar_select 0, %s10, %s8
  $region1: #{lenet_forward.5} parent=0
    #allocation2 [shape = 'u8[1024]{0}', space=vmem, size = 0x400, scoped, tag = 'output window, operand 0, single buffered']
    #allocation3 [shape = 's32[1]{0}', space=sflag, size = 0x4, scoped, tag = 'scoped memory for lenet_forward.5']
    %12 = vsyncpa [#allocation3], 0
    // Predicated region
    $region2: #{lenet_forward.5} parent=1 // pred_check
      _
    $region3: #{lenet_forward.5} parent=1 // pred_check_branch
      %14 = sbr.rel (0) target = $region5
    $region4: #{lenet_forward.5} parent=1 // pred_region
      _
    $region5: #{lenet_forward.5} parent=1 // pred_fallthru
      _
    // Predicated region
    $region6: #{lenet_forward.5} parent=1 // pred_check
      _
    $region7: #{lenet_forward.5} parent=1 // pred_check_branch
      %16 = sbr.rel (0) target = $region9
    $region8: #{lenet_forward.5} parent=1 // pred_region
      _
    $region9: #{lenet_forward.5} parent=1 // pred_fallthru
      _
    // Predicated region
    $region10: #{lenet_forward.5} parent=1 // pred_check
      _
    $region11: #{lenet_forward.5} parent=1 // pred_check_branch
      %18 = sbr.rel (0) target = $region13
    $region12: #{lenet_forward.5} parent=1 // pred_region
      _
    $region13: #{lenet_forward.5} parent=1 // pred_fallthru
      _
    // Predicated region
    $region14: #{lenet_forward.5} parent=1 // pred_check
      _
    $region15: #{lenet_forward.5} parent=1 // pred_check_branch
      %20 = sbr.rel (0) target = $region17
    $region16: #{lenet_forward.5} parent=1 // pred_region
      _
    $region17: #{lenet_forward.5} parent=1 // pred_fallthru
      _
    // Predicated region
    $region18: #{lenet_forward.5} parent=1 // pred_check
      _
    $region19: #{lenet_forward.5} parent=1 // pred_check_branch
      %22 = sbr.rel (0) target = $region21
    $region20: #{lenet_forward.5} parent=1 // pred_region
      _
    $region21: #{lenet_forward.5} parent=1 // pred_fallthru
      _
    // Predicated region
    $region22: #{lenet_forward.5} parent=1 // pred_check
      _
    $region23: #{lenet_forward.5} parent=1 // pred_check_branch
      %24 = sbr.rel (0) target = $region25
    $region24: #{lenet_forward.5} parent=1 // pred_region
      _
    $region25: #{lenet_forward.5} parent=1 // pred_fallthru
      _
    // Predicated region
    $region26: #{lenet_forward.5} parent=1 // pred_check
      _
    $region27: #{lenet_forward.5} parent=1 // pred_check_branch
      %26 = sbr.rel (0) target = $region29
    $region28: #{lenet_forward.5} parent=1 // pred_region
      _
    $region29: #{lenet_forward.5} parent=1 // pred_fallthru
      _
    %v28 = vld [vmem:[%s0] sm:$0xff]
    %v29 = vld [vmem:[%s0 + $0x8] sm:$0xff]
    %v30 = vld [vmem:[%s0 + $0x10] sm:$0xff]
    %v31 = vld [vmem:[%s0 + $0x18] sm:$0x1]
    %v32 = vld [vmem:[%s1] sm:$0xf]
    %v33 = vld [vmem:[%s1 + $0x4] sm:$0xf]
    %v34 = vld [vmem:[%s1 + $0x8] sm:$0xf]
    %v35 = vld [vmem:[%s1 + $0xc] sm:$0xf]
    %v36 = vld [vmem:[%s1 + $0x10] sm:$0xf]
    %v37 = vld [vmem:[%s1 + $0x14] sm:$0xf]
    %v38 = vld [vmem:[%s1 + $0x18] sm:$0xf]
    %v39 = vld [vmem:[%s1 + $0x1c] sm:$0xf]
    %v40 = vld [vmem:[%s1 + $0x20] sm:$0xf]
    %v41 = vld [vmem:[%s1 + $0x24] sm:$0xf]
    %v42 = vld [vmem:[%s1 + $0x28] sm:$0xf]
    %v43 = vld [vmem:[%s1 + $0x2c] sm:$0xf]
    %v44 = vld [vmem:[%s1 + $0x30] sm:$0xf]
    %v45 = vld [vmem:[%s1 + $0x34] sm:$0xf]
    %v46 = vld [vmem:[%s1 + $0x38] sm:$0xf]
    %v47 = vld [vmem:[%s1 + $0x3c] sm:$0xf]
    %v48 = vld [vmem:[%s1 + $0x40] sm:$0xf]
    %v49 = vld [vmem:[%s1 + $0x44] sm:$0xf]
    %v50 = vld [vmem:[%s1 + $0x48] sm:$0xf]
    %v51 = vld [vmem:[%s1 + $0x4c] sm:$0xf]
    %v52 = vld [vmem:[%s1 + $0x50] sm:$0xf]
    %v53 = vld [vmem:[%s1 + $0x54] sm:$0xf]
    %v54 = vld [vmem:[%s1 + $0x58] sm:$0xf]
    %v55 = vld [vmem:[%s1 + $0x5c] sm:$0xf]
    %v56 = vld [vmem:[%s1 + $0x60] sm:$0xf]
    %v57 = vld [vmem:[%s1 + $0x64] sm:$0xf]
    %v58 = vld [vmem:[%s1 + $0x68] sm:$0xf]
    %v59 = vld [vmem:[%s1 + $0x6c] sm:$0xf]
    %v60 = vld [vmem:[%s1 + $0x70] sm:$0xf]
    %v61 = vld [vmem:[%s1 + $0x74] sm:$0xf]
    %v62 = vld [vmem:[%s1 + $0x78] sm:$0xf]
    %v63 = vld [vmem:[%s1 + $0x7c] sm:$0xf]
    %v64 = vld [vmem:[%s1 + $0x80] sm:$0xf]
    %v65 = vld [vmem:[%s1 + $0x84] sm:$0xf]
    %v66 = vld [vmem:[%s1 + $0x88] sm:$0xf]
    %v67 = vld [vmem:[%s1 + $0x8c] sm:$0xf]
    %v68 = vld [vmem:[%s1 + $0x90] sm:$0xf]
    %v69 = vld [vmem:[%s1 + $0x94] sm:$0xf]
    %v70 = vld [vmem:[%s1 + $0x98] sm:$0xf]
    %v71 = vld [vmem:[%s1 + $0x9c] sm:$0xf]
    %v72 = vld [vmem:[%s1 + $0xa0] sm:$0xf]
    %v73 = vld [vmem:[%s1 + $0xa4] sm:$0xf]
    %v74 = vld [vmem:[%s1 + $0xa8] sm:$0xf]
    %v75 = vld [vmem:[%s1 + $0xac] sm:$0xf]
    %v76 = vld [vmem:[%s1 + $0xb0] sm:$0xf]
    %v77 = vld [vmem:[%s1 + $0xb4] sm:$0xf]
    %v78 = vld [vmem:[%s1 + $0xb8] sm:$0xf]
    %v79 = vld [vmem:[%s1 + $0xbc] sm:$0xf]
    %v80 = vld [vmem:[%s1 + $0xc0] sm:$0xf]
    %v81 = vld [vmem:[%s1 + $0xc4] sm:$0xf]
    %v82 = vld [vmem:[%s1 + $0xc8] sm:$0xf]
    %v83 = vld [vmem:[%s1 + $0xcc] sm:$0xf]
    %v84 = vld [vmem:[%s1 + $0xd0] sm:$0xf]
    %v85 = vld [vmem:[%s1 + $0xd4] sm:$0xf]
    %v86 = vld [vmem:[%s1 + $0xd8] sm:$0xf]
    %v87 = vld [vmem:[%s1 + $0xdc] sm:$0xf]
    %v88 = vld [vmem:[%s1 + $0xe0] sm:$0xf]
    %v89 = vld [vmem:[%s1 + $0xe4] sm:$0xf]
    %v90 = vld [vmem:[%s1 + $0xe8] sm:$0xf]
    %v91 = vld [vmem:[%s1 + $0xec] sm:$0xf]
    %v92 = vld [vmem:[%s1 + $0xf0] sm:$0xf]
    %v93 = vld [vmem:[%s1 + $0xf4] sm:$0xf]
    %v94 = vld [vmem:[%s1 + $0xf8] sm:$0xf]
    %v95 = vld [vmem:[%s1 + $0xfc] sm:$0xf]
    %v96 = vld [vmem:[%s1 + $0x100] sm:$0xf]
    %v97 = vld [vmem:[%s1 + $0x104] sm:$0xf]
    %v98 = vld [vmem:[%s1 + $0x108] sm:$0xf]
    %v99 = vld [vmem:[%s1 + $0x10c] sm:$0xf]
    %v100 = vld [vmem:[%s1 + $0x110] sm:$0xf]
    %v101 = vld [vmem:[%s1 + $0x114] sm:$0xf]
    %v102 = vld [vmem:[%s1 + $0x118] sm:$0xf]
    %v103 = vld [vmem:[%s1 + $0x11c] sm:$0xf]
    %v104 = vld [vmem:[%s1 + $0x120] sm:$0xf]
    %v105 = vld [vmem:[%s1 + $0x124] sm:$0xf]
    %v106 = vld [vmem:[%s1 + $0x128] sm:$0xf]
    %v107 = vld [vmem:[%s1 + $0x12c] sm:$0xf]
    %v108 = vld [vmem:[%s1 + $0x130] sm:$0xf]
    %v109 = vld [vmem:[%s1 + $0x134] sm:$0xf]
    %v110 = vld [vmem:[%s1 + $0x138] sm:$0xf]
    %v111 = vld [vmem:[%s1 + $0x13c] sm:$0xf]
    %v112 = vld [vmem:[%s1 + $0x140] sm:$0xf]
    %v113 = vld [vmem:[%s1 + $0x144] sm:$0xf]
    %v114 = vld [vmem:[%s1 + $0x148] sm:$0xf]
    %v115 = vld [vmem:[%s1 + $0x14c] sm:$0xf]
    %v116 = vld [vmem:[%s1 + $0x150] sm:$0xf]
    %v117 = vld [vmem:[%s1 + $0x154] sm:$0xf]
    %v118 = vld [vmem:[%s1 + $0x158] sm:$0xf]
    %v119 = vld [vmem:[%s1 + $0x15c] sm:$0xf]
    %v120 = vld [vmem:[%s1 + $0x160] sm:$0xf]
    %v121 = vld [vmem:[%s1 + $0x164] sm:$0xf]
    %v122 = vld [vmem:[%s1 + $0x168] sm:$0xf]
    %v123 = vld [vmem:[%s1 + $0x16c] sm:$0xf]
    %v124 = vld [vmem:[%s1 + $0x170] sm:$0xf]
    %v125 = vld [vmem:[%s1 + $0x174] sm:$0xf]
    %v126 = vld [vmem:[%s1 + $0x178] sm:$0xf]
    %v127 = vld [vmem:[%s1 + $0x17c] sm:$0xf]
    %v128 = vld [vmem:[%s1 + $0x180] sm:$0xf]
    %v129 = vld [vmem:[%s1 + $0x184] sm:$0xf]
    %v130 = vld [vmem:[%s1 + $0x188] sm:$0xf]
    %v131 = vld [vmem:[%s1 + $0x18c] sm:$0xf]
    %v132 = vld [vmem:[%s1 + $0x190] sm:$0xf]
    %v133 = vld [vmem:[%s1 + $0x194] sm:$0xf]
    %v134 = vld [vmem:[%s1 + $0x198] sm:$0xf]
    %v135 = vld [vmem:[%s1 + $0x19c] sm:$0xf]
    %v136 = vld [vmem:[%s1 + $0x1a0] sm:$0xf]
    %v137 = vld [vmem:[%s1 + $0x1a4] sm:$0xf]
    %v138 = vld [vmem:[%s1 + $0x1a8] sm:$0xf]
    %v139 = vld [vmem:[%s1 + $0x1ac] sm:$0xf]
    %v140 = vld [vmem:[%s1 + $0x1b0] sm:$0xf]
    %v141 = vld [vmem:[%s1 + $0x1b4] sm:$0xf]
    %v142 = vld [vmem:[%s1 + $0x1b8] sm:$0xf]
    %v143 = vld [vmem:[%s1 + $0x1bc] sm:$0xf]
    %v144 = vld [vmem:[%s1 + $0x1c0] sm:$0xf]
    %v145 = vld [vmem:[%s1 + $0x1c4] sm:$0xf]
    %v146 = vld [vmem:[%s1 + $0x1c8] sm:$0xf]
    %v147 = vld [vmem:[%s1 + $0x1cc] sm:$0xf]
    %v148 = vld [vmem:[%s1 + $0x1d0] sm:$0xf]
    %v149 = vld [vmem:[%s1 + $0x1d4] sm:$0xf]
    %v150 = vld [vmem:[%s1 + $0x1d8] sm:$0xf]
    %v151 = vld [vmem:[%s1 + $0x1dc] sm:$0xf]
    %v152 = vld [vmem:[%s1 + $0x1e0] sm:$0xf]
    %v153 = vld [vmem:[%s1 + $0x1e4] sm:$0xf]
    %v154 = vld [vmem:[%s1 + $0x1e8] sm:$0xf]
    %v155 = vld [vmem:[%s1 + $0x1ec] sm:$0xf]
    %v156 = vld [vmem:[%s1 + $0x1f0] sm:$0xf]
    %v157 = vld [vmem:[%s1 + $0x1f4] sm:$0xf]
    %v158 = vld [vmem:[%s1 + $0x1f8] sm:$0xf]
    %v159 = vld [vmem:[%s1 + $0x1fc] sm:$0xf]
    %v160 = vld [vmem:[%s1 + $0x200] sm:$0xf]
    %v161 = vld [vmem:[%s1 + $0x204] sm:$0xf]
    %v162 = vld [vmem:[%s1 + $0x208] sm:$0xf]
    %v163 = vld [vmem:[%s1 + $0x20c] sm:$0xf]
    %v164 = vld [vmem:[%s1 + $0x210] sm:$0xf]
    %v165 = vld [vmem:[%s1 + $0x214] sm:$0xf]
    %v166 = vld [vmem:[%s1 + $0x218] sm:$0xf]
    %v167 = vld [vmem:[%s1 + $0x21c] sm:$0xf]
    %v168 = vld [vmem:[%s1 + $0x220] sm:$0xf]
    %v169 = vld [vmem:[%s1 + $0x224] sm:$0xf]
    %v170 = vld [vmem:[%s1 + $0x228] sm:$0xf]
    %v171 = vld [vmem:[%s1 + $0x22c] sm:$0xf]
    %v172 = vld [vmem:[%s1 + $0x230] sm:$0xf]
    %v173 = vld [vmem:[%s1 + $0x234] sm:$0xf]
    %v174 = vld [vmem:[%s1 + $0x238] sm:$0xf]
    %v175 = vld [vmem:[%s1 + $0x23c] sm:$0xf]
    %v176 = vld [vmem:[%s1 + $0x240] sm:$0xf]
    %v177 = vld [vmem:[%s1 + $0x244] sm:$0xf]
    %v178 = vld [vmem:[%s1 + $0x248] sm:$0xf]
    %v179 = vld [vmem:[%s1 + $0x24c] sm:$0xf]
    %v180 = vld [vmem:[%s1 + $0x250] sm:$0xf]
    %v181 = vld [vmem:[%s1 + $0x254] sm:$0xf]
    %v182 = vld [vmem:[%s1 + $0x258] sm:$0xf]
    %v183 = vld [vmem:[%s1 + $0x25c] sm:$0xf]
    %v184 = vld [vmem:[%s1 + $0x260] sm:$0xf]
    %v185 = vld [vmem:[%s1 + $0x264] sm:$0xf]
    %v186 = vld [vmem:[%s1 + $0x268] sm:$0xf]
    %v187 = vld [vmem:[%s1 + $0x26c] sm:$0xf]
    %v188 = vld [vmem:[%s1 + $0x270] sm:$0xf]
    %v189 = vld [vmem:[%s1 + $0x274] sm:$0xf]
    %v190 = vld [vmem:[%s1 + $0x278] sm:$0xf]
    %v191 = vld [vmem:[%s1 + $0x27c] sm:$0xf]
    %v192 = vld [vmem:[%s1 + $0x280] sm:$0xf]
    %v193 = vld [vmem:[%s1 + $0x284] sm:$0xf]
    %v194 = vld [vmem:[%s1 + $0x288] sm:$0xf]
    %v195 = vld [vmem:[%s1 + $0x28c] sm:$0xf]
    %v196 = vld [vmem:[%s1 + $0x290] sm:$0xf]
    %v197 = vld [vmem:[%s1 + $0x294] sm:$0xf]
    %v198 = vld [vmem:[%s1 + $0x298] sm:$0xf]
    %v199 = vld [vmem:[%s1 + $0x29c] sm:$0xf]
    %v200 = vld [vmem:[%s1 + $0x2a0] sm:$0xf]
    %v201 = vld [vmem:[%s1 + $0x2a4] sm:$0xf]
    %v202 = vld [vmem:[%s1 + $0x2a8] sm:$0xf]
    %v203 = vld [vmem:[%s1 + $0x2ac] sm:$0xf]
    %v204 = vld [vmem:[%s1 + $0x2b0] sm:$0xf]
    %v205 = vld [vmem:[%s1 + $0x2b4] sm:$0xf]
    %v206 = vld [vmem:[%s1 + $0x2b8] sm:$0xf]
    %v207 = vld [vmem:[%s1 + $0x2bc] sm:$0xf]
    %v208 = vld [vmem:[%s1 + $0x2c0] sm:$0xf]
    %v209 = vld [vmem:[%s1 + $0x2c4] sm:$0xf]
    %v210 = vld [vmem:[%s1 + $0x2c8] sm:$0xf]
    %v211 = vld [vmem:[%s1 + $0x2cc] sm:$0xf]
    %v212 = vld [vmem:[%s1 + $0x2d0] sm:$0xf]
    %v213 = vld [vmem:[%s1 + $0x2d4] sm:$0xf]
    %v214 = vld [vmem:[%s1 + $0x2d8] sm:$0xf]
    %v215 = vld [vmem:[%s1 + $0x2dc] sm:$0xf]
    %v216 = vld [vmem:[%s1 + $0x2e0] sm:$0xf]
    %v217 = vld [vmem:[%s1 + $0x2e4] sm:$0xf]
    %v218 = vld [vmem:[%s1 + $0x2e8] sm:$0xf]
    %v219 = vld [vmem:[%s1 + $0x2ec] sm:$0xf]
    %v220 = vld [vmem:[%s1 + $0x2f0] sm:$0xf]
    %v221 = vld [vmem:[%s1 + $0x2f4] sm:$0xf]
    %v222 = vld [vmem:[%s1 + $0x2f8] sm:$0xf]
    %v223 = vld [vmem:[%s1 + $0x2fc] sm:$0xf]
    %v224 = vld [vmem:[%s1 + $0x300] sm:$0xf]
    %v225 = vld [vmem:[%s1 + $0x304] sm:$0xf]
    %v226 = vld [vmem:[%s1 + $0x308] sm:$0xf]
    %v227 = vld [vmem:[%s1 + $0x30c] sm:$0xf]
    %v228 = vld [vmem:[%s1 + $0x310] sm:$0xf]
    %v229 = vld [vmem:[%s1 + $0x314] sm:$0xf]
    %v230 = vld [vmem:[%s1 + $0x318] sm:$0xf]
    %v231 = vld [vmem:[%s1 + $0x31c] sm:$0xf]
    %v232 = vld [vmem:[%s1 + $0x320] sm:$0xf]
    %v233 = vld [vmem:[%s1 + $0x324] sm:$0xf]
    %v234 = vld [vmem:[%s1 + $0x328] sm:$0xf]
    %v235 = vld [vmem:[%s1 + $0x32c] sm:$0xf]
    %v236 = vld [vmem:[%s1 + $0x330] sm:$0xf]
    %v237 = vld [vmem:[%s1 + $0x334] sm:$0xf]
    %v238 = vld [vmem:[%s1 + $0x338] sm:$0xf]
    %v239 = vld [vmem:[%s1 + $0x33c] sm:$0xf]
    %v240 = vld [vmem:[%s1 + $0x340] sm:$0xf]
    %v241 = vld [vmem:[%s1 + $0x344] sm:$0xf]
    %v242 = vld [vmem:[%s1 + $0x348] sm:$0xf]
    %v243 = vld [vmem:[%s1 + $0x34c] sm:$0xf]
    %v244 = vld [vmem:[%s1 + $0x350] sm:$0xf]
    %v245 = vld [vmem:[%s1 + $0x354] sm:$0xf]
    %v246 = vld [vmem:[%s1 + $0x358] sm:$0xf]
    %v247 = vld [vmem:[%s1 + $0x35c] sm:$0xf]
    %v248 = vld [vmem:[%s1 + $0x360] sm:$0xf]
    %v249 = vld [vmem:[%s1 + $0x364] sm:$0xf]
    %v250 = vld [vmem:[%s1 + $0x368] sm:$0xf]
    %v251 = vld [vmem:[%s1 + $0x36c] sm:$0xf]
    %v252 = vld [vmem:[%s1 + $0x370] sm:$0xf]
    %v253 = vld [vmem:[%s1 + $0x374] sm:$0xf]
    %v254 = vld [vmem:[%s1 + $0x378] sm:$0xf]
    %v255 = vld [vmem:[%s1 + $0x37c] sm:$0xf]
    %v256 = vld [vmem:[%s1 + $0x380] sm:$0xf]
    %v257 = vld [vmem:[%s1 + $0x384] sm:$0xf]
    %v258 = vld [vmem:[%s1 + $0x388] sm:$0xf]
    %v259 = vld [vmem:[%s1 + $0x38c] sm:$0xf]
    %v260 = vld [vmem:[%s1 + $0x390] sm:$0xf]
    %v261 = vld [vmem:[%s1 + $0x394] sm:$0xf]
    %v262 = vld [vmem:[%s1 + $0x398] sm:$0xf]
    %v263 = vld [vmem:[%s1 + $0x39c] sm:$0xf]
    %v264 = vld [vmem:[%s1 + $0x3a0] sm:$0xf]
    %v265 = vld [vmem:[%s1 + $0x3a4] sm:$0xf]
    %v266 = vld [vmem:[%s1 + $0x3a8] sm:$0xf]
    %v267 = vld [vmem:[%s1 + $0x3ac] sm:$0xf]
    %v268 = vld [vmem:[%s1 + $0x3b0] sm:$0xf]
    %v269 = vld [vmem:[%s1 + $0x3b4] sm:$0xf]
    %v270 = vld [vmem:[%s1 + $0x3b8] sm:$0xf]
    %v271 = vld [vmem:[%s1 + $0x3bc] sm:$0xf]
    %v272 = vld [vmem:[%s1 + $0x3c0] sm:$0xf]
    %v273 = vld [vmem:[%s1 + $0x3c4] sm:$0xf]
    %v274 = vld [vmem:[%s1 + $0x3c8] sm:$0xf]
    %v275 = vld [vmem:[%s1 + $0x3cc] sm:$0xf]
    %v276 = vld [vmem:[%s1 + $0x3d0] sm:$0xf]
    %v277 = vld [vmem:[%s1 + $0x3d4] sm:$0xf]
    %v278 = vld [vmem:[%s1 + $0x3d8] sm:$0xf]
    %v279 = vld [vmem:[%s1 + $0x3dc] sm:$0xf]
    %v280 = vld [vmem:[%s1 + $0x3e0] sm:$0xf]
    %v281 = vld [vmem:[%s1 + $0x3e4] sm:$0xf]
    %v282 = vld [vmem:[%s1 + $0x3e8] sm:$0xf]
    %v283 = vld [vmem:[%s1 + $0x3ec] sm:$0xf]
    %v284 = vld [vmem:[%s1 + $0x3f0] sm:$0xf]
    %v285 = vld [vmem:[%s1 + $0x3f4] sm:$0xf]
    %v286 = vld [vmem:[%s1 + $0x3f8] sm:$0xf]
    %v287 = vld [vmem:[%s1 + $0x3fc] sm:$0xf]
    %v288 = vld [vmem:[%s1 + $0x400] sm:$0xf]
    %v289 = vld [vmem:[%s1 + $0x404] sm:$0xf]
    %v290 = vld [vmem:[%s1 + $0x408] sm:$0xf]
    %v291 = vld [vmem:[%s1 + $0x40c] sm:$0xf]
    %v292 = vld [vmem:[%s1 + $0x410] sm:$0xf]
    %v293 = vld [vmem:[%s1 + $0x414] sm:$0xf]
    %v294 = vld [vmem:[%s1 + $0x418] sm:$0xf]
    %v295 = vld [vmem:[%s1 + $0x41c] sm:$0xf]
    %v296 = vld [vmem:[%s1 + $0x420] sm:$0xf]
    %v297 = vld [vmem:[%s1 + $0x424] sm:$0xf]
    %v298 = vld [vmem:[%s1 + $0x428] sm:$0xf]
    %v299 = vld [vmem:[%s1 + $0x42c] sm:$0xf]
    %v300 = vld [vmem:[%s1 + $0x430] sm:$0xf]
    %v301 = vld [vmem:[%s1 + $0x434] sm:$0xf]
    %v302 = vld [vmem:[%s1 + $0x438] sm:$0xf]
    %v303 = vld [vmem:[%s1 + $0x43c] sm:$0xf]
    %v304 = vld [vmem:[%s1 + $0x440] sm:$0xf]
    %v305 = vld [vmem:[%s1 + $0x444] sm:$0xf]
    %v306 = vld [vmem:[%s1 + $0x448] sm:$0xf]
    %v307 = vld [vmem:[%s1 + $0x44c] sm:$0xf]
    %v308 = vld [vmem:[%s1 + $0x450] sm:$0xf]
    %v309 = vld [vmem:[%s1 + $0x454] sm:$0xf]
    %v310 = vld [vmem:[%s1 + $0x458] sm:$0xf]
    %v311 = vld [vmem:[%s1 + $0x45c] sm:$0xf]
    %v312 = vld [vmem:[%s1 + $0x460] sm:$0xf]
    %v313 = vld [vmem:[%s1 + $0x464] sm:$0xf]
    %v314 = vld [vmem:[%s1 + $0x468] sm:$0xf]
    %v315 = vld [vmem:[%s1 + $0x46c] sm:$0xf]
    %v316 = vld [vmem:[%s1 + $0x470] sm:$0xf]
    %v317 = vld [vmem:[%s1 + $0x474] sm:$0xf]
    %v318 = vld [vmem:[%s1 + $0x478] sm:$0xf]
    %v319 = vld [vmem:[%s1 + $0x47c] sm:$0xf]
    %v320 = vld [vmem:[%s1 + $0x480] sm:$0xf]
    %v321 = vld [vmem:[%s1 + $0x484] sm:$0xf]
    %v322 = vld [vmem:[%s1 + $0x488] sm:$0xf]
    %v323 = vld [vmem:[%s1 + $0x48c] sm:$0xf]
    %v324 = vld [vmem:[%s1 + $0x490] sm:$0xf]
    %v325 = vld [vmem:[%s1 + $0x494] sm:$0xf]
    %v326 = vld [vmem:[%s1 + $0x498] sm:$0xf]
    %v327 = vld [vmem:[%s1 + $0x49c] sm:$0xf]
    %v328 = vld [vmem:[%s1 + $0x4a0] sm:$0xf]
    %v329 = vld [vmem:[%s1 + $0x4a4] sm:$0xf]
    %v330 = vld [vmem:[%s1 + $0x4a8] sm:$0xf]
    %v331 = vld [vmem:[%s1 + $0x4ac] sm:$0xf]
    %v332 = vld [vmem:[%s1 + $0x4b0] sm:$0xf]
    %v333 = vld [vmem:[%s1 + $0x4b4] sm:$0xf]
    %v334 = vld [vmem:[%s1 + $0x4b8] sm:$0xf]
    %v335 = vld [vmem:[%s1 + $0x4bc] sm:$0xf]
    %v336 = vld [vmem:[%s1 + $0x4c0] sm:$0xf]
    %v337 = vld [vmem:[%s1 + $0x4c4] sm:$0xf]
    %v338 = vld [vmem:[%s1 + $0x4c8] sm:$0xf]
    %v339 = vld [vmem:[%s1 + $0x4cc] sm:$0xf]
    %v340 = vld [vmem:[%s1 + $0x4d0] sm:$0xf]
    %v341 = vld [vmem:[%s1 + $0x4d4] sm:$0xf]
    %v342 = vld [vmem:[%s1 + $0x4d8] sm:$0xf]
    %v343 = vld [vmem:[%s1 + $0x4dc] sm:$0xf]
    %v344 = vld [vmem:[%s1 + $0x4e0] sm:$0xf]
    %v345 = vld [vmem:[%s1 + $0x4e4] sm:$0xf]
    %v346 = vld [vmem:[%s1 + $0x4e8] sm:$0xf]
    %v347 = vld [vmem:[%s1 + $0x4ec] sm:$0xf]
    %v348 = vld [vmem:[%s1 + $0x4f0] sm:$0xf]
    %v349 = vld [vmem:[%s1 + $0x4f4] sm:$0xf]
    %v350 = vld [vmem:[%s1 + $0x4f8] sm:$0xf]
    %v351 = vld [vmem:[%s1 + $0x4fc] sm:$0xf]
    %v352 = vld [vmem:[%s1 + $0x500] sm:$0xf]
    %v353 = vld [vmem:[%s1 + $0x504] sm:$0xf]
    %v354 = vld [vmem:[%s1 + $0x508] sm:$0xf]
    %v355 = vld [vmem:[%s1 + $0x50c] sm:$0xf]
    %v356 = vld [vmem:[%s1 + $0x510] sm:$0xf]
    %v357 = vld [vmem:[%s1 + $0x514] sm:$0xf]
    %v358 = vld [vmem:[%s1 + $0x518] sm:$0xf]
    %v359 = vld [vmem:[%s1 + $0x51c] sm:$0xf]
    %v360 = vld [vmem:[%s1 + $0x520] sm:$0xf]
    %v361 = vld [vmem:[%s1 + $0x524] sm:$0xf]
    %v362 = vld [vmem:[%s1 + $0x528] sm:$0xf]
    %v363 = vld [vmem:[%s1 + $0x52c] sm:$0xf]
    %v364 = vld [vmem:[%s1 + $0x530] sm:$0xf]
    %v365 = vld [vmem:[%s1 + $0x534] sm:$0xf]
    %v366 = vld [vmem:[%s1 + $0x538] sm:$0xf]
    %v367 = vld [vmem:[%s1 + $0x53c] sm:$0xf]
    %v368 = vld [vmem:[%s1 + $0x540] sm:$0xf]
    %v369 = vld [vmem:[%s1 + $0x544] sm:$0xf]
    %v370 = vld [vmem:[%s1 + $0x548] sm:$0xf]
    %v371 = vld [vmem:[%s1 + $0x54c] sm:$0xf]
    %v372 = vld [vmem:[%s1 + $0x550] sm:$0xf]
    %v373 = vld [vmem:[%s1 + $0x554] sm:$0xf]
    %v374 = vld [vmem:[%s1 + $0x558] sm:$0xf]
    %v375 = vld [vmem:[%s1 + $0x55c] sm:$0xf]
    %v376 = vld [vmem:[%s1 + $0x560] sm:$0xf]
    %v377 = vld [vmem:[%s1 + $0x564] sm:$0xf]
    %v378 = vld [vmem:[%s1 + $0x568] sm:$0xf]
    %v379 = vld [vmem:[%s1 + $0x56c] sm:$0xf]
    %v380 = vld [vmem:[%s1 + $0x570] sm:$0xf]
    %v381 = vld [vmem:[%s1 + $0x574] sm:$0xf]
    %v382 = vld [vmem:[%s1 + $0x578] sm:$0xf]
    %v383 = vld [vmem:[%s1 + $0x57c] sm:$0xf]
    %v384 = vld [vmem:[%s1 + $0x580] sm:$0xf]
    %v385 = vld [vmem:[%s1 + $0x584] sm:$0xf]
    %v386 = vld [vmem:[%s1 + $0x588] sm:$0xf]
    %v387 = vld [vmem:[%s1 + $0x58c] sm:$0xf]
    %v388 = vld [vmem:[%s1 + $0x590] sm:$0xf]
    %v389 = vld [vmem:[%s1 + $0x594] sm:$0xf]
    %v390 = vld [vmem:[%s1 + $0x598] sm:$0xf]
    %v391 = vld [vmem:[%s1 + $0x59c] sm:$0xf]
    %v392 = vld [vmem:[%s1 + $0x5a0] sm:$0xf]
    %v393 = vld [vmem:[%s1 + $0x5a4] sm:$0xf]
    %v394 = vld [vmem:[%s1 + $0x5a8] sm:$0xf]
    %v395 = vld [vmem:[%s1 + $0x5ac] sm:$0xf]
    %v396 = vld [vmem:[%s1 + $0x5b0] sm:$0xf]
    %v397 = vld [vmem:[%s1 + $0x5b4] sm:$0xf]
    %v398 = vld [vmem:[%s1 + $0x5b8] sm:$0xf]
    %v399 = vld [vmem:[%s1 + $0x5bc] sm:$0xf]
    %v400 = vld [vmem:[%s1 + $0x5c0] sm:$0xf]
    %v401 = vld [vmem:[%s1 + $0x5c4] sm:$0xf]
    %v402 = vld [vmem:[%s1 + $0x5c8] sm:$0xf]
    %v403 = vld [vmem:[%s1 + $0x5cc] sm:$0xf]
    %v404 = vld [vmem:[%s1 + $0x5d0] sm:$0xf]
    %v405 = vld [vmem:[%s1 + $0x5d4] sm:$0xf]
    %v406 = vld [vmem:[%s1 + $0x5d8] sm:$0xf]
    %v407 = vld [vmem:[%s1 + $0x5dc] sm:$0xf]
    %v408 = vld [vmem:[%s1 + $0x5e0] sm:$0xf]
    %v409 = vld [vmem:[%s1 + $0x5e4] sm:$0xf]
    %v410 = vld [vmem:[%s1 + $0x5e8] sm:$0xf]
    %v411 = vld [vmem:[%s1 + $0x5ec] sm:$0xf]
    %v412 = vld [vmem:[%s1 + $0x5f0] sm:$0xf]
    %v413 = vld [vmem:[%s1 + $0x5f4] sm:$0xf]
    %v414 = vld [vmem:[%s1 + $0x5f8] sm:$0xf]
    %v415 = vld [vmem:[%s1 + $0x5fc] sm:$0xf]
    %v416 = vld [vmem:[%s1 + $0x600] sm:$0xf]
    %v417 = vld [vmem:[%s1 + $0x604] sm:$0xf]
    %v418 = vld [vmem:[%s1 + $0x608] sm:$0xf]
    %v419 = vld [vmem:[%s1 + $0x60c] sm:$0xf]
    %v420 = vld [vmem:[%s1 + $0x610] sm:$0xf]
    %v421 = vld [vmem:[%s1 + $0x614] sm:$0xf]
    %v422 = vld [vmem:[%s1 + $0x618] sm:$0xf]
    %v423 = vld [vmem:[%s1 + $0x61c] sm:$0xf]
    %v424 = vld [vmem:[%s1 + $0x620] sm:$0xf]
    %v425 = vld [vmem:[%s1 + $0x624] sm:$0xf]
    %v426 = vld [vmem:[%s1 + $0x628] sm:$0xf]
    %v427 = vld [vmem:[%s1 + $0x62c] sm:$0xf]
    %v428 = vld [vmem:[%s1 + $0x630] sm:$0xf]
    %v429 = vld [vmem:[%s1 + $0x634] sm:$0xf]
    %v430 = vld [vmem:[%s1 + $0x638] sm:$0xf]
    %v431 = vld [vmem:[%s1 + $0x63c] sm:$0xf]
    %v432 = vld [vmem:[%s2] sm:$0x1]
    %v434 = vlaneseq
    %v435 = vshrl.u32 %v434, 7
    %v436 = vsub.s32 0, %v435
    %v437 = vrot.slane %v432, %v436
    %v443 = vcombine.high %v28, %v28
    %v445 = vunpack.c.l.s4 1966171168
    %v446 = vunpack.c.0.s8 %v445
    %v447 = vlaneseq
    %v448 = vshrl.u32 %v447, 7
    %v449 = vsub.s32 %v446, %v448
    %v450 = vrot.slane %v28, %v449
    %v452 = vunpack.c.l.s4 1966171168
    %v453 = vunpack.c.0.s8 %v452
    %v454 = vlaneseq
    %v455 = vshrl.u32 %v454, 7
    %v456 = vsub.s32 %v453, %v455
    %v457 = vrot.slane %v443, %v456
    %v458 = vcombine.high %v450, %v450
    %v459 = vcombine.high %v457, %v457
    %v461 = vunpack.c.l.s4 1966171168
    %v462 = vunpack.c.0.s8 %v461
    %v463 = vlaneseq
    %v464 = vshrl.u32 %v463, 7
    %v465 = vsub.s32 %v462, %v464
    %v466 = vrot.slane %v450, %v465
    %v468 = vunpack.c.l.s4 1966171168
    %v469 = vunpack.c.0.s8 %v468
    %v470 = vlaneseq
    %v471 = vshrl.u32 %v470, 7
    %v472 = vsub.s32 %v469, %v471
    %v473 = vrot.slane %v457, %v472
    %v475 = vunpack.c.l.s4 1966171168
    %v476 = vunpack.c.0.s8 %v475
    %v477 = vlaneseq
    %v478 = vshrl.u32 %v477, 7
    %v479 = vsub.s32 %v476, %v478
    %v480 = vrot.slane %v458, %v479
    %v482 = vunpack.c.l.s4 1966171168
    %v483 = vunpack.c.0.s8 %v482
    %v484 = vlaneseq
    %v485 = vshrl.u32 %v484, 7
    %v486 = vsub.s32 %v483, %v485
    %v487 = vrot.slane %v459, %v486
    %v488 = vcombine.high %v466, %v466
    %v489 = vcombine.high %v473, %v473
    %v490 = vcombine.high %v480, %v480
    %v491 = vcombine.high %v487, %v487
    %v492 = vcombine.high %v29, %v29
    %v494 = vunpack.c.l.s4 1966171168
    %v495 = vunpack.c.0.s8 %v494
    %v496 = vlaneseq
    %v497 = vshrl.u32 %v496, 7
    %v498 = vsub.s32 %v495, %v497
    %v499 = vrot.slane %v29, %v498
    %v501 = vunpack.c.l.s4 1966171168
    %v502 = vunpack.c.0.s8 %v501
    %v503 = vlaneseq
    %v504 = vshrl.u32 %v503, 7
    %v505 = vsub.s32 %v502, %v504
    %v506 = vrot.slane %v492, %v505
    %v507 = vcombine.high %v499, %v499
    %v508 = vcombine.high %v506, %v506
    %v510 = vunpack.c.l.s4 1966171168
    %v511 = vunpack.c.0.s8 %v510
    %v512 = vlaneseq
    %v513 = vshrl.u32 %v512, 7
    %v514 = vsub.s32 %v511, %v513
    %v515 = vrot.slane %v499, %v514
    %v517 = vunpack.c.l.s4 1966171168
    %v518 = vunpack.c.0.s8 %v517
    %v519 = vlaneseq
    %v520 = vshrl.u32 %v519, 7
    %v521 = vsub.s32 %v518, %v520
    %v522 = vrot.slane %v506, %v521
    %v524 = vunpack.c.l.s4 1966171168
    %v525 = vunpack.c.0.s8 %v524
    %v526 = vlaneseq
    %v527 = vshrl.u32 %v526, 7
    %v528 = vsub.s32 %v525, %v527
    %v529 = vrot.slane %v507, %v528
    %v531 = vunpack.c.l.s4 1966171168
    %v532 = vunpack.c.0.s8 %v531
    %v533 = vlaneseq
    %v534 = vshrl.u32 %v533, 7
    %v535 = vsub.s32 %v532, %v534
    %v536 = vrot.slane %v508, %v535
    %v537 = vcombine.high %v515, %v515
    %v538 = vcombine.high %v522, %v522
    %v539 = vcombine.high %v529, %v529
    %v540 = vcombine.high %v536, %v536
    %v541 = vcombine.high %v30, %v30
    %v543 = vunpack.c.l.s4 1966171168
    %v544 = vunpack.c.0.s8 %v543
    %v545 = vlaneseq
    %v546 = vshrl.u32 %v545, 7
    %v547 = vsub.s32 %v544, %v546
    %v548 = vrot.slane %v30, %v547
    %v550 = vunpack.c.l.s4 1966171168
    %v551 = vunpack.c.0.s8 %v550
    %v552 = vlaneseq
    %v553 = vshrl.u32 %v552, 7
    %v554 = vsub.s32 %v551, %v553
    %v555 = vrot.slane %v541, %v554
    %v556 = vcombine.high %v548, %v548
    %v557 = vcombine.high %v555, %v555
    %v559 = vunpack.c.l.s4 1966171168
    %v560 = vunpack.c.0.s8 %v559
    %v561 = vlaneseq
    %v562 = vshrl.u32 %v561, 7
    %v563 = vsub.s32 %v560, %v562
    %v564 = vrot.slane %v548, %v563
    %v566 = vunpack.c.l.s4 1966171168
    %v567 = vunpack.c.0.s8 %v566
    %v568 = vlaneseq
    %v569 = vshrl.u32 %v568, 7
    %v570 = vsub.s32 %v567, %v569
    %v571 = vrot.slane %v555, %v570
    %v573 = vunpack.c.l.s4 1966171168
    %v574 = vunpack.c.0.s8 %v573
    %v575 = vlaneseq
    %v576 = vshrl.u32 %v575, 7
    %v577 = vsub.s32 %v574, %v576
    %v578 = vrot.slane %v556, %v577
    %v580 = vunpack.c.l.s4 1966171168
    %v581 = vunpack.c.0.s8 %v580
    %v582 = vlaneseq
    %v583 = vshrl.u32 %v582, 7
    %v584 = vsub.s32 %v581, %v583
    %v585 = vrot.slane %v557, %v584
    %v586 = vcombine.high %v564, %v564
    %v587 = vcombine.high %v571, %v571
    %v588 = vcombine.high %v578, %v578
    %v589 = vcombine.high %v585, %v585
    %v591 = vunpack.c.l.s4 1966171168
    %v592 = vunpack.c.0.s8 %v591
    %v593 = vlaneseq
    %v594 = vshrl.u32 %v593, 7
    %v595 = vsub.s32 %v592, %v594
    %v596 = vrot.slane %v31, %v595
    %v598 = vunpack.c.l.s4 1966171168
    %v599 = vunpack.c.0.s8 %v598
    %v600 = vlaneseq
    %v601 = vshrl.u32 %v600, 7
    %v602 = vsub.s32 %v599, %v601
    %v603 = vrot.slane %v596, %v602
    %v1029 = vunpack.c.l.b16 %v32
    %v1030 = vunpack.c.l.b16 %v33
    %v1031 = vunpack.c.l.b16 %v34
    %v1032 = vunpack.c.l.b16 %v35
    %v1033 = vunpack.c.l.b16 %v36
    %v1034 = vunpack.c.l.b16 %v37
    %v1035 = vunpack.c.l.b16 %v38
    %v1036 = vunpack.c.l.b16 %v39
    %v1037 = vunpack.c.l.b16 %v40
    %v1038 = vunpack.c.l.b16 %v41
    %v1039 = vunpack.c.l.b16 %v42
    %v1040 = vunpack.c.l.b16 %v43
    %v1041 = vunpack.c.l.b16 %v44
    %v1042 = vunpack.c.l.b16 %v45
    %v1043 = vunpack.c.l.b16 %v46
    %v1044 = vunpack.c.l.b16 %v47
    %v1045 = vunpack.c.l.b16 %v48
    %v1046 = vunpack.c.l.b16 %v49
    %v1047 = vunpack.c.l.b16 %v50
    %v1048 = vunpack.c.l.b16 %v51
    %v1049 = vunpack.c.l.b16 %v52
    %v1050 = vunpack.c.l.b16 %v53
    %v1051 = vunpack.c.l.b16 %v54
    %v1052 = vunpack.c.l.b16 %v55
    %v1053 = vunpack.c.l.b16 %v56
    %v1054 = vunpack.c.l.b16 %v57
    %v1055 = vunpack.c.l.b16 %v58
    %v1056 = vunpack.c.l.b16 %v59
    %v1057 = vunpack.c.l.b16 %v60
    %v1058 = vunpack.c.l.b16 %v61
    %v1059 = vunpack.c.l.b16 %v62
    %v1060 = vunpack.c.l.b16 %v63
    %v1061 = vunpack.c.l.b16 %v64
    %v1062 = vunpack.c.l.b16 %v65
    %v1063 = vunpack.c.l.b16 %v66
    %v1064 = vunpack.c.l.b16 %v67
    %v1065 = vunpack.c.l.b16 %v68
    %v1066 = vunpack.c.l.b16 %v69
    %v1067 = vunpack.c.l.b16 %v70
    %v1068 = vunpack.c.l.b16 %v71
    %v1069 = vunpack.c.l.b16 %v72
    %v1070 = vunpack.c.l.b16 %v73
    %v1071 = vunpack.c.l.b16 %v74
    %v1072 = vunpack.c.l.b16 %v75
    %v1073 = vunpack.c.l.b16 %v76
    %v1074 = vunpack.c.l.b16 %v77
    %v1075 = vunpack.c.l.b16 %v78
    %v1076 = vunpack.c.l.b16 %v79
    %v1077 = vunpack.c.l.b16 %v80
    %v1078 = vunpack.c.l.b16 %v81
    %v1079 = vunpack.c.l.b16 %v82
    %v1080 = vunpack.c.l.b16 %v83
    %v1081 = vunpack.c.l.b16 %v84
    %v1082 = vunpack.c.l.b16 %v85
    %v1083 = vunpack.c.l.b16 %v86
    %v1084 = vunpack.c.l.b16 %v87
    %v1085 = vunpack.c.l.b16 %v88
    %v1086 = vunpack.c.l.b16 %v89
    %v1087 = vunpack.c.l.b16 %v90
    %v1088 = vunpack.c.l.b16 %v91
    %v1089 = vunpack.c.l.b16 %v92
    %v1090 = vunpack.c.l.b16 %v93
    %v1091 = vunpack.c.l.b16 %v94
    %v1092 = vunpack.c.l.b16 %v95
    %v1093 = vunpack.c.l.b16 %v96
    %v1094 = vunpack.c.l.b16 %v97
    %v1095 = vunpack.c.l.b16 %v98
    %v1096 = vunpack.c.l.b16 %v99
    %v1097 = vunpack.c.l.b16 %v100
    %v1098 = vunpack.c.l.b16 %v101
    %v1099 = vunpack.c.l.b16 %v102
    %v1100 = vunpack.c.l.b16 %v103
    %v1101 = vunpack.c.l.b16 %v104
    %v1102 = vunpack.c.l.b16 %v105
    %v1103 = vunpack.c.l.b16 %v106
    %v1104 = vunpack.c.l.b16 %v107
    %v1105 = vunpack.c.l.b16 %v108
    %v1106 = vunpack.c.l.b16 %v109
    %v1107 = vunpack.c.l.b16 %v110
    %v1108 = vunpack.c.l.b16 %v111
    %v1109 = vunpack.c.l.b16 %v112
    %v1110 = vunpack.c.l.b16 %v113
    %v1111 = vunpack.c.l.b16 %v114
    %v1112 = vunpack.c.l.b16 %v115
    %v1113 = vunpack.c.l.b16 %v116
    %v1114 = vunpack.c.l.b16 %v117
    %v1115 = vunpack.c.l.b16 %v118
    %v1116 = vunpack.c.l.b16 %v119
    %v1117 = vunpack.c.l.b16 %v120
    %v1118 = vunpack.c.l.b16 %v121
    %v1119 = vunpack.c.l.b16 %v122
    %v1120 = vunpack.c.l.b16 %v123
    %v1121 = vunpack.c.l.b16 %v124
    %v1122 = vunpack.c.l.b16 %v125
    %v1123 = vunpack.c.l.b16 %v126
    %v1124 = vunpack.c.l.b16 %v127
    %v1125 = vunpack.c.l.b16 %v128
    %v1126 = vunpack.c.l.b16 %v129
    %v1127 = vunpack.c.l.b16 %v130
    %v1128 = vunpack.c.l.b16 %v131
    %v1129 = vunpack.c.l.b16 %v132
    %v1130 = vunpack.c.l.b16 %v133
    %v1131 = vunpack.c.l.b16 %v134
    %v1132 = vunpack.c.l.b16 %v135
    %v1133 = vunpack.c.l.b16 %v136
    %v1134 = vunpack.c.l.b16 %v137
    %v1135 = vunpack.c.l.b16 %v138
    %v1136 = vunpack.c.l.b16 %v139
    %v1137 = vunpack.c.l.b16 %v140
    %v1138 = vunpack.c.l.b16 %v141
    %v1139 = vunpack.c.l.b16 %v142
    %v1140 = vunpack.c.l.b16 %v143
    %v1141 = vunpack.c.l.b16 %v144
    %v1142 = vunpack.c.l.b16 %v145
    %v1143 = vunpack.c.l.b16 %v146
    %v1144 = vunpack.c.l.b16 %v147
    %v1145 = vunpack.c.l.b16 %v148
    %v1146 = vunpack.c.l.b16 %v149
    %v1147 = vunpack.c.l.b16 %v150
    %v1148 = vunpack.c.l.b16 %v151
    %v1149 = vunpack.c.l.b16 %v152
    %v1150 = vunpack.c.l.b16 %v153
    %v1151 = vunpack.c.l.b16 %v154
    %v1152 = vunpack.c.l.b16 %v155
    %v1153 = vunpack.c.l.b16 %v156
    %v1154 = vunpack.c.l.b16 %v157
    %v1155 = vunpack.c.l.b16 %v158
    %v1156 = vunpack.c.l.b16 %v159
    %v1157 = vunpack.c.l.b16 %v160
    %v1158 = vunpack.c.l.b16 %v161
    %v1159 = vunpack.c.l.b16 %v162
    %v1160 = vunpack.c.l.b16 %v163
    %v1161 = vunpack.c.l.b16 %v164
    %v1162 = vunpack.c.l.b16 %v165
    %v1163 = vunpack.c.l.b16 %v166
    %v1164 = vunpack.c.l.b16 %v167
    %v1165 = vunpack.c.l.b16 %v168
    %v1166 = vunpack.c.l.b16 %v169
    %v1167 = vunpack.c.l.b16 %v170
    %v1168 = vunpack.c.l.b16 %v171
    %v1169 = vunpack.c.l.b16 %v172
    %v1170 = vunpack.c.l.b16 %v173
    %v1171 = vunpack.c.l.b16 %v174
    %v1172 = vunpack.c.l.b16 %v175
    %v1173 = vunpack.c.l.b16 %v176
    %v1174 = vunpack.c.l.b16 %v177
    %v1175 = vunpack.c.l.b16 %v178
    %v1176 = vunpack.c.l.b16 %v179
    %v1177 = vunpack.c.l.b16 %v180
    %v1178 = vunpack.c.l.b16 %v181
    %v1179 = vunpack.c.l.b16 %v182
    %v1180 = vunpack.c.l.b16 %v183
    %v1181 = vunpack.c.l.b16 %v184
    %v1182 = vunpack.c.l.b16 %v185
    %v1183 = vunpack.c.l.b16 %v186
    %v1184 = vunpack.c.l.b16 %v187
    %v1185 = vunpack.c.l.b16 %v188
    %v1186 = vunpack.c.l.b16 %v189
    %v1187 = vunpack.c.l.b16 %v190
    %v1188 = vunpack.c.l.b16 %v191
    %v1189 = vunpack.c.l.b16 %v192
    %v1190 = vunpack.c.l.b16 %v193
    %v1191 = vunpack.c.l.b16 %v194
    %v1192 = vunpack.c.l.b16 %v195
    %v1193 = vunpack.c.l.b16 %v196
    %v1194 = vunpack.c.l.b16 %v197
    %v1195 = vunpack.c.l.b16 %v198
    %v1196 = vunpack.c.l.b16 %v199
    %v1197 = vunpack.c.l.b16 %v200
    %v1198 = vunpack.c.l.b16 %v201
    %v1199 = vunpack.c.l.b16 %v202
    %v1200 = vunpack.c.l.b16 %v203
    %v1201 = vunpack.c.l.b16 %v204
    %v1202 = vunpack.c.l.b16 %v205
    %v1203 = vunpack.c.l.b16 %v206
    %v1204 = vunpack.c.l.b16 %v207
    %v1205 = vunpack.c.l.b16 %v208
    %v1206 = vunpack.c.l.b16 %v209
    %v1207 = vunpack.c.l.b16 %v210
    %v1208 = vunpack.c.l.b16 %v211
    %v1209 = vunpack.c.l.b16 %v212
    %v1210 = vunpack.c.l.b16 %v213
    %v1211 = vunpack.c.l.b16 %v214
    %v1212 = vunpack.c.l.b16 %v215
    %v1213 = vunpack.c.l.b16 %v216
    %v1214 = vunpack.c.l.b16 %v217
    %v1215 = vunpack.c.l.b16 %v218
    %v1216 = vunpack.c.l.b16 %v219
    %v1217 = vunpack.c.l.b16 %v220
    %v1218 = vunpack.c.l.b16 %v221
    %v1219 = vunpack.c.l.b16 %v222
    %v1220 = vunpack.c.l.b16 %v223
    %v1221 = vunpack.c.l.b16 %v224
    %v1222 = vunpack.c.l.b16 %v225
    %v1223 = vunpack.c.l.b16 %v226
    %v1224 = vunpack.c.l.b16 %v227
    %v1225 = vunpack.c.l.b16 %v228
    %v1226 = vunpack.c.l.b16 %v229
    %v1227 = vunpack.c.l.b16 %v230
    %v1228 = vunpack.c.l.b16 %v231
    %v1229 = vunpack.c.l.b16 %v232
    %v1230 = vunpack.c.l.b16 %v233
    %v1231 = vunpack.c.l.b16 %v234
    %v1232 = vunpack.c.l.b16 %v235
    %v1233 = vunpack.c.l.b16 %v236
    %v1234 = vunpack.c.l.b16 %v237
    %v1235 = vunpack.c.l.b16 %v238
    %v1236 = vunpack.c.l.b16 %v239
    %v1237 = vunpack.c.l.b16 %v240
    %v1238 = vunpack.c.l.b16 %v241
    %v1239 = vunpack.c.l.b16 %v242
    %v1240 = vunpack.c.l.b16 %v243
    %v1241 = vunpack.c.l.b16 %v244
    %v1242 = vunpack.c.l.b16 %v245
    %v1243 = vunpack.c.l.b16 %v246
    %v1244 = vunpack.c.l.b16 %v247
    %v1245 = vunpack.c.l.b16 %v248
    %v1246 = vunpack.c.l.b16 %v249
    %v1247 = vunpack.c.l.b16 %v250
    %v1248 = vunpack.c.l.b16 %v251
    %v1249 = vunpack.c.l.b16 %v252
    %v1250 = vunpack.c.l.b16 %v253
    %v1251 = vunpack.c.l.b16 %v254
    %v1252 = vunpack.c.l.b16 %v255
    %v1253 = vunpack.c.l.b16 %v256
    %v1254 = vunpack.c.l.b16 %v257
    %v1255 = vunpack.c.l.b16 %v258
    %v1256 = vunpack.c.l.b16 %v259
    %v1257 = vunpack.c.l.b16 %v260
    %v1258 = vunpack.c.l.b16 %v261
    %v1259 = vunpack.c.l.b16 %v262
    %v1260 = vunpack.c.l.b16 %v263
    %v1261 = vunpack.c.l.b16 %v264
    %v1262 = vunpack.c.l.b16 %v265
    %v1263 = vunpack.c.l.b16 %v266
    %v1264 = vunpack.c.l.b16 %v267
    %v1265 = vunpack.c.l.b16 %v268
    %v1266 = vunpack.c.l.b16 %v269
    %v1267 = vunpack.c.l.b16 %v270
    %v1268 = vunpack.c.l.b16 %v271
    %v1269 = vunpack.c.l.b16 %v272
    %v1270 = vunpack.c.l.b16 %v273
    %v1271 = vunpack.c.l.b16 %v274
    %v1272 = vunpack.c.l.b16 %v275
    %v1273 = vunpack.c.l.b16 %v276
    %v1274 = vunpack.c.l.b16 %v277
    %v1275 = vunpack.c.l.b16 %v278
    %v1276 = vunpack.c.l.b16 %v279
    %v1277 = vunpack.c.l.b16 %v280
    %v1278 = vunpack.c.l.b16 %v281
    %v1279 = vunpack.c.l.b16 %v282
    %v1280 = vunpack.c.l.b16 %v283
    %v1281 = vunpack.c.l.b16 %v284
    %v1282 = vunpack.c.l.b16 %v285
    %v1283 = vunpack.c.l.b16 %v286
    %v1284 = vunpack.c.l.b16 %v287
    %v1285 = vunpack.c.l.b16 %v288
    %v1286 = vunpack.c.l.b16 %v289
    %v1287 = vunpack.c.l.b16 %v290
    %v1288 = vunpack.c.l.b16 %v291
    %v1289 = vunpack.c.l.b16 %v292
    %v1290 = vunpack.c.l.b16 %v293
    %v1291 = vunpack.c.l.b16 %v294
    %v1292 = vunpack.c.l.b16 %v295
    %v1293 = vunpack.c.l.b16 %v296
    %v1294 = vunpack.c.l.b16 %v297
    %v1295 = vunpack.c.l.b16 %v298
    %v1296 = vunpack.c.l.b16 %v299
    %v1297 = vunpack.c.l.b16 %v300
    %v1298 = vunpack.c.l.b16 %v301
    %v1299 = vunpack.c.l.b16 %v302
    %v1300 = vunpack.c.l.b16 %v303
    %v1301 = vunpack.c.l.b16 %v304
    %v1302 = vunpack.c.l.b16 %v305
    %v1303 = vunpack.c.l.b16 %v306
    %v1304 = vunpack.c.l.b16 %v307
    %v1305 = vunpack.c.l.b16 %v308
    %v1306 = vunpack.c.l.b16 %v309
    %v1307 = vunpack.c.l.b16 %v310
    %v1308 = vunpack.c.l.b16 %v311
    %v1309 = vunpack.c.l.b16 %v312
    %v1310 = vunpack.c.l.b16 %v313
    %v1311 = vunpack.c.l.b16 %v314
    %v1312 = vunpack.c.l.b16 %v315
    %v1313 = vunpack.c.l.b16 %v316
    %v1314 = vunpack.c.l.b16 %v317
    %v1315 = vunpack.c.l.b16 %v318
    %v1316 = vunpack.c.l.b16 %v319
    %v1317 = vunpack.c.l.b16 %v320
    %v1318 = vunpack.c.l.b16 %v321
    %v1319 = vunpack.c.l.b16 %v322
    %v1320 = vunpack.c.l.b16 %v323
    %v1321 = vunpack.c.l.b16 %v324
    %v1322 = vunpack.c.l.b16 %v325
    %v1323 = vunpack.c.l.b16 %v326
    %v1324 = vunpack.c.l.b16 %v327
    %v1325 = vunpack.c.l.b16 %v328
    %v1326 = vunpack.c.l.b16 %v329
    %v1327 = vunpack.c.l.b16 %v330
    %v1328 = vunpack.c.l.b16 %v331
    %v1329 = vunpack.c.l.b16 %v332
    %v1330 = vunpack.c.l.b16 %v333
    %v1331 = vunpack.c.l.b16 %v334
    %v1332 = vunpack.c.l.b16 %v335
    %v1333 = vunpack.c.l.b16 %v336
    %v1334 = vunpack.c.l.b16 %v337
    %v1335 = vunpack.c.l.b16 %v338
    %v1336 = vunpack.c.l.b16 %v339
    %v1337 = vunpack.c.l.b16 %v340
    %v1338 = vunpack.c.l.b16 %v341
    %v1339 = vunpack.c.l.b16 %v342
    %v1340 = vunpack.c.l.b16 %v343
    %v1341 = vunpack.c.l.b16 %v344
    %v1342 = vunpack.c.l.b16 %v345
    %v1343 = vunpack.c.l.b16 %v346
    %v1344 = vunpack.c.l.b16 %v347
    %v1345 = vunpack.c.l.b16 %v348
    %v1346 = vunpack.c.l.b16 %v349
    %v1347 = vunpack.c.l.b16 %v350
    %v1348 = vunpack.c.l.b16 %v351
    %v1349 = vunpack.c.l.b16 %v352
    %v1350 = vunpack.c.l.b16 %v353
    %v1351 = vunpack.c.l.b16 %v354
    %v1352 = vunpack.c.l.b16 %v355
    %v1353 = vunpack.c.l.b16 %v356
    %v1354 = vunpack.c.l.b16 %v357
    %v1355 = vunpack.c.l.b16 %v358
    %v1356 = vunpack.c.l.b16 %v359
    %v1357 = vunpack.c.l.b16 %v360
    %v1358 = vunpack.c.l.b16 %v361
    %v1359 = vunpack.c.l.b16 %v362
    %v1360 = vunpack.c.l.b16 %v363
    %v1361 = vunpack.c.l.b16 %v364
    %v1362 = vunpack.c.l.b16 %v365
    %v1363 = vunpack.c.l.b16 %v366
    %v1364 = vunpack.c.l.b16 %v367
    %v1365 = vunpack.c.l.b16 %v368
    %v1366 = vunpack.c.l.b16 %v369
    %v1367 = vunpack.c.l.b16 %v370
    %v1368 = vunpack.c.l.b16 %v371
    %v1369 = vunpack.c.l.b16 %v372
    %v1370 = vunpack.c.l.b16 %v373
    %v1371 = vunpack.c.l.b16 %v374
    %v1372 = vunpack.c.l.b16 %v375
    %v1373 = vunpack.c.l.b16 %v376
    %v1374 = vunpack.c.l.b16 %v377
    %v1375 = vunpack.c.l.b16 %v378
    %v1376 = vunpack.c.l.b16 %v379
    %v1377 = vunpack.c.l.b16 %v380
    %v1378 = vunpack.c.l.b16 %v381
    %v1379 = vunpack.c.l.b16 %v382
    %v1380 = vunpack.c.l.b16 %v383
    %v1381 = vunpack.c.l.b16 %v384
    %v1382 = vunpack.c.l.b16 %v385
    %v1383 = vunpack.c.l.b16 %v386
    %v1384 = vunpack.c.l.b16 %v387
    %v1385 = vunpack.c.l.b16 %v388
    %v1386 = vunpack.c.l.b16 %v389
    %v1387 = vunpack.c.l.b16 %v390
    %v1388 = vunpack.c.l.b16 %v391
    %v1389 = vunpack.c.l.b16 %v392
    %v1390 = vunpack.c.l.b16 %v393
    %v1391 = vunpack.c.l.b16 %v394
    %v1392 = vunpack.c.l.b16 %v395
    %v1393 = vunpack.c.l.b16 %v396
    %v1394 = vunpack.c.l.b16 %v397
    %v1395 = vunpack.c.l.b16 %v398
    %v1396 = vunpack.c.l.b16 %v399
    %v1397 = vunpack.c.l.b16 %v400
    %v1398 = vunpack.c.l.b16 %v401
    %v1399 = vunpack.c.l.b16 %v402
    %v1400 = vunpack.c.l.b16 %v403
    %v1401 = vunpack.c.l.b16 %v404
    %v1402 = vunpack.c.l.b16 %v405
    %v1403 = vunpack.c.l.b16 %v406
    %v1404 = vunpack.c.l.b16 %v407
    %v1405 = vunpack.c.l.b16 %v408
    %v1406 = vunpack.c.l.b16 %v409
    %v1407 = vunpack.c.l.b16 %v410
    %v1408 = vunpack.c.l.b16 %v411
    %v1409 = vunpack.c.l.b16 %v412
    %v1410 = vunpack.c.l.b16 %v413
    %v1411 = vunpack.c.l.b16 %v414
    %v1412 = vunpack.c.l.b16 %v415
    %v1413 = vunpack.c.l.b16 %v416
    %v1414 = vunpack.c.l.b16 %v417
    %v1415 = vunpack.c.l.b16 %v418
    %v1416 = vunpack.c.l.b16 %v419
    %v1417 = vunpack.c.l.b16 %v420
    %v1418 = vunpack.c.l.b16 %v421
    %v1419 = vunpack.c.l.b16 %v422
    %v1420 = vunpack.c.l.b16 %v423
    %v1421 = vunpack.c.l.b16 %v424
    %v1422 = vunpack.c.l.b16 %v425
    %v1423 = vunpack.c.l.b16 %v426
    %v1424 = vunpack.c.l.b16 %v427
    %v1425 = vunpack.c.l.b16 %v428
    %v1426 = vunpack.c.l.b16 %v429
    %v1427 = vunpack.c.l.b16 %v430
    %v1428 = vunpack.c.l.b16 %v431
    %v1429 = vpack.c.b16 %v1030, %v1029
    %v1430 = vpack.c.b16 %v1032, %v1031
    %v1431 = vpack.c.b16 %v1034, %v1033
    %v1432 = vpack.c.b16 %v1036, %v1035
    %v1433 = vpack.c.b16 %v1038, %v1037
    %v1434 = vpack.c.b16 %v1040, %v1039
    %v1435 = vpack.c.b16 %v1042, %v1041
    %v1436 = vpack.c.b16 %v1044, %v1043
    %v1437 = vpack.c.b16 %v1046, %v1045
    %v1438 = vpack.c.b16 %v1048, %v1047
    %v1439 = vpack.c.b16 %v1050, %v1049
    %v1440 = vpack.c.b16 %v1052, %v1051
    %v1441 = vpack.c.b16 %v1054, %v1053
    %v1442 = vpack.c.b16 %v1056, %v1055
    %v1443 = vpack.c.b16 %v1058, %v1057
    %v1444 = vpack.c.b16 %v1060, %v1059
    %v1445 = vpack.c.b16 %v1062, %v1061
    %v1446 = vpack.c.b16 %v1064, %v1063
    %v1447 = vpack.c.b16 %v1066, %v1065
    %v1448 = vpack.c.b16 %v1068, %v1067
    %v1449 = vpack.c.b16 %v1070, %v1069
    %v1450 = vpack.c.b16 %v1072, %v1071
    %v1451 = vpack.c.b16 %v1074, %v1073
    %v1452 = vpack.c.b16 %v1076, %v1075
    %v1453 = vpack.c.b16 %v1078, %v1077
    %v1454 = vpack.c.b16 %v1080, %v1079
    %v1455 = vpack.c.b16 %v1082, %v1081
    %v1456 = vpack.c.b16 %v1084, %v1083
    %v1457 = vpack.c.b16 %v1086, %v1085
    %v1458 = vpack.c.b16 %v1088, %v1087
    %v1459 = vpack.c.b16 %v1090, %v1089
    %v1460 = vpack.c.b16 %v1092, %v1091
    %v1461 = vpack.c.b16 %v1094, %v1093
    %v1462 = vpack.c.b16 %v1096, %v1095
    %v1463 = vpack.c.b16 %v1098, %v1097
    %v1464 = vpack.c.b16 %v1100, %v1099
    %v1465 = vpack.c.b16 %v1102, %v1101
    %v1466 = vpack.c.b16 %v1104, %v1103
    %v1467 = vpack.c.b16 %v1106, %v1105
    %v1468 = vpack.c.b16 %v1108, %v1107
    %v1469 = vpack.c.b16 %v1110, %v1109
    %v1470 = vpack.c.b16 %v1112, %v1111
    %v1471 = vpack.c.b16 %v1114, %v1113
    %v1472 = vpack.c.b16 %v1116, %v1115
    %v1473 = vpack.c.b16 %v1118, %v1117
    %v1474 = vpack.c.b16 %v1120, %v1119
    %v1475 = vpack.c.b16 %v1122, %v1121
    %v1476 = vpack.c.b16 %v1124, %v1123
    %v1477 = vpack.c.b16 %v1126, %v1125
    %v1478 = vpack.c.b16 %v1128, %v1127
    %v1479 = vpack.c.b16 %v1130, %v1129
    %v1480 = vpack.c.b16 %v1132, %v1131
    %v1481 = vpack.c.b16 %v1134, %v1133
    %v1482 = vpack.c.b16 %v1136, %v1135
    %v1483 = vpack.c.b16 %v1138, %v1137
    %v1484 = vpack.c.b16 %v1140, %v1139
    %v1485 = vpack.c.b16 %v1142, %v1141
    %v1486 = vpack.c.b16 %v1144, %v1143
    %v1487 = vpack.c.b16 %v1146, %v1145
    %v1488 = vpack.c.b16 %v1148, %v1147
    %v1489 = vpack.c.b16 %v1150, %v1149
    %v1490 = vpack.c.b16 %v1152, %v1151
    %v1491 = vpack.c.b16 %v1154, %v1153
    %v1492 = vpack.c.b16 %v1156, %v1155
    %v1493 = vpack.c.b16 %v1158, %v1157
    %v1494 = vpack.c.b16 %v1160, %v1159
    %v1495 = vpack.c.b16 %v1162, %v1161
    %v1496 = vpack.c.b16 %v1164, %v1163
    %v1497 = vpack.c.b16 %v1166, %v1165
    %v1498 = vpack.c.b16 %v1168, %v1167
    %v1499 = vpack.c.b16 %v1170, %v1169
    %v1500 = vpack.c.b16 %v1172, %v1171
    %v1501 = vpack.c.b16 %v1174, %v1173
    %v1502 = vpack.c.b16 %v1176, %v1175
    %v1503 = vpack.c.b16 %v1178, %v1177
    %v1504 = vpack.c.b16 %v1180, %v1179
    %v1505 = vpack.c.b16 %v1182, %v1181
    %v1506 = vpack.c.b16 %v1184, %v1183
    %v1507 = vpack.c.b16 %v1186, %v1185
    %v1508 = vpack.c.b16 %v1188, %v1187
    %v1509 = vpack.c.b16 %v1190, %v1189
    %v1510 = vpack.c.b16 %v1192, %v1191
    %v1511 = vpack.c.b16 %v1194, %v1193
    %v1512 = vpack.c.b16 %v1196, %v1195
    %v1513 = vpack.c.b16 %v1198, %v1197
    %v1514 = vpack.c.b16 %v1200, %v1199
    %v1515 = vpack.c.b16 %v1202, %v1201
    %v1516 = vpack.c.b16 %v1204, %v1203
    %v1517 = vpack.c.b16 %v1206, %v1205
    %v1518 = vpack.c.b16 %v1208, %v1207
    %v1519 = vpack.c.b16 %v1210, %v1209
    %v1520 = vpack.c.b16 %v1212, %v1211
    %v1521 = vpack.c.b16 %v1214, %v1213
    %v1522 = vpack.c.b16 %v1216, %v1215
    %v1523 = vpack.c.b16 %v1218, %v1217
    %v1524 = vpack.c.b16 %v1220, %v1219
    %v1525 = vpack.c.b16 %v1222, %v1221
    %v1526 = vpack.c.b16 %v1224, %v1223
    %v1527 = vpack.c.b16 %v1226, %v1225
    %v1528 = vpack.c.b16 %v1228, %v1227
    %v1529 = vpack.c.b16 %v1230, %v1229
    %v1530 = vpack.c.b16 %v1232, %v1231
    %v1531 = vpack.c.b16 %v1234, %v1233
    %v1532 = vpack.c.b16 %v1236, %v1235
    %v1533 = vpack.c.b16 %v1238, %v1237
    %v1534 = vpack.c.b16 %v1240, %v1239
    %v1535 = vpack.c.b16 %v1242, %v1241
    %v1536 = vpack.c.b16 %v1244, %v1243
    %v1537 = vpack.c.b16 %v1246, %v1245
    %v1538 = vpack.c.b16 %v1248, %v1247
    %v1539 = vpack.c.b16 %v1250, %v1249
    %v1540 = vpack.c.b16 %v1252, %v1251
    %v1541 = vpack.c.b16 %v1254, %v1253
    %v1542 = vpack.c.b16 %v1256, %v1255
    %v1543 = vpack.c.b16 %v1258, %v1257
    %v1544 = vpack.c.b16 %v1260, %v1259
    %v1545 = vpack.c.b16 %v1262, %v1261
    %v1546 = vpack.c.b16 %v1264, %v1263
    %v1547 = vpack.c.b16 %v1266, %v1265
    %v1548 = vpack.c.b16 %v1268, %v1267
    %v1549 = vpack.c.b16 %v1270, %v1269
    %v1550 = vpack.c.b16 %v1272, %v1271
    %v1551 = vpack.c.b16 %v1274, %v1273
    %v1552 = vpack.c.b16 %v1276, %v1275
    %v1553 = vpack.c.b16 %v1278, %v1277
    %v1554 = vpack.c.b16 %v1280, %v1279
    %v1555 = vpack.c.b16 %v1282, %v1281
    %v1556 = vpack.c.b16 %v1284, %v1283
    %v1557 = vpack.c.b16 %v1286, %v1285
    %v1558 = vpack.c.b16 %v1288, %v1287
    %v1559 = vpack.c.b16 %v1290, %v1289
    %v1560 = vpack.c.b16 %v1292, %v1291
    %v1561 = vpack.c.b16 %v1294, %v1293
    %v1562 = vpack.c.b16 %v1296, %v1295
    %v1563 = vpack.c.b16 %v1298, %v1297
    %v1564 = vpack.c.b16 %v1300, %v1299
    %v1565 = vpack.c.b16 %v1302, %v1301
    %v1566 = vpack.c.b16 %v1304, %v1303
    %v1567 = vpack.c.b16 %v1306, %v1305
    %v1568 = vpack.c.b16 %v1308, %v1307
    %v1569 = vpack.c.b16 %v1310, %v1309
    %v1570 = vpack.c.b16 %v1312, %v1311
    %v1571 = vpack.c.b16 %v1314, %v1313
    %v1572 = vpack.c.b16 %v1316, %v1315
    %v1573 = vpack.c.b16 %v1318, %v1317
    %v1574 = vpack.c.b16 %v1320, %v1319
    %v1575 = vpack.c.b16 %v1322, %v1321
    %v1576 = vpack.c.b16 %v1324, %v1323
    %v1577 = vpack.c.b16 %v1326, %v1325
    %v1578 = vpack.c.b16 %v1328, %v1327
    %v1579 = vpack.c.b16 %v1330, %v1329
    %v1580 = vpack.c.b16 %v1332, %v1331
    %v1581 = vpack.c.b16 %v1334, %v1333
    %v1582 = vpack.c.b16 %v1336, %v1335
    %v1583 = vpack.c.b16 %v1338, %v1337
    %v1584 = vpack.c.b16 %v1340, %v1339
    %v1585 = vpack.c.b16 %v1342, %v1341
    %v1586 = vpack.c.b16 %v1344, %v1343
    %v1587 = vpack.c.b16 %v1346, %v1345
    %v1588 = vpack.c.b16 %v1348, %v1347
    %v1589 = vpack.c.b16 %v1350, %v1349
    %v1590 = vpack.c.b16 %v1352, %v1351
    %v1591 = vpack.c.b16 %v1354, %v1353
    %v1592 = vpack.c.b16 %v1356, %v1355
    %v1593 = vpack.c.b16 %v1358, %v1357
    %v1594 = vpack.c.b16 %v1360, %v1359
    %v1595 = vpack.c.b16 %v1362, %v1361
    %v1596 = vpack.c.b16 %v1364, %v1363
    %v1597 = vpack.c.b16 %v1366, %v1365
    %v1598 = vpack.c.b16 %v1368, %v1367
    %v1599 = vpack.c.b16 %v1370, %v1369
    %v1600 = vpack.c.b16 %v1372, %v1371
    %v1601 = vpack.c.b16 %v1374, %v1373
    %v1602 = vpack.c.b16 %v1376, %v1375
    %v1603 = vpack.c.b16 %v1378, %v1377
    %v1604 = vpack.c.b16 %v1380, %v1379
    %v1605 = vpack.c.b16 %v1382, %v1381
    %v1606 = vpack.c.b16 %v1384, %v1383
    %v1607 = vpack.c.b16 %v1386, %v1385
    %v1608 = vpack.c.b16 %v1388, %v1387
    %v1609 = vpack.c.b16 %v1390, %v1389
    %v1610 = vpack.c.b16 %v1392, %v1391
    %v1611 = vpack.c.b16 %v1394, %v1393
    %v1612 = vpack.c.b16 %v1396, %v1395
    %v1613 = vpack.c.b16 %v1398, %v1397
    %v1614 = vpack.c.b16 %v1400, %v1399
    %v1615 = vpack.c.b16 %v1402, %v1401
    %v1616 = vpack.c.b16 %v1404, %v1403
    %v1617 = vpack.c.b16 %v1406, %v1405
    %v1618 = vpack.c.b16 %v1408, %v1407
    %v1619 = vpack.c.b16 %v1410, %v1409
    %v1620 = vpack.c.b16 %v1412, %v1411
    %v1621 = vpack.c.b16 %v1414, %v1413
    %v1622 = vpack.c.b16 %v1416, %v1415
    %v1623 = vpack.c.b16 %v1418, %v1417
    %v1624 = vpack.c.b16 %v1420, %v1419
    %v1625 = vpack.c.b16 %v1422, %v1421
    %v1626 = vpack.c.b16 %v1424, %v1423
    %v1627 = vpack.c.b16 %v1426, %v1425
    %v1628 = vpack.c.b16 %v1428, %v1427
    %1829 = vmatprep.subr.bf16.mxu0 0
    %1830 = vmatpush1.bf16.msra.mxu0 %v1436
    %1831 = vmatprep.subr.bf16.mxu0 0
    %1832 = vmatpush1.bf16.msra.mxu0 %v1435
    %1833 = vmatprep.subr.bf16.mxu0 0
    %1834 = vmatpush1.bf16.msra.mxu0 %v1434
    %1835 = vmatprep.subr.bf16.mxu0 0
    %1836 = vmatpush1.bf16.msra.mxu0 %v1433
    %1837 = vmatprep.subr.bf16.mxu0 0
    %1838 = vmatpush1.bf16.msra.mxu0 %v1432
    %1839 = vmatprep.subr.bf16.mxu0 0
    %1840 = vmatpush1.bf16.msra.mxu0 %v1431
    %1841 = vmatprep.subr.bf16.mxu0 0
    %1842 = vmatpush1.bf16.msra.mxu0 %v1430
    %1843 = vmatprep.subr.bf16.mxu0 0
    %1844 = vmatpush1.bf16.msra.mxu0 %v1429
    %1845 = vmatprep.subr.bf16.mxu0 0
    %1846 = vmatpush2.bf16.msra.mxu0 %v1444
    %1847 = vmatprep.subr.bf16.mxu0 0
    %1848 = vmatpush2.bf16.msra.mxu0 %v1443
    %1849 = vmatprep.subr.bf16.mxu0 0
    %1850 = vmatpush2.bf16.msra.mxu0 %v1442
    %1851 = vmatprep.subr.bf16.mxu0 0
    %1852 = vmatpush2.bf16.msra.mxu0 %v1441
    %1853 = vmatprep.subr.bf16.mxu0 0
    %1854 = vmatpush2.bf16.msra.mxu0 %v1440
    %1855 = vmatprep.subr.bf16.mxu0 0
    %1856 = vmatpush2.bf16.msra.mxu0 %v1439
    %1857 = vmatprep.subr.bf16.mxu0 0
    %1858 = vmatpush2.bf16.msra.mxu0 %v1438
    %1859 = vmatprep.subr.bf16.mxu0 0
    %1860 = vmatpush2.bf16.msra.mxu0 %v1437
    %1861 = vmatprep.mubr.bf16.mxu0 %v480
    %1862 = vmatmul.mubr.bf16.gmra.mxu0 %v466
    %v1863 = vpop.f32.mrf.mxu0
    %v1864 = vadd.f32 %v437, %v1863
    %v1865 = vpop.f32.mrf.mxu0
    %v1866 = vpop.f32.mrf.mxu0
    %v1867 = vpop.f32.mrf.mxu0
    %1868 = vdwg.mxu0
    %1869 = vmatprep.subr.bf16.mxu0 0
    %1870 = vmatpush1.bf16.msra.mxu0 %v1452
    %1871 = vmatprep.subr.bf16.mxu0 0
    %1872 = vmatpush1.bf16.msra.mxu0 %v1451
    %1873 = vmatprep.subr.bf16.mxu0 0
    %1874 = vmatpush1.bf16.msra.mxu0 %v1450
    %1875 = vmatprep.subr.bf16.mxu0 0
    %1876 = vmatpush1.bf16.msra.mxu0 %v1449
    %1877 = vmatprep.subr.bf16.mxu0 0
    %1878 = vmatpush1.bf16.msra.mxu0 %v1448
    %1879 = vmatprep.subr.bf16.mxu0 0
    %1880 = vmatpush1.bf16.msra.mxu0 %v1447
    %1881 = vmatprep.subr.bf16.mxu0 0
    %1882 = vmatpush1.bf16.msra.mxu0 %v1446
    %1883 = vmatprep.subr.bf16.mxu0 0
    %1884 = vmatpush1.bf16.msra.mxu0 %v1445
    %1885 = vmatprep.subr.bf16.mxu0 0
    %1886 = vmatpush2.bf16.msra.mxu0 %v1460
    %1887 = vmatprep.subr.bf16.mxu0 0
    %1888 = vmatpush2.bf16.msra.mxu0 %v1459
    %1889 = vmatprep.subr.bf16.mxu0 0
    %1890 = vmatpush2.bf16.msra.mxu0 %v1458
    %1891 = vmatprep.subr.bf16.mxu0 0
    %1892 = vmatpush2.bf16.msra.mxu0 %v1457
    %1893 = vmatprep.subr.bf16.mxu0 0
    %1894 = vmatpush2.bf16.msra.mxu0 %v1456
    %1895 = vmatprep.subr.bf16.mxu0 0
    %1896 = vmatpush2.bf16.msra.mxu0 %v1455
    %1897 = vmatprep.subr.bf16.mxu0 0
    %1898 = vmatpush2.bf16.msra.mxu0 %v1454
    %1899 = vmatprep.subr.bf16.mxu0 0
    %1900 = vmatpush2.bf16.msra.mxu0 %v1453
    %1901 = vmatprep.mubr.bf16.mxu0 %v490
    %1902 = vmatmul.mubr.bf16.gmra.mxu0 %v488
    %v1903 = vpop.f32.mrf.mxu0
    %v1904 = vadd.f32 %v1864, %v1903
    %v1905 = vpop.f32.mrf.mxu0
    %v1906 = vpop.f32.mrf.mxu0
    %v1907 = vpop.f32.mrf.mxu0
    %1908 = vdwg.mxu0
    %1909 = vmatprep.subr.bf16.mxu0 0
    %1910 = vmatpush1.bf16.msra.mxu0 %v1468
    %1911 = vmatprep.subr.bf16.mxu0 0
    %1912 = vmatpush1.bf16.msra.mxu0 %v1467
    %1913 = vmatprep.subr.bf16.mxu0 0
    %1914 = vmatpush1.bf16.msra.mxu0 %v1466
    %1915 = vmatprep.subr.bf16.mxu0 0
    %1916 = vmatpush1.bf16.msra.mxu0 %v1465
    %1917 = vmatprep.subr.bf16.mxu0 0
    %1918 = vmatpush1.bf16.msra.mxu0 %v1464
    %1919 = vmatprep.subr.bf16.mxu0 0
    %1920 = vmatpush1.bf16.msra.mxu0 %v1463
    %1921 = vmatprep.subr.bf16.mxu0 0
    %1922 = vmatpush1.bf16.msra.mxu0 %v1462
    %1923 = vmatprep.subr.bf16.mxu0 0
    %1924 = vmatpush1.bf16.msra.mxu0 %v1461
    %1925 = vmatprep.subr.bf16.mxu0 0
    %1926 = vmatpush2.bf16.msra.mxu0 %v1476
    %1927 = vmatprep.subr.bf16.mxu0 0
    %1928 = vmatpush2.bf16.msra.mxu0 %v1475
    %1929 = vmatprep.subr.bf16.mxu0 0
    %1930 = vmatpush2.bf16.msra.mxu0 %v1474
    %1931 = vmatprep.subr.bf16.mxu0 0
    %1932 = vmatpush2.bf16.msra.mxu0 %v1473
    %1933 = vmatprep.subr.bf16.mxu0 0
    %1934 = vmatpush2.bf16.msra.mxu0 %v1472
    %1935 = vmatprep.subr.bf16.mxu0 0
    %1936 = vmatpush2.bf16.msra.mxu0 %v1471
    %1937 = vmatprep.subr.bf16.mxu0 0
    %1938 = vmatpush2.bf16.msra.mxu0 %v1470
    %1939 = vmatprep.subr.bf16.mxu0 0
    %1940 = vmatpush2.bf16.msra.mxu0 %v1469
    %1941 = vmatprep.mubr.bf16.mxu0 %v487
    %1942 = vmatmul.mubr.bf16.gmra.mxu0 %v473
    %v1943 = vpop.f32.mrf.mxu0
    %v1944 = vadd.f32 %v1904, %v1943
    %v1945 = vpop.f32.mrf.mxu0
    %v1946 = vpop.f32.mrf.mxu0
    %v1947 = vpop.f32.mrf.mxu0
    %1948 = vdwg.mxu0
    %1949 = vmatprep.subr.bf16.mxu0 0
    %1950 = vmatpush1.bf16.msra.mxu0 %v1484
    %1951 = vmatprep.subr.bf16.mxu0 0
    %1952 = vmatpush1.bf16.msra.mxu0 %v1483
    %1953 = vmatprep.subr.bf16.mxu0 0
    %1954 = vmatpush1.bf16.msra.mxu0 %v1482
    %1955 = vmatprep.subr.bf16.mxu0 0
    %1956 = vmatpush1.bf16.msra.mxu0 %v1481
    %1957 = vmatprep.subr.bf16.mxu0 0
    %1958 = vmatpush1.bf16.msra.mxu0 %v1480
    %1959 = vmatprep.subr.bf16.mxu0 0
    %1960 = vmatpush1.bf16.msra.mxu0 %v1479
    %1961 = vmatprep.subr.bf16.mxu0 0
    %1962 = vmatpush1.bf16.msra.mxu0 %v1478
    %1963 = vmatprep.subr.bf16.mxu0 0
    %1964 = vmatpush1.bf16.msra.mxu0 %v1477
    %1965 = vmatprep.subr.bf16.mxu0 0
    %1966 = vmatpush2.bf16.msra.mxu0 %v1492
    %1967 = vmatprep.subr.bf16.mxu0 0
    %1968 = vmatpush2.bf16.msra.mxu0 %v1491
    %1969 = vmatprep.subr.bf16.mxu0 0
    %1970 = vmatpush2.bf16.msra.mxu0 %v1490
    %1971 = vmatprep.subr.bf16.mxu0 0
    %1972 = vmatpush2.bf16.msra.mxu0 %v1489
    %1973 = vmatprep.subr.bf16.mxu0 0
    %1974 = vmatpush2.bf16.msra.mxu0 %v1488
    %1975 = vmatprep.subr.bf16.mxu0 0
    %1976 = vmatpush2.bf16.msra.mxu0 %v1487
    %1977 = vmatprep.subr.bf16.mxu0 0
    %1978 = vmatpush2.bf16.msra.mxu0 %v1486
    %1979 = vmatprep.subr.bf16.mxu0 0
    %1980 = vmatpush2.bf16.msra.mxu0 %v1485
    %1981 = vmatprep.mubr.bf16.mxu0 %v491
    %1982 = vmatmul.mubr.bf16.gmra.mxu0 %v489
    %v1983 = vpop.f32.mrf.mxu0
    %v1984 = vadd.f32 %v1944, %v1983
    %v1985 = vpop.f32.mrf.mxu0
    %v1986 = vpop.f32.mrf.mxu0
    %v1987 = vpop.f32.mrf.mxu0
    %1988 = vdwg.mxu0
    %1989 = vmatprep.subr.bf16.mxu0 0
    %1990 = vmatpush1.bf16.msra.mxu0 %v1500
    %1991 = vmatprep.subr.bf16.mxu0 0
    %1992 = vmatpush1.bf16.msra.mxu0 %v1499
    %1993 = vmatprep.subr.bf16.mxu0 0
    %1994 = vmatpush1.bf16.msra.mxu0 %v1498
    %1995 = vmatprep.subr.bf16.mxu0 0
    %1996 = vmatpush1.bf16.msra.mxu0 %v1497
    %1997 = vmatprep.subr.bf16.mxu0 0
    %1998 = vmatpush1.bf16.msra.mxu0 %v1496
    %1999 = vmatprep.subr.bf16.mxu0 0
    %2000 = vmatpush1.bf16.msra.mxu0 %v1495
    %2001 = vmatprep.subr.bf16.mxu0 0
    %2002 = vmatpush1.bf16.msra.mxu0 %v1494
    %2003 = vmatprep.subr.bf16.mxu0 0
    %2004 = vmatpush1.bf16.msra.mxu0 %v1493
    %2005 = vmatprep.subr.bf16.mxu0 0
    %2006 = vmatpush2.bf16.msra.mxu0 %v1508
    %2007 = vmatprep.subr.bf16.mxu0 0
    %2008 = vmatpush2.bf16.msra.mxu0 %v1507
    %2009 = vmatprep.subr.bf16.mxu0 0
    %2010 = vmatpush2.bf16.msra.mxu0 %v1506
    %2011 = vmatprep.subr.bf16.mxu0 0
    %2012 = vmatpush2.bf16.msra.mxu0 %v1505
    %2013 = vmatprep.subr.bf16.mxu0 0
    %2014 = vmatpush2.bf16.msra.mxu0 %v1504
    %2015 = vmatprep.subr.bf16.mxu0 0
    %2016 = vmatpush2.bf16.msra.mxu0 %v1503
    %2017 = vmatprep.subr.bf16.mxu0 0
    %2018 = vmatpush2.bf16.msra.mxu0 %v1502
    %2019 = vmatprep.subr.bf16.mxu0 0
    %2020 = vmatpush2.bf16.msra.mxu0 %v1501
    %2021 = vmatprep.mubr.bf16.mxu0 %v529
    %2022 = vmatmul.mubr.bf16.gmra.mxu0 %v515
    %v2023 = vpop.f32.mrf.mxu0
    %v2024 = vadd.f32 %v1984, %v2023
    %v2025 = vpop.f32.mrf.mxu0
    %v2026 = vpop.f32.mrf.mxu0
    %v2027 = vpop.f32.mrf.mxu0
    %2028 = vdwg.mxu0
    %2029 = vmatprep.subr.bf16.mxu0 0
    %2030 = vmatpush1.bf16.msra.mxu0 %v1516
    %2031 = vmatprep.subr.bf16.mxu0 0
    %2032 = vmatpush1.bf16.msra.mxu0 %v1515
    %2033 = vmatprep.subr.bf16.mxu0 0
    %2034 = vmatpush1.bf16.msra.mxu0 %v1514
    %2035 = vmatprep.subr.bf16.mxu0 0
    %2036 = vmatpush1.bf16.msra.mxu0 %v1513
    %2037 = vmatprep.subr.bf16.mxu0 0
    %2038 = vmatpush1.bf16.msra.mxu0 %v1512
    %2039 = vmatprep.subr.bf16.mxu0 0
    %2040 = vmatpush1.bf16.msra.mxu0 %v1511
    %2041 = vmatprep.subr.bf16.mxu0 0
    %2042 = vmatpush1.bf16.msra.mxu0 %v1510
    %2043 = vmatprep.subr.bf16.mxu0 0
    %2044 = vmatpush1.bf16.msra.mxu0 %v1509
    %2045 = vmatprep.subr.bf16.mxu0 0
    %2046 = vmatpush2.bf16.msra.mxu0 %v1524
    %2047 = vmatprep.subr.bf16.mxu0 0
    %2048 = vmatpush2.bf16.msra.mxu0 %v1523
    %2049 = vmatprep.subr.bf16.mxu0 0
    %2050 = vmatpush2.bf16.msra.mxu0 %v1522
    %2051 = vmatprep.subr.bf16.mxu0 0
    %2052 = vmatpush2.bf16.msra.mxu0 %v1521
    %2053 = vmatprep.subr.bf16.mxu0 0
    %2054 = vmatpush2.bf16.msra.mxu0 %v1520
    %2055 = vmatprep.subr.bf16.mxu0 0
    %2056 = vmatpush2.bf16.msra.mxu0 %v1519
    %2057 = vmatprep.subr.bf16.mxu0 0
    %2058 = vmatpush2.bf16.msra.mxu0 %v1518
    %2059 = vmatprep.subr.bf16.mxu0 0
    %2060 = vmatpush2.bf16.msra.mxu0 %v1517
    %2061 = vmatprep.mubr.bf16.mxu0 %v539
    %2062 = vmatmul.mubr.bf16.gmra.mxu0 %v537
    %v2063 = vpop.f32.mrf.mxu0
    %v2064 = vadd.f32 %v2024, %v2063
    %v2065 = vpop.f32.mrf.mxu0
    %v2066 = vpop.f32.mrf.mxu0
    %v2067 = vpop.f32.mrf.mxu0
    %2068 = vdwg.mxu0
    %2069 = vmatprep.subr.bf16.mxu0 0
    %2070 = vmatpush1.bf16.msra.mxu0 %v1532
    %2071 = vmatprep.subr.bf16.mxu0 0
    %2072 = vmatpush1.bf16.msra.mxu0 %v1531
    %2073 = vmatprep.subr.bf16.mxu0 0
    %2074 = vmatpush1.bf16.msra.mxu0 %v1530
    %2075 = vmatprep.subr.bf16.mxu0 0
    %2076 = vmatpush1.bf16.msra.mxu0 %v1529
    %2077 = vmatprep.subr.bf16.mxu0 0
    %2078 = vmatpush1.bf16.msra.mxu0 %v1528
    %2079 = vmatprep.subr.bf16.mxu0 0
    %2080 = vmatpush1.bf16.msra.mxu0 %v1527
    %2081 = vmatprep.subr.bf16.mxu0 0
    %2082 = vmatpush1.bf16.msra.mxu0 %v1526
    %2083 = vmatprep.subr.bf16.mxu0 0
    %2084 = vmatpush1.bf16.msra.mxu0 %v1525
    %2085 = vmatprep.subr.bf16.mxu0 0
    %2086 = vmatpush2.bf16.msra.mxu0 %v1540
    %2087 = vmatprep.subr.bf16.mxu0 0
    %2088 = vmatpush2.bf16.msra.mxu0 %v1539
    %2089 = vmatprep.subr.bf16.mxu0 0
    %2090 = vmatpush2.bf16.msra.mxu0 %v1538
    %2091 = vmatprep.subr.bf16.mxu0 0
    %2092 = vmatpush2.bf16.msra.mxu0 %v1537
    %2093 = vmatprep.subr.bf16.mxu0 0
    %2094 = vmatpush2.bf16.msra.mxu0 %v1536
    %2095 = vmatprep.subr.bf16.mxu0 0
    %2096 = vmatpush2.bf16.msra.mxu0 %v1535
    %2097 = vmatprep.subr.bf16.mxu0 0
    %2098 = vmatpush2.bf16.msra.mxu0 %v1534
    %2099 = vmatprep.subr.bf16.mxu0 0
    %2100 = vmatpush2.bf16.msra.mxu0 %v1533
    %2101 = vmatprep.mubr.bf16.mxu0 %v536
    %2102 = vmatmul.mubr.bf16.gmra.mxu0 %v522
    %v2103 = vpop.f32.mrf.mxu0
    %v2104 = vadd.f32 %v2064, %v2103
    %v2105 = vpop.f32.mrf.mxu0
    %v2106 = vpop.f32.mrf.mxu0
    %v2107 = vpop.f32.mrf.mxu0
    %2108 = vdwg.mxu0
    %2109 = vmatprep.subr.bf16.mxu0 0
    %2110 = vmatpush1.bf16.msra.mxu0 %v1548
    %2111 = vmatprep.subr.bf16.mxu0 0
    %2112 = vmatpush1.bf16.msra.mxu0 %v1547
    %2113 = vmatprep.subr.bf16.mxu0 0
    %2114 = vmatpush1.bf16.msra.mxu0 %v1546
    %2115 = vmatprep.subr.bf16.mxu0 0
    %2116 = vmatpush1.bf16.msra.mxu0 %v1545
    %2117 = vmatprep.subr.bf16.mxu0 0
    %2118 = vmatpush1.bf16.msra.mxu0 %v1544
    %2119 = vmatprep.subr.bf16.mxu0 0
    %2120 = vmatpush1.bf16.msra.mxu0 %v1543
    %2121 = vmatprep.subr.bf16.mxu0 0
    %2122 = vmatpush1.bf16.msra.mxu0 %v1542
    %2123 = vmatprep.subr.bf16.mxu0 0
    %2124 = vmatpush1.bf16.msra.mxu0 %v1541
    %2125 = vmatprep.subr.bf16.mxu0 0
    %2126 = vmatpush2.bf16.msra.mxu0 %v1556
    %2127 = vmatprep.subr.bf16.mxu0 0
    %2128 = vmatpush2.bf16.msra.mxu0 %v1555
    %2129 = vmatprep.subr.bf16.mxu0 0
    %2130 = vmatpush2.bf16.msra.mxu0 %v1554
    %2131 = vmatprep.subr.bf16.mxu0 0
    %2132 = vmatpush2.bf16.msra.mxu0 %v1553
    %2133 = vmatprep.subr.bf16.mxu0 0
    %2134 = vmatpush2.bf16.msra.mxu0 %v1552
    %2135 = vmatprep.subr.bf16.mxu0 0
    %2136 = vmatpush2.bf16.msra.mxu0 %v1551
    %2137 = vmatprep.subr.bf16.mxu0 0
    %2138 = vmatpush2.bf16.msra.mxu0 %v1550
    %2139 = vmatprep.subr.bf16.mxu0 0
    %2140 = vmatpush2.bf16.msra.mxu0 %v1549
    %2141 = vmatprep.mubr.bf16.mxu0 %v540
    %2142 = vmatmul.mubr.bf16.gmra.mxu0 %v538
    %v2143 = vpop.f32.mrf.mxu0
    %v2144 = vadd.f32 %v2104, %v2143
    %v2145 = vpop.f32.mrf.mxu0
    %v2146 = vpop.f32.mrf.mxu0
    %v2147 = vpop.f32.mrf.mxu0
    %2148 = vdwg.mxu0
    %2149 = vmatprep.subr.bf16.mxu0 0
    %2150 = vmatpush1.bf16.msra.mxu0 %v1564
    %2151 = vmatprep.subr.bf16.mxu0 0
    %2152 = vmatpush1.bf16.msra.mxu0 %v1563
    %2153 = vmatprep.subr.bf16.mxu0 0
    %2154 = vmatpush1.bf16.msra.mxu0 %v1562
    %2155 = vmatprep.subr.bf16.mxu0 0
    %2156 = vmatpush1.bf16.msra.mxu0 %v1561
    %2157 = vmatprep.subr.bf16.mxu0 0
    %2158 = vmatpush1.bf16.msra.mxu0 %v1560
    %2159 = vmatprep.subr.bf16.mxu0 0
    %2160 = vmatpush1.bf16.msra.mxu0 %v1559
    %2161 = vmatprep.subr.bf16.mxu0 0
    %2162 = vmatpush1.bf16.msra.mxu0 %v1558
    %2163 = vmatprep.subr.bf16.mxu0 0
    %2164 = vmatpush1.bf16.msra.mxu0 %v1557
    %2165 = vmatprep.subr.bf16.mxu0 0
    %2166 = vmatpush2.bf16.msra.mxu0 %v1572
    %2167 = vmatprep.subr.bf16.mxu0 0
    %2168 = vmatpush2.bf16.msra.mxu0 %v1571
    %2169 = vmatprep.subr.bf16.mxu0 0
    %2170 = vmatpush2.bf16.msra.mxu0 %v1570
    %2171 = vmatprep.subr.bf16.mxu0 0
    %2172 = vmatpush2.bf16.msra.mxu0 %v1569
    %2173 = vmatprep.subr.bf16.mxu0 0
    %2174 = vmatpush2.bf16.msra.mxu0 %v1568
    %2175 = vmatprep.subr.bf16.mxu0 0
    %2176 = vmatpush2.bf16.msra.mxu0 %v1567
    %2177 = vmatprep.subr.bf16.mxu0 0
    %2178 = vmatpush2.bf16.msra.mxu0 %v1566
    %2179 = vmatprep.subr.bf16.mxu0 0
    %2180 = vmatpush2.bf16.msra.mxu0 %v1565
    %2181 = vmatprep.mubr.bf16.mxu0 %v578
    %2182 = vmatmul.mubr.bf16.gmra.mxu0 %v564
    %v2183 = vpop.f32.mrf.mxu0
    %v2184 = vadd.f32 %v2144, %v2183
    %v2185 = vpop.f32.mrf.mxu0
    %v2186 = vpop.f32.mrf.mxu0
    %v2187 = vpop.f32.mrf.mxu0
    %2188 = vdwg.mxu0
    %2189 = vmatprep.subr.bf16.mxu0 0
    %2190 = vmatpush1.bf16.msra.mxu0 %v1580
    %2191 = vmatprep.subr.bf16.mxu0 0
    %2192 = vmatpush1.bf16.msra.mxu0 %v1579
    %2193 = vmatprep.subr.bf16.mxu0 0
    %2194 = vmatpush1.bf16.msra.mxu0 %v1578
    %2195 = vmatprep.subr.bf16.mxu0 0
    %2196 = vmatpush1.bf16.msra.mxu0 %v1577
    %2197 = vmatprep.subr.bf16.mxu0 0
    %2198 = vmatpush1.bf16.msra.mxu0 %v1576
    %2199 = vmatprep.subr.bf16.mxu0 0
    %2200 = vmatpush1.bf16.msra.mxu0 %v1575
    %2201 = vmatprep.subr.bf16.mxu0 0
    %2202 = vmatpush1.bf16.msra.mxu0 %v1574
    %2203 = vmatprep.subr.bf16.mxu0 0
    %2204 = vmatpush1.bf16.msra.mxu0 %v1573
    %2205 = vmatprep.subr.bf16.mxu0 0
    %2206 = vmatpush2.bf16.msra.mxu0 %v1588
    %2207 = vmatprep.subr.bf16.mxu0 0
    %2208 = vmatpush2.bf16.msra.mxu0 %v1587
    %2209 = vmatprep.subr.bf16.mxu0 0
    %2210 = vmatpush2.bf16.msra.mxu0 %v1586
    %2211 = vmatprep.subr.bf16.mxu0 0
    %2212 = vmatpush2.bf16.msra.mxu0 %v1585
    %2213 = vmatprep.subr.bf16.mxu0 0
    %2214 = vmatpush2.bf16.msra.mxu0 %v1584
    %2215 = vmatprep.subr.bf16.mxu0 0
    %2216 = vmatpush2.bf16.msra.mxu0 %v1583
    %2217 = vmatprep.subr.bf16.mxu0 0
    %2218 = vmatpush2.bf16.msra.mxu0 %v1582
    %2219 = vmatprep.subr.bf16.mxu0 0
    %2220 = vmatpush2.bf16.msra.mxu0 %v1581
    %2221 = vmatprep.mubr.bf16.mxu0 %v588
    %2222 = vmatmul.mubr.bf16.gmra.mxu0 %v586
    %v2223 = vpop.f32.mrf.mxu0
    %v2224 = vadd.f32 %v2184, %v2223
    %v2225 = vpop.f32.mrf.mxu0
    %v2226 = vpop.f32.mrf.mxu0
    %v2227 = vpop.f32.mrf.mxu0
    %2228 = vdwg.mxu0
    %2229 = vmatprep.subr.bf16.mxu0 0
    %2230 = vmatpush1.bf16.msra.mxu0 %v1596
    %2231 = vmatprep.subr.bf16.mxu0 0
    %2232 = vmatpush1.bf16.msra.mxu0 %v1595
    %2233 = vmatprep.subr.bf16.mxu0 0
    %2234 = vmatpush1.bf16.msra.mxu0 %v1594
    %2235 = vmatprep.subr.bf16.mxu0 0
    %2236 = vmatpush1.bf16.msra.mxu0 %v1593
    %2237 = vmatprep.subr.bf16.mxu0 0
    %2238 = vmatpush1.bf16.msra.mxu0 %v1592
    %2239 = vmatprep.subr.bf16.mxu0 0
    %2240 = vmatpush1.bf16.msra.mxu0 %v1591
    %2241 = vmatprep.subr.bf16.mxu0 0
    %2242 = vmatpush1.bf16.msra.mxu0 %v1590
    %2243 = vmatprep.subr.bf16.mxu0 0
    %2244 = vmatpush1.bf16.msra.mxu0 %v1589
    %2245 = vmatprep.subr.bf16.mxu0 0
    %2246 = vmatpush2.bf16.msra.mxu0 %v1604
    %2247 = vmatprep.subr.bf16.mxu0 0
    %2248 = vmatpush2.bf16.msra.mxu0 %v1603
    %2249 = vmatprep.subr.bf16.mxu0 0
    %2250 = vmatpush2.bf16.msra.mxu0 %v1602
    %2251 = vmatprep.subr.bf16.mxu0 0
    %2252 = vmatpush2.bf16.msra.mxu0 %v1601
    %2253 = vmatprep.subr.bf16.mxu0 0
    %2254 = vmatpush2.bf16.msra.mxu0 %v1600
    %2255 = vmatprep.subr.bf16.mxu0 0
    %2256 = vmatpush2.bf16.msra.mxu0 %v1599
    %2257 = vmatprep.subr.bf16.mxu0 0
    %2258 = vmatpush2.bf16.msra.mxu0 %v1598
    %2259 = vmatprep.subr.bf16.mxu0 0
    %2260 = vmatpush2.bf16.msra.mxu0 %v1597
    %2261 = vmatprep.mubr.bf16.mxu0 %v585
    %2262 = vmatmul.mubr.bf16.gmra.mxu0 %v571
    %v2263 = vpop.f32.mrf.mxu0
    %v2264 = vadd.f32 %v2224, %v2263
    %v2265 = vpop.f32.mrf.mxu0
    %v2266 = vpop.f32.mrf.mxu0
    %v2267 = vpop.f32.mrf.mxu0
    %2268 = vdwg.mxu0
    %2269 = vmatprep.subr.bf16.mxu0 0
    %2270 = vmatpush1.bf16.msra.mxu0 %v1612
    %2271 = vmatprep.subr.bf16.mxu0 0
    %2272 = vmatpush1.bf16.msra.mxu0 %v1611
    %2273 = vmatprep.subr.bf16.mxu0 0
    %2274 = vmatpush1.bf16.msra.mxu0 %v1610
    %2275 = vmatprep.subr.bf16.mxu0 0
    %2276 = vmatpush1.bf16.msra.mxu0 %v1609
    %2277 = vmatprep.subr.bf16.mxu0 0
    %2278 = vmatpush1.bf16.msra.mxu0 %v1608
    %2279 = vmatprep.subr.bf16.mxu0 0
    %2280 = vmatpush1.bf16.msra.mxu0 %v1607
    %2281 = vmatprep.subr.bf16.mxu0 0
    %2282 = vmatpush1.bf16.msra.mxu0 %v1606
    %2283 = vmatprep.subr.bf16.mxu0 0
    %2284 = vmatpush1.bf16.msra.mxu0 %v1605
    %2285 = vmatprep.subr.bf16.mxu0 0
    %2286 = vmatpush2.bf16.msra.mxu0 %v1620
    %2287 = vmatprep.subr.bf16.mxu0 0
    %2288 = vmatpush2.bf16.msra.mxu0 %v1619
    %2289 = vmatprep.subr.bf16.mxu0 0
    %2290 = vmatpush2.bf16.msra.mxu0 %v1618
    %2291 = vmatprep.subr.bf16.mxu0 0
    %2292 = vmatpush2.bf16.msra.mxu0 %v1617
    %2293 = vmatprep.subr.bf16.mxu0 0
    %2294 = vmatpush2.bf16.msra.mxu0 %v1616
    %2295 = vmatprep.subr.bf16.mxu0 0
    %2296 = vmatpush2.bf16.msra.mxu0 %v1615
    %2297 = vmatprep.subr.bf16.mxu0 0
    %2298 = vmatpush2.bf16.msra.mxu0 %v1614
    %2299 = vmatprep.subr.bf16.mxu0 0
    %2300 = vmatpush2.bf16.msra.mxu0 %v1613
    %2301 = vmatprep.mubr.bf16.mxu0 %v589
    %2302 = vmatmul.mubr.bf16.gmra.mxu0 %v587
    %v2303 = vpop.f32.mrf.mxu0
    %v2304 = vadd.f32 %v2264, %v2303
    %v2305 = vpop.f32.mrf.mxu0
    %v2306 = vpop.f32.mrf.mxu0
    %v2307 = vpop.f32.mrf.mxu0
    %2308 = vdwg.mxu0
    %2309 = vmatprep.subr.bf16.mxu0 0
    %2310 = vmatpush1.bf16.msra.mxu0 %v1628
    %2311 = vmatprep.subr.bf16.mxu0 0
    %2312 = vmatpush1.bf16.msra.mxu0 %v1627
    %2313 = vmatprep.subr.bf16.mxu0 0
    %2314 = vmatpush1.bf16.msra.mxu0 %v1626
    %2315 = vmatprep.subr.bf16.mxu0 0
    %2316 = vmatpush1.bf16.msra.mxu0 %v1625
    %2317 = vmatprep.subr.bf16.mxu0 0
    %2318 = vmatpush1.bf16.msra.mxu0 %v1624
    %2319 = vmatprep.subr.bf16.mxu0 0
    %2320 = vmatpush1.bf16.msra.mxu0 %v1623
    %2321 = vmatprep.subr.bf16.mxu0 0
    %2322 = vmatpush1.bf16.msra.mxu0 %v1622
    %2323 = vmatprep.subr.bf16.mxu0 0
    %2324 = vmatpush1.bf16.msra.mxu0 %v1621
    %2325 = vmatprep.subr.bf16.mxu0 0
    %2326 = vmatpush2.bf16.msra.mxu0 0
    %2327 = vmatprep.subr.bf16.mxu0 0
    %2328 = vmatpush2.bf16.msra.mxu0 0
    %2329 = vmatprep.subr.bf16.mxu0 0
    %2330 = vmatpush2.bf16.msra.mxu0 0
    %2331 = vmatprep.subr.bf16.mxu0 0
    %2332 = vmatpush2.bf16.msra.mxu0 0
    %2333 = vmatprep.subr.bf16.mxu0 0
    %2334 = vmatpush2.bf16.msra.mxu0 0
    %2335 = vmatprep.subr.bf16.mxu0 0
    %2336 = vmatpush2.bf16.msra.mxu0 0
    %2337 = vmatprep.subr.bf16.mxu0 0
    %2338 = vmatpush2.bf16.msra.mxu0 0
    %2339 = vmatprep.subr.bf16.mxu0 0
    %2340 = vmatpush2.bf16.msra.mxu0 0
    %2341 = vmatprep.mubr.bf16.mxu0 0
    %2342 = vmatmul.mubr.bf16.gmra.mxu0 %v603
    %v2343 = vpop.f32.mrf.mxu0
    %v2344 = vadd.f32 %v2304, %v2343
    %v2345 = vpop.f32.mrf.mxu0
    %v2346 = vpop.f32.mrf.mxu0
    %v2347 = vpop.f32.mrf.mxu0
    %2348 = vdwg.mxu0
    %v2349 = vmax.f32 %v2344, 0.0
    %v2350 = vpack.c.bf16 %v2349, %v2349
    %v2351 = vld [vmem:[%s3] sm:$0xf]
    %v2352 = vld [vmem:[%s3 + $0x4] sm:$0xf]
    %v2353 = vld [vmem:[%s3 + $0x8] sm:$0xf]
    %v2354 = vld [vmem:[%s3 + $0xc] sm:$0xf]
    %v2355 = vld [vmem:[%s3 + $0x10] sm:$0xf]
    %v2356 = vld [vmem:[%s3 + $0x14] sm:$0xf]
    %v2357 = vld [vmem:[%s3 + $0x18] sm:$0xf]
    %v2358 = vld [vmem:[%s3 + $0x1c] sm:$0xf]
    %v2359 = vld [vmem:[%s3 + $0x20] sm:$0xf]
    %v2360 = vld [vmem:[%s3 + $0x24] sm:$0xf]
    %v2361 = vld [vmem:[%s3 + $0x28] sm:$0xf]
    %v2362 = vld [vmem:[%s3 + $0x2c] sm:$0xf]
    %v2363 = vld [vmem:[%s3 + $0x30] sm:$0xf]
    %v2364 = vld [vmem:[%s3 + $0x34] sm:$0xf]
    %v2365 = vld [vmem:[%s3 + $0x38] sm:$0xf]
    %v2366 = vld [vmem:[%s3 + $0x3c] sm:$0xf]
    %v2367 = vld [vmem:[%s4] sm:$0x1]
    %v2369 = vlaneseq
    %v2370 = vshrl.u32 %v2369, 7
    %v2371 = vsub.s32 0, %v2370
    %v2372 = vrot.slane %v2367, %v2371
    %v2390 = vunpack.c.l.b16 %v2351
    %v2391 = vunpack.c.l.b16 %v2352
    %v2392 = vunpack.c.l.b16 %v2353
    %v2393 = vunpack.c.l.b16 %v2354
    %v2394 = vunpack.c.l.b16 %v2355
    %v2395 = vunpack.c.l.b16 %v2356
    %v2396 = vunpack.c.l.b16 %v2357
    %v2397 = vunpack.c.l.b16 %v2358
    %v2398 = vunpack.c.l.b16 %v2359
    %v2399 = vunpack.c.l.b16 %v2360
    %v2400 = vunpack.c.l.b16 %v2361
    %v2401 = vunpack.c.l.b16 %v2362
    %v2402 = vunpack.c.l.b16 %v2363
    %v2403 = vunpack.c.l.b16 %v2364
    %v2404 = vunpack.c.l.b16 %v2365
    %v2405 = vunpack.c.l.b16 %v2366
    %v2406 = vpack.c.b16 %v2391, %v2390
    %v2407 = vpack.c.b16 %v2393, %v2392
    %v2408 = vpack.c.b16 %v2395, %v2394
    %v2409 = vpack.c.b16 %v2397, %v2396
    %v2410 = vpack.c.b16 %v2399, %v2398
    %v2411 = vpack.c.b16 %v2401, %v2400
    %v2412 = vpack.c.b16 %v2403, %v2402
    %v2413 = vpack.c.b16 %v2405, %v2404
    %2422 = vmatprep.subr.bf16.mxu0 0
    %2423 = vmatpush1.bf16.msra.mxu0 %v2413
    %2424 = vmatprep.subr.bf16.mxu0 0
    %2425 = vmatpush1.bf16.msra.mxu0 %v2412
    %2426 = vmatprep.subr.bf16.mxu0 0
    %2427 = vmatpush1.bf16.msra.mxu0 %v2411
    %2428 = vmatprep.subr.bf16.mxu0 0
    %2429 = vmatpush1.bf16.msra.mxu0 %v2410
    %2430 = vmatprep.subr.bf16.mxu0 0
    %2431 = vmatpush1.bf16.msra.mxu0 %v2409
    %2432 = vmatprep.subr.bf16.mxu0 0
    %2433 = vmatpush1.bf16.msra.mxu0 %v2408
    %2434 = vmatprep.subr.bf16.mxu0 0
    %2435 = vmatpush1.bf16.msra.mxu0 %v2407
    %2436 = vmatprep.subr.bf16.mxu0 0
    %2437 = vmatpush1.bf16.msra.mxu0 %v2406
    %2438 = vmatprep.subr.bf16.mxu0 0
    %2439 = vmatpush2.bf16.msra.mxu0 0
    %2440 = vmatprep.subr.bf16.mxu0 0
    %2441 = vmatpush2.bf16.msra.mxu0 0
    %2442 = vmatprep.subr.bf16.mxu0 0
    %2443 = vmatpush2.bf16.msra.mxu0 0
    %2444 = vmatprep.subr.bf16.mxu0 0
    %2445 = vmatpush2.bf16.msra.mxu0 0
    %2446 = vmatprep.subr.bf16.mxu0 0
    %2447 = vmatpush2.bf16.msra.mxu0 0
    %2448 = vmatprep.subr.bf16.mxu0 0
    %2449 = vmatpush2.bf16.msra.mxu0 0
    %2450 = vmatprep.subr.bf16.mxu0 0
    %2451 = vmatpush2.bf16.msra.mxu0 0
    %2452 = vmatprep.subr.bf16.mxu0 0
    %2453 = vmatpush2.bf16.msra.mxu0 0
    %2454 = vmatprep.mubr.bf16.mxu0 0
    %2455 = vmatmul.mubr.bf16.gmra.mxu0 %v2350
    %v2456 = vpop.f32.mrf.mxu0
    %v2457 = vadd.f32 %v2372, %v2456
    %v2458 = vpop.f32.mrf.mxu0
    %v2459 = vpop.f32.mrf.mxu0
    %v2460 = vpop.f32.mrf.mxu0
    %2461 = vdwg.mxu0
    %v2462 = vmax.f32 %v2457, 0.0
    %v2463 = vpack.c.bf16 %v2462, %v2462
    %v2464 = vld [vmem:[%s5] sm:$0xf]
    %v2465 = vld [vmem:[%s5 + $0x4] sm:$0xf]
    %v2466 = vld [vmem:[%s5 + $0x8] sm:$0xf]
    %v2467 = vld [vmem:[%s5 + $0xc] sm:$0xf]
    %v2468 = vld [vmem:[%s5 + $0x10] sm:$0xf]
    %v2469 = vld [vmem:[%s5 + $0x14] sm:$0xf]
    %v2470 = vld [vmem:[%s5 + $0x18] sm:$0xf]
    %v2471 = vld [vmem:[%s5 + $0x1c] sm:$0xf]
    %v2472 = vld [vmem:[%s5 + $0x20] sm:$0xf]
    %v2473 = vld [vmem:[%s5 + $0x24] sm:$0xf]
    %v2474 = vld [vmem:[%s5 + $0x28] sm:$0xf]
    %v2475 = vld [vmem:[%s5 + $0x2c] sm:$0xf]
    %v2476 = vld [vmem:[%s5 + $0x30] sm:$0xf]
    %v2477 = vld [vmem:[%s5 + $0x34] sm:$0xf]
    %v2478 = vld [vmem:[%s5 + $0x38] sm:$0xf]
    %v2479 = vld [vmem:[%s5 + $0x3c] sm:$0xf]
    %v2480 = vld [vmem:[%s6] sm:$0x1]
    %v2482 = vlaneseq
    %v2483 = vshrl.u32 %v2482, 7
    %v2484 = vsub.s32 0, %v2483
    %v2485 = vrot.slane %v2480, %v2484
    %v2503 = vunpack.c.l.b16 %v2464
    %v2504 = vunpack.c.l.b16 %v2465
    %v2505 = vunpack.c.l.b16 %v2466
    %v2506 = vunpack.c.l.b16 %v2467
    %v2507 = vunpack.c.l.b16 %v2468
    %v2508 = vunpack.c.l.b16 %v2469
    %v2509 = vunpack.c.l.b16 %v2470
    %v2510 = vunpack.c.l.b16 %v2471
    %v2511 = vunpack.c.l.b16 %v2472
    %v2512 = vunpack.c.l.b16 %v2473
    %v2513 = vunpack.c.l.b16 %v2474
    %v2514 = vunpack.c.l.b16 %v2475
    %v2515 = vunpack.c.l.b16 %v2476
    %v2516 = vunpack.c.l.b16 %v2477
    %v2517 = vunpack.c.l.b16 %v2478
    %v2518 = vunpack.c.l.b16 %v2479
    %v2519 = vpack.c.b16 %v2504, %v2503
    %v2520 = vpack.c.b16 %v2506, %v2505
    %v2521 = vpack.c.b16 %v2508, %v2507
    %v2522 = vpack.c.b16 %v2510, %v2509
    %v2523 = vpack.c.b16 %v2512, %v2511
    %v2524 = vpack.c.b16 %v2514, %v2513
    %v2525 = vpack.c.b16 %v2516, %v2515
    %v2526 = vpack.c.b16 %v2518, %v2517
    %2535 = vmatprep.subr.bf16.mxu0 0
    %2536 = vmatpush1.bf16.msra.mxu0 %v2526
    %2537 = vmatprep.subr.bf16.mxu0 0
    %2538 = vmatpush1.bf16.msra.mxu0 %v2525
    %2539 = vmatprep.subr.bf16.mxu0 0
    %2540 = vmatpush1.bf16.msra.mxu0 %v2524
    %2541 = vmatprep.subr.bf16.mxu0 0
    %2542 = vmatpush1.bf16.msra.mxu0 %v2523
    %2543 = vmatprep.subr.bf16.mxu0 0
    %2544 = vmatpush1.bf16.msra.mxu0 %v2522
    %2545 = vmatprep.subr.bf16.mxu0 0
    %2546 = vmatpush1.bf16.msra.mxu0 %v2521
    %2547 = vmatprep.subr.bf16.mxu0 0
    %2548 = vmatpush1.bf16.msra.mxu0 %v2520
    %2549 = vmatprep.subr.bf16.mxu0 0
    %2550 = vmatpush1.bf16.msra.mxu0 %v2519
    %2551 = vmatprep.subr.bf16.mxu0 0
    %2552 = vmatpush2.bf16.msra.mxu0 0
    %2553 = vmatprep.subr.bf16.mxu0 0
    %2554 = vmatpush2.bf16.msra.mxu0 0
    %2555 = vmatprep.subr.bf16.mxu0 0
    %2556 = vmatpush2.bf16.msra.mxu0 0
    %2557 = vmatprep.subr.bf16.mxu0 0
    %2558 = vmatpush2.bf16.msra.mxu0 0
    %2559 = vmatprep.subr.bf16.mxu0 0
    %2560 = vmatpush2.bf16.msra.mxu0 0
    %2561 = vmatprep.subr.bf16.mxu0 0
    %2562 = vmatpush2.bf16.msra.mxu0 0
    %2563 = vmatprep.subr.bf16.mxu0 0
    %2564 = vmatpush2.bf16.msra.mxu0 0
    %2565 = vmatprep.subr.bf16.mxu0 0
    %2566 = vmatpush2.bf16.msra.mxu0 0
    %2567 = vmatprep.mubr.bf16.mxu0 0
    %2568 = vmatmul.mubr.bf16.gmra.mxu0 %v2463
    %v2569 = vpop.f32.mrf.mxu0
    %v2570 = vadd.f32 %v2485, %v2569
    %v2571 = vpop.f32.mrf.mxu0
    %v2572 = vpop.f32.mrf.mxu0
    %v2573 = vpop.f32.mrf.mxu0
    %2574 = vdwg.mxu0
    %2575 = vst [vmem:[#allocation2] sm:$0x3] %v2570
    // Predicated region
    $region30: #{lenet_forward.5} parent=1 // pred_check
      _
    $region31: #{lenet_forward.5} parent=1 // pred_check_branch
      %2577 = sbr.rel (0) target = $region33
    $region32: #{lenet_forward.5} parent=1 // pred_region
      %s2579 = ssub.s32 32, 32
      %2580 = vsyncadd [#allocation3], %s2579
      %s2582 = sshll.u32 [#allocation2], 4
      %s2583 = int_to_ptr.vmem [resolvable:$true] %s2582
      %2585 = dma.vmem_to_hbm [thread:$0]  %s2583, 32, %s7, [#allocation3]
    $region33: #{lenet_forward.5} parent=1 // pred_fallthru
      _
    // Predicated region
    $region34: #{lenet_forward.5} parent=1 // pred_check
      _
    $region35: #{lenet_forward.5} parent=1 // pred_check_branch
      %2587 = sbr.rel (0) target = $region37
    $region36: #{lenet_forward.5} parent=1 // pred_region
      %2588 = dma.done [#allocation3], 32
    $region37: #{lenet_forward.5} parent=1 // pred_fallthru
      _
    %2589 = vsyncpa [#allocation3], 1

// kernel: lenet_forward.4
$region0: #{lenet_forward.4}
  #allocation0 [shape = 'u32[]', space=smem, size = 0x4, offset = 0x4, fixed_abs, tag = 'smem constant byte address 0x4 - core index']
  #allocation1 [shape = 'u32[144,128]{1,0:T(1,128)}', space=vmem, size = 0x12000, scoped, tag = 'internal scratch']
  %s0 = inlined_call_operand.vmem [shape: bf16[2,25,3200], index: 0, kind: input, shape index: {}]
  %s1 = inlined_call_operand.vmem [shape: bf16[2,25,3200], index: 1, kind: input, shape index: {}]
  %s2 = inlined_call_operand.vmem [shape: bf16[2,25,3200], index: 2, kind: input, shape index: {}]
  %s3 = inlined_call_operand.vmem [shape: bf16[2,25,3200], index: 3, kind: input, shape index: {}]
  %s4 = inlined_call_operand.vmem [shape: bf16[3200,128], index: 4, kind: input, shape index: {}]
  %s5 = inlined_call_operand.vmem [shape: f32[1,128], index: 5, kind: input, shape index: {}]
  %s6 = inlined_call_operand.vmem [shape: bf16[2,25,128], index: 6, kind: output, shape index: {}]
  %s7 = sld [smem:[#allocation0]]
  $region57: #{lenet_forward.4} parent=0
    _
  %s9 = ssub.s32 1, %s7
  %s10 = scalar_select 0, %s9, %s7
  loop: start=0, step=1, limit=4
  $region2: #{lenet_forward.4} parent=0 // loop_pre_header
    _
  $region3: #{lenet_forward.4} parent=0 // loop_header
    %s12 = sphi 0, %s16
    %p13 = scmp.ge.s32.totalorder %s12, 4
    %s22 = sphi 0, %s24
    %s25 = sphi 0, %s22
    %s26 = sphi 0, %s25
    %s42 = sphi 0, %s26
    %s48 = sphi 0, %s50
    %s51 = sphi 0, %s48
    %s52 = sphi 0, %s51
    %s68 = sphi 0, %s52
    %s74 = sphi 0, %s76
    %s77 = sphi 0, %s74
    %s78 = sphi 0, %s77
    %s94 = sphi 0, %s78
    %s100 = sphi 0, %s102
    %s103 = sphi 0, %s100
    %s104 = sphi 0, %s103
    %s120 = sphi 0, %s104
    %s124 = sphi 0, %s124
    %s126 = sphi 0, %s124
    %s127 = sphi 0, %s126
    %s141 = sphi 0, %s127
    %s145 = sphi 0, %s145
    %s147 = sphi 0, %s145
    %s148 = sphi 0, %s147
    %s162 = sphi 0, %s148
    %s168 = sphi 0, %s170
    %s171 = sphi 0, %s168
    %s172 = sphi 0, %s171
    %s188 = sphi 0, %s172
  $region4: #{lenet_forward.4} parent=0 // loop_header_branch
    %15 = sbr.rel (%p13) target = $region8
  $region5: #{lenet_forward.4} parent=0 // loop_body
    %s17 = ssub.s32 %s12, 1
    %s18 = ssub.s32 %s12, 2
    %s19 = sadd.s32 %s12, 1
    %s20 = ssub.s32 %s12, %s19
    %p21 = scmp.eq.s32.totalorder %s20, 0
    %s23 = sadd.s32 %s22, 1
    %s24 = scalar_select %p21, %s22, %s23
    %p27 = pneg %p21
    %p28 = scmp.eq.s32.totalorder %s12, 1
    %p29 = por %p27, %p28
    %p30 = scmp.ne.s32.totalorder %s22, %s25
    %p31 = scmp.eq.s32.totalorder %s12, 0
    %p32 = por %p30, %p31
    %p33 = scmp.ne.s32.totalorder %s22, %s25
    %p34 = scmp.eq.s32.totalorder %s17, 1
    %p35 = por %p33, %p34
    %p36 = scmp.ne.s32.totalorder %s25, %s26
    %p37 = scmp.eq.s32.totalorder %s17, 0
    %p38 = por %p36, %p37
    %p39 = scmp.ne.s32.totalorder %s25, %s26
    %p40 = scmp.eq.s32.totalorder %s18, 1
    %p41 = por %p39, %p40
    %p43 = scmp.ne.s32.totalorder %s26, %s42
    %p44 = scmp.eq.s32.totalorder %s18, 0
    %p45 = por %p43, %p44
    %s46 = ssub.s32 %s12, %s19
    %p47 = scmp.eq.s32.totalorder %s46, 0
    %s49 = sadd.s32 %s48, 1
    %s50 = scalar_select %p47, %s48, %s49
    %p53 = pneg %p47
    %p54 = scmp.eq.s32.totalorder %s12, 1
    %p55 = por %p53, %p54
    %p56 = scmp.ne.s32.totalorder %s48, %s51
    %p57 = scmp.eq.s32.totalorder %s12, 0
    %p58 = por %p56, %p57
    %p59 = scmp.ne.s32.totalorder %s48, %s51
    %p60 = scmp.eq.s32.totalorder %s17, 1
    %p61 = por %p59, %p60
    %p62 = scmp.ne.s32.totalorder %s51, %s52
    %p63 = scmp.eq.s32.totalorder %s17, 0
    %p64 = por %p62, %p63
    %p65 = scmp.ne.s32.totalorder %s51, %s52
    %p66 = scmp.eq.s32.totalorder %s18, 1
    %p67 = por %p65, %p66
    %p69 = scmp.ne.s32.totalorder %s52, %s68
    %p70 = scmp.eq.s32.totalorder %s18, 0
    %p71 = por %p69, %p70
    %s72 = ssub.s32 %s12, %s19
    %p73 = scmp.eq.s32.totalorder %s72, 0
    %s75 = sadd.s32 %s74, 1
    %s76 = scalar_select %p73, %s74, %s75
    %p79 = pneg %p73
    %p80 = scmp.eq.s32.totalorder %s12, 1
    %p81 = por %p79, %p80
    %p82 = scmp.ne.s32.totalorder %s74, %s77
    %p83 = scmp.eq.s32.totalorder %s12, 0
    %p84 = por %p82, %p83
    %p85 = scmp.ne.s32.totalorder %s74, %s77
    %p86 = scmp.eq.s32.totalorder %s17, 1
    %p87 = por %p85, %p86
    %p88 = scmp.ne.s32.totalorder %s77, %s78
    %p89 = scmp.eq.s32.totalorder %s17, 0
    %p90 = por %p88, %p89
    %p91 = scmp.ne.s32.totalorder %s77, %s78
    %p92 = scmp.eq.s32.totalorder %s18, 1
    %p93 = por %p91, %p92
    %p95 = scmp.ne.s32.totalorder %s78, %s94
    %p96 = scmp.eq.s32.totalorder %s18, 0
    %p97 = por %p95, %p96
    %s98 = ssub.s32 %s12, %s19
    %p99 = scmp.eq.s32.totalorder %s98, 0
    %s101 = sadd.s32 %s100, 1
    %s102 = scalar_select %p99, %s100, %s101
    %p105 = pneg %p99
    %p106 = scmp.eq.s32.totalorder %s12, 1
    %p107 = por %p105, %p106
    %p108 = scmp.ne.s32.totalorder %s100, %s103
    %p109 = scmp.eq.s32.totalorder %s12, 0
    %p110 = por %p108, %p109
    %p111 = scmp.ne.s32.totalorder %s100, %s103
    %p112 = scmp.eq.s32.totalorder %s17, 1
    %p113 = por %p111, %p112
    %p114 = scmp.ne.s32.totalorder %s103, %s104
    %p115 = scmp.eq.s32.totalorder %s17, 0
    %p116 = por %p114, %p115
    %p117 = scmp.ne.s32.totalorder %s103, %s104
    %p118 = scmp.eq.s32.totalorder %s18, 1
    %p119 = por %p117, %p118
    %p121 = scmp.ne.s32.totalorder %s104, %s120
    %p122 = scmp.eq.s32.totalorder %s18, 0
    %p123 = por %p121, %p122
    %s125 = sadd.s32 %s124, 1
    %p128 = scmp.eq.s32.totalorder %s12, 1
    %p129 = scmp.ne.s32.totalorder %s124, %s126
    %p130 = scmp.eq.s32.totalorder %s12, 0
    %p131 = por %p129, %p130
    %p132 = scmp.ne.s32.totalorder %s124, %s126
    %p133 = scmp.eq.s32.totalorder %s17, 1
    %p134 = por %p132, %p133
    %p135 = scmp.ne.s32.totalorder %s126, %s127
    %p136 = scmp.eq.s32.totalorder %s17, 0
    %p137 = por %p135, %p136
    %p138 = scmp.ne.s32.totalorder %s126, %s127
    %p139 = scmp.eq.s32.totalorder %s18, 1
    %p140 = por %p138, %p139
    %p142 = scmp.ne.s32.totalorder %s127, %s141
    %p143 = scmp.eq.s32.totalorder %s18, 0
    %p144 = por %p142, %p143
    %s146 = sadd.s32 %s145, 1
    %p149 = scmp.eq.s32.totalorder %s12, 1
    %p150 = scmp.ne.s32.totalorder %s145, %s147
    %p151 = scmp.eq.s32.totalorder %s12, 0
    %p152 = por %p150, %p151
    %p153 = scmp.ne.s32.totalorder %s145, %s147
    %p154 = scmp.eq.s32.totalorder %s17, 1
    %p155 = por %p153, %p154
    %p156 = scmp.ne.s32.totalorder %s147, %s148
    %p157 = scmp.eq.s32.totalorder %s17, 0
    %p158 = por %p156, %p157
    %p159 = scmp.ne.s32.totalorder %s147, %s148
    %p160 = scmp.eq.s32.totalorder %s18, 1
    %p161 = por %p159, %p160
    %p163 = scmp.ne.s32.totalorder %s148, %s162
    %p164 = scmp.eq.s32.totalorder %s18, 0
    %p165 = por %p163, %p164
    %s166 = ssub.s32 %s12, %s19
    %p167 = scmp.eq.s32.totalorder %s166, 0
    %s169 = sadd.s32 %s168, 1
    %s170 = scalar_select %p167, %s168, %s169
    %p173 = pneg %p167
    %p174 = scmp.eq.s32.totalorder %s12, 1
    %p175 = por %p173, %p174
    %p176 = scmp.ne.s32.totalorder %s168, %s171
    %p177 = scmp.eq.s32.totalorder %s12, 0
    %p178 = por %p176, %p177
    %p179 = scmp.ne.s32.totalorder %s168, %s171
    %p180 = scmp.eq.s32.totalorder %s17, 1
    %p181 = por %p179, %p180
    %p182 = scmp.ne.s32.totalorder %s171, %s172
    %p183 = scmp.eq.s32.totalorder %s17, 0
    %p184 = por %p182, %p183
    %p185 = scmp.ne.s32.totalorder %s171, %s172
    %p186 = scmp.eq.s32.totalorder %s18, 1
    %p187 = por %p185, %p186
    %p189 = scmp.ne.s32.totalorder %s172, %s188
    %p190 = scmp.eq.s32.totalorder %s18, 0
    %p191 = por %p189, %p190
    %p192 = scmp.le.s32.totalorder 1, %s12
    %p193 = scmp.lt.s32.totalorder %s12, 3
    %p194 = pnand %p192, %p193
    %p195 = pneg %p194
    // Predicated region
    $region9: #{lenet_forward.4} parent=5 // pred_check
      _
    $region10: #{lenet_forward.4} parent=5 // pred_check_branch
      %197 = sbr.rel (%p194) target = $region12
    $region11: #{lenet_forward.4} parent=5 // pred_region
      %s198 = ssub.s32 %s12, 1
      // Predicated region
      $region13: #{lenet_forward.4} parent=11 // pred_check
        %p199 = pneg %p137
      $region14: #{lenet_forward.4} parent=11 // pred_check_branch
        %201 = sbr.rel (%p199) target = $region16
      $region15: #{lenet_forward.4} parent=11 // pred_region
        _
      $region16: #{lenet_forward.4} parent=11 // pred_fallthru
        _
      // Predicated region
      $region17: #{lenet_forward.4} parent=11 // pred_check
        %p202 = pneg %p158
      $region18: #{lenet_forward.4} parent=11 // pred_check_branch
        %204 = sbr.rel (%p202) target = $region20
      $region19: #{lenet_forward.4} parent=11 // pred_region
        _
      $region20: #{lenet_forward.4} parent=11 // pred_fallthru
        _
    $region12: #{lenet_forward.4} parent=5 // pred_fallthru
      _
    %p205 = scmp.lt.s32.totalorder %s12, 2
    // Predicated region
    $region21: #{lenet_forward.4} parent=5 // pred_check
      %p206 = pneg %p205
    $region22: #{lenet_forward.4} parent=5 // pred_check_branch
      %208 = sbr.rel (%p206) target = $region24
    $region23: #{lenet_forward.4} parent=5 // pred_region
      // Predicated region
      $region25: #{lenet_forward.4} parent=23 // pred_check
        %p209 = pneg %p32
      $region26: #{lenet_forward.4} parent=23 // pred_check_branch
        %211 = sbr.rel (%p209) target = $region28
      $region27: #{lenet_forward.4} parent=23 // pred_region
        %p212 = scmp.lt.s32.totalorder %s12, 1
        %s213 = scalar_select %p212, %s12, 1
        %s214 = smul.addr %s213, 100
        %s215 = smul.addr %s214, 4
        %s216 = scalar_lea.vmem %s0, %s215
      $region28: #{lenet_forward.4} parent=23 // pred_fallthru
        _
      // Predicated region
      $region29: #{lenet_forward.4} parent=23 // pred_check
        %p217 = pneg %p58
      $region30: #{lenet_forward.4} parent=23 // pred_check_branch
        %219 = sbr.rel (%p217) target = $region32
      $region31: #{lenet_forward.4} parent=23 // pred_region
        %p220 = scmp.lt.s32.totalorder %s12, 1
        %s221 = scalar_select %p220, %s12, 1
        %s222 = smul.addr %s221, 100
        %s223 = smul.addr %s222, 4
        %s224 = scalar_lea.vmem %s1, %s223
      $region32: #{lenet_forward.4} parent=23 // pred_fallthru
        _
      // Predicated region
      $region33: #{lenet_forward.4} parent=23 // pred_check
        %p225 = pneg %p84
      $region34: #{lenet_forward.4} parent=23 // pred_check_branch
        %227 = sbr.rel (%p225) target = $region36
      $region35: #{lenet_forward.4} parent=23 // pred_region
        %p228 = scmp.lt.s32.totalorder %s12, 1
        %s229 = scalar_select %p228, %s12, 1
        %s230 = smul.addr %s229, 100
        %s231 = smul.addr %s230, 4
        %s232 = scalar_lea.vmem %s2, %s231
      $region36: #{lenet_forward.4} parent=23 // pred_fallthru
        _
      // Predicated region
      $region37: #{lenet_forward.4} parent=23 // pred_check
        %p233 = pneg %p110
      $region38: #{lenet_forward.4} parent=23 // pred_check_branch
        %235 = sbr.rel (%p233) target = $region40
      $region39: #{lenet_forward.4} parent=23 // pred_region
        %p236 = scmp.lt.s32.totalorder %s12, 1
        %s237 = scalar_select %p236, %s12, 1
        %s238 = smul.addr %s237, 100
        %s239 = smul.addr %s238, 4
        %s240 = scalar_lea.vmem %s3, %s239
      $region40: #{lenet_forward.4} parent=23 // pred_fallthru
        _
    $region24: #{lenet_forward.4} parent=5 // pred_fallthru
      _
    %p241 = scmp.le.s32.totalorder 1, %s12
    %p242 = scmp.lt.s32.totalorder %s12, 3
    %p243 = pnand %p241, %p242
    %p244 = pneg %p243
    // Predicated region
    $region41: #{lenet_forward.4} parent=5 // pred_check
      _
    $region42: #{lenet_forward.4} parent=5 // pred_check_branch
      %246 = sbr.rel (%p243) target = $region44
    $region43: #{lenet_forward.4} parent=5 // pred_region
      %s247 = ssub.s32 %s12, 1
      %p248 = scmp.lt.s32.totalorder %s17, 1
      %s249 = scalar_select %p248, %s17, 1
      %s250 = smul.addr %s249, 100
      %s251 = smul.addr %s250, 4
      %s252 = scalar_lea.vmem %s0, %s251
      %p253 = pneg %p38
      %p254 = pneg %p35
      %p255 = scmp.lt.s32.totalorder %s17, 1
      %s256 = scalar_select %p255, %s17, 1
      %s257 = smul.addr %s256, 100
      %s258 = smul.addr %s257, 4
      %s259 = scalar_lea.vmem %s1, %s258
      %p260 = pneg %p64
      %p261 = pneg %p61
      %p262 = scmp.lt.s32.totalorder %s17, 1
      %s263 = scalar_select %p262, %s17, 1
      %s264 = smul.addr %s263, 100
      %s265 = smul.addr %s264, 4
      %s266 = scalar_lea.vmem %s2, %s265
      %p267 = pneg %p90
      %p268 = pneg %p87
      %p269 = scmp.lt.s32.totalorder %s17, 1
      %s270 = scalar_select %p269, %s17, 1
      %s271 = smul.addr %s270, 100
      %s272 = smul.addr %s271, 4
      %s273 = scalar_lea.vmem %s3, %s272
      %p274 = pneg %p116
      %p275 = pneg %p113
      %p276 = pneg %p137
      %p277 = pneg %p134
      %p278 = pneg %p158
      %p279 = pneg %p155
      %p280 = pneg %p184
      %p281 = pneg %p181
      %p282 = scmp.lt.s32.totalorder %s17, 1
      %s283 = scalar_select %p282, %s17, 1
      %s284 = smul.addr %s283, 4
      %s285 = smul.addr %s284, 4
      %s286 = scalar_lea.vmem %s6, %s285
      %p287 = scmp.lt.s32.totalorder %s17, 1
      %s288 = scalar_select %p287, %s17, 1
      %s289 = smul.addr %s288, 100
      %s290 = smul.addr %s289, 4
      %s291 = scalar_lea.vmem %s0, %s290
      %p292 = scmp.lt.s32.totalorder %s17, 1
      %s293 = scalar_select %p292, %s17, 1
      %s294 = smul.addr %s293, 100
      %s295 = smul.addr %s294, 4
      %s296 = scalar_lea.vmem %s1, %s295
      %p297 = scmp.lt.s32.totalorder %s17, 1
      %s298 = scalar_select %p297, %s17, 1
      %s299 = smul.addr %s298, 100
      %s300 = smul.addr %s299, 4
      %s301 = scalar_lea.vmem %s2, %s300
      %p302 = scmp.lt.s32.totalorder %s17, 1
      %s303 = scalar_select %p302, %s17, 1
      %s304 = smul.addr %s303, 100
      %s305 = smul.addr %s304, 4
      %s306 = scalar_lea.vmem %s3, %s305
      %p307 = scmp.lt.s32.totalorder %s17, 1
      %s308 = scalar_select %p307, %s17, 1
      %s309 = smul.addr %s308, 4
      %s310 = smul.addr %s309, 4
      %s311 = scalar_lea.vmem %s6, %s310
      %v313 = vld [vmem:[%s4] sm:$0xf]
      %v314 = vld [vmem:[%s4 + $0x4] sm:$0xf]
      %v315 = vld [vmem:[%s4 + $0x8] sm:$0xf]
      %v316 = vld [vmem:[%s4 + $0xc] sm:$0xf]
      %v317 = vld [vmem:[%s4 + $0x10] sm:$0xf]
      %v318 = vld [vmem:[%s4 + $0x14] sm:$0xf]
      %v319 = vld [vmem:[%s4 + $0x18] sm:$0xf]
      %v320 = vld [vmem:[%s4 + $0x1c] sm:$0xf]
      %v321 = vld [vmem:[%s4 + $0x20] sm:$0xf]
      %v322 = vld [vmem:[%s4 + $0x24] sm:$0xf]
      %v323 = vld [vmem:[%s4 + $0x28] sm:$0xf]
      %v324 = vld [vmem:[%s4 + $0x2c] sm:$0xf]
      %v325 = vld [vmem:[%s4 + $0x30] sm:$0xf]
      %v326 = vld [vmem:[%s4 + $0x34] sm:$0xf]
      %v327 = vld [vmem:[%s4 + $0x38] sm:$0xf]
      %v328 = vld [vmem:[%s4 + $0x3c] sm:$0xf]
      %v329 = vld [vmem:[%s4 + $0x40] sm:$0xf]
      %v330 = vld [vmem:[%s4 + $0x44] sm:$0xf]
      %v331 = vld [vmem:[%s4 + $0x48] sm:$0xf]
      %v332 = vld [vmem:[%s4 + $0x4c] sm:$0xf]
      %v333 = vld [vmem:[%s4 + $0x50] sm:$0xf]
      %v334 = vld [vmem:[%s4 + $0x54] sm:$0xf]
      %v335 = vld [vmem:[%s4 + $0x58] sm:$0xf]
      %v336 = vld [vmem:[%s4 + $0x5c] sm:$0xf]
      %v337 = vld [vmem:[%s4 + $0x60] sm:$0xf]
      %v338 = vld [vmem:[%s4 + $0x64] sm:$0xf]
      %v339 = vld [vmem:[%s4 + $0x68] sm:$0xf]
      %v340 = vld [vmem:[%s4 + $0x6c] sm:$0xf]
      %v341 = vld [vmem:[%s4 + $0x70] sm:$0xf]
      %v342 = vld [vmem:[%s4 + $0x74] sm:$0xf]
      %v343 = vld [vmem:[%s4 + $0x78] sm:$0xf]
      %v344 = vld [vmem:[%s4 + $0x7c] sm:$0xf]
      %v345 = vld [vmem:[%s4 + $0x80] sm:$0xf]
      %v346 = vld [vmem:[%s4 + $0x84] sm:$0xf]
      %v347 = vld [vmem:[%s4 + $0x88] sm:$0xf]
      %v348 = vld [vmem:[%s4 + $0x8c] sm:$0xf]
      %v349 = vld [vmem:[%s4 + $0x90] sm:$0xf]
      %v350 = vld [vmem:[%s4 + $0x94] sm:$0xf]
      %v351 = vld [vmem:[%s4 + $0x98] sm:$0xf]
      %v352 = vld [vmem:[%s4 + $0x9c] sm:$0xf]
      %v353 = vld [vmem:[%s4 + $0xa0] sm:$0xf]
      %v354 = vld [vmem:[%s4 + $0xa4] sm:$0xf]
      %v355 = vld [vmem:[%s4 + $0xa8] sm:$0xf]
      %v356 = vld [vmem:[%s4 + $0xac] sm:$0xf]
      %v357 = vld [vmem:[%s4 + $0xb0] sm:$0xf]
      %v358 = vld [vmem:[%s4 + $0xb4] sm:$0xf]
      %v359 = vld [vmem:[%s4 + $0xb8] sm:$0xf]
      %v360 = vld [vmem:[%s4 + $0xbc] sm:$0xf]
      %v361 = vld [vmem:[%s4 + $0xc0] sm:$0xf]
      %v362 = vld [vmem:[%s4 + $0xc4] sm:$0xf]
      %v363 = vld [vmem:[%s4 + $0xc8] sm:$0xf]
      %v364 = vld [vmem:[%s4 + $0xcc] sm:$0xf]
      %v365 = vld [vmem:[%s4 + $0xd0] sm:$0xf]
      %v366 = vld [vmem:[%s4 + $0xd4] sm:$0xf]
      %v367 = vld [vmem:[%s4 + $0xd8] sm:$0xf]
      %v368 = vld [vmem:[%s4 + $0xdc] sm:$0xf]
      %v369 = vld [vmem:[%s4 + $0xe0] sm:$0xf]
      %v370 = vld [vmem:[%s4 + $0xe4] sm:$0xf]
      %v371 = vld [vmem:[%s4 + $0xe8] sm:$0xf]
      %v372 = vld [vmem:[%s4 + $0xec] sm:$0xf]
      %v373 = vld [vmem:[%s4 + $0xf0] sm:$0xf]
      %v374 = vld [vmem:[%s4 + $0xf4] sm:$0xf]
      %v375 = vld [vmem:[%s4 + $0xf8] sm:$0xf]
      %v376 = vld [vmem:[%s4 + $0xfc] sm:$0xf]
      %v377 = vld [vmem:[%s4 + $0x100] sm:$0xf]
      %v378 = vld [vmem:[%s4 + $0x104] sm:$0xf]
      %v379 = vld [vmem:[%s4 + $0x108] sm:$0xf]
      %v380 = vld [vmem:[%s4 + $0x10c] sm:$0xf]
      %v381 = vld [vmem:[%s4 + $0x110] sm:$0xf]
      %v382 = vld [vmem:[%s4 + $0x114] sm:$0xf]
      %v383 = vld [vmem:[%s4 + $0x118] sm:$0xf]
      %v384 = vld [vmem:[%s4 + $0x11c] sm:$0xf]
      %v385 = vld [vmem:[%s4 + $0x120] sm:$0xf]
      %v386 = vld [vmem:[%s4 + $0x124] sm:$0xf]
      %v387 = vld [vmem:[%s4 + $0x128] sm:$0xf]
      %v388 = vld [vmem:[%s4 + $0x12c] sm:$0xf]
      %v389 = vld [vmem:[%s4 + $0x130] sm:$0xf]
      %v390 = vld [vmem:[%s4 + $0x134] sm:$0xf]
      %v391 = vld [vmem:[%s4 + $0x138] sm:$0xf]
      %v392 = vld [vmem:[%s4 + $0x13c] sm:$0xf]
      %v393 = vld [vmem:[%s4 + $0x140] sm:$0xf]
      %v394 = vld [vmem:[%s4 + $0x144] sm:$0xf]
      %v395 = vld [vmem:[%s4 + $0x148] sm:$0xf]
      %v396 = vld [vmem:[%s4 + $0x14c] sm:$0xf]
      %v397 = vld [vmem:[%s4 + $0x150] sm:$0xf]
      %v398 = vld [vmem:[%s4 + $0x154] sm:$0xf]
      %v399 = vld [vmem:[%s4 + $0x158] sm:$0xf]
      %v400 = vld [vmem:[%s4 + $0x15c] sm:$0xf]
      %v401 = vld [vmem:[%s4 + $0x160] sm:$0xf]
      %v402 = vld [vmem:[%s4 + $0x164] sm:$0xf]
      %v403 = vld [vmem:[%s4 + $0x168] sm:$0xf]
      %v404 = vld [vmem:[%s4 + $0x16c] sm:$0xf]
      %v405 = vld [vmem:[%s4 + $0x170] sm:$0xf]
      %v406 = vld [vmem:[%s4 + $0x174] sm:$0xf]
      %v407 = vld [vmem:[%s4 + $0x178] sm:$0xf]
      %v408 = vld [vmem:[%s4 + $0x17c] sm:$0xf]
      %v409 = vld [vmem:[%s4 + $0x180] sm:$0xf]
      %v410 = vld [vmem:[%s4 + $0x184] sm:$0xf]
      %v411 = vld [vmem:[%s4 + $0x188] sm:$0xf]
      %v412 = vld [vmem:[%s4 + $0x18c] sm:$0xf]
      %v413 = vld [vmem:[%s4 + $0x190] sm:$0xf]
      %v414 = vld [vmem:[%s4 + $0x194] sm:$0xf]
      %v415 = vld [vmem:[%s4 + $0x198] sm:$0xf]
      %v416 = vld [vmem:[%s4 + $0x19c] sm:$0xf]
      %v417 = vld [vmem:[%s4 + $0x1a0] sm:$0xf]
      %v418 = vld [vmem:[%s4 + $0x1a4] sm:$0xf]
      %v419 = vld [vmem:[%s4 + $0x1a8] sm:$0xf]
      %v420 = vld [vmem:[%s4 + $0x1ac] sm:$0xf]
      %v421 = vld [vmem:[%s4 + $0x1b0] sm:$0xf]
      %v422 = vld [vmem:[%s4 + $0x1b4] sm:$0xf]
      %v423 = vld [vmem:[%s4 + $0x1b8] sm:$0xf]
      %v424 = vld [vmem:[%s4 + $0x1bc] sm:$0xf]
      %v425 = vld [vmem:[%s4 + $0x1c0] sm:$0xf]
      %v426 = vld [vmem:[%s4 + $0x1c4] sm:$0xf]
      %v427 = vld [vmem:[%s4 + $0x1c8] sm:$0xf]
      %v428 = vld [vmem:[%s4 + $0x1cc] sm:$0xf]
      %v429 = vld [vmem:[%s4 + $0x1d0] sm:$0xf]
      %v430 = vld [vmem:[%s4 + $0x1d4] sm:$0xf]
      %v431 = vld [vmem:[%s4 + $0x1d8] sm:$0xf]
      %v432 = vld [vmem:[%s4 + $0x1dc] sm:$0xf]
      %v433 = vld [vmem:[%s4 + $0x1e0] sm:$0xf]
      %v434 = vld [vmem:[%s4 + $0x1e4] sm:$0xf]
      %v435 = vld [vmem:[%s4 + $0x1e8] sm:$0xf]
      %v436 = vld [vmem:[%s4 + $0x1ec] sm:$0xf]
      %v437 = vld [vmem:[%s4 + $0x1f0] sm:$0xf]
      %v438 = vld [vmem:[%s4 + $0x1f4] sm:$0xf]
      %v439 = vld [vmem:[%s4 + $0x1f8] sm:$0xf]
      %v440 = vld [vmem:[%s4 + $0x1fc] sm:$0xf]
      %v441 = vld [vmem:[%s4 + $0x200] sm:$0xf]
      %v442 = vld [vmem:[%s4 + $0x204] sm:$0xf]
      %v443 = vld [vmem:[%s4 + $0x208] sm:$0xf]
      %v444 = vld [vmem:[%s4 + $0x20c] sm:$0xf]
      %v445 = vld [vmem:[%s4 + $0x210] sm:$0xf]
      %v446 = vld [vmem:[%s4 + $0x214] sm:$0xf]
      %v447 = vld [vmem:[%s4 + $0x218] sm:$0xf]
      %v448 = vld [vmem:[%s4 + $0x21c] sm:$0xf]
      %v449 = vld [vmem:[%s4 + $0x220] sm:$0xf]
      %v450 = vld [vmem:[%s4 + $0x224] sm:$0xf]
      %v451 = vld [vmem:[%s4 + $0x228] sm:$0xf]
      %v452 = vld [vmem:[%s4 + $0x22c] sm:$0xf]
      %v453 = vld [vmem:[%s4 + $0x230] sm:$0xf]
      %v454 = vld [vmem:[%s4 + $0x234] sm:$0xf]
      %v455 = vld [vmem:[%s4 + $0x238] sm:$0xf]
      %v456 = vld [vmem:[%s4 + $0x23c] sm:$0xf]
      %v457 = vld [vmem:[%s4 + $0x240] sm:$0xf]
      %v458 = vld [vmem:[%s4 + $0x244] sm:$0xf]
      %v459 = vld [vmem:[%s4 + $0x248] sm:$0xf]
      %v460 = vld [vmem:[%s4 + $0x24c] sm:$0xf]
      %v461 = vld [vmem:[%s4 + $0x250] sm:$0xf]
      %v462 = vld [vmem:[%s4 + $0x254] sm:$0xf]
      %v463 = vld [vmem:[%s4 + $0x258] sm:$0xf]
      %v464 = vld [vmem:[%s4 + $0x25c] sm:$0xf]
      %v465 = vld [vmem:[%s4 + $0x260] sm:$0xf]
      %v466 = vld [vmem:[%s4 + $0x264] sm:$0xf]
      %v467 = vld [vmem:[%s4 + $0x268] sm:$0xf]
      %v468 = vld [vmem:[%s4 + $0x26c] sm:$0xf]
      %v469 = vld [vmem:[%s4 + $0x270] sm:$0xf]
      %v470 = vld [vmem:[%s4 + $0x274] sm:$0xf]
      %v471 = vld [vmem:[%s4 + $0x278] sm:$0xf]
      %v472 = vld [vmem:[%s4 + $0x27c] sm:$0xf]
      %v473 = vld [vmem:[%s4 + $0x280] sm:$0xf]
      %v474 = vld [vmem:[%s4 + $0x284] sm:$0xf]
      %v475 = vld [vmem:[%s4 + $0x288] sm:$0xf]
      %v476 = vld [vmem:[%s4 + $0x28c] sm:$0xf]
      %v477 = vld [vmem:[%s4 + $0x290] sm:$0xf]
      %v478 = vld [vmem:[%s4 + $0x294] sm:$0xf]
      %v479 = vld [vmem:[%s4 + $0x298] sm:$0xf]
      %v480 = vld [vmem:[%s4 + $0x29c] sm:$0xf]
      %v481 = vld [vmem:[%s4 + $0x2a0] sm:$0xf]
      %v482 = vld [vmem:[%s4 + $0x2a4] sm:$0xf]
      %v483 = vld [vmem:[%s4 + $0x2a8] sm:$0xf]
      %v484 = vld [vmem:[%s4 + $0x2ac] sm:$0xf]
      %v485 = vld [vmem:[%s4 + $0x2b0] sm:$0xf]
      %v486 = vld [vmem:[%s4 + $0x2b4] sm:$0xf]
      %v487 = vld [vmem:[%s4 + $0x2b8] sm:$0xf]
      %v488 = vld [vmem:[%s4 + $0x2bc] sm:$0xf]
      %v489 = vld [vmem:[%s4 + $0x2c0] sm:$0xf]
      %v490 = vld [vmem:[%s4 + $0x2c4] sm:$0xf]
      %v491 = vld [vmem:[%s4 + $0x2c8] sm:$0xf]
      %v492 = vld [vmem:[%s4 + $0x2cc] sm:$0xf]
      %v493 = vld [vmem:[%s4 + $0x2d0] sm:$0xf]
      %v494 = vld [vmem:[%s4 + $0x2d4] sm:$0xf]
      %v495 = vld [vmem:[%s4 + $0x2d8] sm:$0xf]
      %v496 = vld [vmem:[%s4 + $0x2dc] sm:$0xf]
      %v497 = vld [vmem:[%s4 + $0x2e0] sm:$0xf]
      %v498 = vld [vmem:[%s4 + $0x2e4] sm:$0xf]
      %v499 = vld [vmem:[%s4 + $0x2e8] sm:$0xf]
      %v500 = vld [vmem:[%s4 + $0x2ec] sm:$0xf]
      %v501 = vld [vmem:[%s4 + $0x2f0] sm:$0xf]
      %v502 = vld [vmem:[%s4 + $0x2f4] sm:$0xf]
      %v503 = vld [vmem:[%s4 + $0x2f8] sm:$0xf]
      %v504 = vld [vmem:[%s4 + $0x2fc] sm:$0xf]
      %v505 = vld [vmem:[%s4 + $0x300] sm:$0xf]
      %v506 = vld [vmem:[%s4 + $0x304] sm:$0xf]
      %v507 = vld [vmem:[%s4 + $0x308] sm:$0xf]
      %v508 = vld [vmem:[%s4 + $0x30c] sm:$0xf]
      %v509 = vld [vmem:[%s4 + $0x310] sm:$0xf]
      %v510 = vld [vmem:[%s4 + $0x314] sm:$0xf]
      %v511 = vld [vmem:[%s4 + $0x318] sm:$0xf]
      %v512 = vld [vmem:[%s4 + $0x31c] sm:$0xf]
      %v513 = vld [vmem:[%s4 + $0x320] sm:$0xf]
      %v514 = vld [vmem:[%s4 + $0x324] sm:$0xf]
      %v515 = vld [vmem:[%s4 + $0x328] sm:$0xf]
      %v516 = vld [vmem:[%s4 + $0x32c] sm:$0xf]
      %v517 = vld [vmem:[%s4 + $0x330] sm:$0xf]
      %v518 = vld [vmem:[%s4 + $0x334] sm:$0xf]
      %v519 = vld [vmem:[%s4 + $0x338] sm:$0xf]
      %v520 = vld [vmem:[%s4 + $0x33c] sm:$0xf]
      %v521 = vld [vmem:[%s4 + $0x340] sm:$0xf]
      %v522 = vld [vmem:[%s4 + $0x344] sm:$0xf]
      %v523 = vld [vmem:[%s4 + $0x348] sm:$0xf]
      %v524 = vld [vmem:[%s4 + $0x34c] sm:$0xf]
      %v525 = vld [vmem:[%s4 + $0x350] sm:$0xf]
      %v526 = vld [vmem:[%s4 + $0x354] sm:$0xf]
      %v527 = vld [vmem:[%s4 + $0x358] sm:$0xf]
      %v528 = vld [vmem:[%s4 + $0x35c] sm:$0xf]
      %v529 = vld [vmem:[%s4 + $0x360] sm:$0xf]
      %v530 = vld [vmem:[%s4 + $0x364] sm:$0xf]
      %v531 = vld [vmem:[%s4 + $0x368] sm:$0xf]
      %v532 = vld [vmem:[%s4 + $0x36c] sm:$0xf]
      %v533 = vld [vmem:[%s4 + $0x370] sm:$0xf]
      %v534 = vld [vmem:[%s4 + $0x374] sm:$0xf]
      %v535 = vld [vmem:[%s4 + $0x378] sm:$0xf]
      %v536 = vld [vmem:[%s4 + $0x37c] sm:$0xf]
      %v537 = vld [vmem:[%s4 + $0x380] sm:$0xf]
      %v538 = vld [vmem:[%s4 + $0x384] sm:$0xf]
      %v539 = vld [vmem:[%s4 + $0x388] sm:$0xf]
      %v540 = vld [vmem:[%s4 + $0x38c] sm:$0xf]
      %v541 = vld [vmem:[%s4 + $0x390] sm:$0xf]
      %v542 = vld [vmem:[%s4 + $0x394] sm:$0xf]
      %v543 = vld [vmem:[%s4 + $0x398] sm:$0xf]
      %v544 = vld [vmem:[%s4 + $0x39c] sm:$0xf]
      %v545 = vld [vmem:[%s4 + $0x3a0] sm:$0xf]
      %v546 = vld [vmem:[%s4 + $0x3a4] sm:$0xf]
      %v547 = vld [vmem:[%s4 + $0x3a8] sm:$0xf]
      %v548 = vld [vmem:[%s4 + $0x3ac] sm:$0xf]
      %v549 = vld [vmem:[%s4 + $0x3b0] sm:$0xf]
      %v550 = vld [vmem:[%s4 + $0x3b4] sm:$0xf]
      %v551 = vld [vmem:[%s4 + $0x3b8] sm:$0xf]
      %v552 = vld [vmem:[%s4 + $0x3bc] sm:$0xf]
      %v553 = vld [vmem:[%s4 + $0x3c0] sm:$0xf]
      %v554 = vld [vmem:[%s4 + $0x3c4] sm:$0xf]
      %v555 = vld [vmem:[%s4 + $0x3c8] sm:$0xf]
      %v556 = vld [vmem:[%s4 + $0x3cc] sm:$0xf]
      %v557 = vld [vmem:[%s4 + $0x3d0] sm:$0xf]
      %v558 = vld [vmem:[%s4 + $0x3d4] sm:$0xf]
      %v559 = vld [vmem:[%s4 + $0x3d8] sm:$0xf]
      %v560 = vld [vmem:[%s4 + $0x3dc] sm:$0xf]
      %v561 = vld [vmem:[%s4 + $0x3e0] sm:$0xf]
      %v562 = vld [vmem:[%s4 + $0x3e4] sm:$0xf]
      %v563 = vld [vmem:[%s4 + $0x3e8] sm:$0xf]
      %v564 = vld [vmem:[%s4 + $0x3ec] sm:$0xf]
      %v565 = vld [vmem:[%s4 + $0x3f0] sm:$0xf]
      %v566 = vld [vmem:[%s4 + $0x3f4] sm:$0xf]
      %v567 = vld [vmem:[%s4 + $0x3f8] sm:$0xf]
      %v568 = vld [vmem:[%s4 + $0x3fc] sm:$0xf]
      %v569 = vld [vmem:[%s4 + $0x400] sm:$0xf]
      %v570 = vld [vmem:[%s4 + $0x404] sm:$0xf]
      %v571 = vld [vmem:[%s4 + $0x408] sm:$0xf]
      %v572 = vld [vmem:[%s4 + $0x40c] sm:$0xf]
      %v573 = vld [vmem:[%s4 + $0x410] sm:$0xf]
      %v574 = vld [vmem:[%s4 + $0x414] sm:$0xf]
      %v575 = vld [vmem:[%s4 + $0x418] sm:$0xf]
      %v576 = vld [vmem:[%s4 + $0x41c] sm:$0xf]
      %v577 = vld [vmem:[%s4 + $0x420] sm:$0xf]
      %v578 = vld [vmem:[%s4 + $0x424] sm:$0xf]
      %v579 = vld [vmem:[%s4 + $0x428] sm:$0xf]
      %v580 = vld [vmem:[%s4 + $0x42c] sm:$0xf]
      %v581 = vld [vmem:[%s4 + $0x430] sm:$0xf]
      %v582 = vld [vmem:[%s4 + $0x434] sm:$0xf]
      %v583 = vld [vmem:[%s4 + $0x438] sm:$0xf]
      %v584 = vld [vmem:[%s4 + $0x43c] sm:$0xf]
      %v585 = vld [vmem:[%s4 + $0x440] sm:$0xf]
      %v586 = vld [vmem:[%s4 + $0x444] sm:$0xf]
      %v587 = vld [vmem:[%s4 + $0x448] sm:$0xf]
      %v588 = vld [vmem:[%s4 + $0x44c] sm:$0xf]
      %v589 = vld [vmem:[%s4 + $0x450] sm:$0xf]
      %v590 = vld [vmem:[%s4 + $0x454] sm:$0xf]
      %v591 = vld [vmem:[%s4 + $0x458] sm:$0xf]
      %v592 = vld [vmem:[%s4 + $0x45c] sm:$0xf]
      %v593 = vld [vmem:[%s4 + $0x460] sm:$0xf]
      %v594 = vld [vmem:[%s4 + $0x464] sm:$0xf]
      %v595 = vld [vmem:[%s4 + $0x468] sm:$0xf]
      %v596 = vld [vmem:[%s4 + $0x46c] sm:$0xf]
      %v597 = vld [vmem:[%s4 + $0x470] sm:$0xf]
      %v598 = vld [vmem:[%s4 + $0x474] sm:$0xf]
      %v599 = vld [vmem:[%s4 + $0x478] sm:$0xf]
      %v600 = vld [vmem:[%s4 + $0x47c] sm:$0xf]
      %v601 = vld [vmem:[%s4 + $0x480] sm:$0xf]
      %v602 = vld [vmem:[%s4 + $0x484] sm:$0xf]
      %v603 = vld [vmem:[%s4 + $0x488] sm:$0xf]
      %v604 = vld [vmem:[%s4 + $0x48c] sm:$0xf]
      %v605 = vld [vmem:[%s4 + $0x490] sm:$0xf]
      %v606 = vld [vmem:[%s4 + $0x494] sm:$0xf]
      %v607 = vld [vmem:[%s4 + $0x498] sm:$0xf]
      %v608 = vld [vmem:[%s4 + $0x49c] sm:$0xf]
      %v609 = vld [vmem:[%s4 + $0x4a0] sm:$0xf]
      %v610 = vld [vmem:[%s4 + $0x4a4] sm:$0xf]
      %v611 = vld [vmem:[%s4 + $0x4a8] sm:$0xf]
      %v612 = vld [vmem:[%s4 + $0x4ac] sm:$0xf]
      %v613 = vld [vmem:[%s4 + $0x4b0] sm:$0xf]
      %v614 = vld [vmem:[%s4 + $0x4b4] sm:$0xf]
      %v615 = vld [vmem:[%s4 + $0x4b8] sm:$0xf]
      %v616 = vld [vmem:[%s4 + $0x4bc] sm:$0xf]
      %v617 = vld [vmem:[%s4 + $0x4c0] sm:$0xf]
      %v618 = vld [vmem:[%s4 + $0x4c4] sm:$0xf]
      %v619 = vld [vmem:[%s4 + $0x4c8] sm:$0xf]
      %v620 = vld [vmem:[%s4 + $0x4cc] sm:$0xf]
      %v621 = vld [vmem:[%s4 + $0x4d0] sm:$0xf]
      %v622 = vld [vmem:[%s4 + $0x4d4] sm:$0xf]
      %v623 = vld [vmem:[%s4 + $0x4d8] sm:$0xf]
      %v624 = vld [vmem:[%s4 + $0x4dc] sm:$0xf]
      %v625 = vld [vmem:[%s4 + $0x4e0] sm:$0xf]
      %v626 = vld [vmem:[%s4 + $0x4e4] sm:$0xf]
      %v627 = vld [vmem:[%s4 + $0x4e8] sm:$0xf]
      %v628 = vld [vmem:[%s4 + $0x4ec] sm:$0xf]
      %v629 = vld [vmem:[%s4 + $0x4f0] sm:$0xf]
      %v630 = vld [vmem:[%s4 + $0x4f4] sm:$0xf]
      %v631 = vld [vmem:[%s4 + $0x4f8] sm:$0xf]
      %v632 = vld [vmem:[%s4 + $0x4fc] sm:$0xf]
      %v633 = vld [vmem:[%s4 + $0x500] sm:$0xf]
      %v634 = vld [vmem:[%s4 + $0x504] sm:$0xf]
      %v635 = vld [vmem:[%s4 + $0x508] sm:$0xf]
      %v636 = vld [vmem:[%s4 + $0x50c] sm:$0xf]
      %v637 = vld [vmem:[%s4 + $0x510] sm:$0xf]
      %v638 = vld [vmem:[%s4 + $0x514] sm:$0xf]
      %v639 = vld [vmem:[%s4 + $0x518] sm:$0xf]
      %v640 = vld [vmem:[%s4 + $0x51c] sm:$0xf]
      %v641 = vld [vmem:[%s4 + $0x520] sm:$0xf]
      %v642 = vld [vmem:[%s4 + $0x524] sm:$0xf]
      %v643 = vld [vmem:[%s4 + $0x528] sm:$0xf]
      %v644 = vld [vmem:[%s4 + $0x52c] sm:$0xf]
      %v645 = vld [vmem:[%s4 + $0x530] sm:$0xf]
      %v646 = vld [vmem:[%s4 + $0x534] sm:$0xf]
      %v647 = vld [vmem:[%s4 + $0x538] sm:$0xf]
      %v648 = vld [vmem:[%s4 + $0x53c] sm:$0xf]
      %v649 = vld [vmem:[%s4 + $0x540] sm:$0xf]
      %v650 = vld [vmem:[%s4 + $0x544] sm:$0xf]
      %v651 = vld [vmem:[%s4 + $0x548] sm:$0xf]
      %v652 = vld [vmem:[%s4 + $0x54c] sm:$0xf]
      %v653 = vld [vmem:[%s4 + $0x550] sm:$0xf]
      %v654 = vld [vmem:[%s4 + $0x554] sm:$0xf]
      %v655 = vld [vmem:[%s4 + $0x558] sm:$0xf]
      %v656 = vld [vmem:[%s4 + $0x55c] sm:$0xf]
      %v657 = vld [vmem:[%s4 + $0x560] sm:$0xf]
      %v658 = vld [vmem:[%s4 + $0x564] sm:$0xf]
      %v659 = vld [vmem:[%s4 + $0x568] sm:$0xf]
      %v660 = vld [vmem:[%s4 + $0x56c] sm:$0xf]
      %v661 = vld [vmem:[%s4 + $0x570] sm:$0xf]
      %v662 = vld [vmem:[%s4 + $0x574] sm:$0xf]
      %v663 = vld [vmem:[%s4 + $0x578] sm:$0xf]
      %v664 = vld [vmem:[%s4 + $0x57c] sm:$0xf]
      %v665 = vld [vmem:[%s4 + $0x580] sm:$0xf]
      %v666 = vld [vmem:[%s4 + $0x584] sm:$0xf]
      %v667 = vld [vmem:[%s4 + $0x588] sm:$0xf]
      %v668 = vld [vmem:[%s4 + $0x58c] sm:$0xf]
      %v669 = vld [vmem:[%s4 + $0x590] sm:$0xf]
      %v670 = vld [vmem:[%s4 + $0x594] sm:$0xf]
      %v671 = vld [vmem:[%s4 + $0x598] sm:$0xf]
      %v672 = vld [vmem:[%s4 + $0x59c] sm:$0xf]
      %v673 = vld [vmem:[%s4 + $0x5a0] sm:$0xf]
      %v674 = vld [vmem:[%s4 + $0x5a4] sm:$0xf]
      %v675 = vld [vmem:[%s4 + $0x5a8] sm:$0xf]
      %v676 = vld [vmem:[%s4 + $0x5ac] sm:$0xf]
      %v677 = vld [vmem:[%s4 + $0x5b0] sm:$0xf]
      %v678 = vld [vmem:[%s4 + $0x5b4] sm:$0xf]
      %v679 = vld [vmem:[%s4 + $0x5b8] sm:$0xf]
      %v680 = vld [vmem:[%s4 + $0x5bc] sm:$0xf]
      %v681 = vld [vmem:[%s4 + $0x5c0] sm:$0xf]
      %v682 = vld [vmem:[%s4 + $0x5c4] sm:$0xf]
      %v683 = vld [vmem:[%s4 + $0x5c8] sm:$0xf]
      %v684 = vld [vmem:[%s4 + $0x5cc] sm:$0xf]
      %v685 = vld [vmem:[%s4 + $0x5d0] sm:$0xf]
      %v686 = vld [vmem:[%s4 + $0x5d4] sm:$0xf]
      %v687 = vld [vmem:[%s4 + $0x5d8] sm:$0xf]
      %v688 = vld [vmem:[%s4 + $0x5dc] sm:$0xf]
      %v689 = vld [vmem:[%s4 + $0x5e0] sm:$0xf]
      %v690 = vld [vmem:[%s4 + $0x5e4] sm:$0xf]
      %v691 = vld [vmem:[%s4 + $0x5e8] sm:$0xf]
      %v692 = vld [vmem:[%s4 + $0x5ec] sm:$0xf]
      %v693 = vld [vmem:[%s4 + $0x5f0] sm:$0xf]
      %v694 = vld [vmem:[%s4 + $0x5f4] sm:$0xf]
      %v695 = vld [vmem:[%s4 + $0x5f8] sm:$0xf]
      %v696 = vld [vmem:[%s4 + $0x5fc] sm:$0xf]
      %v697 = vld [vmem:[%s4 + $0x600] sm:$0xf]
      %v698 = vld [vmem:[%s4 + $0x604] sm:$0xf]
      %v699 = vld [vmem:[%s4 + $0x608] sm:$0xf]
      %v700 = vld [vmem:[%s4 + $0x60c] sm:$0xf]
      %v701 = vld [vmem:[%s4 + $0x610] sm:$0xf]
      %v702 = vld [vmem:[%s4 + $0x614] sm:$0xf]
      %v703 = vld [vmem:[%s4 + $0x618] sm:$0xf]
      %v704 = vld [vmem:[%s4 + $0x61c] sm:$0xf]
      %v705 = vld [vmem:[%s4 + $0x620] sm:$0xf]
      %v706 = vld [vmem:[%s4 + $0x624] sm:$0xf]
      %v707 = vld [vmem:[%s4 + $0x628] sm:$0xf]
      %v708 = vld [vmem:[%s4 + $0x62c] sm:$0xf]
      %v709 = vld [vmem:[%s4 + $0x630] sm:$0xf]
      %v710 = vld [vmem:[%s4 + $0x634] sm:$0xf]
      %v711 = vld [vmem:[%s4 + $0x638] sm:$0xf]
      %v712 = vld [vmem:[%s4 + $0x63c] sm:$0xf]
      %v713 = vld [vmem:[%s291] sm:$0xff]
      %v714 = vld [vmem:[%s291 + $0x8] sm:$0xff]
      %v715 = vld [vmem:[%s291 + $0x10] sm:$0xff]
      %v716 = vld [vmem:[%s291 + $0x18] sm:$0xff]
      %v717 = vld [vmem:[%s291 + $0x20] sm:$0xff]
      %v718 = vld [vmem:[%s291 + $0x28] sm:$0xff]
      %v719 = vld [vmem:[%s291 + $0x30] sm:$0xff]
      %v720 = vld [vmem:[%s291 + $0x38] sm:$0xff]
      %v721 = vld [vmem:[%s291 + $0x40] sm:$0xff]
      %v722 = vld [vmem:[%s291 + $0x48] sm:$0xff]
      %v723 = vld [vmem:[%s291 + $0x50] sm:$0xff]
      %v724 = vld [vmem:[%s291 + $0x58] sm:$0xff]
      %v725 = vld [vmem:[%s291 + $0x60] sm:$0xf]
      %v726 = vld [vmem:[%s291 + $0x64] sm:$0xff]
      %v727 = vld [vmem:[%s291 + $0x6c] sm:$0xff]
      %v728 = vld [vmem:[%s291 + $0x74] sm:$0xff]
      %v729 = vld [vmem:[%s291 + $0x7c] sm:$0xff]
      %v730 = vld [vmem:[%s291 + $0x84] sm:$0xff]
      %v731 = vld [vmem:[%s291 + $0x8c] sm:$0xff]
      %v732 = vld [vmem:[%s291 + $0x94] sm:$0xff]
      %v733 = vld [vmem:[%s291 + $0x9c] sm:$0xff]
      %v734 = vld [vmem:[%s291 + $0xa4] sm:$0xff]
      %v735 = vld [vmem:[%s291 + $0xac] sm:$0xff]
      %v736 = vld [vmem:[%s291 + $0xb4] sm:$0xff]
      %v737 = vld [vmem:[%s291 + $0xbc] sm:$0xff]
      %v738 = vld [vmem:[%s291 + $0xc4] sm:$0xf]
      %v739 = vld [vmem:[%s291 + $0xc8] sm:$0xff]
      %v740 = vld [vmem:[%s291 + $0xd0] sm:$0xff]
      %v741 = vld [vmem:[%s291 + $0xd8] sm:$0xff]
      %v742 = vld [vmem:[%s291 + $0xe0] sm:$0xff]
      %v743 = vld [vmem:[%s291 + $0xe8] sm:$0xff]
      %v744 = vld [vmem:[%s291 + $0xf0] sm:$0xff]
      %v745 = vld [vmem:[%s291 + $0xf8] sm:$0xff]
      %v746 = vld [vmem:[%s291 + $0x100] sm:$0xff]
      %v747 = vld [vmem:[%s291 + $0x108] sm:$0xff]
      %v748 = vld [vmem:[%s291 + $0x110] sm:$0xff]
      %v749 = vld [vmem:[%s291 + $0x118] sm:$0xff]
      %v750 = vld [vmem:[%s291 + $0x120] sm:$0xff]
      %v751 = vld [vmem:[%s291 + $0x128] sm:$0xf]
      %v752 = vld [vmem:[%s291 + $0x12c] sm:$0x11]
      %v753 = vld [vmem:[%s291 + $0x134] sm:$0x11]
      %v754 = vld [vmem:[%s291 + $0x13c] sm:$0x11]
      %v755 = vld [vmem:[%s291 + $0x144] sm:$0x11]
      %v756 = vld [vmem:[%s291 + $0x14c] sm:$0x11]
      %v757 = vld [vmem:[%s291 + $0x154] sm:$0x11]
      %v758 = vld [vmem:[%s291 + $0x15c] sm:$0x11]
      %v759 = vld [vmem:[%s291 + $0x164] sm:$0x11]
      %v760 = vld [vmem:[%s291 + $0x16c] sm:$0x11]
      %v761 = vld [vmem:[%s291 + $0x174] sm:$0x11]
      %v762 = vld [vmem:[%s291 + $0x17c] sm:$0x11]
      %v763 = vld [vmem:[%s291 + $0x184] sm:$0x11]
      %v764 = vld [vmem:[%s291 + $0x18c] sm:$0x1]
      %v817 = vunpack.c.l.b16 %v713
      %v818 = vunpack.c.h.b16 %v713
      %v819 = vunpack.c.l.b16 %v714
      %v820 = vunpack.c.h.b16 %v714
      %v821 = vunpack.c.l.b16 %v715
      %v822 = vunpack.c.h.b16 %v715
      %v823 = vunpack.c.l.b16 %v716
      %v824 = vunpack.c.h.b16 %v716
      %v825 = vunpack.c.l.b16 %v717
      %v826 = vunpack.c.h.b16 %v717
      %v827 = vunpack.c.l.b16 %v718
      %v828 = vunpack.c.h.b16 %v718
      %v829 = vunpack.c.l.b16 %v719
      %v830 = vunpack.c.h.b16 %v719
      %v831 = vunpack.c.l.b16 %v720
      %v832 = vunpack.c.h.b16 %v720
      %v833 = vunpack.c.l.b16 %v721
      %v834 = vunpack.c.h.b16 %v721
      %v835 = vunpack.c.l.b16 %v722
      %v836 = vunpack.c.h.b16 %v722
      %v837 = vunpack.c.l.b16 %v723
      %v838 = vunpack.c.h.b16 %v723
      %v839 = vunpack.c.l.b16 %v724
      %v840 = vunpack.c.h.b16 %v724
      %v841 = vunpack.c.l.b16 %v725
      %v842 = vunpack.c.l.b16 %v726
      %v843 = vunpack.c.h.b16 %v726
      %v844 = vunpack.c.l.b16 %v727
      %v845 = vunpack.c.h.b16 %v727
      %v846 = vunpack.c.l.b16 %v728
      %v847 = vunpack.c.h.b16 %v728
      %v848 = vunpack.c.l.b16 %v729
      %v849 = vunpack.c.h.b16 %v729
      %v850 = vunpack.c.l.b16 %v730
      %v851 = vunpack.c.h.b16 %v730
      %v852 = vunpack.c.l.b16 %v731
      %v853 = vunpack.c.h.b16 %v731
      %v854 = vunpack.c.l.b16 %v732
      %v855 = vunpack.c.h.b16 %v732
      %v856 = vunpack.c.l.b16 %v733
      %v857 = vunpack.c.h.b16 %v733
      %v858 = vunpack.c.l.b16 %v734
      %v859 = vunpack.c.h.b16 %v734
      %v860 = vunpack.c.l.b16 %v735
      %v861 = vunpack.c.h.b16 %v735
      %v862 = vunpack.c.l.b16 %v736
      %v863 = vunpack.c.h.b16 %v736
      %v864 = vunpack.c.l.b16 %v737
      %v865 = vunpack.c.h.b16 %v737
      %v866 = vunpack.c.l.b16 %v738
      %v867 = vunpack.c.l.b16 %v739
      %v868 = vunpack.c.h.b16 %v739
      %v869 = vunpack.c.l.b16 %v740
      %v870 = vunpack.c.h.b16 %v740
      %v871 = vunpack.c.l.b16 %v741
      %v872 = vunpack.c.h.b16 %v741
      %v873 = vunpack.c.l.b16 %v742
      %v874 = vunpack.c.h.b16 %v742
      %v875 = vunpack.c.l.b16 %v743
      %v876 = vunpack.c.h.b16 %v743
      %v877 = vunpack.c.l.b16 %v744
      %v878 = vunpack.c.h.b16 %v744
      %v879 = vunpack.c.l.b16 %v745
      %v880 = vunpack.c.h.b16 %v745
      %v881 = vunpack.c.l.b16 %v746
      %v882 = vunpack.c.h.b16 %v746
      %v883 = vunpack.c.l.b16 %v747
      %v884 = vunpack.c.h.b16 %v747
      %v885 = vunpack.c.l.b16 %v748
      %v886 = vunpack.c.h.b16 %v748
      %v887 = vunpack.c.l.b16 %v749
      %v888 = vunpack.c.h.b16 %v749
      %v889 = vunpack.c.l.b16 %v750
      %v890 = vunpack.c.h.b16 %v750
      %v891 = vunpack.c.l.b16 %v751
      %v892 = vunpack.c.l.b16 %v752
      %v893 = vunpack.c.h.b16 %v752
      %v894 = vunpack.c.l.b16 %v753
      %v895 = vunpack.c.h.b16 %v753
      %v896 = vunpack.c.l.b16 %v754
      %v897 = vunpack.c.h.b16 %v754
      %v898 = vunpack.c.l.b16 %v755
      %v899 = vunpack.c.h.b16 %v755
      %v900 = vunpack.c.l.b16 %v756
      %v901 = vunpack.c.h.b16 %v756
      %v902 = vunpack.c.l.b16 %v757
      %v903 = vunpack.c.h.b16 %v757
      %v904 = vunpack.c.l.b16 %v758
      %v905 = vunpack.c.h.b16 %v758
      %v906 = vunpack.c.l.b16 %v759
      %v907 = vunpack.c.h.b16 %v759
      %v908 = vunpack.c.l.b16 %v760
      %v909 = vunpack.c.h.b16 %v760
      %v910 = vunpack.c.l.b16 %v761
      %v911 = vunpack.c.h.b16 %v761
      %v912 = vunpack.c.l.b16 %v762
      %v913 = vunpack.c.h.b16 %v762
      %v914 = vunpack.c.l.b16 %v763
      %v915 = vunpack.c.h.b16 %v763
      %v916 = vunpack.c.l.b16 %v764
      %v917 = vpack.c.b16 %v842, %v817
      %v918 = vpack.c.b16 %v843, %v818
      %v919 = vpack.c.b16 %v844, %v819
      %v920 = vpack.c.b16 %v845, %v820
      %v921 = vpack.c.b16 %v846, %v821
      %v922 = vpack.c.b16 %v847, %v822
      %v923 = vpack.c.b16 %v848, %v823
      %v924 = vpack.c.b16 %v849, %v824
      %v925 = vpack.c.b16 %v850, %v825
      %v926 = vpack.c.b16 %v851, %v826
      %v927 = vpack.c.b16 %v852, %v827
      %v928 = vpack.c.b16 %v853, %v828
      %v929 = vpack.c.b16 %v854, %v829
      %v930 = vpack.c.b16 %v855, %v830
      %v931 = vpack.c.b16 %v856, %v831
      %v932 = vpack.c.b16 %v857, %v832
      %v933 = vpack.c.b16 %v858, %v833
      %v934 = vpack.c.b16 %v859, %v834
      %v935 = vpack.c.b16 %v860, %v835
      %v936 = vpack.c.b16 %v861, %v836
      %v937 = vpack.c.b16 %v862, %v837
      %v938 = vpack.c.b16 %v863, %v838
      %v939 = vpack.c.b16 %v864, %v839
      %v940 = vpack.c.b16 %v865, %v840
      %v941 = vpack.c.b16 %v866, %v841
      %v942 = vpack.c.b16 %v892, %v867
      %v943 = vpack.c.b16 %v893, %v868
      %v944 = vpack.c.b16 %v894, %v869
      %v945 = vpack.c.b16 %v895, %v870
      %v946 = vpack.c.b16 %v896, %v871
      %v947 = vpack.c.b16 %v897, %v872
      %v948 = vpack.c.b16 %v898, %v873
      %v949 = vpack.c.b16 %v899, %v874
      %v950 = vpack.c.b16 %v900, %v875
      %v951 = vpack.c.b16 %v901, %v876
      %v952 = vpack.c.b16 %v902, %v877
      %v953 = vpack.c.b16 %v903, %v878
      %v954 = vpack.c.b16 %v904, %v879
      %v955 = vpack.c.b16 %v905, %v880
      %v956 = vpack.c.b16 %v906, %v881
      %v957 = vpack.c.b16 %v907, %v882
      %v958 = vpack.c.b16 %v908, %v883
      %v959 = vpack.c.b16 %v909, %v884
      %v960 = vpack.c.b16 %v910, %v885
      %v961 = vpack.c.b16 %v911, %v886
      %v962 = vpack.c.b16 %v912, %v887
      %v963 = vpack.c.b16 %v913, %v888
      %v964 = vpack.c.b16 %v914, %v889
      %v965 = vpack.c.b16 %v915, %v890
      %v966 = vpack.c.b16 %v916, %v891
      %v1417 = vunpack.c.l.b16 %v313
      %v1418 = vunpack.c.l.b16 %v314
      %v1419 = vunpack.c.l.b16 %v315
      %v1420 = vunpack.c.l.b16 %v316
      %v1421 = vunpack.c.l.b16 %v317
      %v1422 = vunpack.c.l.b16 %v318
      %v1423 = vunpack.c.l.b16 %v319
      %v1424 = vunpack.c.l.b16 %v320
      %v1425 = vunpack.c.l.b16 %v321
      %v1426 = vunpack.c.l.b16 %v322
      %v1427 = vunpack.c.l.b16 %v323
      %v1428 = vunpack.c.l.b16 %v324
      %v1429 = vunpack.c.l.b16 %v325
      %v1430 = vunpack.c.l.b16 %v326
      %v1431 = vunpack.c.l.b16 %v327
      %v1432 = vunpack.c.l.b16 %v328
      %v1433 = vunpack.c.l.b16 %v329
      %v1434 = vunpack.c.l.b16 %v330
      %v1435 = vunpack.c.l.b16 %v331
      %v1436 = vunpack.c.l.b16 %v332
      %v1437 = vunpack.c.l.b16 %v333
      %v1438 = vunpack.c.l.b16 %v334
      %v1439 = vunpack.c.l.b16 %v335
      %v1440 = vunpack.c.l.b16 %v336
      %v1441 = vunpack.c.l.b16 %v337
      %v1442 = vunpack.c.l.b16 %v338
      %v1443 = vunpack.c.l.b16 %v339
      %v1444 = vunpack.c.l.b16 %v340
      %v1445 = vunpack.c.l.b16 %v341
      %v1446 = vunpack.c.l.b16 %v342
      %v1447 = vunpack.c.l.b16 %v343
      %v1448 = vunpack.c.l.b16 %v344
      %v1449 = vunpack.c.l.b16 %v345
      %v1450 = vunpack.c.l.b16 %v346
      %v1451 = vunpack.c.l.b16 %v347
      %v1452 = vunpack.c.l.b16 %v348
      %v1453 = vunpack.c.l.b16 %v349
      %v1454 = vunpack.c.l.b16 %v350
      %v1455 = vunpack.c.l.b16 %v351
      %v1456 = vunpack.c.l.b16 %v352
      %v1457 = vunpack.c.l.b16 %v353
      %v1458 = vunpack.c.l.b16 %v354
      %v1459 = vunpack.c.l.b16 %v355
      %v1460 = vunpack.c.l.b16 %v356
      %v1461 = vunpack.c.l.b16 %v357
      %v1462 = vunpack.c.l.b16 %v358
      %v1463 = vunpack.c.l.b16 %v359
      %v1464 = vunpack.c.l.b16 %v360
      %v1465 = vunpack.c.l.b16 %v361
      %v1466 = vunpack.c.l.b16 %v362
      %v1467 = vunpack.c.l.b16 %v363
      %v1468 = vunpack.c.l.b16 %v364
      %v1469 = vunpack.c.l.b16 %v365
      %v1470 = vunpack.c.l.b16 %v366
      %v1471 = vunpack.c.l.b16 %v367
      %v1472 = vunpack.c.l.b16 %v368
      %v1473 = vunpack.c.l.b16 %v369
      %v1474 = vunpack.c.l.b16 %v370
      %v1475 = vunpack.c.l.b16 %v371
      %v1476 = vunpack.c.l.b16 %v372
      %v1477 = vunpack.c.l.b16 %v373
      %v1478 = vunpack.c.l.b16 %v374
      %v1479 = vunpack.c.l.b16 %v375
      %v1480 = vunpack.c.l.b16 %v376
      %v1481 = vunpack.c.l.b16 %v377
      %v1482 = vunpack.c.l.b16 %v378
      %v1483 = vunpack.c.l.b16 %v379
      %v1484 = vunpack.c.l.b16 %v380
      %v1485 = vunpack.c.l.b16 %v381
      %v1486 = vunpack.c.l.b16 %v382
      %v1487 = vunpack.c.l.b16 %v383
      %v1488 = vunpack.c.l.b16 %v384
      %v1489 = vunpack.c.l.b16 %v385
      %v1490 = vunpack.c.l.b16 %v386
      %v1491 = vunpack.c.l.b16 %v387
      %v1492 = vunpack.c.l.b16 %v388
      %v1493 = vunpack.c.l.b16 %v389
      %v1494 = vunpack.c.l.b16 %v390
      %v1495 = vunpack.c.l.b16 %v391
      %v1496 = vunpack.c.l.b16 %v392
      %v1497 = vunpack.c.l.b16 %v393
      %v1498 = vunpack.c.l.b16 %v394
      %v1499 = vunpack.c.l.b16 %v395
      %v1500 = vunpack.c.l.b16 %v396
      %v1501 = vunpack.c.l.b16 %v397
      %v1502 = vunpack.c.l.b16 %v398
      %v1503 = vunpack.c.l.b16 %v399
      %v1504 = vunpack.c.l.b16 %v400
      %v1505 = vunpack.c.l.b16 %v401
      %v1506 = vunpack.c.l.b16 %v402
      %v1507 = vunpack.c.l.b16 %v403
      %v1508 = vunpack.c.l.b16 %v404
      %v1509 = vunpack.c.l.b16 %v405
      %v1510 = vunpack.c.l.b16 %v406
      %v1511 = vunpack.c.l.b16 %v407
      %v1512 = vunpack.c.l.b16 %v408
      %v1513 = vunpack.c.l.b16 %v409
      %v1514 = vunpack.c.l.b16 %v410
      %v1515 = vunpack.c.l.b16 %v411
      %v1516 = vunpack.c.l.b16 %v412
      %v1517 = vunpack.c.l.b16 %v413
      %v1518 = vunpack.c.l.b16 %v414
      %v1519 = vunpack.c.l.b16 %v415
      %v1520 = vunpack.c.l.b16 %v416
      %v1521 = vunpack.c.l.b16 %v417
      %v1522 = vunpack.c.l.b16 %v418
      %v1523 = vunpack.c.l.b16 %v419
      %v1524 = vunpack.c.l.b16 %v420
      %v1525 = vunpack.c.l.b16 %v421
      %v1526 = vunpack.c.l.b16 %v422
      %v1527 = vunpack.c.l.b16 %v423
      %v1528 = vunpack.c.l.b16 %v424
      %v1529 = vunpack.c.l.b16 %v425
      %v1530 = vunpack.c.l.b16 %v426
      %v1531 = vunpack.c.l.b16 %v427
      %v1532 = vunpack.c.l.b16 %v428
      %v1533 = vunpack.c.l.b16 %v429
      %v1534 = vunpack.c.l.b16 %v430
      %v1535 = vunpack.c.l.b16 %v431
      %v1536 = vunpack.c.l.b16 %v432
      %v1537 = vunpack.c.l.b16 %v433
      %v1538 = vunpack.c.l.b16 %v434
      %v1539 = vunpack.c.l.b16 %v435
      %v1540 = vunpack.c.l.b16 %v436
      %v1541 = vunpack.c.l.b16 %v437
      %v1542 = vunpack.c.l.b16 %v438
      %v1543 = vunpack.c.l.b16 %v439
      %v1544 = vunpack.c.l.b16 %v440
      %v1545 = vunpack.c.l.b16 %v441
      %v1546 = vunpack.c.l.b16 %v442
      %v1547 = vunpack.c.l.b16 %v443
      %v1548 = vunpack.c.l.b16 %v444
      %v1549 = vunpack.c.l.b16 %v445
      %v1550 = vunpack.c.l.b16 %v446
      %v1551 = vunpack.c.l.b16 %v447
      %v1552 = vunpack.c.l.b16 %v448
      %v1553 = vunpack.c.l.b16 %v449
      %v1554 = vunpack.c.l.b16 %v450
      %v1555 = vunpack.c.l.b16 %v451
      %v1556 = vunpack.c.l.b16 %v452
      %v1557 = vunpack.c.l.b16 %v453
      %v1558 = vunpack.c.l.b16 %v454
      %v1559 = vunpack.c.l.b16 %v455
      %v1560 = vunpack.c.l.b16 %v456
      %v1561 = vunpack.c.l.b16 %v457
      %v1562 = vunpack.c.l.b16 %v458
      %v1563 = vunpack.c.l.b16 %v459
      %v1564 = vunpack.c.l.b16 %v460
      %v1565 = vunpack.c.l.b16 %v461
      %v1566 = vunpack.c.l.b16 %v462
      %v1567 = vunpack.c.l.b16 %v463
      %v1568 = vunpack.c.l.b16 %v464
      %v1569 = vunpack.c.l.b16 %v465
      %v1570 = vunpack.c.l.b16 %v466
      %v1571 = vunpack.c.l.b16 %v467
      %v1572 = vunpack.c.l.b16 %v468
      %v1573 = vunpack.c.l.b16 %v469
      %v1574 = vunpack.c.l.b16 %v470
      %v1575 = vunpack.c.l.b16 %v471
      %v1576 = vunpack.c.l.b16 %v472
      %v1577 = vunpack.c.l.b16 %v473
      %v1578 = vunpack.c.l.b16 %v474
      %v1579 = vunpack.c.l.b16 %v475
      %v1580 = vunpack.c.l.b16 %v476
      %v1581 = vunpack.c.l.b16 %v477
      %v1582 = vunpack.c.l.b16 %v478
      %v1583 = vunpack.c.l.b16 %v479
      %v1584 = vunpack.c.l.b16 %v480
      %v1585 = vunpack.c.l.b16 %v481
      %v1586 = vunpack.c.l.b16 %v482
      %v1587 = vunpack.c.l.b16 %v483
      %v1588 = vunpack.c.l.b16 %v484
      %v1589 = vunpack.c.l.b16 %v485
      %v1590 = vunpack.c.l.b16 %v486
      %v1591 = vunpack.c.l.b16 %v487
      %v1592 = vunpack.c.l.b16 %v488
      %v1593 = vunpack.c.l.b16 %v489
      %v1594 = vunpack.c.l.b16 %v490
      %v1595 = vunpack.c.l.b16 %v491
      %v1596 = vunpack.c.l.b16 %v492
      %v1597 = vunpack.c.l.b16 %v493
      %v1598 = vunpack.c.l.b16 %v494
      %v1599 = vunpack.c.l.b16 %v495
      %v1600 = vunpack.c.l.b16 %v496
      %v1601 = vunpack.c.l.b16 %v497
      %v1602 = vunpack.c.l.b16 %v498
      %v1603 = vunpack.c.l.b16 %v499
      %v1604 = vunpack.c.l.b16 %v500
      %v1605 = vunpack.c.l.b16 %v501
      %v1606 = vunpack.c.l.b16 %v502
      %v1607 = vunpack.c.l.b16 %v503
      %v1608 = vunpack.c.l.b16 %v504
      %v1609 = vunpack.c.l.b16 %v505
      %v1610 = vunpack.c.l.b16 %v506
      %v1611 = vunpack.c.l.b16 %v507
      %v1612 = vunpack.c.l.b16 %v508
      %v1613 = vunpack.c.l.b16 %v509
      %v1614 = vunpack.c.l.b16 %v510
      %v1615 = vunpack.c.l.b16 %v511
      %v1616 = vunpack.c.l.b16 %v512
      %v1617 = vunpack.c.l.b16 %v513
      %v1618 = vunpack.c.l.b16 %v514
      %v1619 = vunpack.c.l.b16 %v515
      %v1620 = vunpack.c.l.b16 %v516
      %v1621 = vunpack.c.l.b16 %v517
      %v1622 = vunpack.c.l.b16 %v518
      %v1623 = vunpack.c.l.b16 %v519
      %v1624 = vunpack.c.l.b16 %v520
      %v1625 = vunpack.c.l.b16 %v521
      %v1626 = vunpack.c.l.b16 %v522
      %v1627 = vunpack.c.l.b16 %v523
      %v1628 = vunpack.c.l.b16 %v524
      %v1629 = vunpack.c.l.b16 %v525
      %v1630 = vunpack.c.l.b16 %v526
      %v1631 = vunpack.c.l.b16 %v527
      %v1632 = vunpack.c.l.b16 %v528
      %v1633 = vunpack.c.l.b16 %v529
      %v1634 = vunpack.c.l.b16 %v530
      %v1635 = vunpack.c.l.b16 %v531
      %v1636 = vunpack.c.l.b16 %v532
      %v1637 = vunpack.c.l.b16 %v533
      %v1638 = vunpack.c.l.b16 %v534
      %v1639 = vunpack.c.l.b16 %v535
      %v1640 = vunpack.c.l.b16 %v536
      %v1641 = vunpack.c.l.b16 %v537
      %v1642 = vunpack.c.l.b16 %v538
      %v1643 = vunpack.c.l.b16 %v539
      %v1644 = vunpack.c.l.b16 %v540
      %v1645 = vunpack.c.l.b16 %v541
      %v1646 = vunpack.c.l.b16 %v542
      %v1647 = vunpack.c.l.b16 %v543
      %v1648 = vunpack.c.l.b16 %v544
      %v1649 = vunpack.c.l.b16 %v545
      %v1650 = vunpack.c.l.b16 %v546
      %v1651 = vunpack.c.l.b16 %v547
      %v1652 = vunpack.c.l.b16 %v548
      %v1653 = vunpack.c.l.b16 %v549
      %v1654 = vunpack.c.l.b16 %v550
      %v1655 = vunpack.c.l.b16 %v551
      %v1656 = vunpack.c.l.b16 %v552
      %v1657 = vunpack.c.l.b16 %v553
      %v1658 = vunpack.c.l.b16 %v554
      %v1659 = vunpack.c.l.b16 %v555
      %v1660 = vunpack.c.l.b16 %v556
      %v1661 = vunpack.c.l.b16 %v557
      %v1662 = vunpack.c.l.b16 %v558
      %v1663 = vunpack.c.l.b16 %v559
      %v1664 = vunpack.c.l.b16 %v560
      %v1665 = vunpack.c.l.b16 %v561
      %v1666 = vunpack.c.l.b16 %v562
      %v1667 = vunpack.c.l.b16 %v563
      %v1668 = vunpack.c.l.b16 %v564
      %v1669 = vunpack.c.l.b16 %v565
      %v1670 = vunpack.c.l.b16 %v566
      %v1671 = vunpack.c.l.b16 %v567
      %v1672 = vunpack.c.l.b16 %v568
      %v1673 = vunpack.c.l.b16 %v569
      %v1674 = vunpack.c.l.b16 %v570
      %v1675 = vunpack.c.l.b16 %v571
      %v1676 = vunpack.c.l.b16 %v572
      %v1677 = vunpack.c.l.b16 %v573
      %v1678 = vunpack.c.l.b16 %v574
      %v1679 = vunpack.c.l.b16 %v575
      %v1680 = vunpack.c.l.b16 %v576
      %v1681 = vunpack.c.l.b16 %v577
      %v1682 = vunpack.c.l.b16 %v578
      %v1683 = vunpack.c.l.b16 %v579
      %v1684 = vunpack.c.l.b16 %v580
      %v1685 = vunpack.c.l.b16 %v581
      %v1686 = vunpack.c.l.b16 %v582
      %v1687 = vunpack.c.l.b16 %v583
      %v1688 = vunpack.c.l.b16 %v584
      %v1689 = vunpack.c.l.b16 %v585
      %v1690 = vunpack.c.l.b16 %v586
      %v1691 = vunpack.c.l.b16 %v587
      %v1692 = vunpack.c.l.b16 %v588
      %v1693 = vunpack.c.l.b16 %v589
      %v1694 = vunpack.c.l.b16 %v590
      %v1695 = vunpack.c.l.b16 %v591
      %v1696 = vunpack.c.l.b16 %v592
      %v1697 = vunpack.c.l.b16 %v593
      %v1698 = vunpack.c.l.b16 %v594
      %v1699 = vunpack.c.l.b16 %v595
      %v1700 = vunpack.c.l.b16 %v596
      %v1701 = vunpack.c.l.b16 %v597
      %v1702 = vunpack.c.l.b16 %v598
      %v1703 = vunpack.c.l.b16 %v599
      %v1704 = vunpack.c.l.b16 %v600
      %v1705 = vunpack.c.l.b16 %v601
      %v1706 = vunpack.c.l.b16 %v602
      %v1707 = vunpack.c.l.b16 %v603
      %v1708 = vunpack.c.l.b16 %v604
      %v1709 = vunpack.c.l.b16 %v605
      %v1710 = vunpack.c.l.b16 %v606
      %v1711 = vunpack.c.l.b16 %v607
      %v1712 = vunpack.c.l.b16 %v608
      %v1713 = vunpack.c.l.b16 %v609
      %v1714 = vunpack.c.l.b16 %v610
      %v1715 = vunpack.c.l.b16 %v611
      %v1716 = vunpack.c.l.b16 %v612
      %v1717 = vunpack.c.l.b16 %v613
      %v1718 = vunpack.c.l.b16 %v614
      %v1719 = vunpack.c.l.b16 %v615
      %v1720 = vunpack.c.l.b16 %v616
      %v1721 = vunpack.c.l.b16 %v617
      %v1722 = vunpack.c.l.b16 %v618
      %v1723 = vunpack.c.l.b16 %v619
      %v1724 = vunpack.c.l.b16 %v620
      %v1725 = vunpack.c.l.b16 %v621
      %v1726 = vunpack.c.l.b16 %v622
      %v1727 = vunpack.c.l.b16 %v623
      %v1728 = vunpack.c.l.b16 %v624
      %v1729 = vunpack.c.l.b16 %v625
      %v1730 = vunpack.c.l.b16 %v626
      %v1731 = vunpack.c.l.b16 %v627
      %v1732 = vunpack.c.l.b16 %v628
      %v1733 = vunpack.c.l.b16 %v629
      %v1734 = vunpack.c.l.b16 %v630
      %v1735 = vunpack.c.l.b16 %v631
      %v1736 = vunpack.c.l.b16 %v632
      %v1737 = vunpack.c.l.b16 %v633
      %v1738 = vunpack.c.l.b16 %v634
      %v1739 = vunpack.c.l.b16 %v635
      %v1740 = vunpack.c.l.b16 %v636
      %v1741 = vunpack.c.l.b16 %v637
      %v1742 = vunpack.c.l.b16 %v638
      %v1743 = vunpack.c.l.b16 %v639
      %v1744 = vunpack.c.l.b16 %v640
      %v1745 = vunpack.c.l.b16 %v641
      %v1746 = vunpack.c.l.b16 %v642
      %v1747 = vunpack.c.l.b16 %v643
      %v1748 = vunpack.c.l.b16 %v644
      %v1749 = vunpack.c.l.b16 %v645
      %v1750 = vunpack.c.l.b16 %v646
      %v1751 = vunpack.c.l.b16 %v647
      %v1752 = vunpack.c.l.b16 %v648
      %v1753 = vunpack.c.l.b16 %v649
      %v1754 = vunpack.c.l.b16 %v650
      %v1755 = vunpack.c.l.b16 %v651
      %v1756 = vunpack.c.l.b16 %v652
      %v1757 = vunpack.c.l.b16 %v653
      %v1758 = vunpack.c.l.b16 %v654
      %v1759 = vunpack.c.l.b16 %v655
      %v1760 = vunpack.c.l.b16 %v656
      %v1761 = vunpack.c.l.b16 %v657
      %v1762 = vunpack.c.l.b16 %v658
      %v1763 = vunpack.c.l.b16 %v659
      %v1764 = vunpack.c.l.b16 %v660
      %v1765 = vunpack.c.l.b16 %v661
      %v1766 = vunpack.c.l.b16 %v662
      %v1767 = vunpack.c.l.b16 %v663
      %v1768 = vunpack.c.l.b16 %v664
      %v1769 = vunpack.c.l.b16 %v665
      %v1770 = vunpack.c.l.b16 %v666
      %v1771 = vunpack.c.l.b16 %v667
      %v1772 = vunpack.c.l.b16 %v668
      %v1773 = vunpack.c.l.b16 %v669
      %v1774 = vunpack.c.l.b16 %v670
      %v1775 = vunpack.c.l.b16 %v671
      %v1776 = vunpack.c.l.b16 %v672
      %v1777 = vunpack.c.l.b16 %v673
      %v1778 = vunpack.c.l.b16 %v674
      %v1779 = vunpack.c.l.b16 %v675
      %v1780 = vunpack.c.l.b16 %v676
      %v1781 = vunpack.c.l.b16 %v677
      %v1782 = vunpack.c.l.b16 %v678
      %v1783 = vunpack.c.l.b16 %v679
      %v1784 = vunpack.c.l.b16 %v680
      %v1785 = vunpack.c.l.b16 %v681
      %v1786 = vunpack.c.l.b16 %v682
      %v1787 = vunpack.c.l.b16 %v683
      %v1788 = vunpack.c.l.b16 %v684
      %v1789 = vunpack.c.l.b16 %v685
      %v1790 = vunpack.c.l.b16 %v686
      %v1791 = vunpack.c.l.b16 %v687
      %v1792 = vunpack.c.l.b16 %v688
      %v1793 = vunpack.c.l.b16 %v689
      %v1794 = vunpack.c.l.b16 %v690
      %v1795 = vunpack.c.l.b16 %v691
      %v1796 = vunpack.c.l.b16 %v692
      %v1797 = vunpack.c.l.b16 %v693
      %v1798 = vunpack.c.l.b16 %v694
      %v1799 = vunpack.c.l.b16 %v695
      %v1800 = vunpack.c.l.b16 %v696
      %v1801 = vunpack.c.l.b16 %v697
      %v1802 = vunpack.c.l.b16 %v698
      %v1803 = vunpack.c.l.b16 %v699
      %v1804 = vunpack.c.l.b16 %v700
      %v1805 = vunpack.c.l.b16 %v701
      %v1806 = vunpack.c.l.b16 %v702
      %v1807 = vunpack.c.l.b16 %v703
      %v1808 = vunpack.c.l.b16 %v704
      %v1809 = vunpack.c.l.b16 %v705
      %v1810 = vunpack.c.l.b16 %v706
      %v1811 = vunpack.c.l.b16 %v707
      %v1812 = vunpack.c.l.b16 %v708
      %v1813 = vunpack.c.l.b16 %v709
      %v1814 = vunpack.c.l.b16 %v710
      %v1815 = vunpack.c.l.b16 %v711
      %v1816 = vunpack.c.l.b16 %v712
      %v1817 = vpack.c.b16 %v1418, %v1417
      %v1818 = vpack.c.b16 %v1420, %v1419
      %v1819 = vpack.c.b16 %v1422, %v1421
      %v1820 = vpack.c.b16 %v1424, %v1423
      %v1821 = vpack.c.b16 %v1426, %v1425
      %v1822 = vpack.c.b16 %v1428, %v1427
      %v1823 = vpack.c.b16 %v1430, %v1429
      %v1824 = vpack.c.b16 %v1432, %v1431
      %v1825 = vpack.c.b16 %v1434, %v1433
      %v1826 = vpack.c.b16 %v1436, %v1435
      %v1827 = vpack.c.b16 %v1438, %v1437
      %v1828 = vpack.c.b16 %v1440, %v1439
      %v1829 = vpack.c.b16 %v1442, %v1441
      %v1830 = vpack.c.b16 %v1444, %v1443
      %v1831 = vpack.c.b16 %v1446, %v1445
      %v1832 = vpack.c.b16 %v1448, %v1447
      %v1833 = vpack.c.b16 %v1450, %v1449
      %v1834 = vpack.c.b16 %v1452, %v1451
      %v1835 = vpack.c.b16 %v1454, %v1453
      %v1836 = vpack.c.b16 %v1456, %v1455
      %v1837 = vpack.c.b16 %v1458, %v1457
      %v1838 = vpack.c.b16 %v1460, %v1459
      %v1839 = vpack.c.b16 %v1462, %v1461
      %v1840 = vpack.c.b16 %v1464, %v1463
      %v1841 = vpack.c.b16 %v1466, %v1465
      %v1842 = vpack.c.b16 %v1468, %v1467
      %v1843 = vpack.c.b16 %v1470, %v1469
      %v1844 = vpack.c.b16 %v1472, %v1471
      %v1845 = vpack.c.b16 %v1474, %v1473
      %v1846 = vpack.c.b16 %v1476, %v1475
      %v1847 = vpack.c.b16 %v1478, %v1477
      %v1848 = vpack.c.b16 %v1480, %v1479
      %v1849 = vpack.c.b16 %v1482, %v1481
      %v1850 = vpack.c.b16 %v1484, %v1483
      %v1851 = vpack.c.b16 %v1486, %v1485
      %v1852 = vpack.c.b16 %v1488, %v1487
      %v1853 = vpack.c.b16 %v1490, %v1489
      %v1854 = vpack.c.b16 %v1492, %v1491
      %v1855 = vpack.c.b16 %v1494, %v1493
      %v1856 = vpack.c.b16 %v1496, %v1495
      %v1857 = vpack.c.b16 %v1498, %v1497
      %v1858 = vpack.c.b16 %v1500, %v1499
      %v1859 = vpack.c.b16 %v1502, %v1501
      %v1860 = vpack.c.b16 %v1504, %v1503
      %v1861 = vpack.c.b16 %v1506, %v1505
      %v1862 = vpack.c.b16 %v1508, %v1507
      %v1863 = vpack.c.b16 %v1510, %v1509
      %v1864 = vpack.c.b16 %v1512, %v1511
      %v1865 = vpack.c.b16 %v1514, %v1513
      %v1866 = vpack.c.b16 %v1516, %v1515
      %v1867 = vpack.c.b16 %v1518, %v1517
      %v1868 = vpack.c.b16 %v1520, %v1519
      %v1869 = vpack.c.b16 %v1522, %v1521
      %v1870 = vpack.c.b16 %v1524, %v1523
      %v1871 = vpack.c.b16 %v1526, %v1525
      %v1872 = vpack.c.b16 %v1528, %v1527
      %v1873 = vpack.c.b16 %v1530, %v1529
      %v1874 = vpack.c.b16 %v1532, %v1531
      %v1875 = vpack.c.b16 %v1534, %v1533
      %v1876 = vpack.c.b16 %v1536, %v1535
      %v1877 = vpack.c.b16 %v1538, %v1537
      %v1878 = vpack.c.b16 %v1540, %v1539
      %v1879 = vpack.c.b16 %v1542, %v1541
      %v1880 = vpack.c.b16 %v1544, %v1543
      %v1881 = vpack.c.b16 %v1546, %v1545
      %v1882 = vpack.c.b16 %v1548, %v1547
      %v1883 = vpack.c.b16 %v1550, %v1549
      %v1884 = vpack.c.b16 %v1552, %v1551
      %v1885 = vpack.c.b16 %v1554, %v1553
      %v1886 = vpack.c.b16 %v1556, %v1555
      %v1887 = vpack.c.b16 %v1558, %v1557
      %v1888 = vpack.c.b16 %v1560, %v1559
      %v1889 = vpack.c.b16 %v1562, %v1561
      %v1890 = vpack.c.b16 %v1564, %v1563
      %v1891 = vpack.c.b16 %v1566, %v1565
      %v1892 = vpack.c.b16 %v1568, %v1567
      %v1893 = vpack.c.b16 %v1570, %v1569
      %v1894 = vpack.c.b16 %v1572, %v1571
      %v1895 = vpack.c.b16 %v1574, %v1573
      %v1896 = vpack.c.b16 %v1576, %v1575
      %v1897 = vpack.c.b16 %v1578, %v1577
      %v1898 = vpack.c.b16 %v1580, %v1579
      %v1899 = vpack.c.b16 %v1582, %v1581
      %v1900 = vpack.c.b16 %v1584, %v1583
      %v1901 = vpack.c.b16 %v1586, %v1585
      %v1902 = vpack.c.b16 %v1588, %v1587
      %v1903 = vpack.c.b16 %v1590, %v1589
      %v1904 = vpack.c.b16 %v1592, %v1591
      %v1905 = vpack.c.b16 %v1594, %v1593
      %v1906 = vpack.c.b16 %v1596, %v1595
      %v1907 = vpack.c.b16 %v1598, %v1597
      %v1908 = vpack.c.b16 %v1600, %v1599
      %v1909 = vpack.c.b16 %v1602, %v1601
      %v1910 = vpack.c.b16 %v1604, %v1603
      %v1911 = vpack.c.b16 %v1606, %v1605
      %v1912 = vpack.c.b16 %v1608, %v1607
      %v1913 = vpack.c.b16 %v1610, %v1609
      %v1914 = vpack.c.b16 %v1612, %v1611
      %v1915 = vpack.c.b16 %v1614, %v1613
      %v1916 = vpack.c.b16 %v1616, %v1615
      %v1917 = vpack.c.b16 %v1618, %v1617
      %v1918 = vpack.c.b16 %v1620, %v1619
      %v1919 = vpack.c.b16 %v1622, %v1621
      %v1920 = vpack.c.b16 %v1624, %v1623
      %v1921 = vpack.c.b16 %v1626, %v1625
      %v1922 = vpack.c.b16 %v1628, %v1627
      %v1923 = vpack.c.b16 %v1630, %v1629
      %v1924 = vpack.c.b16 %v1632, %v1631
      %v1925 = vpack.c.b16 %v1634, %v1633
      %v1926 = vpack.c.b16 %v1636, %v1635
      %v1927 = vpack.c.b16 %v1638, %v1637
      %v1928 = vpack.c.b16 %v1640, %v1639
      %v1929 = vpack.c.b16 %v1642, %v1641
      %v1930 = vpack.c.b16 %v1644, %v1643
      %v1931 = vpack.c.b16 %v1646, %v1645
      %v1932 = vpack.c.b16 %v1648, %v1647
      %v1933 = vpack.c.b16 %v1650, %v1649
      %v1934 = vpack.c.b16 %v1652, %v1651
      %v1935 = vpack.c.b16 %v1654, %v1653
      %v1936 = vpack.c.b16 %v1656, %v1655
      %v1937 = vpack.c.b16 %v1658, %v1657
      %v1938 = vpack.c.b16 %v1660, %v1659
      %v1939 = vpack.c.b16 %v1662, %v1661
      %v1940 = vpack.c.b16 %v1664, %v1663
      %v1941 = vpack.c.b16 %v1666, %v1665
      %v1942 = vpack.c.b16 %v1668, %v1667
      %v1943 = vpack.c.b16 %v1670, %v1669
      %v1944 = vpack.c.b16 %v1672, %v1671
      %v1945 = vpack.c.b16 %v1674, %v1673
      %v1946 = vpack.c.b16 %v1676, %v1675
      %v1947 = vpack.c.b16 %v1678, %v1677
      %v1948 = vpack.c.b16 %v1680, %v1679
      %v1949 = vpack.c.b16 %v1682, %v1681
      %v1950 = vpack.c.b16 %v1684, %v1683
      %v1951 = vpack.c.b16 %v1686, %v1685
      %v1952 = vpack.c.b16 %v1688, %v1687
      %v1953 = vpack.c.b16 %v1690, %v1689
      %v1954 = vpack.c.b16 %v1692, %v1691
      %v1955 = vpack.c.b16 %v1694, %v1693
      %v1956 = vpack.c.b16 %v1696, %v1695
      %v1957 = vpack.c.b16 %v1698, %v1697
      %v1958 = vpack.c.b16 %v1700, %v1699
      %v1959 = vpack.c.b16 %v1702, %v1701
      %v1960 = vpack.c.b16 %v1704, %v1703
      %v1961 = vpack.c.b16 %v1706, %v1705
      %v1962 = vpack.c.b16 %v1708, %v1707
      %v1963 = vpack.c.b16 %v1710, %v1709
      %v1964 = vpack.c.b16 %v1712, %v1711
      %v1965 = vpack.c.b16 %v1714, %v1713
      %v1966 = vpack.c.b16 %v1716, %v1715
      %v1967 = vpack.c.b16 %v1718, %v1717
      %v1968 = vpack.c.b16 %v1720, %v1719
      %v1969 = vpack.c.b16 %v1722, %v1721
      %v1970 = vpack.c.b16 %v1724, %v1723
      %v1971 = vpack.c.b16 %v1726, %v1725
      %v1972 = vpack.c.b16 %v1728, %v1727
      %v1973 = vpack.c.b16 %v1730, %v1729
      %v1974 = vpack.c.b16 %v1732, %v1731
      %v1975 = vpack.c.b16 %v1734, %v1733
      %v1976 = vpack.c.b16 %v1736, %v1735
      %v1977 = vpack.c.b16 %v1738, %v1737
      %v1978 = vpack.c.b16 %v1740, %v1739
      %v1979 = vpack.c.b16 %v1742, %v1741
      %v1980 = vpack.c.b16 %v1744, %v1743
      %v1981 = vpack.c.b16 %v1746, %v1745
      %v1982 = vpack.c.b16 %v1748, %v1747
      %v1983 = vpack.c.b16 %v1750, %v1749
      %v1984 = vpack.c.b16 %v1752, %v1751
      %v1985 = vpack.c.b16 %v1754, %v1753
      %v1986 = vpack.c.b16 %v1756, %v1755
      %v1987 = vpack.c.b16 %v1758, %v1757
      %v1988 = vpack.c.b16 %v1760, %v1759
      %v1989 = vpack.c.b16 %v1762, %v1761
      %v1990 = vpack.c.b16 %v1764, %v1763
      %v1991 = vpack.c.b16 %v1766, %v1765
      %v1992 = vpack.c.b16 %v1768, %v1767
      %v1993 = vpack.c.b16 %v1770, %v1769
      %v1994 = vpack.c.b16 %v1772, %v1771
      %v1995 = vpack.c.b16 %v1774, %v1773
      %v1996 = vpack.c.b16 %v1776, %v1775
      %v1997 = vpack.c.b16 %v1778, %v1777
      %v1998 = vpack.c.b16 %v1780, %v1779
      %v1999 = vpack.c.b16 %v1782, %v1781
      %v2000 = vpack.c.b16 %v1784, %v1783
      %v2001 = vpack.c.b16 %v1786, %v1785
      %v2002 = vpack.c.b16 %v1788, %v1787
      %v2003 = vpack.c.b16 %v1790, %v1789
      %v2004 = vpack.c.b16 %v1792, %v1791
      %v2005 = vpack.c.b16 %v1794, %v1793
      %v2006 = vpack.c.b16 %v1796, %v1795
      %v2007 = vpack.c.b16 %v1798, %v1797
      %v2008 = vpack.c.b16 %v1800, %v1799
      %v2009 = vpack.c.b16 %v1802, %v1801
      %v2010 = vpack.c.b16 %v1804, %v1803
      %v2011 = vpack.c.b16 %v1806, %v1805
      %v2012 = vpack.c.b16 %v1808, %v1807
      %v2013 = vpack.c.b16 %v1810, %v1809
      %v2014 = vpack.c.b16 %v1812, %v1811
      %v2015 = vpack.c.b16 %v1814, %v1813
      %v2016 = vpack.c.b16 %v1816, %v1815
      %2217 = vmatprep.subr.bf16.mxu0 0
      %2218 = vmatpush1.bf16.msra.mxu0 %v1824
      %2219 = vmatprep.subr.bf16.mxu0 0
      %2220 = vmatpush1.bf16.msra.mxu0 %v1823
      %2221 = vmatprep.subr.bf16.mxu0 0
      %2222 = vmatpush1.bf16.msra.mxu0 %v1822
      %2223 = vmatprep.subr.bf16.mxu0 0
      %2224 = vmatpush1.bf16.msra.mxu0 %v1821
      %2225 = vmatprep.subr.bf16.mxu0 0
      %2226 = vmatpush1.bf16.msra.mxu0 %v1820
      %2227 = vmatprep.subr.bf16.mxu0 0
      %2228 = vmatpush1.bf16.msra.mxu0 %v1819
      %2229 = vmatprep.subr.bf16.mxu0 0
      %2230 = vmatpush1.bf16.msra.mxu0 %v1818
      %2231 = vmatprep.subr.bf16.mxu0 0
      %2232 = vmatpush1.bf16.msra.mxu0 %v1817
      %2233 = vmatprep.subr.bf16.mxu0 0
      %2234 = vmatpush2.bf16.msra.mxu0 %v1832
      %2235 = vmatprep.subr.bf16.mxu0 0
      %2236 = vmatpush2.bf16.msra.mxu0 %v1831
      %2237 = vmatprep.subr.bf16.mxu0 0
      %2238 = vmatpush2.bf16.msra.mxu0 %v1830
      %2239 = vmatprep.subr.bf16.mxu0 0
      %2240 = vmatpush2.bf16.msra.mxu0 %v1829
      %2241 = vmatprep.subr.bf16.mxu0 0
      %2242 = vmatpush2.bf16.msra.mxu0 %v1828
      %2243 = vmatprep.subr.bf16.mxu0 0
      %2244 = vmatpush2.bf16.msra.mxu0 %v1827
      %2245 = vmatprep.subr.bf16.mxu0 0
      %2246 = vmatpush2.bf16.msra.mxu0 %v1826
      %2247 = vmatprep.subr.bf16.mxu0 0
      %2248 = vmatpush2.bf16.msra.mxu0 %v1825
      %2249 = vmatprep.mubr.bf16.mxu0 %v918
      %2250 = vmatmul.mubr.bf16.gmra.mxu0 %v917
      %v2251 = vpop.f32.mrf.mxu0
      %v2252 = vadd.f32 0.0, %v2251
      %v2253 = vpop.f32.mrf.mxu0
      %v2254 = vpop.f32.mrf.mxu0
      %v2255 = vadd.f32 0.0, %v2254
      %v2256 = vpop.f32.mrf.mxu0
      %2257 = vmatprep.mubr.bf16.mxu0 %v943
      %2258 = vmatmul.mubr.bf16.gmra.mxu0 %v942
      %v2259 = vpop.f32.mrf.mxu0
      %v2260 = vadd.f32 0.0, %v2259
      %v2261 = vpop.f32.mrf.mxu0
      %v2262 = vpop.f32.mrf.mxu0
      %v2263 = vadd.f32 0.0, %v2262
      %v2264 = vpop.f32.mrf.mxu0
      %2265 = vdwg.mxu0
      %2266 = vmatprep.subr.bf16.mxu0 0
      %2267 = vmatpush1.bf16.msra.mxu0 %v1840
      %2268 = vmatprep.subr.bf16.mxu0 0
      %2269 = vmatpush1.bf16.msra.mxu0 %v1839
      %2270 = vmatprep.subr.bf16.mxu0 0
      %2271 = vmatpush1.bf16.msra.mxu0 %v1838
      %2272 = vmatprep.subr.bf16.mxu0 0
      %2273 = vmatpush1.bf16.msra.mxu0 %v1837
      %2274 = vmatprep.subr.bf16.mxu0 0
      %2275 = vmatpush1.bf16.msra.mxu0 %v1836
      %2276 = vmatprep.subr.bf16.mxu0 0
      %2277 = vmatpush1.bf16.msra.mxu0 %v1835
      %2278 = vmatprep.subr.bf16.mxu0 0
      %2279 = vmatpush1.bf16.msra.mxu0 %v1834
      %2280 = vmatprep.subr.bf16.mxu0 0
      %2281 = vmatpush1.bf16.msra.mxu0 %v1833
      %2282 = vmatprep.subr.bf16.mxu0 0
      %2283 = vmatpush2.bf16.msra.mxu0 %v1848
      %2284 = vmatprep.subr.bf16.mxu0 0
      %2285 = vmatpush2.bf16.msra.mxu0 %v1847
      %2286 = vmatprep.subr.bf16.mxu0 0
      %2287 = vmatpush2.bf16.msra.mxu0 %v1846
      %2288 = vmatprep.subr.bf16.mxu0 0
      %2289 = vmatpush2.bf16.msra.mxu0 %v1845
      %2290 = vmatprep.subr.bf16.mxu0 0
      %2291 = vmatpush2.bf16.msra.mxu0 %v1844
      %2292 = vmatprep.subr.bf16.mxu0 0
      %2293 = vmatpush2.bf16.msra.mxu0 %v1843
      %2294 = vmatprep.subr.bf16.mxu0 0
      %2295 = vmatpush2.bf16.msra.mxu0 %v1842
      %2296 = vmatprep.subr.bf16.mxu0 0
      %2297 = vmatpush2.bf16.msra.mxu0 %v1841
      %2298 = vmatprep.mubr.bf16.mxu0 %v920
      %2299 = vmatmul.mubr.bf16.gmra.mxu0 %v919
      %v2300 = vpop.f32.mrf.mxu0
      %v2301 = vadd.f32 %v2252, %v2300
      %v2302 = vpop.f32.mrf.mxu0
      %v2303 = vpop.f32.mrf.mxu0
      %v2304 = vadd.f32 %v2255, %v2303
      %v2305 = vpop.f32.mrf.mxu0
      %2306 = vmatprep.mubr.bf16.mxu0 %v945
      %2307 = vmatmul.mubr.bf16.gmra.mxu0 %v944
      %v2308 = vpop.f32.mrf.mxu0
      %v2309 = vadd.f32 %v2260, %v2308
      %v2310 = vpop.f32.mrf.mxu0
      %v2311 = vpop.f32.mrf.mxu0
      %v2312 = vadd.f32 %v2263, %v2311
      %v2313 = vpop.f32.mrf.mxu0
      %2314 = vdwg.mxu0
      %2315 = vmatprep.subr.bf16.mxu0 0
      %2316 = vmatpush1.bf16.msra.mxu0 %v1856
      %2317 = vmatprep.subr.bf16.mxu0 0
      %2318 = vmatpush1.bf16.msra.mxu0 %v1855
      %2319 = vmatprep.subr.bf16.mxu0 0
      %2320 = vmatpush1.bf16.msra.mxu0 %v1854
      %2321 = vmatprep.subr.bf16.mxu0 0
      %2322 = vmatpush1.bf16.msra.mxu0 %v1853
      %2323 = vmatprep.subr.bf16.mxu0 0
      %2324 = vmatpush1.bf16.msra.mxu0 %v1852
      %2325 = vmatprep.subr.bf16.mxu0 0
      %2326 = vmatpush1.bf16.msra.mxu0 %v1851
      %2327 = vmatprep.subr.bf16.mxu0 0
      %2328 = vmatpush1.bf16.msra.mxu0 %v1850
      %2329 = vmatprep.subr.bf16.mxu0 0
      %2330 = vmatpush1.bf16.msra.mxu0 %v1849
      %2331 = vmatprep.subr.bf16.mxu0 0
      %2332 = vmatpush2.bf16.msra.mxu0 %v1864
      %2333 = vmatprep.subr.bf16.mxu0 0
      %2334 = vmatpush2.bf16.msra.mxu0 %v1863
      %2335 = vmatprep.subr.bf16.mxu0 0
      %2336 = vmatpush2.bf16.msra.mxu0 %v1862
      %2337 = vmatprep.subr.bf16.mxu0 0
      %2338 = vmatpush2.bf16.msra.mxu0 %v1861
      %2339 = vmatprep.subr.bf16.mxu0 0
      %2340 = vmatpush2.bf16.msra.mxu0 %v1860
      %2341 = vmatprep.subr.bf16.mxu0 0
      %2342 = vmatpush2.bf16.msra.mxu0 %v1859
      %2343 = vmatprep.subr.bf16.mxu0 0
      %2344 = vmatpush2.bf16.msra.mxu0 %v1858
      %2345 = vmatprep.subr.bf16.mxu0 0
      %2346 = vmatpush2.bf16.msra.mxu0 %v1857
      %2347 = vmatprep.mubr.bf16.mxu0 %v922
      %2348 = vmatmul.mubr.bf16.gmra.mxu0 %v921
      %v2349 = vpop.f32.mrf.mxu0
      %v2350 = vadd.f32 %v2301, %v2349
      %v2351 = vpop.f32.mrf.mxu0
      %v2352 = vpop.f32.mrf.mxu0
      %v2353 = vadd.f32 %v2304, %v2352
      %v2354 = vpop.f32.mrf.mxu0
      %2355 = vmatprep.mubr.bf16.mxu0 %v947
      %2356 = vmatmul.mubr.bf16.gmra.mxu0 %v946
      %v2357 = vpop.f32.mrf.mxu0
      %v2358 = vadd.f32 %v2309, %v2357
      %v2359 = vpop.f32.mrf.mxu0
      %v2360 = vpop.f32.mrf.mxu0
      %v2361 = vadd.f32 %v2312, %v2360
      %v2362 = vpop.f32.mrf.mxu0
      %2363 = vdwg.mxu0
      %2364 = vmatprep.subr.bf16.mxu0 0
      %2365 = vmatpush1.bf16.msra.mxu0 %v1872
      %2366 = vmatprep.subr.bf16.mxu0 0
      %2367 = vmatpush1.bf16.msra.mxu0 %v1871
      %2368 = vmatprep.subr.bf16.mxu0 0
      %2369 = vmatpush1.bf16.msra.mxu0 %v1870
      %2370 = vmatprep.subr.bf16.mxu0 0
      %2371 = vmatpush1.bf16.msra.mxu0 %v1869
      %2372 = vmatprep.subr.bf16.mxu0 0
      %2373 = vmatpush1.bf16.msra.mxu0 %v1868
      %2374 = vmatprep.subr.bf16.mxu0 0
      %2375 = vmatpush1.bf16.msra.mxu0 %v1867
      %2376 = vmatprep.subr.bf16.mxu0 0
      %2377 = vmatpush1.bf16.msra.mxu0 %v1866
      %2378 = vmatprep.subr.bf16.mxu0 0
      %2379 = vmatpush1.bf16.msra.mxu0 %v1865
      %2380 = vmatprep.subr.bf16.mxu0 0
      %2381 = vmatpush2.bf16.msra.mxu0 %v1880
      %2382 = vmatprep.subr.bf16.mxu0 0
      %2383 = vmatpush2.bf16.msra.mxu0 %v1879
      %2384 = vmatprep.subr.bf16.mxu0 0
      %2385 = vmatpush2.bf16.msra.mxu0 %v1878
      %2386 = vmatprep.subr.bf16.mxu0 0
      %2387 = vmatpush2.bf16.msra.mxu0 %v1877
      %2388 = vmatprep.subr.bf16.mxu0 0
      %2389 = vmatpush2.bf16.msra.mxu0 %v1876
      %2390 = vmatprep.subr.bf16.mxu0 0
      %2391 = vmatpush2.bf16.msra.mxu0 %v1875
      %2392 = vmatprep.subr.bf16.mxu0 0
      %2393 = vmatpush2.bf16.msra.mxu0 %v1874
      %2394 = vmatprep.subr.bf16.mxu0 0
      %2395 = vmatpush2.bf16.msra.mxu0 %v1873
      %2396 = vmatprep.mubr.bf16.mxu0 %v924
      %2397 = vmatmul.mubr.bf16.gmra.mxu0 %v923
      %v2398 = vpop.f32.mrf.mxu0
      %v2399 = vadd.f32 %v2350, %v2398
      %v2400 = vpop.f32.mrf.mxu0
      %v2401 = vpop.f32.mrf.mxu0
      %v2402 = vadd.f32 %v2353, %v2401
      %v2403 = vpop.f32.mrf.mxu0
      %2404 = vmatprep.mubr.bf16.mxu0 %v949
      %2405 = vmatmul.mubr.bf16.gmra.mxu0 %v948
      %v2406 = vpop.f32.mrf.mxu0
      %v2407 = vadd.f32 %v2358, %v2406
      %v2408 = vpop.f32.mrf.mxu0
      %v2409 = vpop.f32.mrf.mxu0
      %v2410 = vadd.f32 %v2361, %v2409
      %v2411 = vpop.f32.mrf.mxu0
      %2412 = vdwg.mxu0
      %2413 = vmatprep.subr.bf16.mxu0 0
      %2414 = vmatpush1.bf16.msra.mxu0 %v1888
      %2415 = vmatprep.subr.bf16.mxu0 0
      %2416 = vmatpush1.bf16.msra.mxu0 %v1887
      %2417 = vmatprep.subr.bf16.mxu0 0
      %2418 = vmatpush1.bf16.msra.mxu0 %v1886
      %2419 = vmatprep.subr.bf16.mxu0 0
      %2420 = vmatpush1.bf16.msra.mxu0 %v1885
      %2421 = vmatprep.subr.bf16.mxu0 0
      %2422 = vmatpush1.bf16.msra.mxu0 %v1884
      %2423 = vmatprep.subr.bf16.mxu0 0
      %2424 = vmatpush1.bf16.msra.mxu0 %v1883
      %2425 = vmatprep.subr.bf16.mxu0 0
      %2426 = vmatpush1.bf16.msra.mxu0 %v1882
      %2427 = vmatprep.subr.bf16.mxu0 0
      %2428 = vmatpush1.bf16.msra.mxu0 %v1881
      %2429 = vmatprep.subr.bf16.mxu0 0
      %2430 = vmatpush2.bf16.msra.mxu0 %v1896
      %2431 = vmatprep.subr.bf16.mxu0 0
      %2432 = vmatpush2.bf16.msra.mxu0 %v1895
      %2433 = vmatprep.subr.bf16.mxu0 0
      %2434 = vmatpush2.bf16.msra.mxu0 %v1894
      %2435 = vmatprep.subr.bf16.mxu0 0
      %2436 = vmatpush2.bf16.msra.mxu0 %v1893
      %2437 = vmatprep.subr.bf16.mxu0 0
      %2438 = vmatpush2.bf16.msra.mxu0 %v1892
      %2439 = vmatprep.subr.bf16.mxu0 0
      %2440 = vmatpush2.bf16.msra.mxu0 %v1891
      %2441 = vmatprep.subr.bf16.mxu0 0
      %2442 = vmatpush2.bf16.msra.mxu0 %v1890
      %2443 = vmatprep.subr.bf16.mxu0 0
      %2444 = vmatpush2.bf16.msra.mxu0 %v1889
      %2445 = vmatprep.mubr.bf16.mxu0 %v926
      %2446 = vmatmul.mubr.bf16.gmra.mxu0 %v925
      %v2447 = vpop.f32.mrf.mxu0
      %v2448 = vadd.f32 %v2399, %v2447
      %v2449 = vpop.f32.mrf.mxu0
      %v2450 = vpop.f32.mrf.mxu0
      %v2451 = vadd.f32 %v2402, %v2450
      %v2452 = vpop.f32.mrf.mxu0
      %2453 = vmatprep.mubr.bf16.mxu0 %v951
      %2454 = vmatmul.mubr.bf16.gmra.mxu0 %v950
      %v2455 = vpop.f32.mrf.mxu0
      %v2456 = vadd.f32 %v2407, %v2455
      %v2457 = vpop.f32.mrf.mxu0
      %v2458 = vpop.f32.mrf.mxu0
      %v2459 = vadd.f32 %v2410, %v2458
      %v2460 = vpop.f32.mrf.mxu0
      %2461 = vdwg.mxu0
      %2462 = vmatprep.subr.bf16.mxu0 0
      %2463 = vmatpush1.bf16.msra.mxu0 %v1904
      %2464 = vmatprep.subr.bf16.mxu0 0
      %2465 = vmatpush1.bf16.msra.mxu0 %v1903
      %2466 = vmatprep.subr.bf16.mxu0 0
      %2467 = vmatpush1.bf16.msra.mxu0 %v1902
      %2468 = vmatprep.subr.bf16.mxu0 0
      %2469 = vmatpush1.bf16.msra.mxu0 %v1901
      %2470 = vmatprep.subr.bf16.mxu0 0
      %2471 = vmatpush1.bf16.msra.mxu0 %v1900
      %2472 = vmatprep.subr.bf16.mxu0 0
      %2473 = vmatpush1.bf16.msra.mxu0 %v1899
      %2474 = vmatprep.subr.bf16.mxu0 0
      %2475 = vmatpush1.bf16.msra.mxu0 %v1898
      %2476 = vmatprep.subr.bf16.mxu0 0
      %2477 = vmatpush1.bf16.msra.mxu0 %v1897
      %2478 = vmatprep.subr.bf16.mxu0 0
      %2479 = vmatpush2.bf16.msra.mxu0 %v1912
      %2480 = vmatprep.subr.bf16.mxu0 0
      %2481 = vmatpush2.bf16.msra.mxu0 %v1911
      %2482 = vmatprep.subr.bf16.mxu0 0
      %2483 = vmatpush2.bf16.msra.mxu0 %v1910
      %2484 = vmatprep.subr.bf16.mxu0 0
      %2485 = vmatpush2.bf16.msra.mxu0 %v1909
      %2486 = vmatprep.subr.bf16.mxu0 0
      %2487 = vmatpush2.bf16.msra.mxu0 %v1908
      %2488 = vmatprep.subr.bf16.mxu0 0
      %2489 = vmatpush2.bf16.msra.mxu0 %v1907
      %2490 = vmatprep.subr.bf16.mxu0 0
      %2491 = vmatpush2.bf16.msra.mxu0 %v1906
      %2492 = vmatprep.subr.bf16.mxu0 0
      %2493 = vmatpush2.bf16.msra.mxu0 %v1905
      %2494 = vmatprep.mubr.bf16.mxu0 %v928
      %2495 = vmatmul.mubr.bf16.gmra.mxu0 %v927
      %v2496 = vpop.f32.mrf.mxu0
      %v2497 = vadd.f32 %v2448, %v2496
      %v2498 = vpop.f32.mrf.mxu0
      %v2499 = vpop.f32.mrf.mxu0
      %v2500 = vadd.f32 %v2451, %v2499
      %v2501 = vpop.f32.mrf.mxu0
      %2502 = vmatprep.mubr.bf16.mxu0 %v953
      %2503 = vmatmul.mubr.bf16.gmra.mxu0 %v952
      %v2504 = vpop.f32.mrf.mxu0
      %v2505 = vadd.f32 %v2456, %v2504
      %v2506 = vpop.f32.mrf.mxu0
      %v2507 = vpop.f32.mrf.mxu0
      %v2508 = vadd.f32 %v2459, %v2507
      %v2509 = vpop.f32.mrf.mxu0
      %2510 = vdwg.mxu0
      %2511 = vmatprep.subr.bf16.mxu0 0
      %2512 = vmatpush1.bf16.msra.mxu0 %v1920
      %2513 = vmatprep.subr.bf16.mxu0 0
      %2514 = vmatpush1.bf16.msra.mxu0 %v1919
      %2515 = vmatprep.subr.bf16.mxu0 0
      %2516 = vmatpush1.bf16.msra.mxu0 %v1918
      %2517 = vmatprep.subr.bf16.mxu0 0
      %2518 = vmatpush1.bf16.msra.mxu0 %v1917
      %2519 = vmatprep.subr.bf16.mxu0 0
      %2520 = vmatpush1.bf16.msra.mxu0 %v1916
      %2521 = vmatprep.subr.bf16.mxu0 0
      %2522 = vmatpush1.bf16.msra.mxu0 %v1915
      %2523 = vmatprep.subr.bf16.mxu0 0
      %2524 = vmatpush1.bf16.msra.mxu0 %v1914
      %2525 = vmatprep.subr.bf16.mxu0 0
      %2526 = vmatpush1.bf16.msra.mxu0 %v1913
      %2527 = vmatprep.subr.bf16.mxu0 0
      %2528 = vmatpush2.bf16.msra.mxu0 %v1928
      %2529 = vmatprep.subr.bf16.mxu0 0
      %2530 = vmatpush2.bf16.msra.mxu0 %v1927
      %2531 = vmatprep.subr.bf16.mxu0 0
      %2532 = vmatpush2.bf16.msra.mxu0 %v1926
      %2533 = vmatprep.subr.bf16.mxu0 0
      %2534 = vmatpush2.bf16.msra.mxu0 %v1925
      %2535 = vmatprep.subr.bf16.mxu0 0
      %2536 = vmatpush2.bf16.msra.mxu0 %v1924
      %2537 = vmatprep.subr.bf16.mxu0 0
      %2538 = vmatpush2.bf16.msra.mxu0 %v1923
      %2539 = vmatprep.subr.bf16.mxu0 0
      %2540 = vmatpush2.bf16.msra.mxu0 %v1922
      %2541 = vmatprep.subr.bf16.mxu0 0
      %2542 = vmatpush2.bf16.msra.mxu0 %v1921
      %2543 = vmatprep.mubr.bf16.mxu0 %v930
      %2544 = vmatmul.mubr.bf16.gmra.mxu0 %v929
      %v2545 = vpop.f32.mrf.mxu0
      %v2546 = vadd.f32 %v2497, %v2545
      %v2547 = vpop.f32.mrf.mxu0
      %v2548 = vpop.f32.mrf.mxu0
      %v2549 = vadd.f32 %v2500, %v2548
      %v2550 = vpop.f32.mrf.mxu0
      %2551 = vmatprep.mubr.bf16.mxu0 %v955
      %2552 = vmatmul.mubr.bf16.gmra.mxu0 %v954
      %v2553 = vpop.f32.mrf.mxu0
      %v2554 = vadd.f32 %v2505, %v2553
      %v2555 = vpop.f32.mrf.mxu0
      %v2556 = vpop.f32.mrf.mxu0
      %v2557 = vadd.f32 %v2508, %v2556
      %v2558 = vpop.f32.mrf.mxu0
      %2559 = vdwg.mxu0
      %2560 = vmatprep.subr.bf16.mxu0 0
      %2561 = vmatpush1.bf16.msra.mxu0 %v1936
      %2562 = vmatprep.subr.bf16.mxu0 0
      %2563 = vmatpush1.bf16.msra.mxu0 %v1935
      %2564 = vmatprep.subr.bf16.mxu0 0
      %2565 = vmatpush1.bf16.msra.mxu0 %v1934
      %2566 = vmatprep.subr.bf16.mxu0 0
      %2567 = vmatpush1.bf16.msra.mxu0 %v1933
      %2568 = vmatprep.subr.bf16.mxu0 0
      %2569 = vmatpush1.bf16.msra.mxu0 %v1932
      %2570 = vmatprep.subr.bf16.mxu0 0
      %2571 = vmatpush1.bf16.msra.mxu0 %v1931
      %2572 = vmatprep.subr.bf16.mxu0 0
      %2573 = vmatpush1.bf16.msra.mxu0 %v1930
      %2574 = vmatprep.subr.bf16.mxu0 0
      %2575 = vmatpush1.bf16.msra.mxu0 %v1929
      %2576 = vmatprep.subr.bf16.mxu0 0
      %2577 = vmatpush2.bf16.msra.mxu0 %v1944
      %2578 = vmatprep.subr.bf16.mxu0 0
      %2579 = vmatpush2.bf16.msra.mxu0 %v1943
      %2580 = vmatprep.subr.bf16.mxu0 0
      %2581 = vmatpush2.bf16.msra.mxu0 %v1942
      %2582 = vmatprep.subr.bf16.mxu0 0
      %2583 = vmatpush2.bf16.msra.mxu0 %v1941
      %2584 = vmatprep.subr.bf16.mxu0 0
      %2585 = vmatpush2.bf16.msra.mxu0 %v1940
      %2586 = vmatprep.subr.bf16.mxu0 0
      %2587 = vmatpush2.bf16.msra.mxu0 %v1939
      %2588 = vmatprep.subr.bf16.mxu0 0
      %2589 = vmatpush2.bf16.msra.mxu0 %v1938
      %2590 = vmatprep.subr.bf16.mxu0 0
      %2591 = vmatpush2.bf16.msra.mxu0 %v1937
      %2592 = vmatprep.mubr.bf16.mxu0 %v932
      %2593 = vmatmul.mubr.bf16.gmra.mxu0 %v931
      %v2594 = vpop.f32.mrf.mxu0
      %v2595 = vadd.f32 %v2546, %v2594
      %v2596 = vpop.f32.mrf.mxu0
      %v2597 = vpop.f32.mrf.mxu0
      %v2598 = vadd.f32 %v2549, %v2597
      %v2599 = vpop.f32.mrf.mxu0
      %2600 = vmatprep.mubr.bf16.mxu0 %v957
      %2601 = vmatmul.mubr.bf16.gmra.mxu0 %v956
      %v2602 = vpop.f32.mrf.mxu0
      %v2603 = vadd.f32 %v2554, %v2602
      %v2604 = vpop.f32.mrf.mxu0
      %v2605 = vpop.f32.mrf.mxu0
      %v2606 = vadd.f32 %v2557, %v2605
      %v2607 = vpop.f32.mrf.mxu0
      %2608 = vdwg.mxu0
      %2609 = vmatprep.subr.bf16.mxu0 0
      %2610 = vmatpush1.bf16.msra.mxu0 %v1952
      %2611 = vmatprep.subr.bf16.mxu0 0
      %2612 = vmatpush1.bf16.msra.mxu0 %v1951
      %2613 = vmatprep.subr.bf16.mxu0 0
      %2614 = vmatpush1.bf16.msra.mxu0 %v1950
      %2615 = vmatprep.subr.bf16.mxu0 0
      %2616 = vmatpush1.bf16.msra.mxu0 %v1949
      %2617 = vmatprep.subr.bf16.mxu0 0
      %2618 = vmatpush1.bf16.msra.mxu0 %v1948
      %2619 = vmatprep.subr.bf16.mxu0 0
      %2620 = vmatpush1.bf16.msra.mxu0 %v1947
      %2621 = vmatprep.subr.bf16.mxu0 0
      %2622 = vmatpush1.bf16.msra.mxu0 %v1946
      %2623 = vmatprep.subr.bf16.mxu0 0
      %2624 = vmatpush1.bf16.msra.mxu0 %v1945
      %2625 = vmatprep.subr.bf16.mxu0 0
      %2626 = vmatpush2.bf16.msra.mxu0 %v1960
      %2627 = vmatprep.subr.bf16.mxu0 0
      %2628 = vmatpush2.bf16.msra.mxu0 %v1959
      %2629 = vmatprep.subr.bf16.mxu0 0
      %2630 = vmatpush2.bf16.msra.mxu0 %v1958
      %2631 = vmatprep.subr.bf16.mxu0 0
      %2632 = vmatpush2.bf16.msra.mxu0 %v1957
      %2633 = vmatprep.subr.bf16.mxu0 0
      %2634 = vmatpush2.bf16.msra.mxu0 %v1956
      %2635 = vmatprep.subr.bf16.mxu0 0
      %2636 = vmatpush2.bf16.msra.mxu0 %v1955
      %2637 = vmatprep.subr.bf16.mxu0 0
      %2638 = vmatpush2.bf16.msra.mxu0 %v1954
      %2639 = vmatprep.subr.bf16.mxu0 0
      %2640 = vmatpush2.bf16.msra.mxu0 %v1953
      %2641 = vmatprep.mubr.bf16.mxu0 %v934
      %2642 = vmatmul.mubr.bf16.gmra.mxu0 %v933
      %v2643 = vpop.f32.mrf.mxu0
      %v2644 = vadd.f32 %v2595, %v2643
      %v2645 = vpop.f32.mrf.mxu0
      %v2646 = vpop.f32.mrf.mxu0
      %v2647 = vadd.f32 %v2598, %v2646
      %v2648 = vpop.f32.mrf.mxu0
      %2649 = vmatprep.mubr.bf16.mxu0 %v959
      %2650 = vmatmul.mubr.bf16.gmra.mxu0 %v958
      %v2651 = vpop.f32.mrf.mxu0
      %v2652 = vadd.f32 %v2603, %v2651
      %v2653 = vpop.f32.mrf.mxu0
      %v2654 = vpop.f32.mrf.mxu0
      %v2655 = vadd.f32 %v2606, %v2654
      %v2656 = vpop.f32.mrf.mxu0
      %2657 = vdwg.mxu0
      %2658 = vmatprep.subr.bf16.mxu0 0
      %2659 = vmatpush1.bf16.msra.mxu0 %v1968
      %2660 = vmatprep.subr.bf16.mxu0 0
      %2661 = vmatpush1.bf16.msra.mxu0 %v1967
      %2662 = vmatprep.subr.bf16.mxu0 0
      %2663 = vmatpush1.bf16.msra.mxu0 %v1966
      %2664 = vmatprep.subr.bf16.mxu0 0
      %2665 = vmatpush1.bf16.msra.mxu0 %v1965
      %2666 = vmatprep.subr.bf16.mxu0 0
      %2667 = vmatpush1.bf16.msra.mxu0 %v1964
      %2668 = vmatprep.subr.bf16.mxu0 0
      %2669 = vmatpush1.bf16.msra.mxu0 %v1963
      %2670 = vmatprep.subr.bf16.mxu0 0
      %2671 = vmatpush1.bf16.msra.mxu0 %v1962
      %2672 = vmatprep.subr.bf16.mxu0 0
      %2673 = vmatpush1.bf16.msra.mxu0 %v1961
      %2674 = vmatprep.subr.bf16.mxu0 0
      %2675 = vmatpush2.bf16.msra.mxu0 %v1976
      %2676 = vmatprep.subr.bf16.mxu0 0
      %2677 = vmatpush2.bf16.msra.mxu0 %v1975
      %2678 = vmatprep.subr.bf16.mxu0 0
      %2679 = vmatpush2.bf16.msra.mxu0 %v1974
      %2680 = vmatprep.subr.bf16.mxu0 0
      %2681 = vmatpush2.bf16.msra.mxu0 %v1973
      %2682 = vmatprep.subr.bf16.mxu0 0
      %2683 = vmatpush2.bf16.msra.mxu0 %v1972
      %2684 = vmatprep.subr.bf16.mxu0 0
      %2685 = vmatpush2.bf16.msra.mxu0 %v1971
      %2686 = vmatprep.subr.bf16.mxu0 0
      %2687 = vmatpush2.bf16.msra.mxu0 %v1970
      %2688 = vmatprep.subr.bf16.mxu0 0
      %2689 = vmatpush2.bf16.msra.mxu0 %v1969
      %2690 = vmatprep.mubr.bf16.mxu0 %v936
      %2691 = vmatmul.mubr.bf16.gmra.mxu0 %v935
      %v2692 = vpop.f32.mrf.mxu0
      %v2693 = vadd.f32 %v2644, %v2692
      %v2694 = vpop.f32.mrf.mxu0
      %v2695 = vpop.f32.mrf.mxu0
      %v2696 = vadd.f32 %v2647, %v2695
      %v2697 = vpop.f32.mrf.mxu0
      %2698 = vmatprep.mubr.bf16.mxu0 %v961
      %2699 = vmatmul.mubr.bf16.gmra.mxu0 %v960
      %v2700 = vpop.f32.mrf.mxu0
      %v2701 = vadd.f32 %v2652, %v2700
      %v2702 = vpop.f32.mrf.mxu0
      %v2703 = vpop.f32.mrf.mxu0
      %v2704 = vadd.f32 %v2655, %v2703
      %v2705 = vpop.f32.mrf.mxu0
      %2706 = vdwg.mxu0
      %2707 = vmatprep.subr.bf16.mxu0 0
      %2708 = vmatpush1.bf16.msra.mxu0 %v1984
      %2709 = vmatprep.subr.bf16.mxu0 0
      %2710 = vmatpush1.bf16.msra.mxu0 %v1983
      %2711 = vmatprep.subr.bf16.mxu0 0
      %2712 = vmatpush1.bf16.msra.mxu0 %v1982
      %2713 = vmatprep.subr.bf16.mxu0 0
      %2714 = vmatpush1.bf16.msra.mxu0 %v1981
      %2715 = vmatprep.subr.bf16.mxu0 0
      %2716 = vmatpush1.bf16.msra.mxu0 %v1980
      %2717 = vmatprep.subr.bf16.mxu0 0
      %2718 = vmatpush1.bf16.msra.mxu0 %v1979
      %2719 = vmatprep.subr.bf16.mxu0 0
      %2720 = vmatpush1.bf16.msra.mxu0 %v1978
      %2721 = vmatprep.subr.bf16.mxu0 0
      %2722 = vmatpush1.bf16.msra.mxu0 %v1977
      %2723 = vmatprep.subr.bf16.mxu0 0
      %2724 = vmatpush2.bf16.msra.mxu0 %v1992
      %2725 = vmatprep.subr.bf16.mxu0 0
      %2726 = vmatpush2.bf16.msra.mxu0 %v1991
      %2727 = vmatprep.subr.bf16.mxu0 0
      %2728 = vmatpush2.bf16.msra.mxu0 %v1990
      %2729 = vmatprep.subr.bf16.mxu0 0
      %2730 = vmatpush2.bf16.msra.mxu0 %v1989
      %2731 = vmatprep.subr.bf16.mxu0 0
      %2732 = vmatpush2.bf16.msra.mxu0 %v1988
      %2733 = vmatprep.subr.bf16.mxu0 0
      %2734 = vmatpush2.bf16.msra.mxu0 %v1987
      %2735 = vmatprep.subr.bf16.mxu0 0
      %2736 = vmatpush2.bf16.msra.mxu0 %v1986
      %2737 = vmatprep.subr.bf16.mxu0 0
      %2738 = vmatpush2.bf16.msra.mxu0 %v1985
      %2739 = vmatprep.mubr.bf16.mxu0 %v938
      %2740 = vmatmul.mubr.bf16.gmra.mxu0 %v937
      %v2741 = vpop.f32.mrf.mxu0
      %v2742 = vadd.f32 %v2693, %v2741
      %v2743 = vpop.f32.mrf.mxu0
      %v2744 = vpop.f32.mrf.mxu0
      %v2745 = vadd.f32 %v2696, %v2744
      %v2746 = vpop.f32.mrf.mxu0
      %2747 = vmatprep.mubr.bf16.mxu0 %v963
      %2748 = vmatmul.mubr.bf16.gmra.mxu0 %v962
      %v2749 = vpop.f32.mrf.mxu0
      %v2750 = vadd.f32 %v2701, %v2749
      %v2751 = vpop.f32.mrf.mxu0
      %v2752 = vpop.f32.mrf.mxu0
      %v2753 = vadd.f32 %v2704, %v2752
      %v2754 = vpop.f32.mrf.mxu0
      %2755 = vdwg.mxu0
      %2756 = vmatprep.subr.bf16.mxu0 0
      %2757 = vmatpush1.bf16.msra.mxu0 %v2000
      %2758 = vmatprep.subr.bf16.mxu0 0
      %2759 = vmatpush1.bf16.msra.mxu0 %v1999
      %2760 = vmatprep.subr.bf16.mxu0 0
      %2761 = vmatpush1.bf16.msra.mxu0 %v1998
      %2762 = vmatprep.subr.bf16.mxu0 0
      %2763 = vmatpush1.bf16.msra.mxu0 %v1997
      %2764 = vmatprep.subr.bf16.mxu0 0
      %2765 = vmatpush1.bf16.msra.mxu0 %v1996
      %2766 = vmatprep.subr.bf16.mxu0 0
      %2767 = vmatpush1.bf16.msra.mxu0 %v1995
      %2768 = vmatprep.subr.bf16.mxu0 0
      %2769 = vmatpush1.bf16.msra.mxu0 %v1994
      %2770 = vmatprep.subr.bf16.mxu0 0
      %2771 = vmatpush1.bf16.msra.mxu0 %v1993
      %2772 = vmatprep.subr.bf16.mxu0 0
      %2773 = vmatpush2.bf16.msra.mxu0 %v2008
      %2774 = vmatprep.subr.bf16.mxu0 0
      %2775 = vmatpush2.bf16.msra.mxu0 %v2007
      %2776 = vmatprep.subr.bf16.mxu0 0
      %2777 = vmatpush2.bf16.msra.mxu0 %v2006
      %2778 = vmatprep.subr.bf16.mxu0 0
      %2779 = vmatpush2.bf16.msra.mxu0 %v2005
      %2780 = vmatprep.subr.bf16.mxu0 0
      %2781 = vmatpush2.bf16.msra.mxu0 %v2004
      %2782 = vmatprep.subr.bf16.mxu0 0
      %2783 = vmatpush2.bf16.msra.mxu0 %v2003
      %2784 = vmatprep.subr.bf16.mxu0 0
      %2785 = vmatpush2.bf16.msra.mxu0 %v2002
      %2786 = vmatprep.subr.bf16.mxu0 0
      %2787 = vmatpush2.bf16.msra.mxu0 %v2001
      %2788 = vmatprep.mubr.bf16.mxu0 %v940
      %2789 = vmatmul.mubr.bf16.gmra.mxu0 %v939
      %v2790 = vpop.f32.mrf.mxu0
      %v2791 = vadd.f32 %v2742, %v2790
      %v2792 = vpop.f32.mrf.mxu0
      %v2793 = vpop.f32.mrf.mxu0
      %v2794 = vadd.f32 %v2745, %v2793
      %v2795 = vpop.f32.mrf.mxu0
      %2796 = vmatprep.mubr.bf16.mxu0 %v965
      %2797 = vmatmul.mubr.bf16.gmra.mxu0 %v964
      %v2798 = vpop.f32.mrf.mxu0
      %v2799 = vadd.f32 %v2750, %v2798
      %v2800 = vpop.f32.mrf.mxu0
      %v2801 = vpop.f32.mrf.mxu0
      %v2802 = vadd.f32 %v2753, %v2801
      %v2803 = vpop.f32.mrf.mxu0
      %2804 = vdwg.mxu0
      %2805 = vmatprep.subr.bf16.mxu0 0
      %2806 = vmatpush1.bf16.msra.mxu0 %v2016
      %2807 = vmatprep.subr.bf16.mxu0 0
      %2808 = vmatpush1.bf16.msra.mxu0 %v2015
      %2809 = vmatprep.subr.bf16.mxu0 0
      %2810 = vmatpush1.bf16.msra.mxu0 %v2014
      %2811 = vmatprep.subr.bf16.mxu0 0
      %2812 = vmatpush1.bf16.msra.mxu0 %v2013
      %2813 = vmatprep.subr.bf16.mxu0 0
      %2814 = vmatpush1.bf16.msra.mxu0 %v2012
      %2815 = vmatprep.subr.bf16.mxu0 0
      %2816 = vmatpush1.bf16.msra.mxu0 %v2011
      %2817 = vmatprep.subr.bf16.mxu0 0
      %2818 = vmatpush1.bf16.msra.mxu0 %v2010
      %2819 = vmatprep.subr.bf16.mxu0 0
      %2820 = vmatpush1.bf16.msra.mxu0 %v2009
      %2821 = vmatprep.subr.bf16.mxu0 0
      %2822 = vmatpush2.bf16.msra.mxu0 0
      %2823 = vmatprep.subr.bf16.mxu0 0
      %2824 = vmatpush2.bf16.msra.mxu0 0
      %2825 = vmatprep.subr.bf16.mxu0 0
      %2826 = vmatpush2.bf16.msra.mxu0 0
      %2827 = vmatprep.subr.bf16.mxu0 0
      %2828 = vmatpush2.bf16.msra.mxu0 0
      %2829 = vmatprep.subr.bf16.mxu0 0
      %2830 = vmatpush2.bf16.msra.mxu0 0
      %2831 = vmatprep.subr.bf16.mxu0 0
      %2832 = vmatpush2.bf16.msra.mxu0 0
      %2833 = vmatprep.subr.bf16.mxu0 0
      %2834 = vmatpush2.bf16.msra.mxu0 0
      %2835 = vmatprep.subr.bf16.mxu0 0
      %2836 = vmatpush2.bf16.msra.mxu0 0
      %2837 = vmatprep.mubr.bf16.mxu0 0
      %2838 = vmatmul.mubr.bf16.gmra.mxu0 %v941
      %v2839 = vpop.f32.mrf.mxu0
      %v2840 = vadd.f32 %v2791, %v2839
      %v2841 = vpop.f32.mrf.mxu0
      %v2842 = vpop.f32.mrf.mxu0
      %v2843 = vadd.f32 %v2794, %v2842
      %v2844 = vpop.f32.mrf.mxu0
      %2845 = vmatprep.mubr.bf16.mxu0 0
      %2846 = vmatmul.mubr.bf16.gmra.mxu0 %v966
      %v2847 = vpop.f32.mrf.mxu0
      %v2848 = vadd.f32 %v2799, %v2847
      %v2849 = vpop.f32.mrf.mxu0
      %v2850 = vpop.f32.mrf.mxu0
      %v2851 = vadd.f32 %v2802, %v2850
      %v2852 = vpop.f32.mrf.mxu0
      %2853 = vdwg.mxu0
      %v2854 = vld [vmem:[%s296] sm:$0xff]
      %v2855 = vld [vmem:[%s296 + $0x8] sm:$0xff]
      %v2856 = vld [vmem:[%s296 + $0x10] sm:$0xff]
      %v2857 = vld [vmem:[%s296 + $0x18] sm:$0xff]
      %v2858 = vld [vmem:[%s296 + $0x20] sm:$0xff]
      %v2859 = vld [vmem:[%s296 + $0x28] sm:$0xff]
      %v2860 = vld [vmem:[%s296 + $0x30] sm:$0xff]
      %v2861 = vld [vmem:[%s296 + $0x38] sm:$0xff]
      %v2862 = vld [vmem:[%s296 + $0x40] sm:$0xff]
      %v2863 = vld [vmem:[%s296 + $0x48] sm:$0xff]
      %v2864 = vld [vmem:[%s296 + $0x50] sm:$0xff]
      %v2865 = vld [vmem:[%s296 + $0x58] sm:$0xff]
      %v2866 = vld [vmem:[%s296 + $0x60] sm:$0xf]
      %v2867 = vld [vmem:[%s296 + $0x64] sm:$0xff]
      %v2868 = vld [vmem:[%s296 + $0x6c] sm:$0xff]
      %v2869 = vld [vmem:[%s296 + $0x74] sm:$0xff]
      %v2870 = vld [vmem:[%s296 + $0x7c] sm:$0xff]
      %v2871 = vld [vmem:[%s296 + $0x84] sm:$0xff]
      %v2872 = vld [vmem:[%s296 + $0x8c] sm:$0xff]
      %v2873 = vld [vmem:[%s296 + $0x94] sm:$0xff]
      %v2874 = vld [vmem:[%s296 + $0x9c] sm:$0xff]
      %v2875 = vld [vmem:[%s296 + $0xa4] sm:$0xff]
      %v2876 = vld [vmem:[%s296 + $0xac] sm:$0xff]
      %v2877 = vld [vmem:[%s296 + $0xb4] sm:$0xff]
      %v2878 = vld [vmem:[%s296 + $0xbc] sm:$0xff]
      %v2879 = vld [vmem:[%s296 + $0xc4] sm:$0xf]
      %v2880 = vld [vmem:[%s296 + $0xc8] sm:$0xff]
      %v2881 = vld [vmem:[%s296 + $0xd0] sm:$0xff]
      %v2882 = vld [vmem:[%s296 + $0xd8] sm:$0xff]
      %v2883 = vld [vmem:[%s296 + $0xe0] sm:$0xff]
      %v2884 = vld [vmem:[%s296 + $0xe8] sm:$0xff]
      %v2885 = vld [vmem:[%s296 + $0xf0] sm:$0xff]
      %v2886 = vld [vmem:[%s296 + $0xf8] sm:$0xff]
      %v2887 = vld [vmem:[%s296 + $0x100] sm:$0xff]
      %v2888 = vld [vmem:[%s296 + $0x108] sm:$0xff]
      %v2889 = vld [vmem:[%s296 + $0x110] sm:$0xff]
      %v2890 = vld [vmem:[%s296 + $0x118] sm:$0xff]
      %v2891 = vld [vmem:[%s296 + $0x120] sm:$0xff]
      %v2892 = vld [vmem:[%s296 + $0x128] sm:$0xf]
      %v2893 = vld [vmem:[%s296 + $0x12c] sm:$0x11]
      %v2894 = vld [vmem:[%s296 + $0x134] sm:$0x11]
      %v2895 = vld [vmem:[%s296 + $0x13c] sm:$0x11]
      %v2896 = vld [vmem:[%s296 + $0x144] sm:$0x11]
      %v2897 = vld [vmem:[%s296 + $0x14c] sm:$0x11]
      %v2898 = vld [vmem:[%s296 + $0x154] sm:$0x11]
      %v2899 = vld [vmem:[%s296 + $0x15c] sm:$0x11]
      %v2900 = vld [vmem:[%s296 + $0x164] sm:$0x11]
      %v2901 = vld [vmem:[%s296 + $0x16c] sm:$0x11]
      %v2902 = vld [vmem:[%s296 + $0x174] sm:$0x11]
      %v2903 = vld [vmem:[%s296 + $0x17c] sm:$0x11]
      %v2904 = vld [vmem:[%s296 + $0x184] sm:$0x11]
      %v2905 = vld [vmem:[%s296 + $0x18c] sm:$0x1]
      %v2958 = vunpack.c.l.b16 %v2854
      %v2959 = vunpack.c.h.b16 %v2854
      %v2960 = vunpack.c.l.b16 %v2855
      %v2961 = vunpack.c.h.b16 %v2855
      %v2962 = vunpack.c.l.b16 %v2856
      %v2963 = vunpack.c.h.b16 %v2856
      %v2964 = vunpack.c.l.b16 %v2857
      %v2965 = vunpack.c.h.b16 %v2857
      %v2966 = vunpack.c.l.b16 %v2858
      %v2967 = vunpack.c.h.b16 %v2858
      %v2968 = vunpack.c.l.b16 %v2859
      %v2969 = vunpack.c.h.b16 %v2859
      %v2970 = vunpack.c.l.b16 %v2860
      %v2971 = vunpack.c.h.b16 %v2860
      %v2972 = vunpack.c.l.b16 %v2861
      %v2973 = vunpack.c.h.b16 %v2861
      %v2974 = vunpack.c.l.b16 %v2862
      %v2975 = vunpack.c.h.b16 %v2862
      %v2976 = vunpack.c.l.b16 %v2863
      %v2977 = vunpack.c.h.b16 %v2863
      %v2978 = vunpack.c.l.b16 %v2864
      %v2979 = vunpack.c.h.b16 %v2864
      %v2980 = vunpack.c.l.b16 %v2865
      %v2981 = vunpack.c.h.b16 %v2865
      %v2982 = vunpack.c.l.b16 %v2866
      %v2983 = vunpack.c.l.b16 %v2867
      %v2984 = vunpack.c.h.b16 %v2867
      %v2985 = vunpack.c.l.b16 %v2868
      %v2986 = vunpack.c.h.b16 %v2868
      %v2987 = vunpack.c.l.b16 %v2869
      %v2988 = vunpack.c.h.b16 %v2869
      %v2989 = vunpack.c.l.b16 %v2870
      %v2990 = vunpack.c.h.b16 %v2870
      %v2991 = vunpack.c.l.b16 %v2871
      %v2992 = vunpack.c.h.b16 %v2871
      %v2993 = vunpack.c.l.b16 %v2872
      %v2994 = vunpack.c.h.b16 %v2872
      %v2995 = vunpack.c.l.b16 %v2873
      %v2996 = vunpack.c.h.b16 %v2873
      %v2997 = vunpack.c.l.b16 %v2874
      %v2998 = vunpack.c.h.b16 %v2874
      %v2999 = vunpack.c.l.b16 %v2875
      %v3000 = vunpack.c.h.b16 %v2875
      %v3001 = vunpack.c.l.b16 %v2876
      %v3002 = vunpack.c.h.b16 %v2876
      %v3003 = vunpack.c.l.b16 %v2877
      %v3004 = vunpack.c.h.b16 %v2877
      %v3005 = vunpack.c.l.b16 %v2878
      %v3006 = vunpack.c.h.b16 %v2878
      %v3007 = vunpack.c.l.b16 %v2879
      %v3008 = vunpack.c.l.b16 %v2880
      %v3009 = vunpack.c.h.b16 %v2880
      %v3010 = vunpack.c.l.b16 %v2881
      %v3011 = vunpack.c.h.b16 %v2881
      %v3012 = vunpack.c.l.b16 %v2882
      %v3013 = vunpack.c.h.b16 %v2882
      %v3014 = vunpack.c.l.b16 %v2883
      %v3015 = vunpack.c.h.b16 %v2883
      %v3016 = vunpack.c.l.b16 %v2884
      %v3017 = vunpack.c.h.b16 %v2884
      %v3018 = vunpack.c.l.b16 %v2885
      %v3019 = vunpack.c.h.b16 %v2885
      %v3020 = vunpack.c.l.b16 %v2886
      %v3021 = vunpack.c.h.b16 %v2886
      %v3022 = vunpack.c.l.b16 %v2887
      %v3023 = vunpack.c.h.b16 %v2887
      %v3024 = vunpack.c.l.b16 %v2888
      %v3025 = vunpack.c.h.b16 %v2888
      %v3026 = vunpack.c.l.b16 %v2889
      %v3027 = vunpack.c.h.b16 %v2889
      %v3028 = vunpack.c.l.b16 %v2890
      %v3029 = vunpack.c.h.b16 %v2890
      %v3030 = vunpack.c.l.b16 %v2891
      %v3031 = vunpack.c.h.b16 %v2891
      %v3032 = vunpack.c.l.b16 %v2892
      %v3033 = vunpack.c.l.b16 %v2893
      %v3034 = vunpack.c.h.b16 %v2893
      %v3035 = vunpack.c.l.b16 %v2894
      %v3036 = vunpack.c.h.b16 %v2894
      %v3037 = vunpack.c.l.b16 %v2895
      %v3038 = vunpack.c.h.b16 %v2895
      %v3039 = vunpack.c.l.b16 %v2896
      %v3040 = vunpack.c.h.b16 %v2896
      %v3041 = vunpack.c.l.b16 %v2897
      %v3042 = vunpack.c.h.b16 %v2897
      %v3043 = vunpack.c.l.b16 %v2898
      %v3044 = vunpack.c.h.b16 %v2898
      %v3045 = vunpack.c.l.b16 %v2899
      %v3046 = vunpack.c.h.b16 %v2899
      %v3047 = vunpack.c.l.b16 %v2900
      %v3048 = vunpack.c.h.b16 %v2900
      %v3049 = vunpack.c.l.b16 %v2901
      %v3050 = vunpack.c.h.b16 %v2901
      %v3051 = vunpack.c.l.b16 %v2902
      %v3052 = vunpack.c.h.b16 %v2902
      %v3053 = vunpack.c.l.b16 %v2903
      %v3054 = vunpack.c.h.b16 %v2903
      %v3055 = vunpack.c.l.b16 %v2904
      %v3056 = vunpack.c.h.b16 %v2904
      %v3057 = vunpack.c.l.b16 %v2905
      %v3058 = vpack.c.b16 %v2983, %v2958
      %v3059 = vpack.c.b16 %v2984, %v2959
      %v3060 = vpack.c.b16 %v2985, %v2960
      %v3061 = vpack.c.b16 %v2986, %v2961
      %v3062 = vpack.c.b16 %v2987, %v2962
      %v3063 = vpack.c.b16 %v2988, %v2963
      %v3064 = vpack.c.b16 %v2989, %v2964
      %v3065 = vpack.c.b16 %v2990, %v2965
      %v3066 = vpack.c.b16 %v2991, %v2966
      %v3067 = vpack.c.b16 %v2992, %v2967
      %v3068 = vpack.c.b16 %v2993, %v2968
      %v3069 = vpack.c.b16 %v2994, %v2969
      %v3070 = vpack.c.b16 %v2995, %v2970
      %v3071 = vpack.c.b16 %v2996, %v2971
      %v3072 = vpack.c.b16 %v2997, %v2972
      %v3073 = vpack.c.b16 %v2998, %v2973
      %v3074 = vpack.c.b16 %v2999, %v2974
      %v3075 = vpack.c.b16 %v3000, %v2975
      %v3076 = vpack.c.b16 %v3001, %v2976
      %v3077 = vpack.c.b16 %v3002, %v2977
      %v3078 = vpack.c.b16 %v3003, %v2978
      %v3079 = vpack.c.b16 %v3004, %v2979
      %v3080 = vpack.c.b16 %v3005, %v2980
      %v3081 = vpack.c.b16 %v3006, %v2981
      %v3082 = vpack.c.b16 %v3007, %v2982
      %v3083 = vpack.c.b16 %v3033, %v3008
      %v3084 = vpack.c.b16 %v3034, %v3009
      %v3085 = vpack.c.b16 %v3035, %v3010
      %v3086 = vpack.c.b16 %v3036, %v3011
      %v3087 = vpack.c.b16 %v3037, %v3012
      %v3088 = vpack.c.b16 %v3038, %v3013
      %v3089 = vpack.c.b16 %v3039, %v3014
      %v3090 = vpack.c.b16 %v3040, %v3015
      %v3091 = vpack.c.b16 %v3041, %v3016
      %v3092 = vpack.c.b16 %v3042, %v3017
      %v3093 = vpack.c.b16 %v3043, %v3018
      %v3094 = vpack.c.b16 %v3044, %v3019
      %v3095 = vpack.c.b16 %v3045, %v3020
      %v3096 = vpack.c.b16 %v3046, %v3021
      %v3097 = vpack.c.b16 %v3047, %v3022
      %v3098 = vpack.c.b16 %v3048, %v3023
      %v3099 = vpack.c.b16 %v3049, %v3024
      %v3100 = vpack.c.b16 %v3050, %v3025
      %v3101 = vpack.c.b16 %v3051, %v3026
      %v3102 = vpack.c.b16 %v3052, %v3027
      %v3103 = vpack.c.b16 %v3053, %v3028
      %v3104 = vpack.c.b16 %v3054, %v3029
      %v3105 = vpack.c.b16 %v3055, %v3030
      %v3106 = vpack.c.b16 %v3056, %v3031
      %v3107 = vpack.c.b16 %v3057, %v3032
      %3158 = vmatprep.subr.bf16.mxu0 0
      %3159 = vmatpush1.bf16.msra.mxu0 %v1824
      %3160 = vmatprep.subr.bf16.mxu0 0
      %3161 = vmatpush1.bf16.msra.mxu0 %v1823
      %3162 = vmatprep.subr.bf16.mxu0 0
      %3163 = vmatpush1.bf16.msra.mxu0 %v1822
      %3164 = vmatprep.subr.bf16.mxu0 0
      %3165 = vmatpush1.bf16.msra.mxu0 %v1821
      %3166 = vmatprep.subr.bf16.mxu0 0
      %3167 = vmatpush1.bf16.msra.mxu0 %v1820
      %3168 = vmatprep.subr.bf16.mxu0 0
      %3169 = vmatpush1.bf16.msra.mxu0 %v1819
      %3170 = vmatprep.subr.bf16.mxu0 0
      %3171 = vmatpush1.bf16.msra.mxu0 %v1818
      %3172 = vmatprep.subr.bf16.mxu0 0
      %3173 = vmatpush1.bf16.msra.mxu0 %v1817
      %3174 = vmatprep.subr.bf16.mxu0 0
      %3175 = vmatpush2.bf16.msra.mxu0 %v1832
      %3176 = vmatprep.subr.bf16.mxu0 0
      %3177 = vmatpush2.bf16.msra.mxu0 %v1831
      %3178 = vmatprep.subr.bf16.mxu0 0
      %3179 = vmatpush2.bf16.msra.mxu0 %v1830
      %3180 = vmatprep.subr.bf16.mxu0 0
      %3181 = vmatpush2.bf16.msra.mxu0 %v1829
      %3182 = vmatprep.subr.bf16.mxu0 0
      %3183 = vmatpush2.bf16.msra.mxu0 %v1828
      %3184 = vmatprep.subr.bf16.mxu0 0
      %3185 = vmatpush2.bf16.msra.mxu0 %v1827
      %3186 = vmatprep.subr.bf16.mxu0 0
      %3187 = vmatpush2.bf16.msra.mxu0 %v1826
      %3188 = vmatprep.subr.bf16.mxu0 0
      %3189 = vmatpush2.bf16.msra.mxu0 %v1825
      %3190 = vmatprep.mubr.bf16.mxu0 %v3059
      %3191 = vmatmul.mubr.bf16.gmra.mxu0 %v3058
      %v3192 = vpop.f32.mrf.mxu0
      %v3193 = vadd.f32 0.0, %v3192
      %v3194 = vpop.f32.mrf.mxu0
      %v3195 = vpop.f32.mrf.mxu0
      %v3196 = vadd.f32 0.0, %v3195
      %v3197 = vpop.f32.mrf.mxu0
      %3198 = vmatprep.mubr.bf16.mxu0 %v3084
      %3199 = vmatmul.mubr.bf16.gmra.mxu0 %v3083
      %v3200 = vpop.f32.mrf.mxu0
      %v3201 = vadd.f32 0.0, %v3200
      %v3202 = vpop.f32.mrf.mxu0
      %v3203 = vpop.f32.mrf.mxu0
      %v3204 = vadd.f32 0.0, %v3203
      %v3205 = vpop.f32.mrf.mxu0
      %3206 = vdwg.mxu0
      %3207 = vmatprep.subr.bf16.mxu0 0
      %3208 = vmatpush1.bf16.msra.mxu0 %v1840
      %3209 = vmatprep.subr.bf16.mxu0 0
      %3210 = vmatpush1.bf16.msra.mxu0 %v1839
      %3211 = vmatprep.subr.bf16.mxu0 0
      %3212 = vmatpush1.bf16.msra.mxu0 %v1838
      %3213 = vmatprep.subr.bf16.mxu0 0
      %3214 = vmatpush1.bf16.msra.mxu0 %v1837
      %3215 = vmatprep.subr.bf16.mxu0 0
      %3216 = vmatpush1.bf16.msra.mxu0 %v1836
      %3217 = vmatprep.subr.bf16.mxu0 0
      %3218 = vmatpush1.bf16.msra.mxu0 %v1835
      %3219 = vmatprep.subr.bf16.mxu0 0
      %3220 = vmatpush1.bf16.msra.mxu0 %v1834
      %3221 = vmatprep.subr.bf16.mxu0 0
      %3222 = vmatpush1.bf16.msra.mxu0 %v1833
      %3223 = vmatprep.subr.bf16.mxu0 0
      %3224 = vmatpush2.bf16.msra.mxu0 %v1848
      %3225 = vmatprep.subr.bf16.mxu0 0
      %3226 = vmatpush2.bf16.msra.mxu0 %v1847
      %3227 = vmatprep.subr.bf16.mxu0 0
      %3228 = vmatpush2.bf16.msra.mxu0 %v1846
      %3229 = vmatprep.subr.bf16.mxu0 0
      %3230 = vmatpush2.bf16.msra.mxu0 %v1845
      %3231 = vmatprep.subr.bf16.mxu0 0
      %3232 = vmatpush2.bf16.msra.mxu0 %v1844
      %3233 = vmatprep.subr.bf16.mxu0 0
      %3234 = vmatpush2.bf16.msra.mxu0 %v1843
      %3235 = vmatprep.subr.bf16.mxu0 0
      %3236 = vmatpush2.bf16.msra.mxu0 %v1842
      %3237 = vmatprep.subr.bf16.mxu0 0
      %3238 = vmatpush2.bf16.msra.mxu0 %v1841
      %3239 = vmatprep.mubr.bf16.mxu0 %v3061
      %3240 = vmatmul.mubr.bf16.gmra.mxu0 %v3060
      %v3241 = vpop.f32.mrf.mxu0
      %v3242 = vadd.f32 %v3193, %v3241
      %v3243 = vpop.f32.mrf.mxu0
      %v3244 = vpop.f32.mrf.mxu0
      %v3245 = vadd.f32 %v3196, %v3244
      %v3246 = vpop.f32.mrf.mxu0
      %3247 = vmatprep.mubr.bf16.mxu0 %v3086
      %3248 = vmatmul.mubr.bf16.gmra.mxu0 %v3085
      %v3249 = vpop.f32.mrf.mxu0
      %v3250 = vadd.f32 %v3201, %v3249
      %v3251 = vpop.f32.mrf.mxu0
      %v3252 = vpop.f32.mrf.mxu0
      %v3253 = vadd.f32 %v3204, %v3252
      %v3254 = vpop.f32.mrf.mxu0
      %3255 = vdwg.mxu0
      %3256 = vmatprep.subr.bf16.mxu0 0
      %3257 = vmatpush1.bf16.msra.mxu0 %v1856
      %3258 = vmatprep.subr.bf16.mxu0 0
      %3259 = vmatpush1.bf16.msra.mxu0 %v1855
      %3260 = vmatprep.subr.bf16.mxu0 0
      %3261 = vmatpush1.bf16.msra.mxu0 %v1854
      %3262 = vmatprep.subr.bf16.mxu0 0
      %3263 = vmatpush1.bf16.msra.mxu0 %v1853
      %3264 = vmatprep.subr.bf16.mxu0 0
      %3265 = vmatpush1.bf16.msra.mxu0 %v1852
      %3266 = vmatprep.subr.bf16.mxu0 0
      %3267 = vmatpush1.bf16.msra.mxu0 %v1851
      %3268 = vmatprep.subr.bf16.mxu0 0
      %3269 = vmatpush1.bf16.msra.mxu0 %v1850
      %3270 = vmatprep.subr.bf16.mxu0 0
      %3271 = vmatpush1.bf16.msra.mxu0 %v1849
      %3272 = vmatprep.subr.bf16.mxu0 0
      %3273 = vmatpush2.bf16.msra.mxu0 %v1864
      %3274 = vmatprep.subr.bf16.mxu0 0
      %3275 = vmatpush2.bf16.msra.mxu0 %v1863
      %3276 = vmatprep.subr.bf16.mxu0 0
      %3277 = vmatpush2.bf16.msra.mxu0 %v1862
      %3278 = vmatprep.subr.bf16.mxu0 0
      %3279 = vmatpush2.bf16.msra.mxu0 %v1861
      %3280 = vmatprep.subr.bf16.mxu0 0
      %3281 = vmatpush2.bf16.msra.mxu0 %v1860
      %3282 = vmatprep.subr.bf16.mxu0 0
      %3283 = vmatpush2.bf16.msra.mxu0 %v1859
      %3284 = vmatprep.subr.bf16.mxu0 0
      %3285 = vmatpush2.bf16.msra.mxu0 %v1858
      %3286 = vmatprep.subr.bf16.mxu0 0
      %3287 = vmatpush2.bf16.msra.mxu0 %v1857
      %3288 = vmatprep.mubr.bf16.mxu0 %v3063
      %3289 = vmatmul.mubr.bf16.gmra.mxu0 %v3062
      %v3290 = vpop.f32.mrf.mxu0
      %v3291 = vadd.f32 %v3242, %v3290
      %v3292 = vpop.f32.mrf.mxu0
      %v3293 = vpop.f32.mrf.mxu0
      %v3294 = vadd.f32 %v3245, %v3293
      %v3295 = vpop.f32.mrf.mxu0
      %3296 = vmatprep.mubr.bf16.mxu0 %v3088
      %3297 = vmatmul.mubr.bf16.gmra.mxu0 %v3087
      %v3298 = vpop.f32.mrf.mxu0
      %v3299 = vadd.f32 %v3250, %v3298
      %v3300 = vpop.f32.mrf.mxu0
      %v3301 = vpop.f32.mrf.mxu0
      %v3302 = vadd.f32 %v3253, %v3301
      %v3303 = vpop.f32.mrf.mxu0
      %3304 = vdwg.mxu0
      %3305 = vmatprep.subr.bf16.mxu0 0
      %3306 = vmatpush1.bf16.msra.mxu0 %v1872
      %3307 = vmatprep.subr.bf16.mxu0 0
      %3308 = vmatpush1.bf16.msra.mxu0 %v1871
      %3309 = vmatprep.subr.bf16.mxu0 0
      %3310 = vmatpush1.bf16.msra.mxu0 %v1870
      %3311 = vmatprep.subr.bf16.mxu0 0
      %3312 = vmatpush1.bf16.msra.mxu0 %v1869
      %3313 = vmatprep.subr.bf16.mxu0 0
      %3314 = vmatpush1.bf16.msra.mxu0 %v1868
      %3315 = vmatprep.subr.bf16.mxu0 0
      %3316 = vmatpush1.bf16.msra.mxu0 %v1867
      %3317 = vmatprep.subr.bf16.mxu0 0
      %3318 = vmatpush1.bf16.msra.mxu0 %v1866
      %3319 = vmatprep.subr.bf16.mxu0 0
      %3320 = vmatpush1.bf16.msra.mxu0 %v1865
      %3321 = vmatprep.subr.bf16.mxu0 0
      %3322 = vmatpush2.bf16.msra.mxu0 %v1880
      %3323 = vmatprep.subr.bf16.mxu0 0
      %3324 = vmatpush2.bf16.msra.mxu0 %v1879
      %3325 = vmatprep.subr.bf16.mxu0 0
      %3326 = vmatpush2.bf16.msra.mxu0 %v1878
      %3327 = vmatprep.subr.bf16.mxu0 0
      %3328 = vmatpush2.bf16.msra.mxu0 %v1877
      %3329 = vmatprep.subr.bf16.mxu0 0
      %3330 = vmatpush2.bf16.msra.mxu0 %v1876
      %3331 = vmatprep.subr.bf16.mxu0 0
      %3332 = vmatpush2.bf16.msra.mxu0 %v1875
      %3333 = vmatprep.subr.bf16.mxu0 0
      %3334 = vmatpush2.bf16.msra.mxu0 %v1874
      %3335 = vmatprep.subr.bf16.mxu0 0
      %3336 = vmatpush2.bf16.msra.mxu0 %v1873
      %3337 = vmatprep.mubr.bf16.mxu0 %v3065
      %3338 = vmatmul.mubr.bf16.gmra.mxu0 %v3064
      %v3339 = vpop.f32.mrf.mxu0
      %v3340 = vadd.f32 %v3291, %v3339
      %v3341 = vpop.f32.mrf.mxu0
      %v3342 = vpop.f32.mrf.mxu0
      %v3343 = vadd.f32 %v3294, %v3342
      %v3344 = vpop.f32.mrf.mxu0
      %3345 = vmatprep.mubr.bf16.mxu0 %v3090
      %3346 = vmatmul.mubr.bf16.gmra.mxu0 %v3089
      %v3347 = vpop.f32.mrf.mxu0
      %v3348 = vadd.f32 %v3299, %v3347
      %v3349 = vpop.f32.mrf.mxu0
      %v3350 = vpop.f32.mrf.mxu0
      %v3351 = vadd.f32 %v3302, %v3350
      %v3352 = vpop.f32.mrf.mxu0
      %3353 = vdwg.mxu0
      %3354 = vmatprep.subr.bf16.mxu0 0
      %3355 = vmatpush1.bf16.msra.mxu0 %v1888
      %3356 = vmatprep.subr.bf16.mxu0 0
      %3357 = vmatpush1.bf16.msra.mxu0 %v1887
      %3358 = vmatprep.subr.bf16.mxu0 0
      %3359 = vmatpush1.bf16.msra.mxu0 %v1886
      %3360 = vmatprep.subr.bf16.mxu0 0
      %3361 = vmatpush1.bf16.msra.mxu0 %v1885
      %3362 = vmatprep.subr.bf16.mxu0 0
      %3363 = vmatpush1.bf16.msra.mxu0 %v1884
      %3364 = vmatprep.subr.bf16.mxu0 0
      %3365 = vmatpush1.bf16.msra.mxu0 %v1883
      %3366 = vmatprep.subr.bf16.mxu0 0
      %3367 = vmatpush1.bf16.msra.mxu0 %v1882
      %3368 = vmatprep.subr.bf16.mxu0 0
      %3369 = vmatpush1.bf16.msra.mxu0 %v1881
      %3370 = vmatprep.subr.bf16.mxu0 0
      %3371 = vmatpush2.bf16.msra.mxu0 %v1896
      %3372 = vmatprep.subr.bf16.mxu0 0
      %3373 = vmatpush2.bf16.msra.mxu0 %v1895
      %3374 = vmatprep.subr.bf16.mxu0 0
      %3375 = vmatpush2.bf16.msra.mxu0 %v1894
      %3376 = vmatprep.subr.bf16.mxu0 0
      %3377 = vmatpush2.bf16.msra.mxu0 %v1893
      %3378 = vmatprep.subr.bf16.mxu0 0
      %3379 = vmatpush2.bf16.msra.mxu0 %v1892
      %3380 = vmatprep.subr.bf16.mxu0 0
      %3381 = vmatpush2.bf16.msra.mxu0 %v1891
      %3382 = vmatprep.subr.bf16.mxu0 0
      %3383 = vmatpush2.bf16.msra.mxu0 %v1890
      %3384 = vmatprep.subr.bf16.mxu0 0
      %3385 = vmatpush2.bf16.msra.mxu0 %v1889
      %3386 = vmatprep.mubr.bf16.mxu0 %v3067
      %3387 = vmatmul.mubr.bf16.gmra.mxu0 %v3066
      %v3388 = vpop.f32.mrf.mxu0
      %v3389 = vadd.f32 %v3340, %v3388
      %v3390 = vpop.f32.mrf.mxu0
      %v3391 = vpop.f32.mrf.mxu0
      %v3392 = vadd.f32 %v3343, %v3391
      %v3393 = vpop.f32.mrf.mxu0
      %3394 = vmatprep.mubr.bf16.mxu0 %v3092
      %3395 = vmatmul.mubr.bf16.gmra.mxu0 %v3091
      %v3396 = vpop.f32.mrf.mxu0
      %v3397 = vadd.f32 %v3348, %v3396
      %v3398 = vpop.f32.mrf.mxu0
      %v3399 = vpop.f32.mrf.mxu0
      %v3400 = vadd.f32 %v3351, %v3399
      %v3401 = vpop.f32.mrf.mxu0
      %3402 = vdwg.mxu0
      %3403 = vmatprep.subr.bf16.mxu0 0
      %3404 = vmatpush1.bf16.msra.mxu0 %v1904
      %3405 = vmatprep.subr.bf16.mxu0 0
      %3406 = vmatpush1.bf16.msra.mxu0 %v1903
      %3407 = vmatprep.subr.bf16.mxu0 0
      %3408 = vmatpush1.bf16.msra.mxu0 %v1902
      %3409 = vmatprep.subr.bf16.mxu0 0
      %3410 = vmatpush1.bf16.msra.mxu0 %v1901
      %3411 = vmatprep.subr.bf16.mxu0 0
      %3412 = vmatpush1.bf16.msra.mxu0 %v1900
      %3413 = vmatprep.subr.bf16.mxu0 0
      %3414 = vmatpush1.bf16.msra.mxu0 %v1899
      %3415 = vmatprep.subr.bf16.mxu0 0
      %3416 = vmatpush1.bf16.msra.mxu0 %v1898
      %3417 = vmatprep.subr.bf16.mxu0 0
      %3418 = vmatpush1.bf16.msra.mxu0 %v1897
      %3419 = vmatprep.subr.bf16.mxu0 0
      %3420 = vmatpush2.bf16.msra.mxu0 %v1912
      %3421 = vmatprep.subr.bf16.mxu0 0
      %3422 = vmatpush2.bf16.msra.mxu0 %v1911
      %3423 = vmatprep.subr.bf16.mxu0 0
      %3424 = vmatpush2.bf16.msra.mxu0 %v1910
      %3425 = vmatprep.subr.bf16.mxu0 0
      %3426 = vmatpush2.bf16.msra.mxu0 %v1909
      %3427 = vmatprep.subr.bf16.mxu0 0
      %3428 = vmatpush2.bf16.msra.mxu0 %v1908
      %3429 = vmatprep.subr.bf16.mxu0 0
      %3430 = vmatpush2.bf16.msra.mxu0 %v1907
      %3431 = vmatprep.subr.bf16.mxu0 0
      %3432 = vmatpush2.bf16.msra.mxu0 %v1906
      %3433 = vmatprep.subr.bf16.mxu0 0
      %3434 = vmatpush2.bf16.msra.mxu0 %v1905
      %3435 = vmatprep.mubr.bf16.mxu0 %v3069
      %3436 = vmatmul.mubr.bf16.gmra.mxu0 %v3068
      %v3437 = vpop.f32.mrf.mxu0
      %v3438 = vadd.f32 %v3389, %v3437
      %v3439 = vpop.f32.mrf.mxu0
      %v3440 = vpop.f32.mrf.mxu0
      %v3441 = vadd.f32 %v3392, %v3440
      %v3442 = vpop.f32.mrf.mxu0
      %3443 = vmatprep.mubr.bf16.mxu0 %v3094
      %3444 = vmatmul.mubr.bf16.gmra.mxu0 %v3093
      %v3445 = vpop.f32.mrf.mxu0
      %v3446 = vadd.f32 %v3397, %v3445
      %v3447 = vpop.f32.mrf.mxu0
      %v3448 = vpop.f32.mrf.mxu0
      %v3449 = vadd.f32 %v3400, %v3448
      %v3450 = vpop.f32.mrf.mxu0
      %3451 = vdwg.mxu0
      %3452 = vmatprep.subr.bf16.mxu0 0
      %3453 = vmatpush1.bf16.msra.mxu0 %v1920
      %3454 = vmatprep.subr.bf16.mxu0 0
      %3455 = vmatpush1.bf16.msra.mxu0 %v1919
      %3456 = vmatprep.subr.bf16.mxu0 0
      %3457 = vmatpush1.bf16.msra.mxu0 %v1918
      %3458 = vmatprep.subr.bf16.mxu0 0
      %3459 = vmatpush1.bf16.msra.mxu0 %v1917
      %3460 = vmatprep.subr.bf16.mxu0 0
      %3461 = vmatpush1.bf16.msra.mxu0 %v1916
      %3462 = vmatprep.subr.bf16.mxu0 0
      %3463 = vmatpush1.bf16.msra.mxu0 %v1915
      %3464 = vmatprep.subr.bf16.mxu0 0
      %3465 = vmatpush1.bf16.msra.mxu0 %v1914
      %3466 = vmatprep.subr.bf16.mxu0 0
      %3467 = vmatpush1.bf16.msra.mxu0 %v1913
      %3468 = vmatprep.subr.bf16.mxu0 0
      %3469 = vmatpush2.bf16.msra.mxu0 %v1928
      %3470 = vmatprep.subr.bf16.mxu0 0
      %3471 = vmatpush2.bf16.msra.mxu0 %v1927
      %3472 = vmatprep.subr.bf16.mxu0 0
      %3473 = vmatpush2.bf16.msra.mxu0 %v1926
      %3474 = vmatprep.subr.bf16.mxu0 0
      %3475 = vmatpush2.bf16.msra.mxu0 %v1925
      %3476 = vmatprep.subr.bf16.mxu0 0
      %3477 = vmatpush2.bf16.msra.mxu0 %v1924
      %3478 = vmatprep.subr.bf16.mxu0 0
      %3479 = vmatpush2.bf16.msra.mxu0 %v1923
      %3480 = vmatprep.subr.bf16.mxu0 0
      %3481 = vmatpush2.bf16.msra.mxu0 %v1922
      %3482 = vmatprep.subr.bf16.mxu0 0
      %3483 = vmatpush2.bf16.msra.mxu0 %v1921
      %3484 = vmatprep.mubr.bf16.mxu0 %v3071
      %3485 = vmatmul.mubr.bf16.gmra.mxu0 %v3070
      %v3486 = vpop.f32.mrf.mxu0
      %v3487 = vadd.f32 %v3438, %v3486
      %v3488 = vpop.f32.mrf.mxu0
      %v3489 = vpop.f32.mrf.mxu0
      %v3490 = vadd.f32 %v3441, %v3489
      %v3491 = vpop.f32.mrf.mxu0
      %3492 = vmatprep.mubr.bf16.mxu0 %v3096
      %3493 = vmatmul.mubr.bf16.gmra.mxu0 %v3095
      %v3494 = vpop.f32.mrf.mxu0
      %v3495 = vadd.f32 %v3446, %v3494
      %v3496 = vpop.f32.mrf.mxu0
      %v3497 = vpop.f32.mrf.mxu0
      %v3498 = vadd.f32 %v3449, %v3497
      %v3499 = vpop.f32.mrf.mxu0
      %3500 = vdwg.mxu0
      %3501 = vmatprep.subr.bf16.mxu0 0
      %3502 = vmatpush1.bf16.msra.mxu0 %v1936
      %3503 = vmatprep.subr.bf16.mxu0 0
      %3504 = vmatpush1.bf16.msra.mxu0 %v1935
      %3505 = vmatprep.subr.bf16.mxu0 0
      %3506 = vmatpush1.bf16.msra.mxu0 %v1934
      %3507 = vmatprep.subr.bf16.mxu0 0
      %3508 = vmatpush1.bf16.msra.mxu0 %v1933
      %3509 = vmatprep.subr.bf16.mxu0 0
      %3510 = vmatpush1.bf16.msra.mxu0 %v1932
      %3511 = vmatprep.subr.bf16.mxu0 0
      %3512 = vmatpush1.bf16.msra.mxu0 %v1931
      %3513 = vmatprep.subr.bf16.mxu0 0
      %3514 = vmatpush1.bf16.msra.mxu0 %v1930
      %3515 = vmatprep.subr.bf16.mxu0 0
      %3516 = vmatpush1.bf16.msra.mxu0 %v1929
      %3517 = vmatprep.subr.bf16.mxu0 0
      %3518 = vmatpush2.bf16.msra.mxu0 %v1944
      %3519 = vmatprep.subr.bf16.mxu0 0
      %3520 = vmatpush2.bf16.msra.mxu0 %v1943
      %3521 = vmatprep.subr.bf16.mxu0 0
      %3522 = vmatpush2.bf16.msra.mxu0 %v1942
      %3523 = vmatprep.subr.bf16.mxu0 0
      %3524 = vmatpush2.bf16.msra.mxu0 %v1941
      %3525 = vmatprep.subr.bf16.mxu0 0
      %3526 = vmatpush2.bf16.msra.mxu0 %v1940
      %3527 = vmatprep.subr.bf16.mxu0 0
      %3528 = vmatpush2.bf16.msra.mxu0 %v1939
      %3529 = vmatprep.subr.bf16.mxu0 0
      %3530 = vmatpush2.bf16.msra.mxu0 %v1938
      %3531 = vmatprep.subr.bf16.mxu0 0
      %3532 = vmatpush2.bf16.msra.mxu0 %v1937
      %3533 = vmatprep.mubr.bf16.mxu0 %v3073
      %3534 = vmatmul.mubr.bf16.gmra.mxu0 %v3072
      %v3535 = vpop.f32.mrf.mxu0
      %v3536 = vadd.f32 %v3487, %v3535
      %v3537 = vpop.f32.mrf.mxu0
      %v3538 = vpop.f32.mrf.mxu0
      %v3539 = vadd.f32 %v3490, %v3538
      %v3540 = vpop.f32.mrf.mxu0
      %3541 = vmatprep.mubr.bf16.mxu0 %v3098
      %3542 = vmatmul.mubr.bf16.gmra.mxu0 %v3097
      %v3543 = vpop.f32.mrf.mxu0
      %v3544 = vadd.f32 %v3495, %v3543
      %v3545 = vpop.f32.mrf.mxu0
      %v3546 = vpop.f32.mrf.mxu0
      %v3547 = vadd.f32 %v3498, %v3546
      %v3548 = vpop.f32.mrf.mxu0
      %3549 = vdwg.mxu0
      %3550 = vmatprep.subr.bf16.mxu0 0
      %3551 = vmatpush1.bf16.msra.mxu0 %v1952
      %3552 = vmatprep.subr.bf16.mxu0 0
      %3553 = vmatpush1.bf16.msra.mxu0 %v1951
      %3554 = vmatprep.subr.bf16.mxu0 0
      %3555 = vmatpush1.bf16.msra.mxu0 %v1950
      %3556 = vmatprep.subr.bf16.mxu0 0
      %3557 = vmatpush1.bf16.msra.mxu0 %v1949
      %3558 = vmatprep.subr.bf16.mxu0 0
      %3559 = vmatpush1.bf16.msra.mxu0 %v1948
      %3560 = vmatprep.subr.bf16.mxu0 0
      %3561 = vmatpush1.bf16.msra.mxu0 %v1947
      %3562 = vmatprep.subr.bf16.mxu0 0
      %3563 = vmatpush1.bf16.msra.mxu0 %v1946
      %3564 = vmatprep.subr.bf16.mxu0 0
      %3565 = vmatpush1.bf16.msra.mxu0 %v1945
      %3566 = vmatprep.subr.bf16.mxu0 0
      %3567 = vmatpush2.bf16.msra.mxu0 %v1960
      %3568 = vmatprep.subr.bf16.mxu0 0
      %3569 = vmatpush2.bf16.msra.mxu0 %v1959
      %3570 = vmatprep.subr.bf16.mxu0 0
      %3571 = vmatpush2.bf16.msra.mxu0 %v1958
      %3572 = vmatprep.subr.bf16.mxu0 0
      %3573 = vmatpush2.bf16.msra.mxu0 %v1957
      %3574 = vmatprep.subr.bf16.mxu0 0
      %3575 = vmatpush2.bf16.msra.mxu0 %v1956
      %3576 = vmatprep.subr.bf16.mxu0 0
      %3577 = vmatpush2.bf16.msra.mxu0 %v1955
      %3578 = vmatprep.subr.bf16.mxu0 0
      %3579 = vmatpush2.bf16.msra.mxu0 %v1954
      %3580 = vmatprep.subr.bf16.mxu0 0
      %3581 = vmatpush2.bf16.msra.mxu0 %v1953
      %3582 = vmatprep.mubr.bf16.mxu0 %v3075
      %3583 = vmatmul.mubr.bf16.gmra.mxu0 %v3074
      %v3584 = vpop.f32.mrf.mxu0
      %v3585 = vadd.f32 %v3536, %v3584
      %v3586 = vpop.f32.mrf.mxu0
      %v3587 = vpop.f32.mrf.mxu0
      %v3588 = vadd.f32 %v3539, %v3587
      %v3589 = vpop.f32.mrf.mxu0
      %3590 = vmatprep.mubr.bf16.mxu0 %v3100
      %3591 = vmatmul.mubr.bf16.gmra.mxu0 %v3099
      %v3592 = vpop.f32.mrf.mxu0
      %v3593 = vadd.f32 %v3544, %v3592
      %v3594 = vpop.f32.mrf.mxu0
      %v3595 = vpop.f32.mrf.mxu0
      %v3596 = vadd.f32 %v3547, %v3595
      %v3597 = vpop.f32.mrf.mxu0
      %3598 = vdwg.mxu0
      %3599 = vmatprep.subr.bf16.mxu0 0
      %3600 = vmatpush1.bf16.msra.mxu0 %v1968
      %3601 = vmatprep.subr.bf16.mxu0 0
      %3602 = vmatpush1.bf16.msra.mxu0 %v1967
      %3603 = vmatprep.subr.bf16.mxu0 0
      %3604 = vmatpush1.bf16.msra.mxu0 %v1966
      %3605 = vmatprep.subr.bf16.mxu0 0
      %3606 = vmatpush1.bf16.msra.mxu0 %v1965
      %3607 = vmatprep.subr.bf16.mxu0 0
      %3608 = vmatpush1.bf16.msra.mxu0 %v1964
      %3609 = vmatprep.subr.bf16.mxu0 0
      %3610 = vmatpush1.bf16.msra.mxu0 %v1963
      %3611 = vmatprep.subr.bf16.mxu0 0
      %3612 = vmatpush1.bf16.msra.mxu0 %v1962
      %3613 = vmatprep.subr.bf16.mxu0 0
      %3614 = vmatpush1.bf16.msra.mxu0 %v1961
      %3615 = vmatprep.subr.bf16.mxu0 0
      %3616 = vmatpush2.bf16.msra.mxu0 %v1976
      %3617 = vmatprep.subr.bf16.mxu0 0
      %3618 = vmatpush2.bf16.msra.mxu0 %v1975
      %3619 = vmatprep.subr.bf16.mxu0 0
      %3620 = vmatpush2.bf16.msra.mxu0 %v1974
      %3621 = vmatprep.subr.bf16.mxu0 0
      %3622 = vmatpush2.bf16.msra.mxu0 %v1973
      %3623 = vmatprep.subr.bf16.mxu0 0
      %3624 = vmatpush2.bf16.msra.mxu0 %v1972
      %3625 = vmatprep.subr.bf16.mxu0 0
      %3626 = vmatpush2.bf16.msra.mxu0 %v1971
      %3627 = vmatprep.subr.bf16.mxu0 0
      %3628 = vmatpush2.bf16.msra.mxu0 %v1970
      %3629 = vmatprep.subr.bf16.mxu0 0
      %3630 = vmatpush2.bf16.msra.mxu0 %v1969
      %3631 = vmatprep.mubr.bf16.mxu0 %v3077
      %3632 = vmatmul.mubr.bf16.gmra.mxu0 %v3076
      %v3633 = vpop.f32.mrf.mxu0
      %v3634 = vadd.f32 %v3585, %v3633
      %v3635 = vpop.f32.mrf.mxu0
      %v3636 = vpop.f32.mrf.mxu0
      %v3637 = vadd.f32 %v3588, %v3636
      %v3638 = vpop.f32.mrf.mxu0
      %3639 = vmatprep.mubr.bf16.mxu0 %v3102
      %3640 = vmatmul.mubr.bf16.gmra.mxu0 %v3101
      %v3641 = vpop.f32.mrf.mxu0
      %v3642 = vadd.f32 %v3593, %v3641
      %v3643 = vpop.f32.mrf.mxu0
      %v3644 = vpop.f32.mrf.mxu0
      %v3645 = vadd.f32 %v3596, %v3644
      %v3646 = vpop.f32.mrf.mxu0
      %3647 = vdwg.mxu0
      %3648 = vmatprep.subr.bf16.mxu0 0
      %3649 = vmatpush1.bf16.msra.mxu0 %v1984
      %3650 = vmatprep.subr.bf16.mxu0 0
      %3651 = vmatpush1.bf16.msra.mxu0 %v1983
      %3652 = vmatprep.subr.bf16.mxu0 0
      %3653 = vmatpush1.bf16.msra.mxu0 %v1982
      %3654 = vmatprep.subr.bf16.mxu0 0
      %3655 = vmatpush1.bf16.msra.mxu0 %v1981
      %3656 = vmatprep.subr.bf16.mxu0 0
      %3657 = vmatpush1.bf16.msra.mxu0 %v1980
      %3658 = vmatprep.subr.bf16.mxu0 0
      %3659 = vmatpush1.bf16.msra.mxu0 %v1979
      %3660 = vmatprep.subr.bf16.mxu0 0
      %3661 = vmatpush1.bf16.msra.mxu0 %v1978
      %3662 = vmatprep.subr.bf16.mxu0 0
      %3663 = vmatpush1.bf16.msra.mxu0 %v1977
      %3664 = vmatprep.subr.bf16.mxu0 0
      %3665 = vmatpush2.bf16.msra.mxu0 %v1992
      %3666 = vmatprep.subr.bf16.mxu0 0
      %3667 = vmatpush2.bf16.msra.mxu0 %v1991
      %3668 = vmatprep.subr.bf16.mxu0 0
      %3669 = vmatpush2.bf16.msra.mxu0 %v1990
      %3670 = vmatprep.subr.bf16.mxu0 0
      %3671 = vmatpush2.bf16.msra.mxu0 %v1989
      %3672 = vmatprep.subr.bf16.mxu0 0
      %3673 = vmatpush2.bf16.msra.mxu0 %v1988
      %3674 = vmatprep.subr.bf16.mxu0 0
      %3675 = vmatpush2.bf16.msra.mxu0 %v1987
      %3676 = vmatprep.subr.bf16.mxu0 0
      %3677 = vmatpush2.bf16.msra.mxu0 %v1986
      %3678 = vmatprep.subr.bf16.mxu0 0
      %3679 = vmatpush2.bf16.msra.mxu0 %v1985
      %3680 = vmatprep.mubr.bf16.mxu0 %v3079
      %3681 = vmatmul.mubr.bf16.gmra.mxu0 %v3078
      %v3682 = vpop.f32.mrf.mxu0
      %v3683 = vadd.f32 %v3634, %v3682
      %v3684 = vpop.f32.mrf.mxu0
      %v3685 = vpop.f32.mrf.mxu0
      %v3686 = vadd.f32 %v3637, %v3685
      %v3687 = vpop.f32.mrf.mxu0
      %3688 = vmatprep.mubr.bf16.mxu0 %v3104
      %3689 = vmatmul.mubr.bf16.gmra.mxu0 %v3103
      %v3690 = vpop.f32.mrf.mxu0
      %v3691 = vadd.f32 %v3642, %v3690
      %v3692 = vpop.f32.mrf.mxu0
      %v3693 = vpop.f32.mrf.mxu0
      %v3694 = vadd.f32 %v3645, %v3693
      %v3695 = vpop.f32.mrf.mxu0
      %3696 = vdwg.mxu0
      %3697 = vmatprep.subr.bf16.mxu0 0
      %3698 = vmatpush1.bf16.msra.mxu0 %v2000
      %3699 = vmatprep.subr.bf16.mxu0 0
      %3700 = vmatpush1.bf16.msra.mxu0 %v1999
      %3701 = vmatprep.subr.bf16.mxu0 0
      %3702 = vmatpush1.bf16.msra.mxu0 %v1998
      %3703 = vmatprep.subr.bf16.mxu0 0
      %3704 = vmatpush1.bf16.msra.mxu0 %v1997
      %3705 = vmatprep.subr.bf16.mxu0 0
      %3706 = vmatpush1.bf16.msra.mxu0 %v1996
      %3707 = vmatprep.subr.bf16.mxu0 0
      %3708 = vmatpush1.bf16.msra.mxu0 %v1995
      %3709 = vmatprep.subr.bf16.mxu0 0
      %3710 = vmatpush1.bf16.msra.mxu0 %v1994
      %3711 = vmatprep.subr.bf16.mxu0 0
      %3712 = vmatpush1.bf16.msra.mxu0 %v1993
      %3713 = vmatprep.subr.bf16.mxu0 0
      %3714 = vmatpush2.bf16.msra.mxu0 %v2008
      %3715 = vmatprep.subr.bf16.mxu0 0
      %3716 = vmatpush2.bf16.msra.mxu0 %v2007
      %3717 = vmatprep.subr.bf16.mxu0 0
      %3718 = vmatpush2.bf16.msra.mxu0 %v2006
      %3719 = vmatprep.subr.bf16.mxu0 0
      %3720 = vmatpush2.bf16.msra.mxu0 %v2005
      %3721 = vmatprep.subr.bf16.mxu0 0
      %3722 = vmatpush2.bf16.msra.mxu0 %v2004
      %3723 = vmatprep.subr.bf16.mxu0 0
      %3724 = vmatpush2.bf16.msra.mxu0 %v2003
      %3725 = vmatprep.subr.bf16.mxu0 0
      %3726 = vmatpush2.bf16.msra.mxu0 %v2002
      %3727 = vmatprep.subr.bf16.mxu0 0
      %3728 = vmatpush2.bf16.msra.mxu0 %v2001
      %3729 = vmatprep.mubr.bf16.mxu0 %v3081
      %3730 = vmatmul.mubr.bf16.gmra.mxu0 %v3080
      %v3731 = vpop.f32.mrf.mxu0
      %v3732 = vadd.f32 %v3683, %v3731
      %v3733 = vpop.f32.mrf.mxu0
      %v3734 = vpop.f32.mrf.mxu0
      %v3735 = vadd.f32 %v3686, %v3734
      %v3736 = vpop.f32.mrf.mxu0
      %3737 = vmatprep.mubr.bf16.mxu0 %v3106
      %3738 = vmatmul.mubr.bf16.gmra.mxu0 %v3105
      %v3739 = vpop.f32.mrf.mxu0
      %v3740 = vadd.f32 %v3691, %v3739
      %v3741 = vpop.f32.mrf.mxu0
      %v3742 = vpop.f32.mrf.mxu0
      %v3743 = vadd.f32 %v3694, %v3742
      %v3744 = vpop.f32.mrf.mxu0
      %3745 = vdwg.mxu0
      %3746 = vmatprep.subr.bf16.mxu0 0
      %3747 = vmatpush1.bf16.msra.mxu0 %v2016
      %3748 = vmatprep.subr.bf16.mxu0 0
      %3749 = vmatpush1.bf16.msra.mxu0 %v2015
      %3750 = vmatprep.subr.bf16.mxu0 0
      %3751 = vmatpush1.bf16.msra.mxu0 %v2014
      %3752 = vmatprep.subr.bf16.mxu0 0
      %3753 = vmatpush1.bf16.msra.mxu0 %v2013
      %3754 = vmatprep.subr.bf16.mxu0 0
      %3755 = vmatpush1.bf16.msra.mxu0 %v2012
      %3756 = vmatprep.subr.bf16.mxu0 0
      %3757 = vmatpush1.bf16.msra.mxu0 %v2011
      %3758 = vmatprep.subr.bf16.mxu0 0
      %3759 = vmatpush1.bf16.msra.mxu0 %v2010
      %3760 = vmatprep.subr.bf16.mxu0 0
      %3761 = vmatpush1.bf16.msra.mxu0 %v2009
      %3762 = vmatprep.subr.bf16.mxu0 0
      %3763 = vmatpush2.bf16.msra.mxu0 0
      %3764 = vmatprep.subr.bf16.mxu0 0
      %3765 = vmatpush2.bf16.msra.mxu0 0
      %3766 = vmatprep.subr.bf16.mxu0 0
      %3767 = vmatpush2.bf16.msra.mxu0 0
      %3768 = vmatprep.subr.bf16.mxu0 0
      %3769 = vmatpush2.bf16.msra.mxu0 0
      %3770 = vmatprep.subr.bf16.mxu0 0
      %3771 = vmatpush2.bf16.msra.mxu0 0
      %3772 = vmatprep.subr.bf16.mxu0 0
      %3773 = vmatpush2.bf16.msra.mxu0 0
      %3774 = vmatprep.subr.bf16.mxu0 0
      %3775 = vmatpush2.bf16.msra.mxu0 0
      %3776 = vmatprep.subr.bf16.mxu0 0
      %3777 = vmatpush2.bf16.msra.mxu0 0
      %3778 = vmatprep.mubr.bf16.mxu0 0
      %3779 = vmatmul.mubr.bf16.gmra.mxu0 %v3082
      %v3780 = vpop.f32.mrf.mxu0
      %v3781 = vadd.f32 %v3732, %v3780
      %v3782 = vpop.f32.mrf.mxu0
      %v3783 = vpop.f32.mrf.mxu0
      %v3784 = vadd.f32 %v3735, %v3783
      %v3785 = vpop.f32.mrf.mxu0
      %3786 = vmatprep.mubr.bf16.mxu0 0
      %3787 = vmatmul.mubr.bf16.gmra.mxu0 %v3107
      %v3788 = vpop.f32.mrf.mxu0
      %v3789 = vadd.f32 %v3740, %v3788
      %v3790 = vpop.f32.mrf.mxu0
      %v3791 = vpop.f32.mrf.mxu0
      %v3792 = vadd.f32 %v3743, %v3791
      %v3793 = vpop.f32.mrf.mxu0
      %3794 = vdwg.mxu0
      %v3795 = vmax.f32 %v2840, %v3781
      %v3796 = vmax.f32 %v2843, %v3784
      %v3797 = vmax.f32 %v2848, %v3789
      %v3798 = vmax.f32 %v2851, %v3792
      %v3799 = vld [vmem:[%s301] sm:$0xff]
      %v3800 = vld [vmem:[%s301 + $0x8] sm:$0xff]
      %v3801 = vld [vmem:[%s301 + $0x10] sm:$0xff]
      %v3802 = vld [vmem:[%s301 + $0x18] sm:$0xff]
      %v3803 = vld [vmem:[%s301 + $0x20] sm:$0xff]
      %v3804 = vld [vmem:[%s301 + $0x28] sm:$0xff]
      %v3805 = vld [vmem:[%s301 + $0x30] sm:$0xff]
      %v3806 = vld [vmem:[%s301 + $0x38] sm:$0xff]
      %v3807 = vld [vmem:[%s301 + $0x40] sm:$0xff]
      %v3808 = vld [vmem:[%s301 + $0x48] sm:$0xff]
      %v3809 = vld [vmem:[%s301 + $0x50] sm:$0xff]
      %v3810 = vld [vmem:[%s301 + $0x58] sm:$0xff]
      %v3811 = vld [vmem:[%s301 + $0x60] sm:$0xf]
      %v3812 = vld [vmem:[%s301 + $0x64] sm:$0xff]
      %v3813 = vld [vmem:[%s301 + $0x6c] sm:$0xff]
      %v3814 = vld [vmem:[%s301 + $0x74] sm:$0xff]
      %v3815 = vld [vmem:[%s301 + $0x7c] sm:$0xff]
      %v3816 = vld [vmem:[%s301 + $0x84] sm:$0xff]
      %v3817 = vld [vmem:[%s301 + $0x8c] sm:$0xff]
      %v3818 = vld [vmem:[%s301 + $0x94] sm:$0xff]
      %v3819 = vld [vmem:[%s301 + $0x9c] sm:$0xff]
      %v3820 = vld [vmem:[%s301 + $0xa4] sm:$0xff]
      %v3821 = vld [vmem:[%s301 + $0xac] sm:$0xff]
      %v3822 = vld [vmem:[%s301 + $0xb4] sm:$0xff]
      %v3823 = vld [vmem:[%s301 + $0xbc] sm:$0xff]
      %v3824 = vld [vmem:[%s301 + $0xc4] sm:$0xf]
      %v3825 = vld [vmem:[%s301 + $0xc8] sm:$0xff]
      %v3826 = vld [vmem:[%s301 + $0xd0] sm:$0xff]
      %v3827 = vld [vmem:[%s301 + $0xd8] sm:$0xff]
      %v3828 = vld [vmem:[%s301 + $0xe0] sm:$0xff]
      %v3829 = vld [vmem:[%s301 + $0xe8] sm:$0xff]
      %v3830 = vld [vmem:[%s301 + $0xf0] sm:$0xff]
      %v3831 = vld [vmem:[%s301 + $0xf8] sm:$0xff]
      %v3832 = vld [vmem:[%s301 + $0x100] sm:$0xff]
      %v3833 = vld [vmem:[%s301 + $0x108] sm:$0xff]
      %v3834 = vld [vmem:[%s301 + $0x110] sm:$0xff]
      %v3835 = vld [vmem:[%s301 + $0x118] sm:$0xff]
      %v3836 = vld [vmem:[%s301 + $0x120] sm:$0xff]
      %v3837 = vld [vmem:[%s301 + $0x128] sm:$0xf]
      %v3838 = vld [vmem:[%s301 + $0x12c] sm:$0x11]
      %v3839 = vld [vmem:[%s301 + $0x134] sm:$0x11]
      %v3840 = vld [vmem:[%s301 + $0x13c] sm:$0x11]
      %v3841 = vld [vmem:[%s301 + $0x144] sm:$0x11]
      %v3842 = vld [vmem:[%s301 + $0x14c] sm:$0x11]
      %v3843 = vld [vmem:[%s301 + $0x154] sm:$0x11]
      %v3844 = vld [vmem:[%s301 + $0x15c] sm:$0x11]
      %v3845 = vld [vmem:[%s301 + $0x164] sm:$0x11]
      %v3846 = vld [vmem:[%s301 + $0x16c] sm:$0x11]
      %v3847 = vld [vmem:[%s301 + $0x174] sm:$0x11]
      %v3848 = vld [vmem:[%s301 + $0x17c] sm:$0x11]
      %v3849 = vld [vmem:[%s301 + $0x184] sm:$0x11]
      %v3850 = vld [vmem:[%s301 + $0x18c] sm:$0x1]
      %v3903 = vunpack.c.l.b16 %v3799
      %v3904 = vunpack.c.h.b16 %v3799
      %v3905 = vunpack.c.l.b16 %v3800
      %v3906 = vunpack.c.h.b16 %v3800
      %v3907 = vunpack.c.l.b16 %v3801
      %v3908 = vunpack.c.h.b16 %v3801
      %v3909 = vunpack.c.l.b16 %v3802
      %v3910 = vunpack.c.h.b16 %v3802
      %v3911 = vunpack.c.l.b16 %v3803
      %v3912 = vunpack.c.h.b16 %v3803
      %v3913 = vunpack.c.l.b16 %v3804
      %v3914 = vunpack.c.h.b16 %v3804
      %v3915 = vunpack.c.l.b16 %v3805
      %v3916 = vunpack.c.h.b16 %v3805
      %v3917 = vunpack.c.l.b16 %v3806
      %v3918 = vunpack.c.h.b16 %v3806
      %v3919 = vunpack.c.l.b16 %v3807
      %v3920 = vunpack.c.h.b16 %v3807
      %v3921 = vunpack.c.l.b16 %v3808
      %v3922 = vunpack.c.h.b16 %v3808
      %v3923 = vunpack.c.l.b16 %v3809
      %v3924 = vunpack.c.h.b16 %v3809
      %v3925 = vunpack.c.l.b16 %v3810
      %v3926 = vunpack.c.h.b16 %v3810
      %v3927 = vunpack.c.l.b16 %v3811
      %v3928 = vunpack.c.l.b16 %v3812
      %v3929 = vunpack.c.h.b16 %v3812
      %v3930 = vunpack.c.l.b16 %v3813
      %v3931 = vunpack.c.h.b16 %v3813
      %v3932 = vunpack.c.l.b16 %v3814
      %v3933 = vunpack.c.h.b16 %v3814
      %v3934 = vunpack.c.l.b16 %v3815
      %v3935 = vunpack.c.h.b16 %v3815
      %v3936 = vunpack.c.l.b16 %v3816
      %v3937 = vunpack.c.h.b16 %v3816
      %v3938 = vunpack.c.l.b16 %v3817
      %v3939 = vunpack.c.h.b16 %v3817
      %v3940 = vunpack.c.l.b16 %v3818
      %v3941 = vunpack.c.h.b16 %v3818
      %v3942 = vunpack.c.l.b16 %v3819
      %v3943 = vunpack.c.h.b16 %v3819
      %v3944 = vunpack.c.l.b16 %v3820
      %v3945 = vunpack.c.h.b16 %v3820
      %v3946 = vunpack.c.l.b16 %v3821
      %v3947 = vunpack.c.h.b16 %v3821
      %v3948 = vunpack.c.l.b16 %v3822
      %v3949 = vunpack.c.h.b16 %v3822
      %v3950 = vunpack.c.l.b16 %v3823
      %v3951 = vunpack.c.h.b16 %v3823
      %v3952 = vunpack.c.l.b16 %v3824
      %v3953 = vunpack.c.l.b16 %v3825
      %v3954 = vunpack.c.h.b16 %v3825
      %v3955 = vunpack.c.l.b16 %v3826
      %v3956 = vunpack.c.h.b16 %v3826
      %v3957 = vunpack.c.l.b16 %v3827
      %v3958 = vunpack.c.h.b16 %v3827
      %v3959 = vunpack.c.l.b16 %v3828
      %v3960 = vunpack.c.h.b16 %v3828
      %v3961 = vunpack.c.l.b16 %v3829
      %v3962 = vunpack.c.h.b16 %v3829
      %v3963 = vunpack.c.l.b16 %v3830
      %v3964 = vunpack.c.h.b16 %v3830
      %v3965 = vunpack.c.l.b16 %v3831
      %v3966 = vunpack.c.h.b16 %v3831
      %v3967 = vunpack.c.l.b16 %v3832
      %v3968 = vunpack.c.h.b16 %v3832
      %v3969 = vunpack.c.l.b16 %v3833
      %v3970 = vunpack.c.h.b16 %v3833
      %v3971 = vunpack.c.l.b16 %v3834
      %v3972 = vunpack.c.h.b16 %v3834
      %v3973 = vunpack.c.l.b16 %v3835
      %v3974 = vunpack.c.h.b16 %v3835
      %v3975 = vunpack.c.l.b16 %v3836
      %v3976 = vunpack.c.h.b16 %v3836
      %v3977 = vunpack.c.l.b16 %v3837
      %v3978 = vunpack.c.l.b16 %v3838
      %v3979 = vunpack.c.h.b16 %v3838
      %v3980 = vunpack.c.l.b16 %v3839
      %v3981 = vunpack.c.h.b16 %v3839
      %v3982 = vunpack.c.l.b16 %v3840
      %v3983 = vunpack.c.h.b16 %v3840
      %v3984 = vunpack.c.l.b16 %v3841
      %v3985 = vunpack.c.h.b16 %v3841
      %v3986 = vunpack.c.l.b16 %v3842
      %v3987 = vunpack.c.h.b16 %v3842
      %v3988 = vunpack.c.l.b16 %v3843
      %v3989 = vunpack.c.h.b16 %v3843
      %v3990 = vunpack.c.l.b16 %v3844
      %v3991 = vunpack.c.h.b16 %v3844
      %v3992 = vunpack.c.l.b16 %v3845
      %v3993 = vunpack.c.h.b16 %v3845
      %v3994 = vunpack.c.l.b16 %v3846
      %v3995 = vunpack.c.h.b16 %v3846
      %v3996 = vunpack.c.l.b16 %v3847
      %v3997 = vunpack.c.h.b16 %v3847
      %v3998 = vunpack.c.l.b16 %v3848
      %v3999 = vunpack.c.h.b16 %v3848
      %v4000 = vunpack.c.l.b16 %v3849
      %v4001 = vunpack.c.h.b16 %v3849
      %v4002 = vunpack.c.l.b16 %v3850
      %v4003 = vpack.c.b16 %v3928, %v3903
      %v4004 = vpack.c.b16 %v3929, %v3904
      %v4005 = vpack.c.b16 %v3930, %v3905
      %v4006 = vpack.c.b16 %v3931, %v3906
      %v4007 = vpack.c.b16 %v3932, %v3907
      %v4008 = vpack.c.b16 %v3933, %v3908
      %v4009 = vpack.c.b16 %v3934, %v3909
      %v4010 = vpack.c.b16 %v3935, %v3910
      %v4011 = vpack.c.b16 %v3936, %v3911
      %v4012 = vpack.c.b16 %v3937, %v3912
      %v4013 = vpack.c.b16 %v3938, %v3913
      %v4014 = vpack.c.b16 %v3939, %v3914
      %v4015 = vpack.c.b16 %v3940, %v3915
      %v4016 = vpack.c.b16 %v3941, %v3916
      %v4017 = vpack.c.b16 %v3942, %v3917
      %v4018 = vpack.c.b16 %v3943, %v3918
      %v4019 = vpack.c.b16 %v3944, %v3919
      %v4020 = vpack.c.b16 %v3945, %v3920
      %v4021 = vpack.c.b16 %v3946, %v3921
      %v4022 = vpack.c.b16 %v3947, %v3922
      %v4023 = vpack.c.b16 %v3948, %v3923
      %v4024 = vpack.c.b16 %v3949, %v3924
      %v4025 = vpack.c.b16 %v3950, %v3925
      %v4026 = vpack.c.b16 %v3951, %v3926
      %v4027 = vpack.c.b16 %v3952, %v3927
      %v4028 = vpack.c.b16 %v3978, %v3953
      %v4029 = vpack.c.b16 %v3979, %v3954
      %v4030 = vpack.c.b16 %v3980, %v3955
      %v4031 = vpack.c.b16 %v3981, %v3956
      %v4032 = vpack.c.b16 %v3982, %v3957
      %v4033 = vpack.c.b16 %v3983, %v3958
      %v4034 = vpack.c.b16 %v3984, %v3959
      %v4035 = vpack.c.b16 %v3985, %v3960
      %v4036 = vpack.c.b16 %v3986, %v3961
      %v4037 = vpack.c.b16 %v3987, %v3962
      %v4038 = vpack.c.b16 %v3988, %v3963
      %v4039 = vpack.c.b16 %v3989, %v3964
      %v4040 = vpack.c.b16 %v3990, %v3965
      %v4041 = vpack.c.b16 %v3991, %v3966
      %v4042 = vpack.c.b16 %v3992, %v3967
      %v4043 = vpack.c.b16 %v3993, %v3968
      %v4044 = vpack.c.b16 %v3994, %v3969
      %v4045 = vpack.c.b16 %v3995, %v3970
      %v4046 = vpack.c.b16 %v3996, %v3971
      %v4047 = vpack.c.b16 %v3997, %v3972
      %v4048 = vpack.c.b16 %v3998, %v3973
      %v4049 = vpack.c.b16 %v3999, %v3974
      %v4050 = vpack.c.b16 %v4000, %v3975
      %v4051 = vpack.c.b16 %v4001, %v3976
      %v4052 = vpack.c.b16 %v4002, %v3977
      %4103 = vmatprep.subr.bf16.mxu0 0
      %4104 = vmatpush1.bf16.msra.mxu0 %v1824
      %4105 = vmatprep.subr.bf16.mxu0 0
      %4106 = vmatpush1.bf16.msra.mxu0 %v1823
      %4107 = vmatprep.subr.bf16.mxu0 0
      %4108 = vmatpush1.bf16.msra.mxu0 %v1822
      %4109 = vmatprep.subr.bf16.mxu0 0
      %4110 = vmatpush1.bf16.msra.mxu0 %v1821
      %4111 = vmatprep.subr.bf16.mxu0 0
      %4112 = vmatpush1.bf16.msra.mxu0 %v1820
      %4113 = vmatprep.subr.bf16.mxu0 0
      %4114 = vmatpush1.bf16.msra.mxu0 %v1819
      %4115 = vmatprep.subr.bf16.mxu0 0
      %4116 = vmatpush1.bf16.msra.mxu0 %v1818
      %4117 = vmatprep.subr.bf16.mxu0 0
      %4118 = vmatpush1.bf16.msra.mxu0 %v1817
      %4119 = vmatprep.subr.bf16.mxu0 0
      %4120 = vmatpush2.bf16.msra.mxu0 %v1832
      %4121 = vmatprep.subr.bf16.mxu0 0
      %4122 = vmatpush2.bf16.msra.mxu0 %v1831
      %4123 = vmatprep.subr.bf16.mxu0 0
      %4124 = vmatpush2.bf16.msra.mxu0 %v1830
      %4125 = vmatprep.subr.bf16.mxu0 0
      %4126 = vmatpush2.bf16.msra.mxu0 %v1829
      %4127 = vmatprep.subr.bf16.mxu0 0
      %4128 = vmatpush2.bf16.msra.mxu0 %v1828
      %4129 = vmatprep.subr.bf16.mxu0 0
      %4130 = vmatpush2.bf16.msra.mxu0 %v1827
      %4131 = vmatprep.subr.bf16.mxu0 0
      %4132 = vmatpush2.bf16.msra.mxu0 %v1826
      %4133 = vmatprep.subr.bf16.mxu0 0
      %4134 = vmatpush2.bf16.msra.mxu0 %v1825
      %4135 = vmatprep.mubr.bf16.mxu0 %v4004
      %4136 = vmatmul.mubr.bf16.gmra.mxu0 %v4003
      %v4137 = vpop.f32.mrf.mxu0
      %v4138 = vadd.f32 0.0, %v4137
      %v4139 = vpop.f32.mrf.mxu0
      %v4140 = vpop.f32.mrf.mxu0
      %v4141 = vadd.f32 0.0, %v4140
      %v4142 = vpop.f32.mrf.mxu0
      %4143 = vmatprep.mubr.bf16.mxu0 %v4029
      %4144 = vmatmul.mubr.bf16.gmra.mxu0 %v4028
      %v4145 = vpop.f32.mrf.mxu0
      %v4146 = vadd.f32 0.0, %v4145
      %v4147 = vpop.f32.mrf.mxu0
      %v4148 = vpop.f32.mrf.mxu0
      %v4149 = vadd.f32 0.0, %v4148
      %v4150 = vpop.f32.mrf.mxu0
      %4151 = vdwg.mxu0
      %4152 = vmatprep.subr.bf16.mxu0 0
      %4153 = vmatpush1.bf16.msra.mxu0 %v1840
      %4154 = vmatprep.subr.bf16.mxu0 0
      %4155 = vmatpush1.bf16.msra.mxu0 %v1839
      %4156 = vmatprep.subr.bf16.mxu0 0
      %4157 = vmatpush1.bf16.msra.mxu0 %v1838
      %4158 = vmatprep.subr.bf16.mxu0 0
      %4159 = vmatpush1.bf16.msra.mxu0 %v1837
      %4160 = vmatprep.subr.bf16.mxu0 0
      %4161 = vmatpush1.bf16.msra.mxu0 %v1836
      %4162 = vmatprep.subr.bf16.mxu0 0
      %4163 = vmatpush1.bf16.msra.mxu0 %v1835
      %4164 = vmatprep.subr.bf16.mxu0 0
      %4165 = vmatpush1.bf16.msra.mxu0 %v1834
      %4166 = vmatprep.subr.bf16.mxu0 0
      %4167 = vmatpush1.bf16.msra.mxu0 %v1833
      %4168 = vmatprep.subr.bf16.mxu0 0
      %4169 = vmatpush2.bf16.msra.mxu0 %v1848
      %4170 = vmatprep.subr.bf16.mxu0 0
      %4171 = vmatpush2.bf16.msra.mxu0 %v1847
      %4172 = vmatprep.subr.bf16.mxu0 0
      %4173 = vmatpush2.bf16.msra.mxu0 %v1846
      %4174 = vmatprep.subr.bf16.mxu0 0
      %4175 = vmatpush2.bf16.msra.mxu0 %v1845
      %4176 = vmatprep.subr.bf16.mxu0 0
      %4177 = vmatpush2.bf16.msra.mxu0 %v1844
      %4178 = vmatprep.subr.bf16.mxu0 0
      %4179 = vmatpush2.bf16.msra.mxu0 %v1843
      %4180 = vmatprep.subr.bf16.mxu0 0
      %4181 = vmatpush2.bf16.msra.mxu0 %v1842
      %4182 = vmatprep.subr.bf16.mxu0 0
      %4183 = vmatpush2.bf16.msra.mxu0 %v1841
      %4184 = vmatprep.mubr.bf16.mxu0 %v4006
      %4185 = vmatmul.mubr.bf16.gmra.mxu0 %v4005
      %v4186 = vpop.f32.mrf.mxu0
      %v4187 = vadd.f32 %v4138, %v4186
      %v4188 = vpop.f32.mrf.mxu0
      %v4189 = vpop.f32.mrf.mxu0
      %v4190 = vadd.f32 %v4141, %v4189
      %v4191 = vpop.f32.mrf.mxu0
      %4192 = vmatprep.mubr.bf16.mxu0 %v4031
      %4193 = vmatmul.mubr.bf16.gmra.mxu0 %v4030
      %v4194 = vpop.f32.mrf.mxu0
      %v4195 = vadd.f32 %v4146, %v4194
      %v4196 = vpop.f32.mrf.mxu0
      %v4197 = vpop.f32.mrf.mxu0
      %v4198 = vadd.f32 %v4149, %v4197
      %v4199 = vpop.f32.mrf.mxu0
      %4200 = vdwg.mxu0
      %4201 = vmatprep.subr.bf16.mxu0 0
      %4202 = vmatpush1.bf16.msra.mxu0 %v1856
      %4203 = vmatprep.subr.bf16.mxu0 0
      %4204 = vmatpush1.bf16.msra.mxu0 %v1855
      %4205 = vmatprep.subr.bf16.mxu0 0
      %4206 = vmatpush1.bf16.msra.mxu0 %v1854
      %4207 = vmatprep.subr.bf16.mxu0 0
      %4208 = vmatpush1.bf16.msra.mxu0 %v1853
      %4209 = vmatprep.subr.bf16.mxu0 0
      %4210 = vmatpush1.bf16.msra.mxu0 %v1852
      %4211 = vmatprep.subr.bf16.mxu0 0
      %4212 = vmatpush1.bf16.msra.mxu0 %v1851
      %4213 = vmatprep.subr.bf16.mxu0 0
      %4214 = vmatpush1.bf16.msra.mxu0 %v1850
      %4215 = vmatprep.subr.bf16.mxu0 0
      %4216 = vmatpush1.bf16.msra.mxu0 %v1849
      %4217 = vmatprep.subr.bf16.mxu0 0
      %4218 = vmatpush2.bf16.msra.mxu0 %v1864
      %4219 = vmatprep.subr.bf16.mxu0 0
      %4220 = vmatpush2.bf16.msra.mxu0 %v1863
      %4221 = vmatprep.subr.bf16.mxu0 0
      %4222 = vmatpush2.bf16.msra.mxu0 %v1862
      %4223 = vmatprep.subr.bf16.mxu0 0
      %4224 = vmatpush2.bf16.msra.mxu0 %v1861
      %4225 = vmatprep.subr.bf16.mxu0 0
      %4226 = vmatpush2.bf16.msra.mxu0 %v1860
      %4227 = vmatprep.subr.bf16.mxu0 0
      %4228 = vmatpush2.bf16.msra.mxu0 %v1859
      %4229 = vmatprep.subr.bf16.mxu0 0
      %4230 = vmatpush2.bf16.msra.mxu0 %v1858
      %4231 = vmatprep.subr.bf16.mxu0 0
      %4232 = vmatpush2.bf16.msra.mxu0 %v1857
      %4233 = vmatprep.mubr.bf16.mxu0 %v4008
      %4234 = vmatmul.mubr.bf16.gmra.mxu0 %v4007
      %v4235 = vpop.f32.mrf.mxu0
      %v4236 = vadd.f32 %v4187, %v4235
      %v4237 = vpop.f32.mrf.mxu0
      %v4238 = vpop.f32.mrf.mxu0
      %v4239 = vadd.f32 %v4190, %v4238
      %v4240 = vpop.f32.mrf.mxu0
      %4241 = vmatprep.mubr.bf16.mxu0 %v4033
      %4242 = vmatmul.mubr.bf16.gmra.mxu0 %v4032
      %v4243 = vpop.f32.mrf.mxu0
      %v4244 = vadd.f32 %v4195, %v4243
      %v4245 = vpop.f32.mrf.mxu0
      %v4246 = vpop.f32.mrf.mxu0
      %v4247 = vadd.f32 %v4198, %v4246
      %v4248 = vpop.f32.mrf.mxu0
      %4249 = vdwg.mxu0
      %4250 = vmatprep.subr.bf16.mxu0 0
      %4251 = vmatpush1.bf16.msra.mxu0 %v1872
      %4252 = vmatprep.subr.bf16.mxu0 0
      %4253 = vmatpush1.bf16.msra.mxu0 %v1871
      %4254 = vmatprep.subr.bf16.mxu0 0
      %4255 = vmatpush1.bf16.msra.mxu0 %v1870
      %4256 = vmatprep.subr.bf16.mxu0 0
      %4257 = vmatpush1.bf16.msra.mxu0 %v1869
      %4258 = vmatprep.subr.bf16.mxu0 0
      %4259 = vmatpush1.bf16.msra.mxu0 %v1868
      %4260 = vmatprep.subr.bf16.mxu0 0
      %4261 = vmatpush1.bf16.msra.mxu0 %v1867
      %4262 = vmatprep.subr.bf16.mxu0 0
      %4263 = vmatpush1.bf16.msra.mxu0 %v1866
      %4264 = vmatprep.subr.bf16.mxu0 0
      %4265 = vmatpush1.bf16.msra.mxu0 %v1865
      %4266 = vmatprep.subr.bf16.mxu0 0
      %4267 = vmatpush2.bf16.msra.mxu0 %v1880
      %4268 = vmatprep.subr.bf16.mxu0 0
      %4269 = vmatpush2.bf16.msra.mxu0 %v1879
      %4270 = vmatprep.subr.bf16.mxu0 0
      %4271 = vmatpush2.bf16.msra.mxu0 %v1878
      %4272 = vmatprep.subr.bf16.mxu0 0
      %4273 = vmatpush2.bf16.msra.mxu0 %v1877
      %4274 = vmatprep.subr.bf16.mxu0 0
      %4275 = vmatpush2.bf16.msra.mxu0 %v1876
      %4276 = vmatprep.subr.bf16.mxu0 0
      %4277 = vmatpush2.bf16.msra.mxu0 %v1875
      %4278 = vmatprep.subr.bf16.mxu0 0
      %4279 = vmatpush2.bf16.msra.mxu0 %v1874
      %4280 = vmatprep.subr.bf16.mxu0 0
      %4281 = vmatpush2.bf16.msra.mxu0 %v1873
      %4282 = vmatprep.mubr.bf16.mxu0 %v4010
      %4283 = vmatmul.mubr.bf16.gmra.mxu0 %v4009
      %v4284 = vpop.f32.mrf.mxu0
      %v4285 = vadd.f32 %v4236, %v4284
      %v4286 = vpop.f32.mrf.mxu0
      %v4287 = vpop.f32.mrf.mxu0
      %v4288 = vadd.f32 %v4239, %v4287
      %v4289 = vpop.f32.mrf.mxu0
      %4290 = vmatprep.mubr.bf16.mxu0 %v4035
      %4291 = vmatmul.mubr.bf16.gmra.mxu0 %v4034
      %v4292 = vpop.f32.mrf.mxu0
      %v4293 = vadd.f32 %v4244, %v4292
      %v4294 = vpop.f32.mrf.mxu0
      %v4295 = vpop.f32.mrf.mxu0
      %v4296 = vadd.f32 %v4247, %v4295
      %v4297 = vpop.f32.mrf.mxu0
      %4298 = vdwg.mxu0
      %4299 = vmatprep.subr.bf16.mxu0 0
      %4300 = vmatpush1.bf16.msra.mxu0 %v1888
      %4301 = vmatprep.subr.bf16.mxu0 0
      %4302 = vmatpush1.bf16.msra.mxu0 %v1887
      %4303 = vmatprep.subr.bf16.mxu0 0
      %4304 = vmatpush1.bf16.msra.mxu0 %v1886
      %4305 = vmatprep.subr.bf16.mxu0 0
      %4306 = vmatpush1.bf16.msra.mxu0 %v1885
      %4307 = vmatprep.subr.bf16.mxu0 0
      %4308 = vmatpush1.bf16.msra.mxu0 %v1884
      %4309 = vmatprep.subr.bf16.mxu0 0
      %4310 = vmatpush1.bf16.msra.mxu0 %v1883
      %4311 = vmatprep.subr.bf16.mxu0 0
      %4312 = vmatpush1.bf16.msra.mxu0 %v1882
      %4313 = vmatprep.subr.bf16.mxu0 0
      %4314 = vmatpush1.bf16.msra.mxu0 %v1881
      %4315 = vmatprep.subr.bf16.mxu0 0
      %4316 = vmatpush2.bf16.msra.mxu0 %v1896
      %4317 = vmatprep.subr.bf16.mxu0 0
      %4318 = vmatpush2.bf16.msra.mxu0 %v1895
      %4319 = vmatprep.subr.bf16.mxu0 0
      %4320 = vmatpush2.bf16.msra.mxu0 %v1894
      %4321 = vmatprep.subr.bf16.mxu0 0
      %4322 = vmatpush2.bf16.msra.mxu0 %v1893
      %4323 = vmatprep.subr.bf16.mxu0 0
      %4324 = vmatpush2.bf16.msra.mxu0 %v1892
      %4325 = vmatprep.subr.bf16.mxu0 0
      %4326 = vmatpush2.bf16.msra.mxu0 %v1891
      %4327 = vmatprep.subr.bf16.mxu0 0
      %4328 = vmatpush2.bf16.msra.mxu0 %v1890
      %4329 = vmatprep.subr.bf16.mxu0 0
      %4330 = vmatpush2.bf16.msra.mxu0 %v1889
      %4331 = vmatprep.mubr.bf16.mxu0 %v4012
      %4332 = vmatmul.mubr.bf16.gmra.mxu0 %v4011
      %v4333 = vpop.f32.mrf.mxu0
      %v4334 = vadd.f32 %v4285, %v4333
      %v4335 = vpop.f32.mrf.mxu0
      %v4336 = vpop.f32.mrf.mxu0
      %v4337 = vadd.f32 %v4288, %v4336
      %v4338 = vpop.f32.mrf.mxu0
      %4339 = vmatprep.mubr.bf16.mxu0 %v4037
      %4340 = vmatmul.mubr.bf16.gmra.mxu0 %v4036
      %v4341 = vpop.f32.mrf.mxu0
      %v4342 = vadd.f32 %v4293, %v4341
      %v4343 = vpop.f32.mrf.mxu0
      %v4344 = vpop.f32.mrf.mxu0
      %v4345 = vadd.f32 %v4296, %v4344
      %v4346 = vpop.f32.mrf.mxu0
      %4347 = vdwg.mxu0
      %4348 = vmatprep.subr.bf16.mxu0 0
      %4349 = vmatpush1.bf16.msra.mxu0 %v1904
      %4350 = vmatprep.subr.bf16.mxu0 0
      %4351 = vmatpush1.bf16.msra.mxu0 %v1903
      %4352 = vmatprep.subr.bf16.mxu0 0
      %4353 = vmatpush1.bf16.msra.mxu0 %v1902
      %4354 = vmatprep.subr.bf16.mxu0 0
      %4355 = vmatpush1.bf16.msra.mxu0 %v1901
      %4356 = vmatprep.subr.bf16.mxu0 0
      %4357 = vmatpush1.bf16.msra.mxu0 %v1900
      %4358 = vmatprep.subr.bf16.mxu0 0
      %4359 = vmatpush1.bf16.msra.mxu0 %v1899
      %4360 = vmatprep.subr.bf16.mxu0 0
      %4361 = vmatpush1.bf16.msra.mxu0 %v1898
      %4362 = vmatprep.subr.bf16.mxu0 0
      %4363 = vmatpush1.bf16.msra.mxu0 %v1897
      %4364 = vmatprep.subr.bf16.mxu0 0
      %4365 = vmatpush2.bf16.msra.mxu0 %v1912
      %4366 = vmatprep.subr.bf16.mxu0 0
      %4367 = vmatpush2.bf16.msra.mxu0 %v1911
      %4368 = vmatprep.subr.bf16.mxu0 0
      %4369 = vmatpush2.bf16.msra.mxu0 %v1910
      %4370 = vmatprep.subr.bf16.mxu0 0
      %4371 = vmatpush2.bf16.msra.mxu0 %v1909
      %4372 = vmatprep.subr.bf16.mxu0 0
      %4373 = vmatpush2.bf16.msra.mxu0 %v1908
      %4374 = vmatprep.subr.bf16.mxu0 0
      %4375 = vmatpush2.bf16.msra.mxu0 %v1907
      %4376 = vmatprep.subr.bf16.mxu0 0
      %4377 = vmatpush2.bf16.msra.mxu0 %v1906
      %4378 = vmatprep.subr.bf16.mxu0 0
      %4379 = vmatpush2.bf16.msra.mxu0 %v1905
      %4380 = vmatprep.mubr.bf16.mxu0 %v4014
      %4381 = vmatmul.mubr.bf16.gmra.mxu0 %v4013
      %v4382 = vpop.f32.mrf.mxu0
      %v4383 = vadd.f32 %v4334, %v4382
      %v4384 = vpop.f32.mrf.mxu0
      %v4385 = vpop.f32.mrf.mxu0
      %v4386 = vadd.f32 %v4337, %v4385
      %v4387 = vpop.f32.mrf.mxu0
      %4388 = vmatprep.mubr.bf16.mxu0 %v4039
      %4389 = vmatmul.mubr.bf16.gmra.mxu0 %v4038
      %v4390 = vpop.f32.mrf.mxu0
      %v4391 = vadd.f32 %v4342, %v4390
      %v4392 = vpop.f32.mrf.mxu0
      %v4393 = vpop.f32.mrf.mxu0
      %v4394 = vadd.f32 %v4345, %v4393
      %v4395 = vpop.f32.mrf.mxu0
      %4396 = vdwg.mxu0
      %4397 = vmatprep.subr.bf16.mxu0 0
      %4398 = vmatpush1.bf16.msra.mxu0 %v1920
      %4399 = vmatprep.subr.bf16.mxu0 0
      %4400 = vmatpush1.bf16.msra.mxu0 %v1919
      %4401 = vmatprep.subr.bf16.mxu0 0
      %4402 = vmatpush1.bf16.msra.mxu0 %v1918
      %4403 = vmatprep.subr.bf16.mxu0 0
      %4404 = vmatpush1.bf16.msra.mxu0 %v1917
      %4405 = vmatprep.subr.bf16.mxu0 0
      %4406 = vmatpush1.bf16.msra.mxu0 %v1916
      %4407 = vmatprep.subr.bf16.mxu0 0
      %4408 = vmatpush1.bf16.msra.mxu0 %v1915
      %4409 = vmatprep.subr.bf16.mxu0 0
      %4410 = vmatpush1.bf16.msra.mxu0 %v1914
      %4411 = vmatprep.subr.bf16.mxu0 0
      %4412 = vmatpush1.bf16.msra.mxu0 %v1913
      %4413 = vmatprep.subr.bf16.mxu0 0
      %4414 = vmatpush2.bf16.msra.mxu0 %v1928
      %4415 = vmatprep.subr.bf16.mxu0 0
      %4416 = vmatpush2.bf16.msra.mxu0 %v1927
      %4417 = vmatprep.subr.bf16.mxu0 0
      %4418 = vmatpush2.bf16.msra.mxu0 %v1926
      %4419 = vmatprep.subr.bf16.mxu0 0
      %4420 = vmatpush2.bf16.msra.mxu0 %v1925
      %4421 = vmatprep.subr.bf16.mxu0 0
      %4422 = vmatpush2.bf16.msra.mxu0 %v1924
      %4423 = vmatprep.subr.bf16.mxu0 0
      %4424 = vmatpush2.bf16.msra.mxu0 %v1923
      %4425 = vmatprep.subr.bf16.mxu0 0
      %4426 = vmatpush2.bf16.msra.mxu0 %v1922
      %4427 = vmatprep.subr.bf16.mxu0 0
      %4428 = vmatpush2.bf16.msra.mxu0 %v1921
      %4429 = vmatprep.mubr.bf16.mxu0 %v4016
      %4430 = vmatmul.mubr.bf16.gmra.mxu0 %v4015
      %v4431 = vpop.f32.mrf.mxu0
      %v4432 = vadd.f32 %v4383, %v4431
      %v4433 = vpop.f32.mrf.mxu0
      %v4434 = vpop.f32.mrf.mxu0
      %v4435 = vadd.f32 %v4386, %v4434
      %v4436 = vpop.f32.mrf.mxu0
      %4437 = vmatprep.mubr.bf16.mxu0 %v4041
      %4438 = vmatmul.mubr.bf16.gmra.mxu0 %v4040
      %v4439 = vpop.f32.mrf.mxu0
      %v4440 = vadd.f32 %v4391, %v4439
      %v4441 = vpop.f32.mrf.mxu0
      %v4442 = vpop.f32.mrf.mxu0
      %v4443 = vadd.f32 %v4394, %v4442
      %v4444 = vpop.f32.mrf.mxu0
      %4445 = vdwg.mxu0
      %4446 = vmatprep.subr.bf16.mxu0 0
      %4447 = vmatpush1.bf16.msra.mxu0 %v1936
      %4448 = vmatprep.subr.bf16.mxu0 0
      %4449 = vmatpush1.bf16.msra.mxu0 %v1935
      %4450 = vmatprep.subr.bf16.mxu0 0
      %4451 = vmatpush1.bf16.msra.mxu0 %v1934
      %4452 = vmatprep.subr.bf16.mxu0 0
      %4453 = vmatpush1.bf16.msra.mxu0 %v1933
      %4454 = vmatprep.subr.bf16.mxu0 0
      %4455 = vmatpush1.bf16.msra.mxu0 %v1932
      %4456 = vmatprep.subr.bf16.mxu0 0
      %4457 = vmatpush1.bf16.msra.mxu0 %v1931
      %4458 = vmatprep.subr.bf16.mxu0 0
      %4459 = vmatpush1.bf16.msra.mxu0 %v1930
      %4460 = vmatprep.subr.bf16.mxu0 0
      %4461 = vmatpush1.bf16.msra.mxu0 %v1929
      %4462 = vmatprep.subr.bf16.mxu0 0
      %4463 = vmatpush2.bf16.msra.mxu0 %v1944
      %4464 = vmatprep.subr.bf16.mxu0 0
      %4465 = vmatpush2.bf16.msra.mxu0 %v1943
      %4466 = vmatprep.subr.bf16.mxu0 0
      %4467 = vmatpush2.bf16.msra.mxu0 %v1942
      %4468 = vmatprep.subr.bf16.mxu0 0
      %4469 = vmatpush2.bf16.msra.mxu0 %v1941
      %4470 = vmatprep.subr.bf16.mxu0 0
      %4471 = vmatpush2.bf16.msra.mxu0 %v1940
      %4472 = vmatprep.subr.bf16.mxu0 0
      %4473 = vmatpush2.bf16.msra.mxu0 %v1939
      %4474 = vmatprep.subr.bf16.mxu0 0
      %4475 = vmatpush2.bf16.msra.mxu0 %v1938
      %4476 = vmatprep.subr.bf16.mxu0 0
      %4477 = vmatpush2.bf16.msra.mxu0 %v1937
      %4478 = vmatprep.mubr.bf16.mxu0 %v4018
      %4479 = vmatmul.mubr.bf16.gmra.mxu0 %v4017
      %v4480 = vpop.f32.mrf.mxu0
      %v4481 = vadd.f32 %v4432, %v4480
      %v4482 = vpop.f32.mrf.mxu0
      %v4483 = vpop.f32.mrf.mxu0
      %v4484 = vadd.f32 %v4435, %v4483
      %v4485 = vpop.f32.mrf.mxu0
      %4486 = vmatprep.mubr.bf16.mxu0 %v4043
      %4487 = vmatmul.mubr.bf16.gmra.mxu0 %v4042
      %v4488 = vpop.f32.mrf.mxu0
      %v4489 = vadd.f32 %v4440, %v4488
      %v4490 = vpop.f32.mrf.mxu0
      %v4491 = vpop.f32.mrf.mxu0
      %v4492 = vadd.f32 %v4443, %v4491
      %v4493 = vpop.f32.mrf.mxu0
      %4494 = vdwg.mxu0
      %4495 = vmatprep.subr.bf16.mxu0 0
      %4496 = vmatpush1.bf16.msra.mxu0 %v1952
      %4497 = vmatprep.subr.bf16.mxu0 0
      %4498 = vmatpush1.bf16.msra.mxu0 %v1951
      %4499 = vmatprep.subr.bf16.mxu0 0
      %4500 = vmatpush1.bf16.msra.mxu0 %v1950
      %4501 = vmatprep.subr.bf16.mxu0 0
      %4502 = vmatpush1.bf16.msra.mxu0 %v1949
      %4503 = vmatprep.subr.bf16.mxu0 0
      %4504 = vmatpush1.bf16.msra.mxu0 %v1948
      %4505 = vmatprep.subr.bf16.mxu0 0
      %4506 = vmatpush1.bf16.msra.mxu0 %v1947
      %4507 = vmatprep.subr.bf16.mxu0 0
      %4508 = vmatpush1.bf16.msra.mxu0 %v1946
      %4509 = vmatprep.subr.bf16.mxu0 0
      %4510 = vmatpush1.bf16.msra.mxu0 %v1945
      %4511 = vmatprep.subr.bf16.mxu0 0
      %4512 = vmatpush2.bf16.msra.mxu0 %v1960
      %4513 = vmatprep.subr.bf16.mxu0 0
      %4514 = vmatpush2.bf16.msra.mxu0 %v1959
      %4515 = vmatprep.subr.bf16.mxu0 0
      %4516 = vmatpush2.bf16.msra.mxu0 %v1958
      %4517 = vmatprep.subr.bf16.mxu0 0
      %4518 = vmatpush2.bf16.msra.mxu0 %v1957
      %4519 = vmatprep.subr.bf16.mxu0 0
      %4520 = vmatpush2.bf16.msra.mxu0 %v1956
      %4521 = vmatprep.subr.bf16.mxu0 0
      %4522 = vmatpush2.bf16.msra.mxu0 %v1955
      %4523 = vmatprep.subr.bf16.mxu0 0
      %4524 = vmatpush2.bf16.msra.mxu0 %v1954
      %4525 = vmatprep.subr.bf16.mxu0 0
      %4526 = vmatpush2.bf16.msra.mxu0 %v1953
      %4527 = vmatprep.mubr.bf16.mxu0 %v4020
      %4528 = vmatmul.mubr.bf16.gmra.mxu0 %v4019
      %v4529 = vpop.f32.mrf.mxu0
      %v4530 = vadd.f32 %v4481, %v4529
      %v4531 = vpop.f32.mrf.mxu0
      %v4532 = vpop.f32.mrf.mxu0
      %v4533 = vadd.f32 %v4484, %v4532
      %v4534 = vpop.f32.mrf.mxu0
      %4535 = vmatprep.mubr.bf16.mxu0 %v4045
      %4536 = vmatmul.mubr.bf16.gmra.mxu0 %v4044
      %v4537 = vpop.f32.mrf.mxu0
      %v4538 = vadd.f32 %v4489, %v4537
      %v4539 = vpop.f32.mrf.mxu0
      %v4540 = vpop.f32.mrf.mxu0
      %v4541 = vadd.f32 %v4492, %v4540
      %v4542 = vpop.f32.mrf.mxu0
      %4543 = vdwg.mxu0
      %4544 = vmatprep.subr.bf16.mxu0 0
      %4545 = vmatpush1.bf16.msra.mxu0 %v1968
      %4546 = vmatprep.subr.bf16.mxu0 0
      %4547 = vmatpush1.bf16.msra.mxu0 %v1967
      %4548 = vmatprep.subr.bf16.mxu0 0
      %4549 = vmatpush1.bf16.msra.mxu0 %v1966
      %4550 = vmatprep.subr.bf16.mxu0 0
      %4551 = vmatpush1.bf16.msra.mxu0 %v1965
      %4552 = vmatprep.subr.bf16.mxu0 0
      %4553 = vmatpush1.bf16.msra.mxu0 %v1964
      %4554 = vmatprep.subr.bf16.mxu0 0
      %4555 = vmatpush1.bf16.msra.mxu0 %v1963
      %4556 = vmatprep.subr.bf16.mxu0 0
      %4557 = vmatpush1.bf16.msra.mxu0 %v1962
      %4558 = vmatprep.subr.bf16.mxu0 0
      %4559 = vmatpush1.bf16.msra.mxu0 %v1961
      %4560 = vmatprep.subr.bf16.mxu0 0
      %4561 = vmatpush2.bf16.msra.mxu0 %v1976
      %4562 = vmatprep.subr.bf16.mxu0 0
      %4563 = vmatpush2.bf16.msra.mxu0 %v1975
      %4564 = vmatprep.subr.bf16.mxu0 0
      %4565 = vmatpush2.bf16.msra.mxu0 %v1974
      %4566 = vmatprep.subr.bf16.mxu0 0
      %4567 = vmatpush2.bf16.msra.mxu0 %v1973
      %4568 = vmatprep.subr.bf16.mxu0 0
      %4569 = vmatpush2.bf16.msra.mxu0 %v1972
      %4570 = vmatprep.subr.bf16.mxu0 0
      %4571 = vmatpush2.bf16.msra.mxu0 %v1971
      %4572 = vmatprep.subr.bf16.mxu0 0
      %4573 = vmatpush2.bf16.msra.mxu0 %v1970
      %4574 = vmatprep.subr.bf16.mxu0 0
      %4575 = vmatpush2.bf16.msra.mxu0 %v1969
      %4576 = vmatprep.mubr.bf16.mxu0 %v4022
      %4577 = vmatmul.mubr.bf16.gmra.mxu0 %v4021
      %v4578 = vpop.f32.mrf.mxu0
      %v4579 = vadd.f32 %v4530, %v4578
      %v4580 = vpop.f32.mrf.mxu0
      %v4581 = vpop.f32.mrf.mxu0
      %v4582 = vadd.f32 %v4533, %v4581
      %v4583 = vpop.f32.mrf.mxu0
      %4584 = vmatprep.mubr.bf16.mxu0 %v4047
      %4585 = vmatmul.mubr.bf16.gmra.mxu0 %v4046
      %v4586 = vpop.f32.mrf.mxu0
      %v4587 = vadd.f32 %v4538, %v4586
      %v4588 = vpop.f32.mrf.mxu0
      %v4589 = vpop.f32.mrf.mxu0
      %v4590 = vadd.f32 %v4541, %v4589
      %v4591 = vpop.f32.mrf.mxu0
      %4592 = vdwg.mxu0
      %4593 = vmatprep.subr.bf16.mxu0 0
      %4594 = vmatpush1.bf16.msra.mxu0 %v1984
      %4595 = vmatprep.subr.bf16.mxu0 0
      %4596 = vmatpush1.bf16.msra.mxu0 %v1983
      %4597 = vmatprep.subr.bf16.mxu0 0
      %4598 = vmatpush1.bf16.msra.mxu0 %v1982
      %4599 = vmatprep.subr.bf16.mxu0 0
      %4600 = vmatpush1.bf16.msra.mxu0 %v1981
      %4601 = vmatprep.subr.bf16.mxu0 0
      %4602 = vmatpush1.bf16.msra.mxu0 %v1980
      %4603 = vmatprep.subr.bf16.mxu0 0
      %4604 = vmatpush1.bf16.msra.mxu0 %v1979
      %4605 = vmatprep.subr.bf16.mxu0 0
      %4606 = vmatpush1.bf16.msra.mxu0 %v1978
      %4607 = vmatprep.subr.bf16.mxu0 0
      %4608 = vmatpush1.bf16.msra.mxu0 %v1977
      %4609 = vmatprep.subr.bf16.mxu0 0
      %4610 = vmatpush2.bf16.msra.mxu0 %v1992
      %4611 = vmatprep.subr.bf16.mxu0 0
      %4612 = vmatpush2.bf16.msra.mxu0 %v1991
      %4613 = vmatprep.subr.bf16.mxu0 0
      %4614 = vmatpush2.bf16.msra.mxu0 %v1990
      %4615 = vmatprep.subr.bf16.mxu0 0
      %4616 = vmatpush2.bf16.msra.mxu0 %v1989
      %4617 = vmatprep.subr.bf16.mxu0 0
      %4618 = vmatpush2.bf16.msra.mxu0 %v1988
      %4619 = vmatprep.subr.bf16.mxu0 0
      %4620 = vmatpush2.bf16.msra.mxu0 %v1987
      %4621 = vmatprep.subr.bf16.mxu0 0
      %4622 = vmatpush2.bf16.msra.mxu0 %v1986
      %4623 = vmatprep.subr.bf16.mxu0 0
      %4624 = vmatpush2.bf16.msra.mxu0 %v1985
      %4625 = vmatprep.mubr.bf16.mxu0 %v4024
      %4626 = vmatmul.mubr.bf16.gmra.mxu0 %v4023
      %v4627 = vpop.f32.mrf.mxu0
      %v4628 = vadd.f32 %v4579, %v4627
      %v4629 = vpop.f32.mrf.mxu0
      %v4630 = vpop.f32.mrf.mxu0
      %v4631 = vadd.f32 %v4582, %v4630
      %v4632 = vpop.f32.mrf.mxu0
      %4633 = vmatprep.mubr.bf16.mxu0 %v4049
      %4634 = vmatmul.mubr.bf16.gmra.mxu0 %v4048
      %v4635 = vpop.f32.mrf.mxu0
      %v4636 = vadd.f32 %v4587, %v4635
      %v4637 = vpop.f32.mrf.mxu0
      %v4638 = vpop.f32.mrf.mxu0
      %v4639 = vadd.f32 %v4590, %v4638
      %v4640 = vpop.f32.mrf.mxu0
      %4641 = vdwg.mxu0
      %4642 = vmatprep.subr.bf16.mxu0 0
      %4643 = vmatpush1.bf16.msra.mxu0 %v2000
      %4644 = vmatprep.subr.bf16.mxu0 0
      %4645 = vmatpush1.bf16.msra.mxu0 %v1999
      %4646 = vmatprep.subr.bf16.mxu0 0
      %4647 = vmatpush1.bf16.msra.mxu0 %v1998
      %4648 = vmatprep.subr.bf16.mxu0 0
      %4649 = vmatpush1.bf16.msra.mxu0 %v1997
      %4650 = vmatprep.subr.bf16.mxu0 0
      %4651 = vmatpush1.bf16.msra.mxu0 %v1996
      %4652 = vmatprep.subr.bf16.mxu0 0
      %4653 = vmatpush1.bf16.msra.mxu0 %v1995
      %4654 = vmatprep.subr.bf16.mxu0 0
      %4655 = vmatpush1.bf16.msra.mxu0 %v1994
      %4656 = vmatprep.subr.bf16.mxu0 0
      %4657 = vmatpush1.bf16.msra.mxu0 %v1993
      %4658 = vmatprep.subr.bf16.mxu0 0
      %4659 = vmatpush2.bf16.msra.mxu0 %v2008
      %4660 = vmatprep.subr.bf16.mxu0 0
      %4661 = vmatpush2.bf16.msra.mxu0 %v2007
      %4662 = vmatprep.subr.bf16.mxu0 0
      %4663 = vmatpush2.bf16.msra.mxu0 %v2006
      %4664 = vmatprep.subr.bf16.mxu0 0
      %4665 = vmatpush2.bf16.msra.mxu0 %v2005
      %4666 = vmatprep.subr.bf16.mxu0 0
      %4667 = vmatpush2.bf16.msra.mxu0 %v2004
      %4668 = vmatprep.subr.bf16.mxu0 0
      %4669 = vmatpush2.bf16.msra.mxu0 %v2003
      %4670 = vmatprep.subr.bf16.mxu0 0
      %4671 = vmatpush2.bf16.msra.mxu0 %v2002
      %4672 = vmatprep.subr.bf16.mxu0 0
      %4673 = vmatpush2.bf16.msra.mxu0 %v2001
      %4674 = vmatprep.mubr.bf16.mxu0 %v4026
      %4675 = vmatmul.mubr.bf16.gmra.mxu0 %v4025
      %v4676 = vpop.f32.mrf.mxu0
      %v4677 = vadd.f32 %v4628, %v4676
      %v4678 = vpop.f32.mrf.mxu0
      %v4679 = vpop.f32.mrf.mxu0
      %v4680 = vadd.f32 %v4631, %v4679
      %v4681 = vpop.f32.mrf.mxu0
      %4682 = vmatprep.mubr.bf16.mxu0 %v4051
      %4683 = vmatmul.mubr.bf16.gmra.mxu0 %v4050
      %v4684 = vpop.f32.mrf.mxu0
      %v4685 = vadd.f32 %v4636, %v4684
      %v4686 = vpop.f32.mrf.mxu0
      %v4687 = vpop.f32.mrf.mxu0
      %v4688 = vadd.f32 %v4639, %v4687
      %v4689 = vpop.f32.mrf.mxu0
      %4690 = vdwg.mxu0
      %4691 = vmatprep.subr.bf16.mxu0 0
      %4692 = vmatpush1.bf16.msra.mxu0 %v2016
      %4693 = vmatprep.subr.bf16.mxu0 0
      %4694 = vmatpush1.bf16.msra.mxu0 %v2015
      %4695 = vmatprep.subr.bf16.mxu0 0
      %4696 = vmatpush1.bf16.msra.mxu0 %v2014
      %4697 = vmatprep.subr.bf16.mxu0 0
      %4698 = vmatpush1.bf16.msra.mxu0 %v2013
      %4699 = vmatprep.subr.bf16.mxu0 0
      %4700 = vmatpush1.bf16.msra.mxu0 %v2012
      %4701 = vmatprep.subr.bf16.mxu0 0
      %4702 = vmatpush1.bf16.msra.mxu0 %v2011
      %4703 = vmatprep.subr.bf16.mxu0 0
      %4704 = vmatpush1.bf16.msra.mxu0 %v2010
      %4705 = vmatprep.subr.bf16.mxu0 0
      %4706 = vmatpush1.bf16.msra.mxu0 %v2009
      %4707 = vmatprep.subr.bf16.mxu0 0
      %4708 = vmatpush2.bf16.msra.mxu0 0
      %4709 = vmatprep.subr.bf16.mxu0 0
      %4710 = vmatpush2.bf16.msra.mxu0 0
      %4711 = vmatprep.subr.bf16.mxu0 0
      %4712 = vmatpush2.bf16.msra.mxu0 0
      %4713 = vmatprep.subr.bf16.mxu0 0
      %4714 = vmatpush2.bf16.msra.mxu0 0
      %4715 = vmatprep.subr.bf16.mxu0 0
      %4716 = vmatpush2.bf16.msra.mxu0 0
      %4717 = vmatprep.subr.bf16.mxu0 0
      %4718 = vmatpush2.bf16.msra.mxu0 0
      %4719 = vmatprep.subr.bf16.mxu0 0
      %4720 = vmatpush2.bf16.msra.mxu0 0
      %4721 = vmatprep.subr.bf16.mxu0 0
      %4722 = vmatpush2.bf16.msra.mxu0 0
      %4723 = vmatprep.mubr.bf16.mxu0 0
      %4724 = vmatmul.mubr.bf16.gmra.mxu0 %v4027
      %v4725 = vpop.f32.mrf.mxu0
      %v4726 = vadd.f32 %v4677, %v4725
      %v4727 = vpop.f32.mrf.mxu0
      %v4728 = vpop.f32.mrf.mxu0
      %v4729 = vadd.f32 %v4680, %v4728
      %v4730 = vpop.f32.mrf.mxu0
      %4731 = vmatprep.mubr.bf16.mxu0 0
      %4732 = vmatmul.mubr.bf16.gmra.mxu0 %v4052
      %v4733 = vpop.f32.mrf.mxu0
      %v4734 = vadd.f32 %v4685, %v4733
      %v4735 = vpop.f32.mrf.mxu0
      %v4736 = vpop.f32.mrf.mxu0
      %v4737 = vadd.f32 %v4688, %v4736
      %v4738 = vpop.f32.mrf.mxu0
      %4739 = vdwg.mxu0
      %v4740 = vmax.f32 %v3795, %v4726
      %v4741 = vmax.f32 %v3796, %v4729
      %v4742 = vmax.f32 %v3797, %v4734
      %v4743 = vmax.f32 %v3798, %v4737
      %v4744 = vld [vmem:[%s306] sm:$0xff]
      %v4745 = vld [vmem:[%s306 + $0x8] sm:$0xff]
      %v4746 = vld [vmem:[%s306 + $0x10] sm:$0xff]
      %v4747 = vld [vmem:[%s306 + $0x18] sm:$0xff]
      %v4748 = vld [vmem:[%s306 + $0x20] sm:$0xff]
      %v4749 = vld [vmem:[%s306 + $0x28] sm:$0xff]
      %v4750 = vld [vmem:[%s306 + $0x30] sm:$0xff]
      %v4751 = vld [vmem:[%s306 + $0x38] sm:$0xff]
      %v4752 = vld [vmem:[%s306 + $0x40] sm:$0xff]
      %v4753 = vld [vmem:[%s306 + $0x48] sm:$0xff]
      %v4754 = vld [vmem:[%s306 + $0x50] sm:$0xff]
      %v4755 = vld [vmem:[%s306 + $0x58] sm:$0xff]
      %v4756 = vld [vmem:[%s306 + $0x60] sm:$0xf]
      %v4757 = vld [vmem:[%s306 + $0x64] sm:$0xff]
      %v4758 = vld [vmem:[%s306 + $0x6c] sm:$0xff]
      %v4759 = vld [vmem:[%s306 + $0x74] sm:$0xff]
      %v4760 = vld [vmem:[%s306 + $0x7c] sm:$0xff]
      %v4761 = vld [vmem:[%s306 + $0x84] sm:$0xff]
      %v4762 = vld [vmem:[%s306 + $0x8c] sm:$0xff]
      %v4763 = vld [vmem:[%s306 + $0x94] sm:$0xff]
      %v4764 = vld [vmem:[%s306 + $0x9c] sm:$0xff]
      %v4765 = vld [vmem:[%s306 + $0xa4] sm:$0xff]
      %v4766 = vld [vmem:[%s306 + $0xac] sm:$0xff]
      %v4767 = vld [vmem:[%s306 + $0xb4] sm:$0xff]
      %v4768 = vld [vmem:[%s306 + $0xbc] sm:$0xff]
      %v4769 = vld [vmem:[%s306 + $0xc4] sm:$0xf]
      %v4770 = vld [vmem:[%s306 + $0xc8] sm:$0xff]
      %v4771 = vld [vmem:[%s306 + $0xd0] sm:$0xff]
      %v4772 = vld [vmem:[%s306 + $0xd8] sm:$0xff]
      %v4773 = vld [vmem:[%s306 + $0xe0] sm:$0xff]
      %v4774 = vld [vmem:[%s306 + $0xe8] sm:$0xff]
      %v4775 = vld [vmem:[%s306 + $0xf0] sm:$0xff]
      %v4776 = vld [vmem:[%s306 + $0xf8] sm:$0xff]
      %v4777 = vld [vmem:[%s306 + $0x100] sm:$0xff]
      %v4778 = vld [vmem:[%s306 + $0x108] sm:$0xff]
      %v4779 = vld [vmem:[%s306 + $0x110] sm:$0xff]
      %v4780 = vld [vmem:[%s306 + $0x118] sm:$0xff]
      %v4781 = vld [vmem:[%s306 + $0x120] sm:$0xff]
      %v4782 = vld [vmem:[%s306 + $0x128] sm:$0xf]
      %v4783 = vld [vmem:[%s306 + $0x12c] sm:$0x11]
      %v4784 = vld [vmem:[%s306 + $0x134] sm:$0x11]
      %v4785 = vld [vmem:[%s306 + $0x13c] sm:$0x11]
      %v4786 = vld [vmem:[%s306 + $0x144] sm:$0x11]
      %v4787 = vld [vmem:[%s306 + $0x14c] sm:$0x11]
      %v4788 = vld [vmem:[%s306 + $0x154] sm:$0x11]
      %v4789 = vld [vmem:[%s306 + $0x15c] sm:$0x11]
      %v4790 = vld [vmem:[%s306 + $0x164] sm:$0x11]
      %v4791 = vld [vmem:[%s306 + $0x16c] sm:$0x11]
      %v4792 = vld [vmem:[%s306 + $0x174] sm:$0x11]
      %v4793 = vld [vmem:[%s306 + $0x17c] sm:$0x11]
      %v4794 = vld [vmem:[%s306 + $0x184] sm:$0x11]
      %v4795 = vld [vmem:[%s306 + $0x18c] sm:$0x1]
      %v4848 = vunpack.c.l.b16 %v4744
      %v4849 = vunpack.c.h.b16 %v4744
      %v4850 = vunpack.c.l.b16 %v4745
      %v4851 = vunpack.c.h.b16 %v4745
      %v4852 = vunpack.c.l.b16 %v4746
      %v4853 = vunpack.c.h.b16 %v4746
      %v4854 = vunpack.c.l.b16 %v4747
      %v4855 = vunpack.c.h.b16 %v4747
      %v4856 = vunpack.c.l.b16 %v4748
      %v4857 = vunpack.c.h.b16 %v4748
      %v4858 = vunpack.c.l.b16 %v4749
      %v4859 = vunpack.c.h.b16 %v4749
      %v4860 = vunpack.c.l.b16 %v4750
      %v4861 = vunpack.c.h.b16 %v4750
      %v4862 = vunpack.c.l.b16 %v4751
      %v4863 = vunpack.c.h.b16 %v4751
      %v4864 = vunpack.c.l.b16 %v4752
      %v4865 = vunpack.c.h.b16 %v4752
      %v4866 = vunpack.c.l.b16 %v4753
      %v4867 = vunpack.c.h.b16 %v4753
      %v4868 = vunpack.c.l.b16 %v4754
      %v4869 = vunpack.c.h.b16 %v4754
      %v4870 = vunpack.c.l.b16 %v4755
      %v4871 = vunpack.c.h.b16 %v4755
      %v4872 = vunpack.c.l.b16 %v4756
      %v4873 = vunpack.c.l.b16 %v4757
      %v4874 = vunpack.c.h.b16 %v4757
      %v4875 = vunpack.c.l.b16 %v4758
      %v4876 = vunpack.c.h.b16 %v4758
      %v4877 = vunpack.c.l.b16 %v4759
      %v4878 = vunpack.c.h.b16 %v4759
      %v4879 = vunpack.c.l.b16 %v4760
      %v4880 = vunpack.c.h.b16 %v4760
      %v4881 = vunpack.c.l.b16 %v4761
      %v4882 = vunpack.c.h.b16 %v4761
      %v4883 = vunpack.c.l.b16 %v4762
      %v4884 = vunpack.c.h.b16 %v4762
      %v4885 = vunpack.c.l.b16 %v4763
      %v4886 = vunpack.c.h.b16 %v4763
      %v4887 = vunpack.c.l.b16 %v4764
      %v4888 = vunpack.c.h.b16 %v4764
      %v4889 = vunpack.c.l.b16 %v4765
      %v4890 = vunpack.c.h.b16 %v4765
      %v4891 = vunpack.c.l.b16 %v4766
      %v4892 = vunpack.c.h.b16 %v4766
      %v4893 = vunpack.c.l.b16 %v4767
      %v4894 = vunpack.c.h.b16 %v4767
      %v4895 = vunpack.c.l.b16 %v4768
      %v4896 = vunpack.c.h.b16 %v4768
      %v4897 = vunpack.c.l.b16 %v4769
      %v4898 = vunpack.c.l.b16 %v4770
      %v4899 = vunpack.c.h.b16 %v4770
      %v4900 = vunpack.c.l.b16 %v4771
      %v4901 = vunpack.c.h.b16 %v4771
      %v4902 = vunpack.c.l.b16 %v4772
      %v4903 = vunpack.c.h.b16 %v4772
      %v4904 = vunpack.c.l.b16 %v4773
      %v4905 = vunpack.c.h.b16 %v4773
      %v4906 = vunpack.c.l.b16 %v4774
      %v4907 = vunpack.c.h.b16 %v4774
      %v4908 = vunpack.c.l.b16 %v4775
      %v4909 = vunpack.c.h.b16 %v4775
      %v4910 = vunpack.c.l.b16 %v4776
      %v4911 = vunpack.c.h.b16 %v4776
      %v4912 = vunpack.c.l.b16 %v4777
      %v4913 = vunpack.c.h.b16 %v4777
      %v4914 = vunpack.c.l.b16 %v4778
      %v4915 = vunpack.c.h.b16 %v4778
      %v4916 = vunpack.c.l.b16 %v4779
      %v4917 = vunpack.c.h.b16 %v4779
      %v4918 = vunpack.c.l.b16 %v4780
      %v4919 = vunpack.c.h.b16 %v4780
      %v4920 = vunpack.c.l.b16 %v4781
      %v4921 = vunpack.c.h.b16 %v4781
      %v4922 = vunpack.c.l.b16 %v4782
      %v4923 = vunpack.c.l.b16 %v4783
      %v4924 = vunpack.c.h.b16 %v4783
      %v4925 = vunpack.c.l.b16 %v4784
      %v4926 = vunpack.c.h.b16 %v4784
      %v4927 = vunpack.c.l.b16 %v4785
      %v4928 = vunpack.c.h.b16 %v4785
      %v4929 = vunpack.c.l.b16 %v4786
      %v4930 = vunpack.c.h.b16 %v4786
      %v4931 = vunpack.c.l.b16 %v4787
      %v4932 = vunpack.c.h.b16 %v4787
      %v4933 = vunpack.c.l.b16 %v4788
      %v4934 = vunpack.c.h.b16 %v4788
      %v4935 = vunpack.c.l.b16 %v4789
      %v4936 = vunpack.c.h.b16 %v4789
      %v4937 = vunpack.c.l.b16 %v4790
      %v4938 = vunpack.c.h.b16 %v4790
      %v4939 = vunpack.c.l.b16 %v4791
      %v4940 = vunpack.c.h.b16 %v4791
      %v4941 = vunpack.c.l.b16 %v4792
      %v4942 = vunpack.c.h.b16 %v4792
      %v4943 = vunpack.c.l.b16 %v4793
      %v4944 = vunpack.c.h.b16 %v4793
      %v4945 = vunpack.c.l.b16 %v4794
      %v4946 = vunpack.c.h.b16 %v4794
      %v4947 = vunpack.c.l.b16 %v4795
      %v4948 = vpack.c.b16 %v4873, %v4848
      %v4949 = vpack.c.b16 %v4874, %v4849
      %v4950 = vpack.c.b16 %v4875, %v4850
      %v4951 = vpack.c.b16 %v4876, %v4851
      %v4952 = vpack.c.b16 %v4877, %v4852
      %v4953 = vpack.c.b16 %v4878, %v4853
      %v4954 = vpack.c.b16 %v4879, %v4854
      %v4955 = vpack.c.b16 %v4880, %v4855
      %v4956 = vpack.c.b16 %v4881, %v4856
      %v4957 = vpack.c.b16 %v4882, %v4857
      %v4958 = vpack.c.b16 %v4883, %v4858
      %v4959 = vpack.c.b16 %v4884, %v4859
      %v4960 = vpack.c.b16 %v4885, %v4860
      %v4961 = vpack.c.b16 %v4886, %v4861
      %v4962 = vpack.c.b16 %v4887, %v4862
      %v4963 = vpack.c.b16 %v4888, %v4863
      %v4964 = vpack.c.b16 %v4889, %v4864
      %v4965 = vpack.c.b16 %v4890, %v4865
      %v4966 = vpack.c.b16 %v4891, %v4866
      %v4967 = vpack.c.b16 %v4892, %v4867
      %v4968 = vpack.c.b16 %v4893, %v4868
      %v4969 = vpack.c.b16 %v4894, %v4869
      %v4970 = vpack.c.b16 %v4895, %v4870
      %v4971 = vpack.c.b16 %v4896, %v4871
      %v4972 = vpack.c.b16 %v4897, %v4872
      %v4973 = vpack.c.b16 %v4923, %v4898
      %v4974 = vpack.c.b16 %v4924, %v4899
      %v4975 = vpack.c.b16 %v4925, %v4900
      %v4976 = vpack.c.b16 %v4926, %v4901
      %v4977 = vpack.c.b16 %v4927, %v4902
      %v4978 = vpack.c.b16 %v4928, %v4903
      %v4979 = vpack.c.b16 %v4929, %v4904
      %v4980 = vpack.c.b16 %v4930, %v4905
      %v4981 = vpack.c.b16 %v4931, %v4906
      %v4982 = vpack.c.b16 %v4932, %v4907
      %v4983 = vpack.c.b16 %v4933, %v4908
      %v4984 = vpack.c.b16 %v4934, %v4909
      %v4985 = vpack.c.b16 %v4935, %v4910
      %v4986 = vpack.c.b16 %v4936, %v4911
      %v4987 = vpack.c.b16 %v4937, %v4912
      %v4988 = vpack.c.b16 %v4938, %v4913
      %v4989 = vpack.c.b16 %v4939, %v4914
      %v4990 = vpack.c.b16 %v4940, %v4915
      %v4991 = vpack.c.b16 %v4941, %v4916
      %v4992 = vpack.c.b16 %v4942, %v4917
      %v4993 = vpack.c.b16 %v4943, %v4918
      %v4994 = vpack.c.b16 %v4944, %v4919
      %v4995 = vpack.c.b16 %v4945, %v4920
      %v4996 = vpack.c.b16 %v4946, %v4921
      %v4997 = vpack.c.b16 %v4947, %v4922
      %5048 = vmatprep.subr.bf16.mxu0 0
      %5049 = vmatpush1.bf16.msra.mxu0 %v1824
      %5050 = vmatprep.subr.bf16.mxu0 0
      %5051 = vmatpush1.bf16.msra.mxu0 %v1823
      %5052 = vmatprep.subr.bf16.mxu0 0
      %5053 = vmatpush1.bf16.msra.mxu0 %v1822
      %5054 = vmatprep.subr.bf16.mxu0 0
      %5055 = vmatpush1.bf16.msra.mxu0 %v1821
      %5056 = vmatprep.subr.bf16.mxu0 0
      %5057 = vmatpush1.bf16.msra.mxu0 %v1820
      %5058 = vmatprep.subr.bf16.mxu0 0
      %5059 = vmatpush1.bf16.msra.mxu0 %v1819
      %5060 = vmatprep.subr.bf16.mxu0 0
      %5061 = vmatpush1.bf16.msra.mxu0 %v1818
      %5062 = vmatprep.subr.bf16.mxu0 0
      %5063 = vmatpush1.bf16.msra.mxu0 %v1817
      %5064 = vmatprep.subr.bf16.mxu0 0
      %5065 = vmatpush2.bf16.msra.mxu0 %v1832
      %5066 = vmatprep.subr.bf16.mxu0 0
      %5067 = vmatpush2.bf16.msra.mxu0 %v1831
      %5068 = vmatprep.subr.bf16.mxu0 0
      %5069 = vmatpush2.bf16.msra.mxu0 %v1830
      %5070 = vmatprep.subr.bf16.mxu0 0
      %5071 = vmatpush2.bf16.msra.mxu0 %v1829
      %5072 = vmatprep.subr.bf16.mxu0 0
      %5073 = vmatpush2.bf16.msra.mxu0 %v1828
      %5074 = vmatprep.subr.bf16.mxu0 0
      %5075 = vmatpush2.bf16.msra.mxu0 %v1827
      %5076 = vmatprep.subr.bf16.mxu0 0
      %5077 = vmatpush2.bf16.msra.mxu0 %v1826
      %5078 = vmatprep.subr.bf16.mxu0 0
      %5079 = vmatpush2.bf16.msra.mxu0 %v1825
      %5080 = vmatprep.mubr.bf16.mxu0 %v4949
      %5081 = vmatmul.mubr.bf16.gmra.mxu0 %v4948
      %v5082 = vpop.f32.mrf.mxu0
      %v5083 = vadd.f32 0.0, %v5082
      %v5084 = vpop.f32.mrf.mxu0
      %v5085 = vpop.f32.mrf.mxu0
      %v5086 = vadd.f32 0.0, %v5085
      %v5087 = vpop.f32.mrf.mxu0
      %5088 = vmatprep.mubr.bf16.mxu0 %v4974
      %5089 = vmatmul.mubr.bf16.gmra.mxu0 %v4973
      %v5090 = vpop.f32.mrf.mxu0
      %v5091 = vadd.f32 0.0, %v5090
      %v5092 = vpop.f32.mrf.mxu0
      %v5093 = vpop.f32.mrf.mxu0
      %v5094 = vadd.f32 0.0, %v5093
      %v5095 = vpop.f32.mrf.mxu0
      %5096 = vdwg.mxu0
      %5097 = vmatprep.subr.bf16.mxu0 0
      %5098 = vmatpush1.bf16.msra.mxu0 %v1840
      %5099 = vmatprep.subr.bf16.mxu0 0
      %5100 = vmatpush1.bf16.msra.mxu0 %v1839
      %5101 = vmatprep.subr.bf16.mxu0 0
      %5102 = vmatpush1.bf16.msra.mxu0 %v1838
      %5103 = vmatprep.subr.bf16.mxu0 0
      %5104 = vmatpush1.bf16.msra.mxu0 %v1837
      %5105 = vmatprep.subr.bf16.mxu0 0
      %5106 = vmatpush1.bf16.msra.mxu0 %v1836
      %5107 = vmatprep.subr.bf16.mxu0 0
      %5108 = vmatpush1.bf16.msra.mxu0 %v1835
      %5109 = vmatprep.subr.bf16.mxu0 0
      %5110 = vmatpush1.bf16.msra.mxu0 %v1834
      %5111 = vmatprep.subr.bf16.mxu0 0
      %5112 = vmatpush1.bf16.msra.mxu0 %v1833
      %5113 = vmatprep.subr.bf16.mxu0 0
      %5114 = vmatpush2.bf16.msra.mxu0 %v1848
      %5115 = vmatprep.subr.bf16.mxu0 0
      %5116 = vmatpush2.bf16.msra.mxu0 %v1847
      %5117 = vmatprep.subr.bf16.mxu0 0
      %5118 = vmatpush2.bf16.msra.mxu0 %v1846
      %5119 = vmatprep.subr.bf16.mxu0 0
      %5120 = vmatpush2.bf16.msra.mxu0 %v1845
      %5121 = vmatprep.subr.bf16.mxu0 0
      %5122 = vmatpush2.bf16.msra.mxu0 %v1844
      %5123 = vmatprep.subr.bf16.mxu0 0
      %5124 = vmatpush2.bf16.msra.mxu0 %v1843
      %5125 = vmatprep.subr.bf16.mxu0 0
      %5126 = vmatpush2.bf16.msra.mxu0 %v1842
      %5127 = vmatprep.subr.bf16.mxu0 0
      %5128 = vmatpush2.bf16.msra.mxu0 %v1841
      %5129 = vmatprep.mubr.bf16.mxu0 %v4951
      %5130 = vmatmul.mubr.bf16.gmra.mxu0 %v4950
      %v5131 = vpop.f32.mrf.mxu0
      %v5132 = vadd.f32 %v5083, %v5131
      %v5133 = vpop.f32.mrf.mxu0
      %v5134 = vpop.f32.mrf.mxu0
      %v5135 = vadd.f32 %v5086, %v5134
      %v5136 = vpop.f32.mrf.mxu0
      %5137 = vmatprep.mubr.bf16.mxu0 %v4976
      %5138 = vmatmul.mubr.bf16.gmra.mxu0 %v4975
      %v5139 = vpop.f32.mrf.mxu0
      %v5140 = vadd.f32 %v5091, %v5139
      %v5141 = vpop.f32.mrf.mxu0
      %v5142 = vpop.f32.mrf.mxu0
      %v5143 = vadd.f32 %v5094, %v5142
      %v5144 = vpop.f32.mrf.mxu0
      %5145 = vdwg.mxu0
      %5146 = vmatprep.subr.bf16.mxu0 0
      %5147 = vmatpush1.bf16.msra.mxu0 %v1856
      %5148 = vmatprep.subr.bf16.mxu0 0
      %5149 = vmatpush1.bf16.msra.mxu0 %v1855
      %5150 = vmatprep.subr.bf16.mxu0 0
      %5151 = vmatpush1.bf16.msra.mxu0 %v1854
      %5152 = vmatprep.subr.bf16.mxu0 0
      %5153 = vmatpush1.bf16.msra.mxu0 %v1853
      %5154 = vmatprep.subr.bf16.mxu0 0
      %5155 = vmatpush1.bf16.msra.mxu0 %v1852
      %5156 = vmatprep.subr.bf16.mxu0 0
      %5157 = vmatpush1.bf16.msra.mxu0 %v1851
      %5158 = vmatprep.subr.bf16.mxu0 0
      %5159 = vmatpush1.bf16.msra.mxu0 %v1850
      %5160 = vmatprep.subr.bf16.mxu0 0
      %5161 = vmatpush1.bf16.msra.mxu0 %v1849
      %5162 = vmatprep.subr.bf16.mxu0 0
      %5163 = vmatpush2.bf16.msra.mxu0 %v1864
      %5164 = vmatprep.subr.bf16.mxu0 0
      %5165 = vmatpush2.bf16.msra.mxu0 %v1863
      %5166 = vmatprep.subr.bf16.mxu0 0
      %5167 = vmatpush2.bf16.msra.mxu0 %v1862
      %5168 = vmatprep.subr.bf16.mxu0 0
      %5169 = vmatpush2.bf16.msra.mxu0 %v1861
      %5170 = vmatprep.subr.bf16.mxu0 0
      %5171 = vmatpush2.bf16.msra.mxu0 %v1860
      %5172 = vmatprep.subr.bf16.mxu0 0
      %5173 = vmatpush2.bf16.msra.mxu0 %v1859
      %5174 = vmatprep.subr.bf16.mxu0 0
      %5175 = vmatpush2.bf16.msra.mxu0 %v1858
      %5176 = vmatprep.subr.bf16.mxu0 0
      %5177 = vmatpush2.bf16.msra.mxu0 %v1857
      %5178 = vmatprep.mubr.bf16.mxu0 %v4953
      %5179 = vmatmul.mubr.bf16.gmra.mxu0 %v4952
      %v5180 = vpop.f32.mrf.mxu0
      %v5181 = vadd.f32 %v5132, %v5180
      %v5182 = vpop.f32.mrf.mxu0
      %v5183 = vpop.f32.mrf.mxu0
      %v5184 = vadd.f32 %v5135, %v5183
      %v5185 = vpop.f32.mrf.mxu0
      %5186 = vmatprep.mubr.bf16.mxu0 %v4978
      %5187 = vmatmul.mubr.bf16.gmra.mxu0 %v4977
      %v5188 = vpop.f32.mrf.mxu0
      %v5189 = vadd.f32 %v5140, %v5188
      %v5190 = vpop.f32.mrf.mxu0
      %v5191 = vpop.f32.mrf.mxu0
      %v5192 = vadd.f32 %v5143, %v5191
      %v5193 = vpop.f32.mrf.mxu0
      %5194 = vdwg.mxu0
      %5195 = vmatprep.subr.bf16.mxu0 0
      %5196 = vmatpush1.bf16.msra.mxu0 %v1872
      %5197 = vmatprep.subr.bf16.mxu0 0
      %5198 = vmatpush1.bf16.msra.mxu0 %v1871
      %5199 = vmatprep.subr.bf16.mxu0 0
      %5200 = vmatpush1.bf16.msra.mxu0 %v1870
      %5201 = vmatprep.subr.bf16.mxu0 0
      %5202 = vmatpush1.bf16.msra.mxu0 %v1869
      %5203 = vmatprep.subr.bf16.mxu0 0
      %5204 = vmatpush1.bf16.msra.mxu0 %v1868
      %5205 = vmatprep.subr.bf16.mxu0 0
      %5206 = vmatpush1.bf16.msra.mxu0 %v1867
      %5207 = vmatprep.subr.bf16.mxu0 0
      %5208 = vmatpush1.bf16.msra.mxu0 %v1866
      %5209 = vmatprep.subr.bf16.mxu0 0
      %5210 = vmatpush1.bf16.msra.mxu0 %v1865
      %5211 = vmatprep.subr.bf16.mxu0 0
      %5212 = vmatpush2.bf16.msra.mxu0 %v1880
      %5213 = vmatprep.subr.bf16.mxu0 0
      %5214 = vmatpush2.bf16.msra.mxu0 %v1879
      %5215 = vmatprep.subr.bf16.mxu0 0
      %5216 = vmatpush2.bf16.msra.mxu0 %v1878
      %5217 = vmatprep.subr.bf16.mxu0 0
      %5218 = vmatpush2.bf16.msra.mxu0 %v1877
      %5219 = vmatprep.subr.bf16.mxu0 0
      %5220 = vmatpush2.bf16.msra.mxu0 %v1876
      %5221 = vmatprep.subr.bf16.mxu0 0
      %5222 = vmatpush2.bf16.msra.mxu0 %v1875
      %5223 = vmatprep.subr.bf16.mxu0 0
      %5224 = vmatpush2.bf16.msra.mxu0 %v1874
      %5225 = vmatprep.subr.bf16.mxu0 0
      %5226 = vmatpush2.bf16.msra.mxu0 %v1873
      %5227 = vmatprep.mubr.bf16.mxu0 %v4955
      %5228 = vmatmul.mubr.bf16.gmra.mxu0 %v4954
      %v5229 = vpop.f32.mrf.mxu0
      %v5230 = vadd.f32 %v5181, %v5229
      %v5231 = vpop.f32.mrf.mxu0
      %v5232 = vpop.f32.mrf.mxu0
      %v5233 = vadd.f32 %v5184, %v5232
      %v5234 = vpop.f32.mrf.mxu0
      %5235 = vmatprep.mubr.bf16.mxu0 %v4980
      %5236 = vmatmul.mubr.bf16.gmra.mxu0 %v4979
      %v5237 = vpop.f32.mrf.mxu0
      %v5238 = vadd.f32 %v5189, %v5237
      %v5239 = vpop.f32.mrf.mxu0
      %v5240 = vpop.f32.mrf.mxu0
      %v5241 = vadd.f32 %v5192, %v5240
      %v5242 = vpop.f32.mrf.mxu0
      %5243 = vdwg.mxu0
      %5244 = vmatprep.subr.bf16.mxu0 0
      %5245 = vmatpush1.bf16.msra.mxu0 %v1888
      %5246 = vmatprep.subr.bf16.mxu0 0
      %5247 = vmatpush1.bf16.msra.mxu0 %v1887
      %5248 = vmatprep.subr.bf16.mxu0 0
      %5249 = vmatpush1.bf16.msra.mxu0 %v1886
      %5250 = vmatprep.subr.bf16.mxu0 0
      %5251 = vmatpush1.bf16.msra.mxu0 %v1885
      %5252 = vmatprep.subr.bf16.mxu0 0
      %5253 = vmatpush1.bf16.msra.mxu0 %v1884
      %5254 = vmatprep.subr.bf16.mxu0 0
      %5255 = vmatpush1.bf16.msra.mxu0 %v1883
      %5256 = vmatprep.subr.bf16.mxu0 0
      %5257 = vmatpush1.bf16.msra.mxu0 %v1882
      %5258 = vmatprep.subr.bf16.mxu0 0
      %5259 = vmatpush1.bf16.msra.mxu0 %v1881
      %5260 = vmatprep.subr.bf16.mxu0 0
      %5261 = vmatpush2.bf16.msra.mxu0 %v1896
      %5262 = vmatprep.subr.bf16.mxu0 0
      %5263 = vmatpush2.bf16.msra.mxu0 %v1895
      %5264 = vmatprep.subr.bf16.mxu0 0
      %5265 = vmatpush2.bf16.msra.mxu0 %v1894
      %5266 = vmatprep.subr.bf16.mxu0 0
      %5267 = vmatpush2.bf16.msra.mxu0 %v1893
      %5268 = vmatprep.subr.bf16.mxu0 0
      %5269 = vmatpush2.bf16.msra.mxu0 %v1892
      %5270 = vmatprep.subr.bf16.mxu0 0
      %5271 = vmatpush2.bf16.msra.mxu0 %v1891
      %5272 = vmatprep.subr.bf16.mxu0 0
      %5273 = vmatpush2.bf16.msra.mxu0 %v1890
      %5274 = vmatprep.subr.bf16.mxu0 0
      %5275 = vmatpush2.bf16.msra.mxu0 %v1889
      %5276 = vmatprep.mubr.bf16.mxu0 %v4957
      %5277 = vmatmul.mubr.bf16.gmra.mxu0 %v4956
      %v5278 = vpop.f32.mrf.mxu0
      %v5279 = vadd.f32 %v5230, %v5278
      %v5280 = vpop.f32.mrf.mxu0
      %v5281 = vpop.f32.mrf.mxu0
      %v5282 = vadd.f32 %v5233, %v5281
      %v5283 = vpop.f32.mrf.mxu0
      %5284 = vmatprep.mubr.bf16.mxu0 %v4982
      %5285 = vmatmul.mubr.bf16.gmra.mxu0 %v4981
      %v5286 = vpop.f32.mrf.mxu0
      %v5287 = vadd.f32 %v5238, %v5286
      %v5288 = vpop.f32.mrf.mxu0
      %v5289 = vpop.f32.mrf.mxu0
      %v5290 = vadd.f32 %v5241, %v5289
      %v5291 = vpop.f32.mrf.mxu0
      %5292 = vdwg.mxu0
      %5293 = vmatprep.subr.bf16.mxu0 0
      %5294 = vmatpush1.bf16.msra.mxu0 %v1904
      %5295 = vmatprep.subr.bf16.mxu0 0
      %5296 = vmatpush1.bf16.msra.mxu0 %v1903
      %5297 = vmatprep.subr.bf16.mxu0 0
      %5298 = vmatpush1.bf16.msra.mxu0 %v1902
      %5299 = vmatprep.subr.bf16.mxu0 0
      %5300 = vmatpush1.bf16.msra.mxu0 %v1901
      %5301 = vmatprep.subr.bf16.mxu0 0
      %5302 = vmatpush1.bf16.msra.mxu0 %v1900
      %5303 = vmatprep.subr.bf16.mxu0 0
      %5304 = vmatpush1.bf16.msra.mxu0 %v1899
      %5305 = vmatprep.subr.bf16.mxu0 0
      %5306 = vmatpush1.bf16.msra.mxu0 %v1898
      %5307 = vmatprep.subr.bf16.mxu0 0
      %5308 = vmatpush1.bf16.msra.mxu0 %v1897
      %5309 = vmatprep.subr.bf16.mxu0 0
      %5310 = vmatpush2.bf16.msra.mxu0 %v1912
      %5311 = vmatprep.subr.bf16.mxu0 0
      %5312 = vmatpush2.bf16.msra.mxu0 %v1911
      %5313 = vmatprep.subr.bf16.mxu0 0
      %5314 = vmatpush2.bf16.msra.mxu0 %v1910
      %5315 = vmatprep.subr.bf16.mxu0 0
      %5316 = vmatpush2.bf16.msra.mxu0 %v1909
      %5317 = vmatprep.subr.bf16.mxu0 0
      %5318 = vmatpush2.bf16.msra.mxu0 %v1908
      %5319 = vmatprep.subr.bf16.mxu0 0
      %5320 = vmatpush2.bf16.msra.mxu0 %v1907
      %5321 = vmatprep.subr.bf16.mxu0 0
      %5322 = vmatpush2.bf16.msra.mxu0 %v1906
      %5323 = vmatprep.subr.bf16.mxu0 0
      %5324 = vmatpush2.bf16.msra.mxu0 %v1905
      %5325 = vmatprep.mubr.bf16.mxu0 %v4959
      %5326 = vmatmul.mubr.bf16.gmra.mxu0 %v4958
      %v5327 = vpop.f32.mrf.mxu0
      %v5328 = vadd.f32 %v5279, %v5327
      %v5329 = vpop.f32.mrf.mxu0
      %v5330 = vpop.f32.mrf.mxu0
      %v5331 = vadd.f32 %v5282, %v5330
      %v5332 = vpop.f32.mrf.mxu0
      %5333 = vmatprep.mubr.bf16.mxu0 %v4984
      %5334 = vmatmul.mubr.bf16.gmra.mxu0 %v4983
      %v5335 = vpop.f32.mrf.mxu0
      %v5336 = vadd.f32 %v5287, %v5335
      %v5337 = vpop.f32.mrf.mxu0
      %v5338 = vpop.f32.mrf.mxu0
      %v5339 = vadd.f32 %v5290, %v5338
      %v5340 = vpop.f32.mrf.mxu0
      %5341 = vdwg.mxu0
      %5342 = vmatprep.subr.bf16.mxu0 0
      %5343 = vmatpush1.bf16.msra.mxu0 %v1920
      %5344 = vmatprep.subr.bf16.mxu0 0
      %5345 = vmatpush1.bf16.msra.mxu0 %v1919
      %5346 = vmatprep.subr.bf16.mxu0 0
      %5347 = vmatpush1.bf16.msra.mxu0 %v1918
      %5348 = vmatprep.subr.bf16.mxu0 0
      %5349 = vmatpush1.bf16.msra.mxu0 %v1917
      %5350 = vmatprep.subr.bf16.mxu0 0
      %5351 = vmatpush1.bf16.msra.mxu0 %v1916
      %5352 = vmatprep.subr.bf16.mxu0 0
      %5353 = vmatpush1.bf16.msra.mxu0 %v1915
      %5354 = vmatprep.subr.bf16.mxu0 0
      %5355 = vmatpush1.bf16.msra.mxu0 %v1914
      %5356 = vmatprep.subr.bf16.mxu0 0
      %5357 = vmatpush1.bf16.msra.mxu0 %v1913
      %5358 = vmatprep.subr.bf16.mxu0 0
      %5359 = vmatpush2.bf16.msra.mxu0 %v1928
      %5360 = vmatprep.subr.bf16.mxu0 0
      %5361 = vmatpush2.bf16.msra.mxu0 %v1927
      %5362 = vmatprep.subr.bf16.mxu0 0
      %5363 = vmatpush2.bf16.msra.mxu0 %v1926
      %5364 = vmatprep.subr.bf16.mxu0 0
      %5365 = vmatpush2.bf16.msra.mxu0 %v1925
      %5366 = vmatprep.subr.bf16.mxu0 0
      %5367 = vmatpush2.bf16.msra.mxu0 %v1924
      %5368 = vmatprep.subr.bf16.mxu0 0
      %5369 = vmatpush2.bf16.msra.mxu0 %v1923
      %5370 = vmatprep.subr.bf16.mxu0 0
      %5371 = vmatpush2.bf16.msra.mxu0 %v1922
      %5372 = vmatprep.subr.bf16.mxu0 0
      %5373 = vmatpush2.bf16.msra.mxu0 %v1921
      %5374 = vmatprep.mubr.bf16.mxu0 %v4961
      %5375 = vmatmul.mubr.bf16.gmra.mxu0 %v4960
      %v5376 = vpop.f32.mrf.mxu0
      %v5377 = vadd.f32 %v5328, %v5376
      %v5378 = vpop.f32.mrf.mxu0
      %v5379 = vpop.f32.mrf.mxu0
      %v5380 = vadd.f32 %v5331, %v5379
      %v5381 = vpop.f32.mrf.mxu0
      %5382 = vmatprep.mubr.bf16.mxu0 %v4986
      %5383 = vmatmul.mubr.bf16.gmra.mxu0 %v4985
      %v5384 = vpop.f32.mrf.mxu0
      %v5385 = vadd.f32 %v5336, %v5384
      %v5386 = vpop.f32.mrf.mxu0
      %v5387 = vpop.f32.mrf.mxu0
      %v5388 = vadd.f32 %v5339, %v5387
      %v5389 = vpop.f32.mrf.mxu0
      %5390 = vdwg.mxu0
      %5391 = vmatprep.subr.bf16.mxu0 0
      %5392 = vmatpush1.bf16.msra.mxu0 %v1936
      %5393 = vmatprep.subr.bf16.mxu0 0
      %5394 = vmatpush1.bf16.msra.mxu0 %v1935
      %5395 = vmatprep.subr.bf16.mxu0 0
      %5396 = vmatpush1.bf16.msra.mxu0 %v1934
      %5397 = vmatprep.subr.bf16.mxu0 0
      %5398 = vmatpush1.bf16.msra.mxu0 %v1933
      %5399 = vmatprep.subr.bf16.mxu0 0
      %5400 = vmatpush1.bf16.msra.mxu0 %v1932
      %5401 = vmatprep.subr.bf16.mxu0 0
      %5402 = vmatpush1.bf16.msra.mxu0 %v1931
      %5403 = vmatprep.subr.bf16.mxu0 0
      %5404 = vmatpush1.bf16.msra.mxu0 %v1930
      %5405 = vmatprep.subr.bf16.mxu0 0
      %5406 = vmatpush1.bf16.msra.mxu0 %v1929
      %5407 = vmatprep.subr.bf16.mxu0 0
      %5408 = vmatpush2.bf16.msra.mxu0 %v1944
      %5409 = vmatprep.subr.bf16.mxu0 0
      %5410 = vmatpush2.bf16.msra.mxu0 %v1943
      %5411 = vmatprep.subr.bf16.mxu0 0
      %5412 = vmatpush2.bf16.msra.mxu0 %v1942
      %5413 = vmatprep.subr.bf16.mxu0 0
      %5414 = vmatpush2.bf16.msra.mxu0 %v1941
      %5415 = vmatprep.subr.bf16.mxu0 0
      %5416 = vmatpush2.bf16.msra.mxu0 %v1940
      %5417 = vmatprep.subr.bf16.mxu0 0
      %5418 = vmatpush2.bf16.msra.mxu0 %v1939
      %5419 = vmatprep.subr.bf16.mxu0 0
      %5420 = vmatpush2.bf16.msra.mxu0 %v1938
      %5421 = vmatprep.subr.bf16.mxu0 0
      %5422 = vmatpush2.bf16.msra.mxu0 %v1937
      %5423 = vmatprep.mubr.bf16.mxu0 %v4963
      %5424 = vmatmul.mubr.bf16.gmra.mxu0 %v4962
      %v5425 = vpop.f32.mrf.mxu0
      %v5426 = vadd.f32 %v5377, %v5425
      %v5427 = vpop.f32.mrf.mxu0
      %v5428 = vpop.f32.mrf.mxu0
      %v5429 = vadd.f32 %v5380, %v5428
      %v5430 = vpop.f32.mrf.mxu0
      %5431 = vmatprep.mubr.bf16.mxu0 %v4988
      %5432 = vmatmul.mubr.bf16.gmra.mxu0 %v4987
      %v5433 = vpop.f32.mrf.mxu0
      %v5434 = vadd.f32 %v5385, %v5433
      %v5435 = vpop.f32.mrf.mxu0
      %v5436 = vpop.f32.mrf.mxu0
      %v5437 = vadd.f32 %v5388, %v5436
      %v5438 = vpop.f32.mrf.mxu0
      %5439 = vdwg.mxu0
      %5440 = vmatprep.subr.bf16.mxu0 0
      %5441 = vmatpush1.bf16.msra.mxu0 %v1952
      %5442 = vmatprep.subr.bf16.mxu0 0
      %5443 = vmatpush1.bf16.msra.mxu0 %v1951
      %5444 = vmatprep.subr.bf16.mxu0 0
      %5445 = vmatpush1.bf16.msra.mxu0 %v1950
      %5446 = vmatprep.subr.bf16.mxu0 0
      %5447 = vmatpush1.bf16.msra.mxu0 %v1949
      %5448 = vmatprep.subr.bf16.mxu0 0
      %5449 = vmatpush1.bf16.msra.mxu0 %v1948
      %5450 = vmatprep.subr.bf16.mxu0 0
      %5451 = vmatpush1.bf16.msra.mxu0 %v1947
      %5452 = vmatprep.subr.bf16.mxu0 0
      %5453 = vmatpush1.bf16.msra.mxu0 %v1946
      %5454 = vmatprep.subr.bf16.mxu0 0
      %5455 = vmatpush1.bf16.msra.mxu0 %v1945
      %5456 = vmatprep.subr.bf16.mxu0 0
      %5457 = vmatpush2.bf16.msra.mxu0 %v1960
      %5458 = vmatprep.subr.bf16.mxu0 0
      %5459 = vmatpush2.bf16.msra.mxu0 %v1959
      %5460 = vmatprep.subr.bf16.mxu0 0
      %5461 = vmatpush2.bf16.msra.mxu0 %v1958
      %5462 = vmatprep.subr.bf16.mxu0 0
      %5463 = vmatpush2.bf16.msra.mxu0 %v1957
      %5464 = vmatprep.subr.bf16.mxu0 0
      %5465 = vmatpush2.bf16.msra.mxu0 %v1956
      %5466 = vmatprep.subr.bf16.mxu0 0
      %5467 = vmatpush2.bf16.msra.mxu0 %v1955
      %5468 = vmatprep.subr.bf16.mxu0 0
      %5469 = vmatpush2.bf16.msra.mxu0 %v1954
      %5470 = vmatprep.subr.bf16.mxu0 0
      %5471 = vmatpush2.bf16.msra.mxu0 %v1953
      %5472 = vmatprep.mubr.bf16.mxu0 %v4965
      %5473 = vmatmul.mubr.bf16.gmra.mxu0 %v4964
      %v5474 = vpop.f32.mrf.mxu0
      %v5475 = vadd.f32 %v5426, %v5474
      %v5476 = vpop.f32.mrf.mxu0
      %v5477 = vpop.f32.mrf.mxu0
      %v5478 = vadd.f32 %v5429, %v5477
      %v5479 = vpop.f32.mrf.mxu0
      %5480 = vmatprep.mubr.bf16.mxu0 %v4990
      %5481 = vmatmul.mubr.bf16.gmra.mxu0 %v4989
      %v5482 = vpop.f32.mrf.mxu0
      %v5483 = vadd.f32 %v5434, %v5482
      %v5484 = vpop.f32.mrf.mxu0
      %v5485 = vpop.f32.mrf.mxu0
      %v5486 = vadd.f32 %v5437, %v5485
      %v5487 = vpop.f32.mrf.mxu0
      %5488 = vdwg.mxu0
      %5489 = vmatprep.subr.bf16.mxu0 0
      %5490 = vmatpush1.bf16.msra.mxu0 %v1968
      %5491 = vmatprep.subr.bf16.mxu0 0
      %5492 = vmatpush1.bf16.msra.mxu0 %v1967
      %5493 = vmatprep.subr.bf16.mxu0 0
      %5494 = vmatpush1.bf16.msra.mxu0 %v1966
      %5495 = vmatprep.subr.bf16.mxu0 0
      %5496 = vmatpush1.bf16.msra.mxu0 %v1965
      %5497 = vmatprep.subr.bf16.mxu0 0
      %5498 = vmatpush1.bf16.msra.mxu0 %v1964
      %5499 = vmatprep.subr.bf16.mxu0 0
      %5500 = vmatpush1.bf16.msra.mxu0 %v1963
      %5501 = vmatprep.subr.bf16.mxu0 0
      %5502 = vmatpush1.bf16.msra.mxu0 %v1962
      %5503 = vmatprep.subr.bf16.mxu0 0
      %5504 = vmatpush1.bf16.msra.mxu0 %v1961
      %5505 = vmatprep.subr.bf16.mxu0 0
      %5506 = vmatpush2.bf16.msra.mxu0 %v1976
      %5507 = vmatprep.subr.bf16.mxu0 0
      %5508 = vmatpush2.bf16.msra.mxu0 %v1975
      %5509 = vmatprep.subr.bf16.mxu0 0
      %5510 = vmatpush2.bf16.msra.mxu0 %v1974
      %5511 = vmatprep.subr.bf16.mxu0 0
      %5512 = vmatpush2.bf16.msra.mxu0 %v1973
      %5513 = vmatprep.subr.bf16.mxu0 0
      %5514 = vmatpush2.bf16.msra.mxu0 %v1972
      %5515 = vmatprep.subr.bf16.mxu0 0
      %5516 = vmatpush2.bf16.msra.mxu0 %v1971
      %5517 = vmatprep.subr.bf16.mxu0 0
      %5518 = vmatpush2.bf16.msra.mxu0 %v1970
      %5519 = vmatprep.subr.bf16.mxu0 0
      %5520 = vmatpush2.bf16.msra.mxu0 %v1969
      %5521 = vmatprep.mubr.bf16.mxu0 %v4967
      %5522 = vmatmul.mubr.bf16.gmra.mxu0 %v4966
      %v5523 = vpop.f32.mrf.mxu0
      %v5524 = vadd.f32 %v5475, %v5523
      %v5525 = vpop.f32.mrf.mxu0
      %v5526 = vpop.f32.mrf.mxu0
      %v5527 = vadd.f32 %v5478, %v5526
      %v5528 = vpop.f32.mrf.mxu0
      %5529 = vmatprep.mubr.bf16.mxu0 %v4992
      %5530 = vmatmul.mubr.bf16.gmra.mxu0 %v4991
      %v5531 = vpop.f32.mrf.mxu0
      %v5532 = vadd.f32 %v5483, %v5531
      %v5533 = vpop.f32.mrf.mxu0
      %v5534 = vpop.f32.mrf.mxu0
      %v5535 = vadd.f32 %v5486, %v5534
      %v5536 = vpop.f32.mrf.mxu0
      %5537 = vdwg.mxu0
      %5538 = vmatprep.subr.bf16.mxu0 0
      %5539 = vmatpush1.bf16.msra.mxu0 %v1984
      %5540 = vmatprep.subr.bf16.mxu0 0
      %5541 = vmatpush1.bf16.msra.mxu0 %v1983
      %5542 = vmatprep.subr.bf16.mxu0 0
      %5543 = vmatpush1.bf16.msra.mxu0 %v1982
      %5544 = vmatprep.subr.bf16.mxu0 0
      %5545 = vmatpush1.bf16.msra.mxu0 %v1981
      %5546 = vmatprep.subr.bf16.mxu0 0
      %5547 = vmatpush1.bf16.msra.mxu0 %v1980
      %5548 = vmatprep.subr.bf16.mxu0 0
      %5549 = vmatpush1.bf16.msra.mxu0 %v1979
      %5550 = vmatprep.subr.bf16.mxu0 0
      %5551 = vmatpush1.bf16.msra.mxu0 %v1978
      %5552 = vmatprep.subr.bf16.mxu0 0
      %5553 = vmatpush1.bf16.msra.mxu0 %v1977
      %5554 = vmatprep.subr.bf16.mxu0 0
      %5555 = vmatpush2.bf16.msra.mxu0 %v1992
      %5556 = vmatprep.subr.bf16.mxu0 0
      %5557 = vmatpush2.bf16.msra.mxu0 %v1991
      %5558 = vmatprep.subr.bf16.mxu0 0
      %5559 = vmatpush2.bf16.msra.mxu0 %v1990
      %5560 = vmatprep.subr.bf16.mxu0 0
      %5561 = vmatpush2.bf16.msra.mxu0 %v1989
      %5562 = vmatprep.subr.bf16.mxu0 0
      %5563 = vmatpush2.bf16.msra.mxu0 %v1988
      %5564 = vmatprep.subr.bf16.mxu0 0
      %5565 = vmatpush2.bf16.msra.mxu0 %v1987
      %5566 = vmatprep.subr.bf16.mxu0 0
      %5567 = vmatpush2.bf16.msra.mxu0 %v1986
      %5568 = vmatprep.subr.bf16.mxu0 0
      %5569 = vmatpush2.bf16.msra.mxu0 %v1985
      %5570 = vmatprep.mubr.bf16.mxu0 %v4969
      %5571 = vmatmul.mubr.bf16.gmra.mxu0 %v4968
      %v5572 = vpop.f32.mrf.mxu0
      %v5573 = vadd.f32 %v5524, %v5572
      %v5574 = vpop.f32.mrf.mxu0
      %v5575 = vpop.f32.mrf.mxu0
      %v5576 = vadd.f32 %v5527, %v5575
      %v5577 = vpop.f32.mrf.mxu0
      %5578 = vmatprep.mubr.bf16.mxu0 %v4994
      %5579 = vmatmul.mubr.bf16.gmra.mxu0 %v4993
      %v5580 = vpop.f32.mrf.mxu0
      %v5581 = vadd.f32 %v5532, %v5580
      %v5582 = vpop.f32.mrf.mxu0
      %v5583 = vpop.f32.mrf.mxu0
      %v5584 = vadd.f32 %v5535, %v5583
      %v5585 = vpop.f32.mrf.mxu0
      %5586 = vdwg.mxu0
      %5587 = vmatprep.subr.bf16.mxu0 0
      %5588 = vmatpush1.bf16.msra.mxu0 %v2000
      %5589 = vmatprep.subr.bf16.mxu0 0
      %5590 = vmatpush1.bf16.msra.mxu0 %v1999
      %5591 = vmatprep.subr.bf16.mxu0 0
      %5592 = vmatpush1.bf16.msra.mxu0 %v1998
      %5593 = vmatprep.subr.bf16.mxu0 0
      %5594 = vmatpush1.bf16.msra.mxu0 %v1997
      %5595 = vmatprep.subr.bf16.mxu0 0
      %5596 = vmatpush1.bf16.msra.mxu0 %v1996
      %5597 = vmatprep.subr.bf16.mxu0 0
      %5598 = vmatpush1.bf16.msra.mxu0 %v1995
      %5599 = vmatprep.subr.bf16.mxu0 0
      %5600 = vmatpush1.bf16.msra.mxu0 %v1994
      %5601 = vmatprep.subr.bf16.mxu0 0
      %5602 = vmatpush1.bf16.msra.mxu0 %v1993
      %5603 = vmatprep.subr.bf16.mxu0 0
      %5604 = vmatpush2.bf16.msra.mxu0 %v2008
      %5605 = vmatprep.subr.bf16.mxu0 0
      %5606 = vmatpush2.bf16.msra.mxu0 %v2007
      %5607 = vmatprep.subr.bf16.mxu0 0
      %5608 = vmatpush2.bf16.msra.mxu0 %v2006
      %5609 = vmatprep.subr.bf16.mxu0 0
      %5610 = vmatpush2.bf16.msra.mxu0 %v2005
      %5611 = vmatprep.subr.bf16.mxu0 0
      %5612 = vmatpush2.bf16.msra.mxu0 %v2004
      %5613 = vmatprep.subr.bf16.mxu0 0
      %5614 = vmatpush2.bf16.msra.mxu0 %v2003
      %5615 = vmatprep.subr.bf16.mxu0 0
      %5616 = vmatpush2.bf16.msra.mxu0 %v2002
      %5617 = vmatprep.subr.bf16.mxu0 0
      %5618 = vmatpush2.bf16.msra.mxu0 %v2001
      %5619 = vmatprep.mubr.bf16.mxu0 %v4971
      %5620 = vmatmul.mubr.bf16.gmra.mxu0 %v4970
      %v5621 = vpop.f32.mrf.mxu0
      %v5622 = vadd.f32 %v5573, %v5621
      %v5623 = vpop.f32.mrf.mxu0
      %v5624 = vpop.f32.mrf.mxu0
      %v5625 = vadd.f32 %v5576, %v5624
      %v5626 = vpop.f32.mrf.mxu0
      %5627 = vmatprep.mubr.bf16.mxu0 %v4996
      %5628 = vmatmul.mubr.bf16.gmra.mxu0 %v4995
      %v5629 = vpop.f32.mrf.mxu0
      %v5630 = vadd.f32 %v5581, %v5629
      %v5631 = vpop.f32.mrf.mxu0
      %v5632 = vpop.f32.mrf.mxu0
      %v5633 = vadd.f32 %v5584, %v5632
      %v5634 = vpop.f32.mrf.mxu0
      %5635 = vdwg.mxu0
      %5636 = vmatprep.subr.bf16.mxu0 0
      %5637 = vmatpush1.bf16.msra.mxu0 %v2016
      %5638 = vmatprep.subr.bf16.mxu0 0
      %5639 = vmatpush1.bf16.msra.mxu0 %v2015
      %5640 = vmatprep.subr.bf16.mxu0 0
      %5641 = vmatpush1.bf16.msra.mxu0 %v2014
      %5642 = vmatprep.subr.bf16.mxu0 0
      %5643 = vmatpush1.bf16.msra.mxu0 %v2013
      %5644 = vmatprep.subr.bf16.mxu0 0
      %5645 = vmatpush1.bf16.msra.mxu0 %v2012
      %5646 = vmatprep.subr.bf16.mxu0 0
      %5647 = vmatpush1.bf16.msra.mxu0 %v2011
      %5648 = vmatprep.subr.bf16.mxu0 0
      %5649 = vmatpush1.bf16.msra.mxu0 %v2010
      %5650 = vmatprep.subr.bf16.mxu0 0
      %5651 = vmatpush1.bf16.msra.mxu0 %v2009
      %5652 = vmatprep.subr.bf16.mxu0 0
      %5653 = vmatpush2.bf16.msra.mxu0 0
      %5654 = vmatprep.subr.bf16.mxu0 0
      %5655 = vmatpush2.bf16.msra.mxu0 0
      %5656 = vmatprep.subr.bf16.mxu0 0
      %5657 = vmatpush2.bf16.msra.mxu0 0
      %5658 = vmatprep.subr.bf16.mxu0 0
      %5659 = vmatpush2.bf16.msra.mxu0 0
      %5660 = vmatprep.subr.bf16.mxu0 0
      %5661 = vmatpush2.bf16.msra.mxu0 0
      %5662 = vmatprep.subr.bf16.mxu0 0
      %5663 = vmatpush2.bf16.msra.mxu0 0
      %5664 = vmatprep.subr.bf16.mxu0 0
      %5665 = vmatpush2.bf16.msra.mxu0 0
      %5666 = vmatprep.subr.bf16.mxu0 0
      %5667 = vmatpush2.bf16.msra.mxu0 0
      %5668 = vmatprep.mubr.bf16.mxu0 0
      %5669 = vmatmul.mubr.bf16.gmra.mxu0 %v4972
      %v5670 = vpop.f32.mrf.mxu0
      %v5671 = vadd.f32 %v5622, %v5670
      %v5672 = vpop.f32.mrf.mxu0
      %v5673 = vpop.f32.mrf.mxu0
      %v5674 = vadd.f32 %v5625, %v5673
      %v5675 = vpop.f32.mrf.mxu0
      %5676 = vmatprep.mubr.bf16.mxu0 0
      %5677 = vmatmul.mubr.bf16.gmra.mxu0 %v4997
      %v5678 = vpop.f32.mrf.mxu0
      %v5679 = vadd.f32 %v5630, %v5678
      %v5680 = vpop.f32.mrf.mxu0
      %v5681 = vpop.f32.mrf.mxu0
      %v5682 = vadd.f32 %v5633, %v5681
      %v5683 = vpop.f32.mrf.mxu0
      %5684 = vdwg.mxu0
      %v5685 = vmax.f32 %v4740, %v5671
      %v5686 = vmax.f32 %v4741, %v5674
      %v5687 = vmax.f32 %v4742, %v5679
      %v5688 = vmax.f32 %v4743, %v5682
      %v5689 = vld [vmem:[%s5] sm:$0x1]
      %v5691 = vlaneseq
      %v5692 = vshrl.u32 %v5691, 7
      %v5693 = vsub.s32 0, %v5692
      %v5694 = vrot.slane %v5689, %v5693
      %v5696 = vadd.f32 %v5685, %v5694
      %v5697 = vadd.f32 %v5686, %v5694
      %v5698 = vadd.f32 %v5687, %v5694
      %v5699 = vadd.f32 %v5688, %v5694
      %v5700 = vmax.f32 %v5696, 0.0
      %v5701 = vmax.f32 %v5697, 0.0
      %v5702 = vmax.f32 %v5698, 0.0
      %v5703 = vmax.f32 %v5699, 0.0
      %v5704 = vpack.c.bf16 %v5701, %v5700
      %v5705 = vpack.c.bf16 %v5703, %v5702
      %v5708 = vunpack.c.l.b16 %v5704
      %v5709 = vunpack.c.h.b16 %v5704
      %v5710 = vunpack.c.l.b16 %v5705
      %v5711 = vunpack.c.h.b16 %v5705
      %v5712 = vpack.c.b16 %v5708, %v5708
      %v5713 = vpack.c.b16 %v5709, %v5709
      %v5714 = vpack.c.b16 %v5710, %v5710
      %v5715 = vpack.c.b16 %v5711, %v5711
      %5720 = vst [vmem:[%s311] sm:$0xf] %v5712
      %5721 = vst [vmem:[%s311 + $0x4] sm:$0xf] %v5713
      %5722 = vst [vmem:[%s311 + $0x8] sm:$0xf] %v5714
      %vm5723 = vcmask 1040384
      %vm5724 = vsmask.f32 256
      %vm5725 = vmand %vm5723, %vm5724
      %v5726 = vld [vmem:[%s311 + $0xc] sm:$0x1]
      %v5727 = vsel %vm5725, %v5715, %v5726
      %5728 = vst [vmem:[%s311 + $0xc] sm:$0x1] %v5727
      %p5729 = scmp.lt.s32.totalorder %s17, 1
      %s5730 = scalar_select %p5729, %s17, 1
      %s5731 = smul.addr %s5730, 4
      %s5732 = smul.addr %s5731, 4
      %s5733 = scalar_lea.vmem %s6, %s5732
      // Predicated region
      $region45: #{lenet_forward.4} parent=43 // pred_check
        %p5734 = pneg %p181
      $region46: #{lenet_forward.4} parent=43 // pred_check_branch
        %5736 = sbr.rel (%p5734) target = $region48
      $region47: #{lenet_forward.4} parent=43 // pred_region
        _
      $region48: #{lenet_forward.4} parent=43 // pred_fallthru
        _
    $region44: #{lenet_forward.4} parent=5 // pred_fallthru
      _
    %p5737 = scmp.le.s32.totalorder 2, %s12
    // Predicated region
    $region49: #{lenet_forward.4} parent=5 // pred_check
      %p5738 = pneg %p5737
    $region50: #{lenet_forward.4} parent=5 // pred_check_branch
      %5740 = sbr.rel (%p5738) target = $region52
    $region51: #{lenet_forward.4} parent=5 // pred_region
      %s5741 = ssub.s32 %s12, 2
      // Predicated region
      $region53: #{lenet_forward.4} parent=51 // pred_check
        %p5742 = pneg %p187
      $region54: #{lenet_forward.4} parent=51 // pred_check_branch
        %5744 = sbr.rel (%p5742) target = $region56
      $region55: #{lenet_forward.4} parent=51 // pred_region
        %p5745 = scmp.lt.s32.totalorder %s18, 1
        %s5746 = scalar_select %p5745, %s18, 1
        %s5747 = smul.addr %s5746, 4
        %s5748 = smul.addr %s5747, 4
        %s5749 = scalar_lea.vmem %s6, %s5748
      $region56: #{lenet_forward.4} parent=51 // pred_fallthru
        _
    $region52: #{lenet_forward.4} parent=5 // pred_fallthru
      _
  $region6: #{lenet_forward.4} parent=0 // loop_footer
    %s16 = sadd.s32 1, %s12
  $region7: #{lenet_forward.4} parent=0 // loop_footer_branch
    %11 = sbr.rel target = $region3
  $region8: #{lenet_forward.4} parent=0 // loop_exit
    _

</llo_original>
